<compile_context>
chip_gen: v5e
topology: v5e:2x2
jax: 0.10.0
libtpu: 0.0.40
codegen_flags: <defaults>
</compile_context>

<pallas_src>
import jax
import jax.numpy as jnp
from jax.experimental import pallas as pl
from jax.experimental.pallas import tpu as pltpu


# ----------------------------- in-kernel helpers ----------------------------

def _pool_vertical(v, n_rows, row_width):
    """Vertical 2x max-pool of a flattened (n_rows*row_width, C) image.

    Uses a layout-preserving sublane-split reshape (row_width % 8 == 0,
    n_rows even) and a single jnp.maximum -> ((n_rows//2)*row_width, C).
    """
    half_r = n_rows // 2
    c = v.shape[-1]
    v3 = v.reshape(half_r, 2 * row_width, c)
    vert = jnp.maximum(v3[:, :row_width, :], v3[:, row_width:, :])
    return vert.reshape(half_r * row_width, c)


# ----------------------------- fused conv stack ------------------------------

def conv_chain(x_flat, w_a, b_a, w_b, b_b, *, height, width):
    """[conv1∘conv2] -> pool1 -> [conv4∘conv5∘BN] -> pool2, one image per grid step.

    x_flat: (N, H*W, 5*Cin) f32, kx-prepacked row-major flattened image.
    w_a:    (5, 5*Cin, C_a) bf16   (per-ky slabs of the fused 5x5 conv A)
    w_b:    (25, C_a, C_b) bf16    (per-(ky,kx) taps of the fused 5x5 conv B)
    Returns (N, out_h*out_w, C_b) bf16 compacted features in (h, w, c) order.
    """
    n, rows_in, kcin = x_flat.shape
    assert rows_in == height * width
    # Geometry required for aligned slices / layout-preserving reshapes and
    # for garbage columns to stay confined to discarded positions.
    assert width % 16 == 0 and height % 4 == 0 and width >= 16 and height >= 16

    c_a = w_a.shape[-1]
    c_b = w_b.shape[-1]

    rows1 = height - 4                      # conv A output height
    out_rows_a = rows1 * width              # conv A output rows (flattened)
    half_w = width // 2                     # physical width after pool1
    h3 = rows1 // 2                         # pool1 output height
    rows_p1 = h3 * half_w                   # pool1 output rows (flattened)
    rows_b_h = h3 - 4                       # conv B output height
    out_rows_b = rows_b_h * half_w          # conv B output rows (flattened)
    out_h = rows_b_h // 2                   # final output height
    out_w_phys = half_w // 2                # physical final width (incl. garbage)
    out_w = ((width - 4) // 2 - 4) // 2     # valid final width
    out_rows = out_h * out_w
    hp1_rows = 2 * rows_p1 + 8              # + 8 zero rows for the kx-shifted loads
    hp2_rows = (rows_b_h // 2) * half_w

    def kernel(x_ref, wa_ref, ba_ref, wb_ref, bb_ref, o_ref, hp1_ref, hp2_ref):
        # ---- fused conv1∘conv2 (5x5): kx prepacked in lanes, per-ky matmuls.
        xa = x_ref[0].astype(jnp.bfloat16)                      # (H*W, 5*Cin)
        acc_a = None
        for ky in range(5):
            tap = xa[ky * width: ky * width + out_rows_a, :]    # aligned view
            y = jnp.dot(tap, wa_ref[ky], preferred_element_type=jnp.float32)
            acc_a = y if acc_a is None else acc_a + y
        a1 = acc_a + ba_ref[...]                                # (out_rows_a, C_a) f32

        # ---- max-pool 1, vertical pass (vectorised), single scratch store.
        vert1 = _pool_vertical(a1, rows1, width)                # (2*rows_p1, C_a)
        hp1_ref[pl.ds(0, 2 * rows_p1), :] = vert1
        # Zero tail rows: the kx-shifted strided loads below read up to 8 rows
        # past the valid range; those values only reach garbage output columns.
        hp1_ref[pl.ds(2 * rows_p1, 8), :] = jnp.zeros((8, c_a), jnp.float32)

        # ---- fused conv4∘conv5(+BN) (5x5): horizontal pool fused with the
        #      per-kx shift via strided loads; per-tap f32 accumulation.
        acc_b = None
        for kx in range(5):
            e = hp1_ref[pl.ds(2 * kx, rows_p1, 2), :]
            o = hp1_ref[pl.ds(2 * kx + 1, rows_p1, 2), :]
            p1k = jnp.maximum(e, o).astype(jnp.bfloat16)        # pool1 shifted by kx
            for ky in range(5):
                tap = p1k[ky * half_w: ky * half_w + out_rows_b, :]   # aligned view
                y = jnp.dot(tap, wb_ref[ky * 5 + kx],
                            preferred_element_type=jnp.float32)
                acc_b = y if acc_b is None else acc_b + y
        a2 = acc_b + bb_ref[...]                                # (out_rows_b, C_b) f32

        # ---- max-pool 2 + compaction of garbage width columns.
        vert2 = _pool_vertical(a2, rows_b_h, half_w)            # (hp2_rows, C_b)
        hp2_ref[...] = vert2
        n2 = (rows_b_h // 2) * out_w_phys
        p2 = jnp.maximum(hp2_ref[pl.ds(0, n2, 2), :],
                         hp2_ref[pl.ds(1, n2, 2), :])           # (n2, C_b)
        comp = jnp.concatenate(
            [p2[h * out_w_phys: h * out_w_phys + out_w, :] for h in range(out_h)],
            axis=0)                                             # (out_rows, C_b)
        o_ref[0] = comp.astype(o_ref.dtype)

    return pl.pallas_call(
        kernel,
        out_shape=jax.ShapeDtypeStruct((n, out_rows, c_b), jnp.bfloat16),
        grid=(n,),
        in_specs=[
            pl.BlockSpec((1, rows_in, kcin), lambda i: (i, 0, 0)),
            pl.BlockSpec(w_a.shape, lambda i: (0, 0, 0)),
            pl.BlockSpec(b_a.shape, lambda i: (0, 0)),
            pl.BlockSpec(w_b.shape, lambda i: (0, 0, 0)),
            pl.BlockSpec(b_b.shape, lambda i: (0, 0)),
        ],
        out_specs=pl.BlockSpec((1, out_rows, c_b), lambda i: (i, 0, 0)),
        scratch_shapes=[
            pltpu.VMEM((hp1_rows, c_a), jnp.float32),   # pool1 vertical-max scratch
            pltpu.VMEM((hp2_rows, c_b), jnp.float32),   # pool2 vertical-max scratch
        ],
        compiler_params=pltpu.CompilerParams(
            dimension_semantics=("parallel",),
            vmem_limit_bytes=32 << 20),
    )(x_flat, w_a, b_a, w_b, b_b)


# ----------------------------- fused fc1/fc2/fc3 -----------------------------

def _pick_k_tile(k_total, n_cols, itemsize, budget_bytes):
    """Largest multiple-of-128 divisor of k_total whose weight tile fits budget."""
    if k_total % 128 != 0:
        # TODO(synk): pad K to a multiple of 128 (prep-side) for the 224x224
        # config so fc1 can be K-tiled; the 32x32 demo fits in a single tile.
        return k_total
    budget_rows = max(128, budget_bytes // (n_cols * itemsize))
    n128 = k_total // 128
    best = 128
    for d in range(1, n128 + 1):
        if n128 % d == 0 and d * 128 <= budget_rows:
            best = d * 128
    return best


def fc_fused(x, w1, b1, w2, b2, w3, b3):
    """fc1 + ReLU + fc2 + ReLU + fc3 in one pallas_call (fc1 K-tiled)."""
    n, k_total = x.shape
    m1 = w1.shape[-1]
    n_classes = w3.shape[-1]
    k_tile = _pick_k_tile(k_total, m1, w1.dtype.itemsize, budget_bytes=4 << 20)
    k_steps = k_total // k_tile

    def kernel(x_ref, w1_ref, b1_ref, w2_ref, b2_ref, w3_ref, b3_ref,
               o_ref, acc_ref):
        k = pl.program_id(0)

        @pl.when(k == 0)
        def _init():
            acc_ref[...] = jnp.zeros_like(acc_ref)

        # x is already bf16 (emitted by the conv kernel) -> no per-step cast.
        acc_ref[...] += jnp.dot(x_ref[...], w1_ref[...],
                                preferred_element_type=jnp.float32)

        @pl.when(k == pl.num_programs(0) - 1)
        def _finalize():
            h = jnp.maximum(acc_ref[...] + b1_ref[...], 0.0)
            h = jnp.dot(h.astype(jnp.bfloat16), w2_ref[...],
                        preferred_element_type=jnp.float32) + b2_ref[...]
            h = jnp.maximum(h, 0.0)
            h = jnp.dot(h.astype(jnp.bfloat16), w3_ref[...],
                        preferred_element_type=jnp.float32) + b3_ref[...]
            o_ref[...] = h

    return pl.pallas_call(
        kernel,
        out_shape=jax.ShapeDtypeStruct((n, n_classes), jnp.float32),
        grid=(k_steps,),
        in_specs=[
            pl.BlockSpec((n, k_tile), lambda k: (0, k)),
            pl.BlockSpec((k_tile, m1), lambda k: (k, 0)),
            pl.BlockSpec(b1.shape, lambda k: (0, 0)),
            pl.BlockSpec(w2.shape, lambda k: (0, 0)),
            pl.BlockSpec(b2.shape, lambda k: (0, 0)),
            pl.BlockSpec(w3.shape, lambda k: (0, 0)),
            pl.BlockSpec(b3.shape, lambda k: (0, 0)),
        ],
        out_specs=pl.BlockSpec((n, n_classes), lambda k: (0, 0)),
        scratch_shapes=[pltpu.VMEM((n, m1), jnp.float32)],
        compiler_params=pltpu.CompilerParams(
            dimension_semantics=("arbitrary",),
            vmem_limit_bytes=32 << 20),
    )(x, w1, b1, w2, b2, w3, b3)


# ----------------------------- model forward --------------------------------

def cnn_forward(x_nchw, prep):
    n, c, height, width = x_nchw.shape
    # One-time, tiny XLA-side prep: NHWC, pad width by 4 zeros, pre-pack the 5
    # kx taps into lanes (last dim = 5*Cin), flatten rows as h*W + w.
    x = jnp.transpose(x_nchw, (0, 2, 3, 1))
    xp = jnp.pad(x, ((0, 0), (0, 0), (0, 4), (0, 0)))
    x_kx = jnp.concatenate([xp[:, :, kx:kx + width, :] for kx in range(5)], axis=-1)
    x_flat = x_kx.reshape(n, height * width, 5 * c)

    feats = conv_chain(x_flat, prep["wA"], prep["bA"], prep["wB"], prep["bB"],
                       height=height, width=width)     # (N, out_h*out_w, 64) bf16
    feats = feats.reshape(n, -1)
    return fc_fused(feats, prep["fc1_w"], prep["fc1_b"],
                    prep["fc2_w"], prep["fc2_b"],
                    prep["fc3_w"], prep["fc3_b"])


# ----------------------------- parameter prep --------------------------------

def _compose_convs(w_first, b_first, w_second, b_second):
    """Compose two stacked 3x3 VALID convs (no nonlinearity between) -> one 5x5."""
    cin = w_first.shape[2]
    cout = w_second.shape[3]
    w_eff = jnp.zeros((5, 5, cin, cout), jnp.float32)
    for a in range(3):
        for b in range(3):
            for p in range(3):
                for q in range(3):
                    w_eff = w_eff.at[a + p, b + q].add(w_first[a, b] @ w_second[p, q])
    b_eff = jnp.einsum("m,pqmo->o", b_first.reshape(-1), w_second) + b_second.reshape(-1)
    return w_eff, b_eff.reshape(1, -1)


def prepare_params(params, height, width):
    """One-time (outside the hot path) conv fusion / BN fold / weight repacking."""
    eps = 1e-5
    scale = params["bn_gamma"] / jnp.sqrt(params["bn_var"] + eps)
    shift = params["bn_beta"] - params["bn_mean"] * scale

    # conv1∘conv2 and conv4∘conv5 as exact 5x5 compositions; BN folded into the 2nd.
    w_a, b_a = _compose_convs(params["w1"], params["b1"], params["w2"], params["b2"])
    w_b, b_b = _compose_convs(params["w4"], params["b4"], params["w5"], params["b5"])
    w_b = w_b * scale
    b_b = b_b * scale[None, :] + shift[None, :]

    prep = {
        # (5, 5*Cin, C_a): row index inside a ky-slab = kx*Cin + cin (matches the
        # wrapper's kx-prepacked input lanes).
        "wA": w_a.reshape(5, 5 * w_a.shape[2], w_a.shape[3]).astype(jnp.bfloat16),
        "bA": b_a,
        # (25, C_a, C_b): leading index = ky*5 + kx.
        "wB": w_b.reshape(25, w_b.shape[2], w_b.shape[3]).astype(jnp.bfloat16),
        "bB": b_b,
    }

    # Conv-stack output geometry (compacted: valid columns only).
    out_h = (((height - 4) // 2) - 4) // 2
    out_w = (((width - 4) // 2) - 4) // 2
    c_out = params["w5"].shape[-1]

    # torch flattens NCHW (c, h, w); our compacted feats are (h, w, c) -> pure
    # row permutation of fc1's weight, no zero padding.
    fc1_w = params["fc1_w"].reshape(c_out, out_h, out_w, -1).transpose(1, 2, 0, 3)
    prep["fc1_w"] = fc1_w.reshape(out_h * out_w * c_out, -1).astype(jnp.bfloat16)
    prep["fc1_b"] = params["fc1_b"]
    prep["fc2_w"] = params["fc2_w"].astype(jnp.bfloat16)
    prep["fc2_b"] = params["fc2_b"]
    prep["fc3_w"] = params["fc3_w"].astype(jnp.bfloat16)
    prep["fc3_b"] = params["fc3_b"]
    return prep


def init_params(key, num_classes, height, width):
    ks = jax.random.split(key, 18)

    def conv_init(kw, kb, cin, cout):
        w = jax.random.normal(kw, (3, 3, cin, cout), jnp.float32) / jnp.sqrt(9.0 * cin)
        b = 0.01 * jax.random.normal(kb, (1, cout), jnp.float32)
        return w, b

    def fc_init(kw, kb, kin, kout):
        w = jax.random.normal(kw, (kin, kout), jnp.float32) / jnp.sqrt(1.0 * kin)
        b = 0.01 * jax.random.normal(kb, (1, kout), jnp.float32)
        return w, b

    p = {}
    p["w1"], p["b1"] = conv_init(ks[0], ks[1], 3, 32)
    p["w2"], p["b2"] = conv_init(ks[2], ks[3], 32, 32)
    p["w4"], p["b4"] = conv_init(ks[4], ks[5], 32, 64)
    p["w5"], p["b5"] = conv_init(ks[6], ks[7], 64, 64)

    # BatchNorm2d(64) inference-mode stats (non-trivial so the fold is exercised).
    p["bn_gamma"] = 1.0 + 0.1 * jax.random.normal(ks[8], (64,), jnp.float32)
    p["bn_beta"] = 0.1 * jax.random.normal(ks[9], (64,), jnp.float32)
    p["bn_mean"] = 0.1 * jax.random.normal(ks[10], (64,), jnp.float32)
    p["bn_var"] = jax.random.uniform(ks[11], (64,), jnp.float32, 0.5, 1.5)

    # fc1 in_features follows torch's 64*Hout*Wout formula
    # (179776 = 64*53*53 at 224x224; 64*5*5 = 1600 for the 32x32 demo input).
    out_h = (((height - 4) // 2) - 4) // 2
    out_w = (((width - 4) // 2) - 4) // 2
    fc1_in = 64 * out_h * out_w
    p["fc1_w"], p["fc1_b"] = fc_init(ks[12], ks[13], fc1_in, 256)
    p["fc2_w"], p["fc2_b"] = fc_init(ks[14], ks[15], 256, 128)
    p["fc3_w"], p["fc3_b"] = fc_init(ks[16], ks[17], 128, num_classes)
    return p


# ----------------------------- pure-JAX reference ----------------------------

def reference_forward(x_nchw, params):
    x = jnp.transpose(x_nchw, (0, 2, 3, 1))

    def conv(x, w, b):
        y = jax.lax.conv_general_dilated(
            x, w, (1, 1), "VALID", dimension_numbers=("NHWC", "HWIO", "NHWC"))
        return y + b.reshape(1, 1, 1, -1)

    def pool(x):
        return jax.lax.reduce_window(x, -jnp.inf, jax.lax.max,
                                     (1, 2, 2, 1), (1, 2, 2, 1), "VALID")

    x = conv(x, params["w1"], params["b1"])
    x = conv(x, params["w2"], params["b2"])
    x = pool(x)
    x = conv(x, params["w4"], params["b4"])
    x = conv(x, params["w5"], params["b5"])
    eps = 1e-5
    scale = params["bn_gamma"] / jnp.sqrt(params["bn_var"] + eps)
    shift = params["bn_beta"] - params["bn_mean"] * scale
    x = x * scale + shift
    x = pool(x)
    x = jnp.transpose(x, (0, 3, 1, 2)).reshape(x.shape[0], -1)   # torch NCHW flatten
    x = jnp.maximum(x @ params["fc1_w"] + params["fc1_b"], 0.0)
    x = jnp.maximum(x @ params["fc2_w"] + params["fc2_b"], 0.0)
    return x @ params["fc3_w"] + params["fc3_b"]


# ----------------------------- main ------------------------------------------

if __name__ == "__main__":
    num_classes = 10
    n, c, height, width = 2, 3, 32, 32                 # small demo input (NCHW)
    # spatial chain: 32 ->(5x5) 28 -> pool 14 ->(5x5) 10 -> pool 5

    key = jax.random.PRNGKey(0)
    kx, kp = jax.random.split(key)
    x = jax.random.normal(kx, (n, c, height, width), jnp.float32)
    params = init_params(kp, num_classes, height, width)
    prep = prepare_params(params, height, width)

    out = jax.block_until_ready(jax.jit(cnn_forward)(x, prep))
    ref = jax.block_until_ready(reference_forward(x, params))

    assert out.shape == (n, num_classes)
    max_err = float(jnp.max(jnp.abs(out - ref)))
    # Pallas path uses bf16 MXU operands with fp32 accumulation; reference is fp32.
    assert bool(jnp.allclose(out, ref, rtol=1e-1, atol=1e-1)), max_err
    print("KERNEL_OK")
</pallas_src>

<mosaic_0001>
module attributes {stable_mosaic.version = 11 : i64} {
  func.func @kernel(%arg0: i32, %arg1: memref<2x1600xbf16, #tpu.memory_space<vmem>>, %arg2: memref<1600x256xbf16, #tpu.memory_space<vmem>>, %arg3: memref<1x256xf32, #tpu.memory_space<vmem>>, %arg4: memref<256x128xbf16, #tpu.memory_space<vmem>>, %arg5: memref<1x128xf32, #tpu.memory_space<vmem>>, %arg6: memref<128x10xbf16, #tpu.memory_space<vmem>>, %arg7: memref<1x10xf32, #tpu.memory_space<vmem>>, %arg8: memref<2x10xf32, #tpu.memory_space<vmem>>, %arg9: memref<2x256xf32, #tpu.memory_space<vmem>>) attributes {dimension_semantics = [#tpu.dimension_semantics<arbitrary>], iteration_bounds = array<i64: 1>, scalar_prefetch = 0 : i64, scratch_operands = 1 : i64, tpu.core_type = #tpu.core_type<tc>, window_params = [{transform_indices = @transform_0, window_bounds = array<i64: 2, 1600>}, {transform_indices = @transform_1, window_bounds = array<i64: 1600, 256>}, {pipeline_mode = #tpu.pipeline_mode<synchronous>, transform_indices = @transform_2, window_bounds = array<i64: 1, 256>}, {pipeline_mode = #tpu.pipeline_mode<synchronous>, transform_indices = @transform_3, window_bounds = array<i64: 256, 128>}, {pipeline_mode = #tpu.pipeline_mode<synchronous>, transform_indices = @transform_4, window_bounds = array<i64: 1, 128>}, {pipeline_mode = #tpu.pipeline_mode<synchronous>, transform_indices = @transform_5, window_bounds = array<i64: 128, 10>}, {pipeline_mode = #tpu.pipeline_mode<synchronous>, transform_indices = @transform_6, window_bounds = array<i64: 1, 10>}, {pipeline_mode = #tpu.pipeline_mode<synchronous>, transform_indices = @transform_7, window_bounds = array<i64: 2, 10>}]} {
    %c0_i32 = arith.constant 0 : i32
    %0 = arith.cmpi eq, %arg0, %c0_i32 : i32
    %1 = arith.extui %0 : i1 to i32
    %c0_i32_0 = arith.constant 0 : i32
    %2 = arith.cmpi ne, %1, %c0_i32_0 : i32
    scf.if %2 {
      %cst_10 = arith.constant 0.000000e+00 : f32
      %12 = vector.broadcast %cst_10 : f32 to vector<2x256xf32>
      %c0_11 = arith.constant 0 : index
      %c0_12 = arith.constant 0 : index
      %13 = vector.load %arg9[%c0_11, %c0_12] : memref<2x256xf32, #tpu.memory_space<vmem>>, vector<2x256xf32>
      tpu.vector_store %arg9[%c0_11, %c0_12], %12 {strides = array<i32>} : memref<2x256xf32, #tpu.memory_space<vmem>>, vector<2x256xf32>,
    } else {
    }
    %c0 = arith.constant 0 : index
    %c0_1 = arith.constant 0 : index
    %3 = vector.load %arg9[%c0, %c0_1] : memref<2x256xf32, #tpu.memory_space<vmem>>, vector<2x256xf32>
    %c0_2 = arith.constant 0 : index
    %c0_3 = arith.constant 0 : index
    %4 = vector.load %arg1[%c0_2, %c0_3] : memref<2x1600xbf16, #tpu.memory_space<vmem>>, vector<2x1600xbf16>
    %c0_4 = arith.constant 0 : index
    %c0_5 = arith.constant 0 : index
    %5 = vector.load %arg2[%c0_4, %c0_5] : memref<1600x256xbf16, #tpu.memory_space<vmem>>, vector<1600x256xbf16>
    %cst = arith.constant dense<0.000000e+00> : vector<2x256xf32>
    %6 = tpu.matmul %4, %5, %cst {dimension_numbers = #tpu.dot_dimension_numbers<[1], [0], [0], [1], [0, 0, 1, 1], [], []>} : vector<2x1600xbf16>, vector<1600x256xbf16>, vector<2x256xf32> -> vector<2x256xf32>
    %7 = arith.addf %3, %6 : vector<2x256xf32>
    %c0_6 = arith.constant 0 : index
    %c0_7 = arith.constant 0 : index
    %8 = vector.load %arg9[%c0_6, %c0_7] : memref<2x256xf32, #tpu.memory_space<vmem>>, vector<2x256xf32>
    tpu.vector_store %arg9[%c0_6, %c0_7], %7 {strides = array<i32>} : memref<2x256xf32, #tpu.memory_space<vmem>>, vector<2x256xf32>,
    %c0_i32_8 = arith.constant 0 : i32
    %9 = arith.cmpi eq, %arg0, %c0_i32_8 : i32
    %10 = arith.extui %9 : i1 to i32
    %c0_i32_9 = arith.constant 0 : i32
    %11 = arith.cmpi ne, %10, %c0_i32_9 : i32
    scf.if %11 {
      %c0_10 = arith.constant 0 : index
      %c0_11 = arith.constant 0 : index
      %12 = vector.load %arg9[%c0_10, %c0_11] : memref<2x256xf32, #tpu.memory_space<vmem>>, vector<2x256xf32>
      %c0_12 = arith.constant 0 : index
      %c0_13 = arith.constant 0 : index
      %13 = vector.load %arg3[%c0_12, %c0_13] : memref<1x256xf32, #tpu.memory_space<vmem>>, vector<1x256xf32>
      %14 = vector.broadcast %13 : vector<1x256xf32> to vector<2x256xf32>
      %15 = arith.addf %12, %14 : vector<2x256xf32>
      %cst_14 = arith.constant 0.000000e+00 : f32
      %16 = vector.broadcast %cst_14 : f32 to vector<2x256xf32>
      %17 = arith.maximumf %15, %16 : vector<2x256xf32>
      %18 = arith.truncf %17 : vector<2x256xf32> to vector<2x256xbf16>
      %c0_15 = arith.constant 0 : index
      %c0_16 = arith.constant 0 : index
      %19 = vector.load %arg4[%c0_15, %c0_16] : memref<256x128xbf16, #tpu.memory_space<vmem>>, vector<256x128xbf16>
      %cst_17 = arith.constant dense<0.000000e+00> : vector<2x128xf32>
      %20 = tpu.matmul %18, %19, %cst_17 {dimension_numbers = #tpu.dot_dimension_numbers<[1], [0], [0], [1], [0, 0, 1, 1], [], []>} : vector<2x256xbf16>, vector<256x128xbf16>, vector<2x128xf32> -> vector<2x128xf32>
      %c0_18 = arith.constant 0 : index
      %c0_19 = arith.constant 0 : index
      %21 = vector.load %arg5[%c0_18, %c0_19] : memref<1x128xf32, #tpu.memory_space<vmem>>, vector<1x128xf32>
      %22 = vector.broadcast %21 : vector<1x128xf32> to vector<2x128xf32>
      %23 = arith.addf %20, %22 : vector<2x128xf32>
      %cst_20 = arith.constant 0.000000e+00 : f32
      %24 = vector.broadcast %cst_20 : f32 to vector<2x128xf32>
      %25 = arith.maximumf %23, %24 : vector<2x128xf32>
      %26 = arith.truncf %25 : vector<2x128xf32> to vector<2x128xbf16>
      %c0_21 = arith.constant 0 : index
      %c0_22 = arith.constant 0 : index
      %27 = vector.load %arg6[%c0_21, %c0_22] : memref<128x10xbf16, #tpu.memory_space<vmem>>, vector<128x10xbf16>
      %cst_23 = arith.constant dense<0.000000e+00> : vector<2x10xf32>
      %28 = tpu.matmul %26, %27, %cst_23 {dimension_numbers = #tpu.dot_dimension_numbers<[1], [0], [0], [1], [0, 0, 1, 1], [], []>} : vector<2x128xbf16>, vector<128x10xbf16>, vector<2x10xf32> -> vector<2x10xf32>
      %c0_24 = arith.constant 0 : index
      %c0_25 = arith.constant 0 : index
      %29 = vector.load %arg7[%c0_24, %c0_25] : memref<1x10xf32, #tpu.memory_space<vmem>>, vector<1x10xf32>
      %30 = vector.broadcast %29 : vector<1x10xf32> to vector<2x10xf32>
      %31 = arith.addf %28, %30 : vector<2x10xf32>
      %c0_26 = arith.constant 0 : index
      %c0_27 = arith.constant 0 : index
      %32 = vector.load %arg8[%c0_26, %c0_27] : memref<2x10xf32, #tpu.memory_space<vmem>>, vector<2x10xf32>
      tpu.vector_store %arg8[%c0_26, %c0_27], %31 {strides = array<i32>} : memref<2x10xf32, #tpu.memory_space<vmem>>, vector<2x10xf32>,
    } else {
    }
    return
  }
  func.func @transform_0(%arg0: i32) -> (i32, i32) {
    %c0_i32 = arith.constant 0 : i32
    %c0_i32_0 = arith.constant 0 : i32
    return %c0_i32, %arg0 : i32, i32
  }
  func.func @transform_1(%arg0: i32) -> (i32, i32) {
    %c0_i32 = arith.constant 0 : i32
    %c0_i32_0 = arith.constant 0 : i32
    return %arg0, %c0_i32 : i32, i32
  }
  func.func @transform_2(%arg0: i32) -> (i32, i32) {
    %c0_i32 = arith.constant 0 : i32
    %c0_i32_0 = arith.constant 0 : i32
    %c0_i32_1 = arith.constant 0 : i32
    return %c0_i32, %c0_i32_0 : i32, i32
  }
  func.func @transform_3(%arg0: i32) -> (i32, i32) {
    %c0_i32 = arith.constant 0 : i32
    %c0_i32_0 = arith.constant 0 : i32
    %c0_i32_1 = arith.constant 0 : i32
    return %c0_i32, %c0_i32_0 : i32, i32
  }
  func.func @transform_4(%arg0: i32) -> (i32, i32) {
    %c0_i32 = arith.constant 0 : i32
    %c0_i32_0 = arith.constant 0 : i32
    %c0_i32_1 = arith.constant 0 : i32
    return %c0_i32, %c0_i32_0 : i32, i32
  }
  func.func @transform_5(%arg0: i32) -> (i32, i32) {
    %c0_i32 = arith.constant 0 : i32
    %c0_i32_0 = arith.constant 0 : i32
    %c0_i32_1 = arith.constant 0 : i32
    return %c0_i32, %c0_i32_0 : i32, i32
  }
  func.func @transform_6(%arg0: i32) -> (i32, i32) {
    %c0_i32 = arith.constant 0 : i32
    %c0_i32_0 = arith.constant 0 : i32
    %c0_i32_1 = arith.constant 0 : i32
    return %c0_i32, %c0_i32_0 : i32, i32
  }
  func.func @transform_7(%arg0: i32) -> (i32, i32) {
    %c0_i32 = arith.constant 0 : i32
    %c0_i32_0 = arith.constant 0 : i32
    %c0_i32_1 = arith.constant 0 : i32
    return %c0_i32, %c0_i32_0 : i32, i32
  }
}

module attributes {stable_mosaic.version = 11 : i64} {
  func.func @kernel(%arg0: i32, %arg1: memref<1x1024x15xf32, #tpu.memory_space<vmem>>, %arg2: memref<5x15x32xbf16, #tpu.memory_space<vmem>>, %arg3: memref<1x32xf32, #tpu.memory_space<vmem>>, %arg4: memref<25x32x64xbf16, #tpu.memory_space<vmem>>, %arg5: memref<1x64xf32, #tpu.memory_space<vmem>>, %arg6: memref<1x25x64xbf16, #tpu.memory_space<vmem>>, %arg7: memref<456x32xf32, #tpu.memory_space<vmem>>, %arg8: memref<80x64xf32, #tpu.memory_space<vmem>>) attributes {dimension_semantics = [#tpu.dimension_semantics<parallel>], iteration_bounds = array<i64: 2>, scalar_prefetch = 0 : i64, scratch_operands = 2 : i64, tpu.core_type = #tpu.core_type<tc>, window_params = [{transform_indices = @transform_0, window_bounds = array<i64: 1, 1024, 15>}, {pipeline_mode = #tpu.pipeline_mode<synchronous>, transform_indices = @transform_1, window_bounds = array<i64: 5, 15, 32>}, {pipeline_mode = #tpu.pipeline_mode<synchronous>, transform_indices = @transform_2, window_bounds = array<i64: 1, 32>}, {pipeline_mode = #tpu.pipeline_mode<synchronous>, transform_indices = @transform_3, window_bounds = array<i64: 25, 32, 64>}, {pipeline_mode = #tpu.pipeline_mode<synchronous>, transform_indices = @transform_4, window_bounds = array<i64: 1, 64>}, {transform_indices = @transform_5, window_bounds = array<i64: 1, 25, 64>}]} {
    %c0 = arith.constant 0 : index
    %c0_0 = arith.constant 0 : index
    %c0_1 = arith.constant 0 : index
    %0 = vector.load %arg1[%c0, %c0_0, %c0_1] : memref<1x1024x15xf32, #tpu.memory_space<vmem>>, vector<1x1024x15xf32>
    %1 = vector.shape_cast %0 : vector<1x1024x15xf32> to vector<1024x15xf32>
    %2 = arith.truncf %1 : vector<1024x15xf32> to vector<1024x15xbf16>
    %3 = vector.extract_strided_slice %2 {offsets = [0, 0], sizes = [896, 15], strides = [1, 1]} : vector<1024x15xbf16> to vector<896x15xbf16>
    %c0_2 = arith.constant 0 : index
    %c0_3 = arith.constant 0 : index
    %c0_4 = arith.constant 0 : index
    %4 = vector.load %arg2[%c0_2, %c0_3, %c0_4] : memref<5x15x32xbf16, #tpu.memory_space<vmem>>, vector<1x15x32xbf16>
    %5 = vector.shape_cast %4 : vector<1x15x32xbf16> to vector<15x32xbf16>
    %cst = arith.constant dense<0.000000e+00> : vector<896x32xf32>
    %6 = tpu.matmul %3, %5, %cst {dimension_numbers = #tpu.dot_dimension_numbers<[1], [0], [0], [1], [0, 0, 1, 1], [], []>} : vector<896x15xbf16>, vector<15x32xbf16>, vector<896x32xf32> -> vector<896x32xf32>
    %7 = vector.extract_strided_slice %2 {offsets = [32, 0], sizes = [896, 15], strides = [1, 1]} : vector<1024x15xbf16> to vector<896x15xbf16>
    %c1 = arith.constant 1 : index
    %c0_5 = arith.constant 0 : index
    %c0_6 = arith.constant 0 : index
    %8 = vector.load %arg2[%c1, %c0_5, %c0_6] : memref<5x15x32xbf16, #tpu.memory_space<vmem>>, vector<1x15x32xbf16>
    %9 = vector.shape_cast %8 : vector<1x15x32xbf16> to vector<15x32xbf16>
    %cst_7 = arith.constant dense<0.000000e+00> : vector<896x32xf32>
    %10 = tpu.matmul %7, %9, %cst_7 {dimension_numbers = #tpu.dot_dimension_numbers<[1], [0], [0], [1], [0, 0, 1, 1], [], []>} : vector<896x15xbf16>, vector<15x32xbf16>, vector<896x32xf32> -> vector<896x32xf32>
    %11 = arith.addf %6, %10 : vector<896x32xf32>
    %12 = vector.extract_strided_slice %2 {offsets = [64, 0], sizes = [896, 15], strides = [1, 1]} : vector<1024x15xbf16> to vector<896x15xbf16>
    %c2 = arith.constant 2 : index
    %c0_8 = arith.constant 0 : index
    %c0_9 = arith.constant 0 : index
    %13 = vector.load %arg2[%c2, %c0_8, %c0_9] : memref<5x15x32xbf16, #tpu.memory_space<vmem>>, vector<1x15x32xbf16>
    %14 = vector.shape_cast %13 : vector<1x15x32xbf16> to vector<15x32xbf16>
    %cst_10 = arith.constant dense<0.000000e+00> : vector<896x32xf32>
    %15 = tpu.matmul %12, %14, %cst_10 {dimension_numbers = #tpu.dot_dimension_numbers<[1], [0], [0], [1], [0, 0, 1, 1], [], []>} : vector<896x15xbf16>, vector<15x32xbf16>, vector<896x32xf32> -> vector<896x32xf32>
    %16 = arith.addf %11, %15 : vector<896x32xf32>
    %17 = vector.extract_strided_slice %2 {offsets = [96, 0], sizes = [896, 15], strides = [1, 1]} : vector<1024x15xbf16> to vector<896x15xbf16>
    %c3 = arith.constant 3 : index
    %c0_11 = arith.constant 0 : index
    %c0_12 = arith.constant 0 : index
    %18 = vector.load %arg2[%c3, %c0_11, %c0_12] : memref<5x15x32xbf16, #tpu.memory_space<vmem>>, vector<1x15x32xbf16>
    %19 = vector.shape_cast %18 : vector<1x15x32xbf16> to vector<15x32xbf16>
    %cst_13 = arith.constant dense<0.000000e+00> : vector<896x32xf32>
    %20 = tpu.matmul %17, %19, %cst_13 {dimension_numbers = #tpu.dot_dimension_numbers<[1], [0], [0], [1], [0, 0, 1, 1], [], []>} : vector<896x15xbf16>, vector<15x32xbf16>, vector<896x32xf32> -> vector<896x32xf32>
    %21 = arith.addf %16, %20 : vector<896x32xf32>
    %22 = vector.extract_strided_slice %2 {offsets = [128, 0], sizes = [896, 15], strides = [1, 1]} : vector<1024x15xbf16> to vector<896x15xbf16>
    %c4 = arith.constant 4 : index
    %c0_14 = arith.constant 0 : index
    %c0_15 = arith.constant 0 : index
    %23 = vector.load %arg2[%c4, %c0_14, %c0_15] : memref<5x15x32xbf16, #tpu.memory_space<vmem>>, vector<1x15x32xbf16>
    %24 = vector.shape_cast %23 : vector<1x15x32xbf16> to vector<15x32xbf16>
    %cst_16 = arith.constant dense<0.000000e+00> : vector<896x32xf32>
    %25 = tpu.matmul %22, %24, %cst_16 {dimension_numbers = #tpu.dot_dimension_numbers<[1], [0], [0], [1], [0, 0, 1, 1], [], []>} : vector<896x15xbf16>, vector<15x32xbf16>, vector<896x32xf32> -> vector<896x32xf32>
    %26 = arith.addf %21, %25 : vector<896x32xf32>
    %c0_17 = arith.constant 0 : index
    %c0_18 = arith.constant 0 : index
    %27 = vector.load %arg3[%c0_17, %c0_18] : memref<1x32xf32, #tpu.memory_space<vmem>>, vector<1x32xf32>
    %28 = vector.broadcast %27 : vector<1x32xf32> to vector<896x32xf32>
    %29 = arith.addf %26, %28 : vector<896x32xf32>
    %30 = vector.shape_cast %29 : vector<896x32xf32> to vector<14x64x32xf32>
    %31 = vector.extract_strided_slice %30 {offsets = [0, 0, 0], sizes = [14, 32, 32], strides = [1, 1, 1]} : vector<14x64x32xf32> to vector<14x32x32xf32>
    %32 = vector.extract_strided_slice %30 {offsets = [0, 32, 0], sizes = [14, 32, 32], strides = [1, 1, 1]} : vector<14x64x32xf32> to vector<14x32x32xf32>
    %33 = arith.maximumf %31, %32 : vector<14x32x32xf32>
    %34 = vector.shape_cast %33 : vector<14x32x32xf32> to vector<448x32xf32>
    %c0_19 = arith.constant 0 : index
    %c0_20 = arith.constant 0 : index
    %35 = vector.load %arg7[%c0_19, %c0_20] : memref<456x32xf32, #tpu.memory_space<vmem>>, vector<448x32xf32>
    tpu.vector_store %arg7[%c0_19, %c0_20], %34 {strides = array<i32>} : memref<456x32xf32, #tpu.memory_space<vmem>>, vector<448x32xf32>,
    %cst_21 = arith.constant 0.000000e+00 : f32
    %36 = vector.broadcast %cst_21 : f32 to vector<8x32xf32>
    %c448 = arith.constant 448 : index
    %c0_22 = arith.constant 0 : index
    %37 = vector.load %arg7[%c448, %c0_22] : memref<456x32xf32, #tpu.memory_space<vmem>>, vector<8x32xf32>
    tpu.vector_store %arg7[%c448, %c0_22], %36 {strides = array<i32>} : memref<456x32xf32, #tpu.memory_space<vmem>>, vector<8x32xf32>,
    %c0_23 = arith.constant 0 : index
    %c0_24 = arith.constant 0 : index
    %38 = tpu.strided_load %arg7[%c0_23, %c0_24] {strides = array<i32: 2, 1>} : memref<456x32xf32, #tpu.memory_space<vmem>>, vector<224x32xf32>
    %c1_25 = arith.constant 1 : index
    %c0_26 = arith.constant 0 : index
    %39 = tpu.strided_load %arg7[%c1_25, %c0_26] {strides = array<i32: 2, 1>} : memref<456x32xf32, #tpu.memory_space<vmem>>, vector<224x32xf32>
    %40 = arith.maximumf %38, %39 : vector<224x32xf32>
    %41 = arith.truncf %40 : vector<224x32xf32> to vector<224x32xbf16>
    %42 = vector.extract_strided_slice %41 {offsets = [0, 0], sizes = [160, 32], strides = [1, 1]} : vector<224x32xbf16> to vector<160x32xbf16>
    %c0_27 = arith.constant 0 : index
    %c0_28 = arith.constant 0 : index
    %c0_29 = arith.constant 0 : index
    %43 = vector.load %arg4[%c0_27, %c0_28, %c0_29] : memref<25x32x64xbf16, #tpu.memory_space<vmem>>, vector<1x32x64xbf16>
    %44 = vector.shape_cast %43 : vector<1x32x64xbf16> to vector<32x64xbf16>
    %cst_30 = arith.constant dense<0.000000e+00> : vector<160x64xf32>
    %45 = tpu.matmul %42, %44, %cst_30 {dimension_numbers = #tpu.dot_dimension_numbers<[1], [0], [0], [1], [0, 0, 1, 1], [], []>} : vector<160x32xbf16>, vector<32x64xbf16>, vector<160x64xf32> -> vector<160x64xf32>
    %46 = vector.extract_strided_slice %41 {offsets = [16, 0], sizes = [160, 32], strides = [1, 1]} : vector<224x32xbf16> to vector<160x32xbf16>
    %c5 = arith.constant 5 : index
    %c0_31 = arith.constant 0 : index
    %c0_32 = arith.constant 0 : index
    %47 = vector.load %arg4[%c5, %c0_31, %c0_32] : memref<25x32x64xbf16, #tpu.memory_space<vmem>>, vector<1x32x64xbf16>
    %48 = vector.shape_cast %47 : vector<1x32x64xbf16> to vector<32x64xbf16>
    %cst_33 = arith.constant dense<0.000000e+00> : vector<160x64xf32>
    %49 = tpu.matmul %46, %48, %cst_33 {dimension_numbers = #tpu.dot_dimension_numbers<[1], [0], [0], [1], [0, 0, 1, 1], [], []>} : vector<160x32xbf16>, vector<32x64xbf16>, vector<160x64xf32> -> vector<160x64xf32>
    %50 = arith.addf %45, %49 : vector<160x64xf32>
    %51 = vector.extract_strided_slice %41 {offsets = [32, 0], sizes = [160, 32], strides = [1, 1]} : vector<224x32xbf16> to vector<160x32xbf16>
    %c10 = arith.constant 10 : index
    %c0_34 = arith.constant 0 : index
    %c0_35 = arith.constant 0 : index
    %52 = vector.load %arg4[%c10, %c0_34, %c0_35] : memref<25x32x64xbf16, #tpu.memory_space<vmem>>, vector<1x32x64xbf16>
    %53 = vector.shape_cast %52 : vector<1x32x64xbf16> to vector<32x64xbf16>
    %cst_36 = arith.constant dense<0.000000e+00> : vector<160x64xf32>
    %54 = tpu.matmul %51, %53, %cst_36 {dimension_numbers = #tpu.dot_dimension_numbers<[1], [0], [0], [1], [0, 0, 1, 1], [], []>} : vector<160x32xbf16>, vector<32x64xbf16>, vector<160x64xf32> -> vector<160x64xf32>
    %55 = arith.addf %50, %54 : vector<160x64xf32>
    %56 = vector.extract_strided_slice %41 {offsets = [48, 0], sizes = [160, 32], strides = [1, 1]} : vector<224x32xbf16> to vector<160x32xbf16>
    %c15 = arith.constant 15 : index
    %c0_37 = arith.constant 0 : index
    %c0_38 = arith.constant 0 : index
    %57 = vector.load %arg4[%c15, %c0_37, %c0_38] : memref<25x32x64xbf16, #tpu.memory_space<vmem>>, vector<1x32x64xbf16>
    %58 = vector.shape_cast %57 : vector<1x32x64xbf16> to vector<32x64xbf16>
    %cst_39 = arith.constant dense<0.000000e+00> : vector<160x64xf32>
    %59 = tpu.matmul %56, %58, %cst_39 {dimension_numbers = #tpu.dot_dimension_numbers<[1], [0], [0], [1], [0, 0, 1, 1], [], []>} : vector<160x32xbf16>, vector<32x64xbf16>, vector<160x64xf32> -> vector<160x64xf32>
    %60 = arith.addf %55, %59 : vector<160x64xf32>
    %61 = vector.extract_strided_slice %41 {offsets = [64, 0], sizes = [160, 32], strides = [1, 1]} : vector<224x32xbf16> to vector<160x32xbf16>
    %c20 = arith.constant 20 : index
    %c0_40 = arith.constant 0 : index
    %c0_41 = arith.constant 0 : index
    %62 = vector.load %arg4[%c20, %c0_40, %c0_41] : memref<25x32x64xbf16, #tpu.memory_space<vmem>>, vector<1x32x64xbf16>
    %63 = vector.shape_cast %62 : vector<1x32x64xbf16> to vector<32x64xbf16>
    %cst_42 = arith.constant dense<0.000000e+00> : vector<160x64xf32>
    %64 = tpu.matmul %61, %63, %cst_42 {dimension_numbers = #tpu.dot_dimension_numbers<[1], [0], [0], [1], [0, 0, 1, 1], [], []>} : vector<160x32xbf16>, vector<32x64xbf16>, vector<160x64xf32> -> vector<160x64xf32>
    %65 = arith.addf %60, %64 : vector<160x64xf32>
    %c2_43 = arith.constant 2 : index
    %c0_44 = arith.constant 0 : index
    %66 = tpu.strided_load %arg7[%c2_43, %c0_44] {strides = array<i32: 2, 1>} : memref<456x32xf32, #tpu.memory_space<vmem>>, vector<224x32xf32>
    %c3_45 = arith.constant 3 : index
    %c0_46 = arith.constant 0 : index
    %67 = tpu.strided_load %arg7[%c3_45, %c0_46] {strides = array<i32: 2, 1>} : memref<456x32xf32, #tpu.memory_space<vmem>>, vector<224x32xf32>
    %68 = arith.maximumf %66, %67 : vector<224x32xf32>
    %69 = arith.truncf %68 : vector<224x32xf32> to vector<224x32xbf16>
    %70 = vector.extract_strided_slice %69 {offsets = [0, 0], sizes = [160, 32], strides = [1, 1]} : vector<224x32xbf16> to vector<160x32xbf16>
    %c1_47 = arith.constant 1 : index
    %c0_48 = arith.constant 0 : index
    %c0_49 = arith.constant 0 : index
    %71 = vector.load %arg4[%c1_47, %c0_48, %c0_49] : memref<25x32x64xbf16, #tpu.memory_space<vmem>>, vector<1x32x64xbf16>
    %72 = vector.shape_cast %71 : vector<1x32x64xbf16> to vector<32x64xbf16>
    %cst_50 = arith.constant dense<0.000000e+00> : vector<160x64xf32>
    %73 = tpu.matmul %70, %72, %cst_50 {dimension_numbers = #tpu.dot_dimension_numbers<[1], [0], [0], [1], [0, 0, 1, 1], [], []>} : vector<160x32xbf16>, vector<32x64xbf16>, vector<160x64xf32> -> vector<160x64xf32>
    %74 = arith.addf %65, %73 : vector<160x64xf32>
    %75 = vector.extract_strided_slice %69 {offsets = [16, 0], sizes = [160, 32], strides = [1, 1]} : vector<224x32xbf16> to vector<160x32xbf16>
    %c6 = arith.constant 6 : index
    %c0_51 = arith.constant 0 : index
    %c0_52 = arith.constant 0 : index
    %76 = vector.load %arg4[%c6, %c0_51, %c0_52] : memref<25x32x64xbf16, #tpu.memory_space<vmem>>, vector<1x32x64xbf16>
    %77 = vector.shape_cast %76 : vector<1x32x64xbf16> to vector<32x64xbf16>
    %cst_53 = arith.constant dense<0.000000e+00> : vector<160x64xf32>
    %78 = tpu.matmul %75, %77, %cst_53 {dimension_numbers = #tpu.dot_dimension_numbers<[1], [0], [0], [1], [0, 0, 1, 1], [], []>} : vector<160x32xbf16>, vector<32x64xbf16>, vector<160x64xf32> -> vector<160x64xf32>
    %79 = arith.addf %74, %78 : vector<160x64xf32>
    %80 = vector.extract_strided_slice %69 {offsets = [32, 0], sizes = [160, 32], strides = [1, 1]} : vector<224x32xbf16> to vector<160x32xbf16>
    %c11 = arith.constant 11 : index
    %c0_54 = arith.constant 0 : index
    %c0_55 = arith.constant 0 : index
    %81 = vector.load %arg4[%c11, %c0_54, %c0_55] : memref<25x32x64xbf16, #tpu.memory_space<vmem>>, vector<1x32x64xbf16>
    %82 = vector.shape_cast %81 : vector<1x32x64xbf16> to vector<32x64xbf16>
    %cst_56 = arith.constant dense<0.000000e+00> : vector<160x64xf32>
    %83 = tpu.matmul %80, %82, %cst_56 {dimension_numbers = #tpu.dot_dimension_numbers<[1], [0], [0], [1], [0, 0, 1, 1], [], []>} : vector<160x32xbf16>, vector<32x64xbf16>, vector<160x64xf32> -> vector<160x64xf32>
    %84 = arith.addf %79, %83 : vector<160x64xf32>
    %85 = vector.extract_strided_slice %69 {offsets = [48, 0], sizes = [160, 32], strides = [1, 1]} : vector<224x32xbf16> to vector<160x32xbf16>
    %c16 = arith.constant 16 : index
    %c0_57 = arith.constant 0 : index
    %c0_58 = arith.constant 0 : index
    %86 = vector.load %arg4[%c16, %c0_57, %c0_58] : memref<25x32x64xbf16, #tpu.memory_space<vmem>>, vector<1x32x64xbf16>
    %87 = vector.shape_cast %86 : vector<1x32x64xbf16> to vector<32x64xbf16>
    %cst_59 = arith.constant dense<0.000000e+00> : vector<160x64xf32>
    %88 = tpu.matmul %85, %87, %cst_59 {dimension_numbers = #tpu.dot_dimension_numbers<[1], [0], [0], [1], [0, 0, 1, 1], [], []>} : vector<160x32xbf16>, vector<32x64xbf16>, vector<160x64xf32> -> vector<160x64xf32>
    %89 = arith.addf %84, %88 : vector<160x64xf32>
    %90 = vector.extract_strided_slice %69 {offsets = [64, 0], sizes = [160, 32], strides = [1, 1]} : vector<224x32xbf16> to vector<160x32xbf16>
    %c21 = arith.constant 21 : index
    %c0_60 = arith.constant 0 : index
    %c0_61 = arith.constant 0 : index
    %91 = vector.load %arg4[%c21, %c0_60, %c0_61] : memref<25x32x64xbf16, #tpu.memory_space<vmem>>, vector<1x32x64xbf16>
    %92 = vector.shape_cast %91 : vector<1x32x64xbf16> to vector<32x64xbf16>
    %cst_62 = arith.constant dense<0.000000e+00> : vector<160x64xf32>
    %93 = tpu.matmul %90, %92, %cst_62 {dimension_numbers = #tpu.dot_dimension_numbers<[1], [0], [0], [1], [0, 0, 1, 1], [], []>} : vector<160x32xbf16>, vector<32x64xbf16>, vector<160x64xf32> -> vector<160x64xf32>
    %94 = arith.addf %89, %93 : vector<160x64xf32>
    %c4_63 = arith.constant 4 : index
    %c0_64 = arith.constant 0 : index
    %95 = tpu.strided_load %arg7[%c4_63, %c0_64] {strides = array<i32: 2, 1>} : memref<456x32xf32, #tpu.memory_space<vmem>>, vector<224x32xf32>
    %c5_65 = arith.constant 5 : index
    %c0_66 = arith.constant 0 : index
    %96 = tpu.strided_load %arg7[%c5_65, %c0_66] {strides = array<i32: 2, 1>} : memref<456x32xf32, #tpu.memory_space<vmem>>, vector<224x32xf32>
    %97 = arith.maximumf %95, %96 : vector<224x32xf32>
    %98 = arith.truncf %97 : vector<224x32xf32> to vector<224x32xbf16>
    %99 = vector.extract_strided_slice %98 {offsets = [0, 0], sizes = [160, 32], strides = [1, 1]} : vector<224x32xbf16> to vector<160x32xbf16>
    %c2_67 = arith.constant 2 : index
    %c0_68 = arith.constant 0 : index
    %c0_69 = arith.constant 0 : index
    %100 = vector.load %arg4[%c2_67, %c0_68, %c0_69] : memref<25x32x64xbf16, #tpu.memory_space<vmem>>, vector<1x32x64xbf16>
    %101 = vector.shape_cast %100 : vector<1x32x64xbf16> to vector<32x64xbf16>
    %cst_70 = arith.constant dense<0.000000e+00> : vector<160x64xf32>
    %102 = tpu.matmul %99, %101, %cst_70 {dimension_numbers = #tpu.dot_dimension_numbers<[1], [0], [0], [1], [0, 0, 1, 1], [], []>} : vector<160x32xbf16>, vector<32x64xbf16>, vector<160x64xf32> -> vector<160x64xf32>
    %103 = arith.addf %94, %102 : vector<160x64xf32>
    %104 = vector.extract_strided_slice %98 {offsets = [16, 0], sizes = [160, 32], strides = [1, 1]} : vector<224x32xbf16> to vector<160x32xbf16>
    %c7 = arith.constant 7 : index
    %c0_71 = arith.constant 0 : index
    %c0_72 = arith.constant 0 : index
    %105 = vector.load %arg4[%c7, %c0_71, %c0_72] : memref<25x32x64xbf16, #tpu.memory_space<vmem>>, vector<1x32x64xbf16>
    %106 = vector.shape_cast %105 : vector<1x32x64xbf16> to vector<32x64xbf16>
    %cst_73 = arith.constant dense<0.000000e+00> : vector<160x64xf32>
    %107 = tpu.matmul %104, %106, %cst_73 {dimension_numbers = #tpu.dot_dimension_numbers<[1], [0], [0], [1], [0, 0, 1, 1], [], []>} : vector<160x32xbf16>, vector<32x64xbf16>, vector<160x64xf32> -> vector<160x64xf32>
    %108 = arith.addf %103, %107 : vector<160x64xf32>
    %109 = vector.extract_strided_slice %98 {offsets = [32, 0], sizes = [160, 32], strides = [1, 1]} : vector<224x32xbf16> to vector<160x32xbf16>
    %c12 = arith.constant 12 : index
    %c0_74 = arith.constant 0 : index
    %c0_75 = arith.constant 0 : index
    %110 = vector.load %arg4[%c12, %c0_74, %c0_75] : memref<25x32x64xbf16, #tpu.memory_space<vmem>>, vector<1x32x64xbf16>
    %111 = vector.shape_cast %110 : vector<1x32x64xbf16> to vector<32x64xbf16>
    %cst_76 = arith.constant dense<0.000000e+00> : vector<160x64xf32>
    %112 = tpu.matmul %109, %111, %cst_76 {dimension_numbers = #tpu.dot_dimension_numbers<[1], [0], [0], [1], [0, 0, 1, 1], [], []>} : vector<160x32xbf16>, vector<32x64xbf16>, vector<160x64xf32> -> vector<160x64xf32>
    %113 = arith.addf %108, %112 : vector<160x64xf32>
    %114 = vector.extract_strided_slice %98 {offsets = [48, 0], sizes = [160, 32], strides = [1, 1]} : vector<224x32xbf16> to vector<160x32xbf16>
    %c17 = arith.constant 17 : index
    %c0_77 = arith.constant 0 : index
    %c0_78 = arith.constant 0 : index
    %115 = vector.load %arg4[%c17, %c0_77, %c0_78] : memref<25x32x64xbf16, #tpu.memory_space<vmem>>, vector<1x32x64xbf16>
    %116 = vector.shape_cast %115 : vector<1x32x64xbf16> to vector<32x64xbf16>
    %cst_79 = arith.constant dense<0.000000e+00> : vector<160x64xf32>
    %117 = tpu.matmul %114, %116, %cst_79 {dimension_numbers = #tpu.dot_dimension_numbers<[1], [0], [0], [1], [0, 0, 1, 1], [], []>} : vector<160x32xbf16>, vector<32x64xbf16>, vector<160x64xf32> -> vector<160x64xf32>
    %118 = arith.addf %113, %117 : vector<160x64xf32>
    %119 = vector.extract_strided_slice %98 {offsets = [64, 0], sizes = [160, 32], strides = [1, 1]} : vector<224x32xbf16> to vector<160x32xbf16>
    %c22 = arith.constant 22 : index
    %c0_80 = arith.constant 0 : index
    %c0_81 = arith.constant 0 : index
    %120 = vector.load %arg4[%c22, %c0_80, %c0_81] : memref<25x32x64xbf16, #tpu.memory_space<vmem>>, vector<1x32x64xbf16>
    %121 = vector.shape_cast %120 : vector<1x32x64xbf16> to vector<32x64xbf16>
    %cst_82 = arith.constant dense<0.000000e+00> : vector<160x64xf32>
    %122 = tpu.matmul %119, %121, %cst_82 {dimension_numbers = #tpu.dot_dimension_numbers<[1], [0], [0], [1], [0, 0, 1, 1], [], []>} : vector<160x32xbf16>, vector<32x64xbf16>, vector<160x64xf32> -> vector<160x64xf32>
    %123 = arith.addf %118, %122 : vector<160x64xf32>
    %c6_83 = arith.constant 6 : index
    %c0_84 = arith.constant 0 : index
    %124 = tpu.strided_load %arg7[%c6_83, %c0_84] {strides = array<i32: 2, 1>} : memref<456x32xf32, #tpu.memory_space<vmem>>, vector<224x32xf32>
    %c7_85 = arith.constant 7 : index
    %c0_86 = arith.constant 0 : index
    %125 = tpu.strided_load %arg7[%c7_85, %c0_86] {strides = array<i32: 2, 1>} : memref<456x32xf32, #tpu.memory_space<vmem>>, vector<224x32xf32>
    %126 = arith.maximumf %124, %125 : vector<224x32xf32>
    %127 = arith.truncf %126 : vector<224x32xf32> to vector<224x32xbf16>
    %128 = vector.extract_strided_slice %127 {offsets = [0, 0], sizes = [160, 32], strides = [1, 1]} : vector<224x32xbf16> to vector<160x32xbf16>
    %c3_87 = arith.constant 3 : index
    %c0_88 = arith.constant 0 : index
    %c0_89 = arith.constant 0 : index
    %129 = vector.load %arg4[%c3_87, %c0_88, %c0_89] : memref<25x32x64xbf16, #tpu.memory_space<vmem>>, vector<1x32x64xbf16>
    %130 = vector.shape_cast %129 : vector<1x32x64xbf16> to vector<32x64xbf16>
    %cst_90 = arith.constant dense<0.000000e+00> : vector<160x64xf32>
    %131 = tpu.matmul %128, %130, %cst_90 {dimension_numbers = #tpu.dot_dimension_numbers<[1], [0], [0], [1], [0, 0, 1, 1], [], []>} : vector<160x32xbf16>, vector<32x64xbf16>, vector<160x64xf32> -> vector<160x64xf32>
    %132 = arith.addf %123, %131 : vector<160x64xf32>
    %133 = vector.extract_strided_slice %127 {offsets = [16, 0], sizes = [160, 32], strides = [1, 1]} : vector<224x32xbf16> to vector<160x32xbf16>
    %c8 = arith.constant 8 : index
    %c0_91 = arith.constant 0 : index
    %c0_92 = arith.constant 0 : index
    %134 = vector.load %arg4[%c8, %c0_91, %c0_92] : memref<25x32x64xbf16, #tpu.memory_space<vmem>>, vector<1x32x64xbf16>
    %135 = vector.shape_cast %134 : vector<1x32x64xbf16> to vector<32x64xbf16>
    %cst_93 = arith.constant dense<0.000000e+00> : vector<160x64xf32>
    %136 = tpu.matmul %133, %135, %cst_93 {dimension_numbers = #tpu.dot_dimension_numbers<[1], [0], [0], [1], [0, 0, 1, 1], [], []>} : vector<160x32xbf16>, vector<32x64xbf16>, vector<160x64xf32> -> vector<160x64xf32>
    %137 = arith.addf %132, %136 : vector<160x64xf32>
    %138 = vector.extract_strided_slice %127 {offsets = [32, 0], sizes = [160, 32], strides = [1, 1]} : vector<224x32xbf16> to vector<160x32xbf16>
    %c13 = arith.constant 13 : index
    %c0_94 = arith.constant 0 : index
    %c0_95 = arith.constant 0 : index
    %139 = vector.load %arg4[%c13, %c0_94, %c0_95] : memref<25x32x64xbf16, #tpu.memory_space<vmem>>, vector<1x32x64xbf16>
    %140 = vector.shape_cast %139 : vector<1x32x64xbf16> to vector<32x64xbf16>
    %cst_96 = arith.constant dense<0.000000e+00> : vector<160x64xf32>
    %141 = tpu.matmul %138, %140, %cst_96 {dimension_numbers = #tpu.dot_dimension_numbers<[1], [0], [0], [1], [0, 0, 1, 1], [], []>} : vector<160x32xbf16>, vector<32x64xbf16>, vector<160x64xf32> -> vector<160x64xf32>
    %142 = arith.addf %137, %141 : vector<160x64xf32>
    %143 = vector.extract_strided_slice %127 {offsets = [48, 0], sizes = [160, 32], strides = [1, 1]} : vector<224x32xbf16> to vector<160x32xbf16>
    %c18 = arith.constant 18 : index
    %c0_97 = arith.constant 0 : index
    %c0_98 = arith.constant 0 : index
    %144 = vector.load %arg4[%c18, %c0_97, %c0_98] : memref<25x32x64xbf16, #tpu.memory_space<vmem>>, vector<1x32x64xbf16>
    %145 = vector.shape_cast %144 : vector<1x32x64xbf16> to vector<32x64xbf16>
    %cst_99 = arith.constant dense<0.000000e+00> : vector<160x64xf32>
    %146 = tpu.matmul %143, %145, %cst_99 {dimension_numbers = #tpu.dot_dimension_numbers<[1], [0], [0], [1], [0, 0, 1, 1], [], []>} : vector<160x32xbf16>, vector<32x64xbf16>, vector<160x64xf32> -> vector<160x64xf32>
    %147 = arith.addf %142, %146 : vector<160x64xf32>
    %148 = vector.extract_strided_slice %127 {offsets = [64, 0], sizes = [160, 32], strides = [1, 1]} : vector<224x32xbf16> to vector<160x32xbf16>
    %c23 = arith.constant 23 : index
    %c0_100 = arith.constant 0 : index
    %c0_101 = arith.constant 0 : index
    %149 = vector.load %arg4[%c23, %c0_100, %c0_101] : memref<25x32x64xbf16, #tpu.memory_space<vmem>>, vector<1x32x64xbf16>
    %150 = vector.shape_cast %149 : vector<1x32x64xbf16> to vector<32x64xbf16>
    %cst_102 = arith.constant dense<0.000000e+00> : vector<160x64xf32>
    %151 = tpu.matmul %148, %150, %cst_102 {dimension_numbers = #tpu.dot_dimension_numbers<[1], [0], [0], [1], [0, 0, 1, 1], [], []>} : vector<160x32xbf16>, vector<32x64xbf16>, vector<160x64xf32> -> vector<160x64xf32>
    %152 = arith.addf %147, %151 : vector<160x64xf32>
    %c8_103 = arith.constant 8 : index
    %c0_104 = arith.constant 0 : index
    %153 = tpu.strided_load %arg7[%c8_103, %c0_104] {strides = array<i32: 2, 1>} : memref<456x32xf32, #tpu.memory_space<vmem>>, vector<224x32xf32>
    %c9 = arith.constant 9 : index
    %c0_105 = arith.constant 0 : index
    %154 = tpu.strided_load %arg7[%c9, %c0_105] {strides = array<i32: 2, 1>} : memref<456x32xf32, #tpu.memory_space<vmem>>, vector<224x32xf32>
    %155 = arith.maximumf %153, %154 : vector<224x32xf32>
    %156 = arith.truncf %155 : vector<224x32xf32> to vector<224x32xbf16>
    %157 = vector.extract_strided_slice %156 {offsets = [0, 0], sizes = [160, 32], strides = [1, 1]} : vector<224x32xbf16> to vector<160x32xbf16>
    %c4_106 = arith.constant 4 : index
    %c0_107 = arith.constant 0 : index
    %c0_108 = arith.constant 0 : index
    %158 = vector.load %arg4[%c4_106, %c0_107, %c0_108] : memref<25x32x64xbf16, #tpu.memory_space<vmem>>, vector<1x32x64xbf16>
    %159 = vector.shape_cast %158 : vector<1x32x64xbf16> to vector<32x64xbf16>
    %cst_109 = arith.constant dense<0.000000e+00> : vector<160x64xf32>
    %160 = tpu.matmul %157, %159, %cst_109 {dimension_numbers = #tpu.dot_dimension_numbers<[1], [0], [0], [1], [0, 0, 1, 1], [], []>} : vector<160x32xbf16>, vector<32x64xbf16>, vector<160x64xf32> -> vector<160x64xf32>
    %161 = arith.addf %152, %160 : vector<160x64xf32>
    %162 = vector.extract_strided_slice %156 {offsets = [16, 0], sizes = [160, 32], strides = [1, 1]} : vector<224x32xbf16> to vector<160x32xbf16>
    %c9_110 = arith.constant 9 : index
    %c0_111 = arith.constant 0 : index
    %c0_112 = arith.constant 0 : index
    %163 = vector.load %arg4[%c9_110, %c0_111, %c0_112] : memref<25x32x64xbf16, #tpu.memory_space<vmem>>, vector<1x32x64xbf16>
    %164 = vector.shape_cast %163 : vector<1x32x64xbf16> to vector<32x64xbf16>
    %cst_113 = arith.constant dense<0.000000e+00> : vector<160x64xf32>
    %165 = tpu.matmul %162, %164, %cst_113 {dimension_numbers = #tpu.dot_dimension_numbers<[1], [0], [0], [1], [0, 0, 1, 1], [], []>} : vector<160x32xbf16>, vector<32x64xbf16>, vector<160x64xf32> -> vector<160x64xf32>
    %166 = arith.addf %161, %165 : vector<160x64xf32>
    %167 = vector.extract_strided_slice %156 {offsets = [32, 0], sizes = [160, 32], strides = [1, 1]} : vector<224x32xbf16> to vector<160x32xbf16>
    %c14 = arith.constant 14 : index
    %c0_114 = arith.constant 0 : index
    %c0_115 = arith.constant 0 : index
    %168 = vector.load %arg4[%c14, %c0_114, %c0_115] : memref<25x32x64xbf16, #tpu.memory_space<vmem>>, vector<1x32x64xbf16>
    %169 = vector.shape_cast %168 : vector<1x32x64xbf16> to vector<32x64xbf16>
    %cst_116 = arith.constant dense<0.000000e+00> : vector<160x64xf32>
    %170 = tpu.matmul %167, %169, %cst_116 {dimension_numbers = #tpu.dot_dimension_numbers<[1], [0], [0], [1], [0, 0, 1, 1], [], []>} : vector<160x32xbf16>, vector<32x64xbf16>, vector<160x64xf32> -> vector<160x64xf32>
    %171 = arith.addf %166, %170 : vector<160x64xf32>
    %172 = vector.extract_strided_slice %156 {offsets = [48, 0], sizes = [160, 32], strides = [1, 1]} : vector<224x32xbf16> to vector<160x32xbf16>
    %c19 = arith.constant 19 : index
    %c0_117 = arith.constant 0 : index
    %c0_118 = arith.constant 0 : index
    %173 = vector.load %arg4[%c19, %c0_117, %c0_118] : memref<25x32x64xbf16, #tpu.memory_space<vmem>>, vector<1x32x64xbf16>
    %174 = vector.shape_cast %173 : vector<1x32x64xbf16> to vector<32x64xbf16>
    %cst_119 = arith.constant dense<0.000000e+00> : vector<160x64xf32>
    %175 = tpu.matmul %172, %174, %cst_119 {dimension_numbers = #tpu.dot_dimension_numbers<[1], [0], [0], [1], [0, 0, 1, 1], [], []>} : vector<160x32xbf16>, vector<32x64xbf16>, vector<160x64xf32> -> vector<160x64xf32>
    %176 = arith.addf %171, %175 : vector<160x64xf32>
    %177 = vector.extract_strided_slice %156 {offsets = [64, 0], sizes = [160, 32], strides = [1, 1]} : vector<224x32xbf16> to vector<160x32xbf16>
    %c24 = arith.constant 24 : index
    %c0_120 = arith.constant 0 : index
    %c0_121 = arith.constant 0 : index
    %178 = vector.load %arg4[%c24, %c0_120, %c0_121] : memref<25x32x64xbf16, #tpu.memory_space<vmem>>, vector<1x32x64xbf16>
    %179 = vector.shape_cast %178 : vector<1x32x64xbf16> to vector<32x64xbf16>
    %cst_122 = arith.constant dense<0.000000e+00> : vector<160x64xf32>
    %180 = tpu.matmul %177, %179, %cst_122 {dimension_numbers = #tpu.dot_dimension_numbers<[1], [0], [0], [1], [0, 0, 1, 1], [], []>} : vector<160x32xbf16>, vector<32x64xbf16>, vector<160x64xf32> -> vector<160x64xf32>
    %181 = arith.addf %176, %180 : vector<160x64xf32>
    %c0_123 = arith.constant 0 : index
    %c0_124 = arith.constant 0 : index
    %182 = vector.load %arg5[%c0_123, %c0_124] : memref<1x64xf32, #tpu.memory_space<vmem>>, vector<1x64xf32>
    %183 = vector.broadcast %182 : vector<1x64xf32> to vector<160x64xf32>
    %184 = arith.addf %181, %183 : vector<160x64xf32>
    %185 = vector.shape_cast %184 : vector<160x64xf32> to vector<5x32x64xf32>
    %186 = vector.extract_strided_slice %185 {offsets = [0, 0, 0], sizes = [5, 16, 64], strides = [1, 1, 1]} : vector<5x32x64xf32> to vector<5x16x64xf32>
    %187 = vector.extract_strided_slice %185 {offsets = [0, 16, 0], sizes = [5, 16, 64], strides = [1, 1, 1]} : vector<5x32x64xf32> to vector<5x16x64xf32>
    %188 = arith.maximumf %186, %187 : vector<5x16x64xf32>
    %189 = vector.shape_cast %188 : vector<5x16x64xf32> to vector<80x64xf32>
    %c0_125 = arith.constant 0 : index
    %c0_126 = arith.constant 0 : index
    %190 = vector.load %arg8[%c0_125, %c0_126] : memref<80x64xf32, #tpu.memory_space<vmem>>, vector<80x64xf32>
    tpu.vector_store %arg8[%c0_125, %c0_126], %189 {strides = array<i32>} : memref<80x64xf32, #tpu.memory_space<vmem>>, vector<80x64xf32>,
    %c0_127 = arith.constant 0 : index
    %c0_128 = arith.constant 0 : index
    %191 = tpu.strided_load %arg8[%c0_127, %c0_128] {strides = array<i32: 2, 1>} : memref<80x64xf32, #tpu.memory_space<vmem>>, vector<40x64xf32>
    %c1_129 = arith.constant 1 : index
    %c0_130 = arith.constant 0 : index
    %192 = tpu.strided_load %arg8[%c1_129, %c0_130] {strides = array<i32: 2, 1>} : memref<80x64xf32, #tpu.memory_space<vmem>>, vector<40x64xf32>
    %193 = arith.maximumf %191, %192 : vector<40x64xf32>
    %194 = vector.extract_strided_slice %193 {offsets = [0, 0], sizes = [5, 64], strides = [1, 1]} : vector<40x64xf32> to vector<5x64xf32>
    %195 = vector.extract_strided_slice %193 {offsets = [8, 0], sizes = [5, 64], strides = [1, 1]} : vector<40x64xf32> to vector<5x64xf32>
    %196 = vector.extract_strided_slice %193 {offsets = [16, 0], sizes = [5, 64], strides = [1, 1]} : vector<40x64xf32> to vector<5x64xf32>
    %197 = vector.extract_strided_slice %193 {offsets = [24, 0], sizes = [5, 64], strides = [1, 1]} : vector<40x64xf32> to vector<5x64xf32>
    %198 = vector.extract_strided_slice %193 {offsets = [32, 0], sizes = [5, 64], strides = [1, 1]} : vector<40x64xf32> to vector<5x64xf32>
    %199 = tpu.concatenate %194, %195, %196, %197, %198 in 0 : vector<5x64xf32>, vector<5x64xf32>, vector<5x64xf32>, vector<5x64xf32>, vector<5x64xf32> -> vector<25x64xf32>
    %200 = arith.truncf %199 : vector<25x64xf32> to vector<25x64xbf16>
    %c0_131 = arith.constant 0 : index
    %c0_132 = arith.constant 0 : index
    %c0_133 = arith.constant 0 : index
    %201 = vector.load %arg6[%c0_131, %c0_132, %c0_133] : memref<1x25x64xbf16, #tpu.memory_space<vmem>>, vector<1x25x64xbf16>
    %202 = vector.shape_cast %201 : vector<1x25x64xbf16> to vector<25x64xbf16>
    %203 = vector.shape_cast %200 : vector<25x64xbf16> to vector<1x25x64xbf16>
    tpu.vector_store %arg6[%c0_131, %c0_132, %c0_133], %203 {strides = array<i32>} : memref<1x25x64xbf16, #tpu.memory_space<vmem>>, vector<1x25x64xbf16>,
    return
  }
  func.func @transform_0(%arg0: i32) -> (i32, i32, i32) {
    %c0_i32 = arith.constant 0 : i32
    %c0_i32_0 = arith.constant 0 : i32
    %c0_i32_1 = arith.constant 0 : i32
    return %arg0, %c0_i32, %c0_i32_0 : i32, i32, i32
  }
  func.func @transform_1(%arg0: i32) -> (i32, i32, i32) {
    %c0_i32 = arith.constant 0 : i32
    %c0_i32_0 = arith.constant 0 : i32
    %c0_i32_1 = arith.constant 0 : i32
    %c0_i32_2 = arith.constant 0 : i32
    return %c0_i32, %c0_i32_0, %c0_i32_1 : i32, i32, i32
  }
  func.func @transform_2(%arg0: i32) -> (i32, i32) {
    %c0_i32 = arith.constant 0 : i32
    %c0_i32_0 = arith.constant 0 : i32
    %c0_i32_1 = arith.constant 0 : i32
    return %c0_i32, %c0_i32_0 : i32, i32
  }
  func.func @transform_3(%arg0: i32) -> (i32, i32, i32) {
    %c0_i32 = arith.constant 0 : i32
    %c0_i32_0 = arith.constant 0 : i32
    %c0_i32_1 = arith.constant 0 : i32
    %c0_i32_2 = arith.constant 0 : i32
    return %c0_i32, %c0_i32_0, %c0_i32_1 : i32, i32, i32
  }
  func.func @transform_4(%arg0: i32) -> (i32, i32) {
    %c0_i32 = arith.constant 0 : i32
    %c0_i32_0 = arith.constant 0 : i32
    %c0_i32_1 = arith.constant 0 : i32
    return %c0_i32, %c0_i32_0 : i32, i32
  }
  func.func @transform_5(%arg0: i32) -> (i32, i32, i32) {
    %c0_i32 = arith.constant 0 : i32
    %c0_i32_0 = arith.constant 0 : i32
    %c0_i32_1 = arith.constant 0 : i32
    return %arg0, %c0_i32, %c0_i32_0 : i32, i32, i32
  }
}

</mosaic_0001>

<llo_original>
// kernel: cnn_forward.3
$region0: #{cnn_forward.3}
  #allocation0 [shape = 'u32[]', space=smem, size = 0x4, offset = 0x4, fixed_abs, tag = 'smem constant byte address 0x4 - core index']
  #allocation1 [shape = 'u32[72,128]{1,0:T(1,128)}', space=vmem, size = 0x9000, scoped, tag = 'internal scratch']
  #allocation2 [shape = 'f32[2,256]{1,0:T(2,128)}', space=vmem, size = 0x800, scoped, tag = 'scratch operand']
  %s0 = inlined_call_operand.vmem [shape: bf16[2,1600], index: 0, kind: input, shape index: {}]
  %s1 = inlined_call_operand.vmem [shape: bf16[1600,256], index: 1, kind: input, shape index: {}]
  %s2 = inlined_call_operand.vmem [shape: f32[1,256], index: 2, kind: input, shape index: {}]
  %s3 = inlined_call_operand.vmem [shape: bf16[256,128], index: 3, kind: input, shape index: {}]
  %s4 = inlined_call_operand.vmem [shape: f32[1,128], index: 4, kind: input, shape index: {}]
  %s5 = inlined_call_operand.vmem [shape: bf16[128,10], index: 5, kind: input, shape index: {}]
  %s6 = inlined_call_operand.vmem [shape: f32[1,10], index: 6, kind: input, shape index: {}]
  %s7 = inlined_call_operand.hbm [shape: f32[2,10], index: 7, kind: output, shape index: {}]
  %s8 = sld [smem:[#allocation0]]
  $region46: #{cnn_forward.3} parent=0
    _
  %s10 = ssub.s32 1, %s8
  %s11 = scalar_select 0, %s10, %s8
  $region1: #{cnn_forward.3} parent=0
    #allocation3 [shape = 'u8[1024]{0}', space=vmem, size = 0x400, scoped, tag = 'output window, operand 0, single buffered']
    #allocation4 [shape = 's32[1]{0}', space=sflag, size = 0x4, scoped, tag = 'scoped memory for cnn_forward.3']
    %12 = vsyncpa [#allocation4], 0
    // Predicated region
    $region2: #{cnn_forward.3} parent=1 // pred_check
      _
    $region3: #{cnn_forward.3} parent=1 // pred_check_branch
      %14 = sbr.rel (0) target = $region5
    $region4: #{cnn_forward.3} parent=1 // pred_region
      _
    $region5: #{cnn_forward.3} parent=1 // pred_fallthru
      _
    // Predicated region
    $region6: #{cnn_forward.3} parent=1 // pred_check
      _
    $region7: #{cnn_forward.3} parent=1 // pred_check_branch
      %16 = sbr.rel (0) target = $region9
    $region8: #{cnn_forward.3} parent=1 // pred_region
      _
    $region9: #{cnn_forward.3} parent=1 // pred_fallthru
      _
    // Predicated region
    $region10: #{cnn_forward.3} parent=1 // pred_check
      _
    $region11: #{cnn_forward.3} parent=1 // pred_check_branch
      %18 = sbr.rel (0) target = $region13
    $region12: #{cnn_forward.3} parent=1 // pred_region
      _
    $region13: #{cnn_forward.3} parent=1 // pred_fallthru
      _
    // Predicated region
    $region14: #{cnn_forward.3} parent=1 // pred_check
      _
    $region15: #{cnn_forward.3} parent=1 // pred_check_branch
      %20 = sbr.rel (0) target = $region17
    $region16: #{cnn_forward.3} parent=1 // pred_region
      _
    $region17: #{cnn_forward.3} parent=1 // pred_fallthru
      _
    // Predicated region
    $region18: #{cnn_forward.3} parent=1 // pred_check
      _
    $region19: #{cnn_forward.3} parent=1 // pred_check_branch
      %22 = sbr.rel (0) target = $region21
    $region20: #{cnn_forward.3} parent=1 // pred_region
      _
    $region21: #{cnn_forward.3} parent=1 // pred_fallthru
      _
    // Predicated region
    $region22: #{cnn_forward.3} parent=1 // pred_check
      _
    $region23: #{cnn_forward.3} parent=1 // pred_check_branch
      %24 = sbr.rel (0) target = $region25
    $region24: #{cnn_forward.3} parent=1 // pred_region
      _
    $region25: #{cnn_forward.3} parent=1 // pred_fallthru
      _
    // Predicated region
    $region26: #{cnn_forward.3} parent=1 // pred_check
      _
    $region27: #{cnn_forward.3} parent=1 // pred_check_branch
      %26 = sbr.rel (0) target = $region29
    $region28: #{cnn_forward.3} parent=1 // pred_region
      _
    $region29: #{cnn_forward.3} parent=1 // pred_fallthru
      _
    %p28 = scmp.eq.s32.totalorder 0, 0
    // Predicated region
    $region30: #{cnn_forward.3} parent=1 // pred_check
      %p29 = pneg %p28
    $region31: #{cnn_forward.3} parent=1 // pred_check_branch
      %31 = sbr.rel (%p29) target = $region33
    $region32: #{cnn_forward.3} parent=1 // pred_region
      %32 = vst [vmem:[#allocation2] sm:$0xf] 0.0
    $region33: #{cnn_forward.3} parent=1 // pred_fallthru
      _
    %v33 = vld [vmem:[#allocation2] sm:$0xf]
    %v34 = vld [vmem:[%s0] sm:$0xff]
    %v35 = vld [vmem:[%s0 + $0x8] sm:$0x1f]
    %v36 = vld [vmem:[%s1] sm:$0xff]
    %v37 = vld [vmem:[%s1 + $0x8] sm:$0xff]
    %v38 = vld [vmem:[%s1 + $0x10] sm:$0xff]
    %v39 = vld [vmem:[%s1 + $0x18] sm:$0xff]
    %v40 = vld [vmem:[%s1 + $0x20] sm:$0xff]
    %v41 = vld [vmem:[%s1 + $0x28] sm:$0xff]
    %v42 = vld [vmem:[%s1 + $0x30] sm:$0xff]
    %v43 = vld [vmem:[%s1 + $0x38] sm:$0xff]
    %v44 = vld [vmem:[%s1 + $0x40] sm:$0xff]
    %v45 = vld [vmem:[%s1 + $0x48] sm:$0xff]
    %v46 = vld [vmem:[%s1 + $0x50] sm:$0xff]
    %v47 = vld [vmem:[%s1 + $0x58] sm:$0xff]
    %v48 = vld [vmem:[%s1 + $0x60] sm:$0xff]
    %v49 = vld [vmem:[%s1 + $0x68] sm:$0xff]
    %v50 = vld [vmem:[%s1 + $0x70] sm:$0xff]
    %v51 = vld [vmem:[%s1 + $0x78] sm:$0xff]
    %v52 = vld [vmem:[%s1 + $0x80] sm:$0xff]
    %v53 = vld [vmem:[%s1 + $0x88] sm:$0xff]
    %v54 = vld [vmem:[%s1 + $0x90] sm:$0xff]
    %v55 = vld [vmem:[%s1 + $0x98] sm:$0xff]
    %v56 = vld [vmem:[%s1 + $0xa0] sm:$0xff]
    %v57 = vld [vmem:[%s1 + $0xa8] sm:$0xff]
    %v58 = vld [vmem:[%s1 + $0xb0] sm:$0xff]
    %v59 = vld [vmem:[%s1 + $0xb8] sm:$0xff]
    %v60 = vld [vmem:[%s1 + $0xc0] sm:$0xff]
    %v61 = vld [vmem:[%s1 + $0xc8] sm:$0xff]
    %v62 = vld [vmem:[%s1 + $0xd0] sm:$0xff]
    %v63 = vld [vmem:[%s1 + $0xd8] sm:$0xff]
    %v64 = vld [vmem:[%s1 + $0xe0] sm:$0xff]
    %v65 = vld [vmem:[%s1 + $0xe8] sm:$0xff]
    %v66 = vld [vmem:[%s1 + $0xf0] sm:$0xff]
    %v67 = vld [vmem:[%s1 + $0xf8] sm:$0xff]
    %v68 = vld [vmem:[%s1 + $0x100] sm:$0xff]
    %v69 = vld [vmem:[%s1 + $0x108] sm:$0xff]
    %v70 = vld [vmem:[%s1 + $0x110] sm:$0xff]
    %v71 = vld [vmem:[%s1 + $0x118] sm:$0xff]
    %v72 = vld [vmem:[%s1 + $0x120] sm:$0xff]
    %v73 = vld [vmem:[%s1 + $0x128] sm:$0xff]
    %v74 = vld [vmem:[%s1 + $0x130] sm:$0xff]
    %v75 = vld [vmem:[%s1 + $0x138] sm:$0xff]
    %v76 = vld [vmem:[%s1 + $0x140] sm:$0xff]
    %v77 = vld [vmem:[%s1 + $0x148] sm:$0xff]
    %v78 = vld [vmem:[%s1 + $0x150] sm:$0xff]
    %v79 = vld [vmem:[%s1 + $0x158] sm:$0xff]
    %v80 = vld [vmem:[%s1 + $0x160] sm:$0xff]
    %v81 = vld [vmem:[%s1 + $0x168] sm:$0xff]
    %v82 = vld [vmem:[%s1 + $0x170] sm:$0xff]
    %v83 = vld [vmem:[%s1 + $0x178] sm:$0xff]
    %v84 = vld [vmem:[%s1 + $0x180] sm:$0xff]
    %v85 = vld [vmem:[%s1 + $0x188] sm:$0xff]
    %v86 = vld [vmem:[%s1 + $0x190] sm:$0xff]
    %v87 = vld [vmem:[%s1 + $0x198] sm:$0xff]
    %v88 = vld [vmem:[%s1 + $0x1a0] sm:$0xff]
    %v89 = vld [vmem:[%s1 + $0x1a8] sm:$0xff]
    %v90 = vld [vmem:[%s1 + $0x1b0] sm:$0xff]
    %v91 = vld [vmem:[%s1 + $0x1b8] sm:$0xff]
    %v92 = vld [vmem:[%s1 + $0x1c0] sm:$0xff]
    %v93 = vld [vmem:[%s1 + $0x1c8] sm:$0xff]
    %v94 = vld [vmem:[%s1 + $0x1d0] sm:$0xff]
    %v95 = vld [vmem:[%s1 + $0x1d8] sm:$0xff]
    %v96 = vld [vmem:[%s1 + $0x1e0] sm:$0xff]
    %v97 = vld [vmem:[%s1 + $0x1e8] sm:$0xff]
    %v98 = vld [vmem:[%s1 + $0x1f0] sm:$0xff]
    %v99 = vld [vmem:[%s1 + $0x1f8] sm:$0xff]
    %v100 = vld [vmem:[%s1 + $0x200] sm:$0xff]
    %v101 = vld [vmem:[%s1 + $0x208] sm:$0xff]
    %v102 = vld [vmem:[%s1 + $0x210] sm:$0xff]
    %v103 = vld [vmem:[%s1 + $0x218] sm:$0xff]
    %v104 = vld [vmem:[%s1 + $0x220] sm:$0xff]
    %v105 = vld [vmem:[%s1 + $0x228] sm:$0xff]
    %v106 = vld [vmem:[%s1 + $0x230] sm:$0xff]
    %v107 = vld [vmem:[%s1 + $0x238] sm:$0xff]
    %v108 = vld [vmem:[%s1 + $0x240] sm:$0xff]
    %v109 = vld [vmem:[%s1 + $0x248] sm:$0xff]
    %v110 = vld [vmem:[%s1 + $0x250] sm:$0xff]
    %v111 = vld [vmem:[%s1 + $0x258] sm:$0xff]
    %v112 = vld [vmem:[%s1 + $0x260] sm:$0xff]
    %v113 = vld [vmem:[%s1 + $0x268] sm:$0xff]
    %v114 = vld [vmem:[%s1 + $0x270] sm:$0xff]
    %v115 = vld [vmem:[%s1 + $0x278] sm:$0xff]
    %v116 = vld [vmem:[%s1 + $0x280] sm:$0xff]
    %v117 = vld [vmem:[%s1 + $0x288] sm:$0xff]
    %v118 = vld [vmem:[%s1 + $0x290] sm:$0xff]
    %v119 = vld [vmem:[%s1 + $0x298] sm:$0xff]
    %v120 = vld [vmem:[%s1 + $0x2a0] sm:$0xff]
    %v121 = vld [vmem:[%s1 + $0x2a8] sm:$0xff]
    %v122 = vld [vmem:[%s1 + $0x2b0] sm:$0xff]
    %v123 = vld [vmem:[%s1 + $0x2b8] sm:$0xff]
    %v124 = vld [vmem:[%s1 + $0x2c0] sm:$0xff]
    %v125 = vld [vmem:[%s1 + $0x2c8] sm:$0xff]
    %v126 = vld [vmem:[%s1 + $0x2d0] sm:$0xff]
    %v127 = vld [vmem:[%s1 + $0x2d8] sm:$0xff]
    %v128 = vld [vmem:[%s1 + $0x2e0] sm:$0xff]
    %v129 = vld [vmem:[%s1 + $0x2e8] sm:$0xff]
    %v130 = vld [vmem:[%s1 + $0x2f0] sm:$0xff]
    %v131 = vld [vmem:[%s1 + $0x2f8] sm:$0xff]
    %v132 = vld [vmem:[%s1 + $0x300] sm:$0xff]
    %v133 = vld [vmem:[%s1 + $0x308] sm:$0xff]
    %v134 = vld [vmem:[%s1 + $0x310] sm:$0xff]
    %v135 = vld [vmem:[%s1 + $0x318] sm:$0xff]
    %v136 = vld [vmem:[%s1 + $0x320] sm:$0xff]
    %v137 = vld [vmem:[%s1 + $0x328] sm:$0xff]
    %v138 = vld [vmem:[%s1 + $0x330] sm:$0xff]
    %v139 = vld [vmem:[%s1 + $0x338] sm:$0xff]
    %v140 = vld [vmem:[%s1 + $0x340] sm:$0xff]
    %v141 = vld [vmem:[%s1 + $0x348] sm:$0xff]
    %v142 = vld [vmem:[%s1 + $0x350] sm:$0xff]
    %v143 = vld [vmem:[%s1 + $0x358] sm:$0xff]
    %v144 = vld [vmem:[%s1 + $0x360] sm:$0xff]
    %v145 = vld [vmem:[%s1 + $0x368] sm:$0xff]
    %v146 = vld [vmem:[%s1 + $0x370] sm:$0xff]
    %v147 = vld [vmem:[%s1 + $0x378] sm:$0xff]
    %v148 = vld [vmem:[%s1 + $0x380] sm:$0xff]
    %v149 = vld [vmem:[%s1 + $0x388] sm:$0xff]
    %v150 = vld [vmem:[%s1 + $0x390] sm:$0xff]
    %v151 = vld [vmem:[%s1 + $0x398] sm:$0xff]
    %v152 = vld [vmem:[%s1 + $0x3a0] sm:$0xff]
    %v153 = vld [vmem:[%s1 + $0x3a8] sm:$0xff]
    %v154 = vld [vmem:[%s1 + $0x3b0] sm:$0xff]
    %v155 = vld [vmem:[%s1 + $0x3b8] sm:$0xff]
    %v156 = vld [vmem:[%s1 + $0x3c0] sm:$0xff]
    %v157 = vld [vmem:[%s1 + $0x3c8] sm:$0xff]
    %v158 = vld [vmem:[%s1 + $0x3d0] sm:$0xff]
    %v159 = vld [vmem:[%s1 + $0x3d8] sm:$0xff]
    %v160 = vld [vmem:[%s1 + $0x3e0] sm:$0xff]
    %v161 = vld [vmem:[%s1 + $0x3e8] sm:$0xff]
    %v162 = vld [vmem:[%s1 + $0x3f0] sm:$0xff]
    %v163 = vld [vmem:[%s1 + $0x3f8] sm:$0xff]
    %v164 = vld [vmem:[%s1 + $0x400] sm:$0xff]
    %v165 = vld [vmem:[%s1 + $0x408] sm:$0xff]
    %v166 = vld [vmem:[%s1 + $0x410] sm:$0xff]
    %v167 = vld [vmem:[%s1 + $0x418] sm:$0xff]
    %v168 = vld [vmem:[%s1 + $0x420] sm:$0xff]
    %v169 = vld [vmem:[%s1 + $0x428] sm:$0xff]
    %v170 = vld [vmem:[%s1 + $0x430] sm:$0xff]
    %v171 = vld [vmem:[%s1 + $0x438] sm:$0xff]
    %v172 = vld [vmem:[%s1 + $0x440] sm:$0xff]
    %v173 = vld [vmem:[%s1 + $0x448] sm:$0xff]
    %v174 = vld [vmem:[%s1 + $0x450] sm:$0xff]
    %v175 = vld [vmem:[%s1 + $0x458] sm:$0xff]
    %v176 = vld [vmem:[%s1 + $0x460] sm:$0xff]
    %v177 = vld [vmem:[%s1 + $0x468] sm:$0xff]
    %v178 = vld [vmem:[%s1 + $0x470] sm:$0xff]
    %v179 = vld [vmem:[%s1 + $0x478] sm:$0xff]
    %v180 = vld [vmem:[%s1 + $0x480] sm:$0xff]
    %v181 = vld [vmem:[%s1 + $0x488] sm:$0xff]
    %v182 = vld [vmem:[%s1 + $0x490] sm:$0xff]
    %v183 = vld [vmem:[%s1 + $0x498] sm:$0xff]
    %v184 = vld [vmem:[%s1 + $0x4a0] sm:$0xff]
    %v185 = vld [vmem:[%s1 + $0x4a8] sm:$0xff]
    %v186 = vld [vmem:[%s1 + $0x4b0] sm:$0xff]
    %v187 = vld [vmem:[%s1 + $0x4b8] sm:$0xff]
    %v188 = vld [vmem:[%s1 + $0x4c0] sm:$0xff]
    %v189 = vld [vmem:[%s1 + $0x4c8] sm:$0xff]
    %v190 = vld [vmem:[%s1 + $0x4d0] sm:$0xff]
    %v191 = vld [vmem:[%s1 + $0x4d8] sm:$0xff]
    %v192 = vld [vmem:[%s1 + $0x4e0] sm:$0xff]
    %v193 = vld [vmem:[%s1 + $0x4e8] sm:$0xff]
    %v194 = vld [vmem:[%s1 + $0x4f0] sm:$0xff]
    %v195 = vld [vmem:[%s1 + $0x4f8] sm:$0xff]
    %v196 = vld [vmem:[%s1 + $0x500] sm:$0xff]
    %v197 = vld [vmem:[%s1 + $0x508] sm:$0xff]
    %v198 = vld [vmem:[%s1 + $0x510] sm:$0xff]
    %v199 = vld [vmem:[%s1 + $0x518] sm:$0xff]
    %v200 = vld [vmem:[%s1 + $0x520] sm:$0xff]
    %v201 = vld [vmem:[%s1 + $0x528] sm:$0xff]
    %v202 = vld [vmem:[%s1 + $0x530] sm:$0xff]
    %v203 = vld [vmem:[%s1 + $0x538] sm:$0xff]
    %v204 = vld [vmem:[%s1 + $0x540] sm:$0xff]
    %v205 = vld [vmem:[%s1 + $0x548] sm:$0xff]
    %v206 = vld [vmem:[%s1 + $0x550] sm:$0xff]
    %v207 = vld [vmem:[%s1 + $0x558] sm:$0xff]
    %v208 = vld [vmem:[%s1 + $0x560] sm:$0xff]
    %v209 = vld [vmem:[%s1 + $0x568] sm:$0xff]
    %v210 = vld [vmem:[%s1 + $0x570] sm:$0xff]
    %v211 = vld [vmem:[%s1 + $0x578] sm:$0xff]
    %v212 = vld [vmem:[%s1 + $0x580] sm:$0xff]
    %v213 = vld [vmem:[%s1 + $0x588] sm:$0xff]
    %v214 = vld [vmem:[%s1 + $0x590] sm:$0xff]
    %v215 = vld [vmem:[%s1 + $0x598] sm:$0xff]
    %v216 = vld [vmem:[%s1 + $0x5a0] sm:$0xff]
    %v217 = vld [vmem:[%s1 + $0x5a8] sm:$0xff]
    %v218 = vld [vmem:[%s1 + $0x5b0] sm:$0xff]
    %v219 = vld [vmem:[%s1 + $0x5b8] sm:$0xff]
    %v220 = vld [vmem:[%s1 + $0x5c0] sm:$0xff]
    %v221 = vld [vmem:[%s1 + $0x5c8] sm:$0xff]
    %v222 = vld [vmem:[%s1 + $0x5d0] sm:$0xff]
    %v223 = vld [vmem:[%s1 + $0x5d8] sm:$0xff]
    %v224 = vld [vmem:[%s1 + $0x5e0] sm:$0xff]
    %v225 = vld [vmem:[%s1 + $0x5e8] sm:$0xff]
    %v226 = vld [vmem:[%s1 + $0x5f0] sm:$0xff]
    %v227 = vld [vmem:[%s1 + $0x5f8] sm:$0xff]
    %v228 = vld [vmem:[%s1 + $0x600] sm:$0xff]
    %v229 = vld [vmem:[%s1 + $0x608] sm:$0xff]
    %v230 = vld [vmem:[%s1 + $0x610] sm:$0xff]
    %v231 = vld [vmem:[%s1 + $0x618] sm:$0xff]
    %v232 = vld [vmem:[%s1 + $0x620] sm:$0xff]
    %v233 = vld [vmem:[%s1 + $0x628] sm:$0xff]
    %v234 = vld [vmem:[%s1 + $0x630] sm:$0xff]
    %v235 = vld [vmem:[%s1 + $0x638] sm:$0xff]
    %237 = vst [vmem:[#allocation1] ss:$9 sm:$0xff] %v34
    %v238 = vld [vmem:[#allocation1] sm:$0xff]
    %v239 = vld [vmem:[#allocation1 + $0x9] sm:$0xff]
    %v240 = vld [vmem:[#allocation1 + $0x12] sm:$0xff]
    %v241 = vld [vmem:[#allocation1 + $0x1b] sm:$0xff]
    %v242 = vld [vmem:[#allocation1 + $0x24] sm:$0xff]
    %v243 = vld [vmem:[#allocation1 + $0x2d] sm:$0xff]
    %v244 = vld [vmem:[#allocation1 + $0x36] sm:$0xff]
    %v245 = vld [vmem:[#allocation1 + $0x3f] sm:$0xff]
    %247 = vst [vmem:[#allocation1] ss:$9 sm:$0xff] %v35
    %v248 = vld [vmem:[#allocation1] sm:$0xff]
    %v249 = vld [vmem:[#allocation1 + $0x9] sm:$0xff]
    %v250 = vld [vmem:[#allocation1 + $0x12] sm:$0xff]
    %v251 = vld [vmem:[#allocation1 + $0x1b] sm:$0xff]
    %v252 = vld [vmem:[#allocation1 + $0x24] sm:$0xff]
    %v465 = vunpack.c.l.b16 %v36
    %v466 = vunpack.c.h.b16 %v36
    %v467 = vunpack.c.l.b16 %v37
    %v468 = vunpack.c.h.b16 %v37
    %v469 = vunpack.c.l.b16 %v38
    %v470 = vunpack.c.h.b16 %v38
    %v471 = vunpack.c.l.b16 %v39
    %v472 = vunpack.c.h.b16 %v39
    %v473 = vunpack.c.l.b16 %v40
    %v474 = vunpack.c.h.b16 %v40
    %v475 = vunpack.c.l.b16 %v41
    %v476 = vunpack.c.h.b16 %v41
    %v477 = vunpack.c.l.b16 %v42
    %v478 = vunpack.c.h.b16 %v42
    %v479 = vunpack.c.l.b16 %v43
    %v480 = vunpack.c.h.b16 %v43
    %v481 = vunpack.c.l.b16 %v44
    %v482 = vunpack.c.h.b16 %v44
    %v483 = vunpack.c.l.b16 %v45
    %v484 = vunpack.c.h.b16 %v45
    %v485 = vunpack.c.l.b16 %v46
    %v486 = vunpack.c.h.b16 %v46
    %v487 = vunpack.c.l.b16 %v47
    %v488 = vunpack.c.h.b16 %v47
    %v489 = vunpack.c.l.b16 %v48
    %v490 = vunpack.c.h.b16 %v48
    %v491 = vunpack.c.l.b16 %v49
    %v492 = vunpack.c.h.b16 %v49
    %v493 = vunpack.c.l.b16 %v50
    %v494 = vunpack.c.h.b16 %v50
    %v495 = vunpack.c.l.b16 %v51
    %v496 = vunpack.c.h.b16 %v51
    %v497 = vunpack.c.l.b16 %v52
    %v498 = vunpack.c.h.b16 %v52
    %v499 = vunpack.c.l.b16 %v53
    %v500 = vunpack.c.h.b16 %v53
    %v501 = vunpack.c.l.b16 %v54
    %v502 = vunpack.c.h.b16 %v54
    %v503 = vunpack.c.l.b16 %v55
    %v504 = vunpack.c.h.b16 %v55
    %v505 = vunpack.c.l.b16 %v56
    %v506 = vunpack.c.h.b16 %v56
    %v507 = vunpack.c.l.b16 %v57
    %v508 = vunpack.c.h.b16 %v57
    %v509 = vunpack.c.l.b16 %v58
    %v510 = vunpack.c.h.b16 %v58
    %v511 = vunpack.c.l.b16 %v59
    %v512 = vunpack.c.h.b16 %v59
    %v513 = vunpack.c.l.b16 %v60
    %v514 = vunpack.c.h.b16 %v60
    %v515 = vunpack.c.l.b16 %v61
    %v516 = vunpack.c.h.b16 %v61
    %v517 = vunpack.c.l.b16 %v62
    %v518 = vunpack.c.h.b16 %v62
    %v519 = vunpack.c.l.b16 %v63
    %v520 = vunpack.c.h.b16 %v63
    %v521 = vunpack.c.l.b16 %v64
    %v522 = vunpack.c.h.b16 %v64
    %v523 = vunpack.c.l.b16 %v65
    %v524 = vunpack.c.h.b16 %v65
    %v525 = vunpack.c.l.b16 %v66
    %v526 = vunpack.c.h.b16 %v66
    %v527 = vunpack.c.l.b16 %v67
    %v528 = vunpack.c.h.b16 %v67
    %v529 = vunpack.c.l.b16 %v68
    %v530 = vunpack.c.h.b16 %v68
    %v531 = vunpack.c.l.b16 %v69
    %v532 = vunpack.c.h.b16 %v69
    %v533 = vunpack.c.l.b16 %v70
    %v534 = vunpack.c.h.b16 %v70
    %v535 = vunpack.c.l.b16 %v71
    %v536 = vunpack.c.h.b16 %v71
    %v537 = vunpack.c.l.b16 %v72
    %v538 = vunpack.c.h.b16 %v72
    %v539 = vunpack.c.l.b16 %v73
    %v540 = vunpack.c.h.b16 %v73
    %v541 = vunpack.c.l.b16 %v74
    %v542 = vunpack.c.h.b16 %v74
    %v543 = vunpack.c.l.b16 %v75
    %v544 = vunpack.c.h.b16 %v75
    %v545 = vunpack.c.l.b16 %v76
    %v546 = vunpack.c.h.b16 %v76
    %v547 = vunpack.c.l.b16 %v77
    %v548 = vunpack.c.h.b16 %v77
    %v549 = vunpack.c.l.b16 %v78
    %v550 = vunpack.c.h.b16 %v78
    %v551 = vunpack.c.l.b16 %v79
    %v552 = vunpack.c.h.b16 %v79
    %v553 = vunpack.c.l.b16 %v80
    %v554 = vunpack.c.h.b16 %v80
    %v555 = vunpack.c.l.b16 %v81
    %v556 = vunpack.c.h.b16 %v81
    %v557 = vunpack.c.l.b16 %v82
    %v558 = vunpack.c.h.b16 %v82
    %v559 = vunpack.c.l.b16 %v83
    %v560 = vunpack.c.h.b16 %v83
    %v561 = vunpack.c.l.b16 %v84
    %v562 = vunpack.c.h.b16 %v84
    %v563 = vunpack.c.l.b16 %v85
    %v564 = vunpack.c.h.b16 %v85
    %v565 = vunpack.c.l.b16 %v86
    %v566 = vunpack.c.h.b16 %v86
    %v567 = vunpack.c.l.b16 %v87
    %v568 = vunpack.c.h.b16 %v87
    %v569 = vunpack.c.l.b16 %v88
    %v570 = vunpack.c.h.b16 %v88
    %v571 = vunpack.c.l.b16 %v89
    %v572 = vunpack.c.h.b16 %v89
    %v573 = vunpack.c.l.b16 %v90
    %v574 = vunpack.c.h.b16 %v90
    %v575 = vunpack.c.l.b16 %v91
    %v576 = vunpack.c.h.b16 %v91
    %v577 = vunpack.c.l.b16 %v92
    %v578 = vunpack.c.h.b16 %v92
    %v579 = vunpack.c.l.b16 %v93
    %v580 = vunpack.c.h.b16 %v93
    %v581 = vunpack.c.l.b16 %v94
    %v582 = vunpack.c.h.b16 %v94
    %v583 = vunpack.c.l.b16 %v95
    %v584 = vunpack.c.h.b16 %v95
    %v585 = vunpack.c.l.b16 %v96
    %v586 = vunpack.c.h.b16 %v96
    %v587 = vunpack.c.l.b16 %v97
    %v588 = vunpack.c.h.b16 %v97
    %v589 = vunpack.c.l.b16 %v98
    %v590 = vunpack.c.h.b16 %v98
    %v591 = vunpack.c.l.b16 %v99
    %v592 = vunpack.c.h.b16 %v99
    %v593 = vunpack.c.l.b16 %v100
    %v594 = vunpack.c.h.b16 %v100
    %v595 = vunpack.c.l.b16 %v101
    %v596 = vunpack.c.h.b16 %v101
    %v597 = vunpack.c.l.b16 %v102
    %v598 = vunpack.c.h.b16 %v102
    %v599 = vunpack.c.l.b16 %v103
    %v600 = vunpack.c.h.b16 %v103
    %v601 = vunpack.c.l.b16 %v104
    %v602 = vunpack.c.h.b16 %v104
    %v603 = vunpack.c.l.b16 %v105
    %v604 = vunpack.c.h.b16 %v105
    %v605 = vunpack.c.l.b16 %v106
    %v606 = vunpack.c.h.b16 %v106
    %v607 = vunpack.c.l.b16 %v107
    %v608 = vunpack.c.h.b16 %v107
    %v609 = vunpack.c.l.b16 %v108
    %v610 = vunpack.c.h.b16 %v108
    %v611 = vunpack.c.l.b16 %v109
    %v612 = vunpack.c.h.b16 %v109
    %v613 = vunpack.c.l.b16 %v110
    %v614 = vunpack.c.h.b16 %v110
    %v615 = vunpack.c.l.b16 %v111
    %v616 = vunpack.c.h.b16 %v111
    %v617 = vunpack.c.l.b16 %v112
    %v618 = vunpack.c.h.b16 %v112
    %v619 = vunpack.c.l.b16 %v113
    %v620 = vunpack.c.h.b16 %v113
    %v621 = vunpack.c.l.b16 %v114
    %v622 = vunpack.c.h.b16 %v114
    %v623 = vunpack.c.l.b16 %v115
    %v624 = vunpack.c.h.b16 %v115
    %v625 = vunpack.c.l.b16 %v116
    %v626 = vunpack.c.h.b16 %v116
    %v627 = vunpack.c.l.b16 %v117
    %v628 = vunpack.c.h.b16 %v117
    %v629 = vunpack.c.l.b16 %v118
    %v630 = vunpack.c.h.b16 %v118
    %v631 = vunpack.c.l.b16 %v119
    %v632 = vunpack.c.h.b16 %v119
    %v633 = vunpack.c.l.b16 %v120
    %v634 = vunpack.c.h.b16 %v120
    %v635 = vunpack.c.l.b16 %v121
    %v636 = vunpack.c.h.b16 %v121
    %v637 = vunpack.c.l.b16 %v122
    %v638 = vunpack.c.h.b16 %v122
    %v639 = vunpack.c.l.b16 %v123
    %v640 = vunpack.c.h.b16 %v123
    %v641 = vunpack.c.l.b16 %v124
    %v642 = vunpack.c.h.b16 %v124
    %v643 = vunpack.c.l.b16 %v125
    %v644 = vunpack.c.h.b16 %v125
    %v645 = vunpack.c.l.b16 %v126
    %v646 = vunpack.c.h.b16 %v126
    %v647 = vunpack.c.l.b16 %v127
    %v648 = vunpack.c.h.b16 %v127
    %v649 = vunpack.c.l.b16 %v128
    %v650 = vunpack.c.h.b16 %v128
    %v651 = vunpack.c.l.b16 %v129
    %v652 = vunpack.c.h.b16 %v129
    %v653 = vunpack.c.l.b16 %v130
    %v654 = vunpack.c.h.b16 %v130
    %v655 = vunpack.c.l.b16 %v131
    %v656 = vunpack.c.h.b16 %v131
    %v657 = vunpack.c.l.b16 %v132
    %v658 = vunpack.c.h.b16 %v132
    %v659 = vunpack.c.l.b16 %v133
    %v660 = vunpack.c.h.b16 %v133
    %v661 = vunpack.c.l.b16 %v134
    %v662 = vunpack.c.h.b16 %v134
    %v663 = vunpack.c.l.b16 %v135
    %v664 = vunpack.c.h.b16 %v135
    %v665 = vunpack.c.l.b16 %v136
    %v666 = vunpack.c.h.b16 %v136
    %v667 = vunpack.c.l.b16 %v137
    %v668 = vunpack.c.h.b16 %v137
    %v669 = vunpack.c.l.b16 %v138
    %v670 = vunpack.c.h.b16 %v138
    %v671 = vunpack.c.l.b16 %v139
    %v672 = vunpack.c.h.b16 %v139
    %v673 = vunpack.c.l.b16 %v140
    %v674 = vunpack.c.h.b16 %v140
    %v675 = vunpack.c.l.b16 %v141
    %v676 = vunpack.c.h.b16 %v141
    %v677 = vunpack.c.l.b16 %v142
    %v678 = vunpack.c.h.b16 %v142
    %v679 = vunpack.c.l.b16 %v143
    %v680 = vunpack.c.h.b16 %v143
    %v681 = vunpack.c.l.b16 %v144
    %v682 = vunpack.c.h.b16 %v144
    %v683 = vunpack.c.l.b16 %v145
    %v684 = vunpack.c.h.b16 %v145
    %v685 = vunpack.c.l.b16 %v146
    %v686 = vunpack.c.h.b16 %v146
    %v687 = vunpack.c.l.b16 %v147
    %v688 = vunpack.c.h.b16 %v147
    %v689 = vunpack.c.l.b16 %v148
    %v690 = vunpack.c.h.b16 %v148
    %v691 = vunpack.c.l.b16 %v149
    %v692 = vunpack.c.h.b16 %v149
    %v693 = vunpack.c.l.b16 %v150
    %v694 = vunpack.c.h.b16 %v150
    %v695 = vunpack.c.l.b16 %v151
    %v696 = vunpack.c.h.b16 %v151
    %v697 = vunpack.c.l.b16 %v152
    %v698 = vunpack.c.h.b16 %v152
    %v699 = vunpack.c.l.b16 %v153
    %v700 = vunpack.c.h.b16 %v153
    %v701 = vunpack.c.l.b16 %v154
    %v702 = vunpack.c.h.b16 %v154
    %v703 = vunpack.c.l.b16 %v155
    %v704 = vunpack.c.h.b16 %v155
    %v705 = vunpack.c.l.b16 %v156
    %v706 = vunpack.c.h.b16 %v156
    %v707 = vunpack.c.l.b16 %v157
    %v708 = vunpack.c.h.b16 %v157
    %v709 = vunpack.c.l.b16 %v158
    %v710 = vunpack.c.h.b16 %v158
    %v711 = vunpack.c.l.b16 %v159
    %v712 = vunpack.c.h.b16 %v159
    %v713 = vunpack.c.l.b16 %v160
    %v714 = vunpack.c.h.b16 %v160
    %v715 = vunpack.c.l.b16 %v161
    %v716 = vunpack.c.h.b16 %v161
    %v717 = vunpack.c.l.b16 %v162
    %v718 = vunpack.c.h.b16 %v162
    %v719 = vunpack.c.l.b16 %v163
    %v720 = vunpack.c.h.b16 %v163
    %v721 = vunpack.c.l.b16 %v164
    %v722 = vunpack.c.h.b16 %v164
    %v723 = vunpack.c.l.b16 %v165
    %v724 = vunpack.c.h.b16 %v165
    %v725 = vunpack.c.l.b16 %v166
    %v726 = vunpack.c.h.b16 %v166
    %v727 = vunpack.c.l.b16 %v167
    %v728 = vunpack.c.h.b16 %v167
    %v729 = vunpack.c.l.b16 %v168
    %v730 = vunpack.c.h.b16 %v168
    %v731 = vunpack.c.l.b16 %v169
    %v732 = vunpack.c.h.b16 %v169
    %v733 = vunpack.c.l.b16 %v170
    %v734 = vunpack.c.h.b16 %v170
    %v735 = vunpack.c.l.b16 %v171
    %v736 = vunpack.c.h.b16 %v171
    %v737 = vunpack.c.l.b16 %v172
    %v738 = vunpack.c.h.b16 %v172
    %v739 = vunpack.c.l.b16 %v173
    %v740 = vunpack.c.h.b16 %v173
    %v741 = vunpack.c.l.b16 %v174
    %v742 = vunpack.c.h.b16 %v174
    %v743 = vunpack.c.l.b16 %v175
    %v744 = vunpack.c.h.b16 %v175
    %v745 = vunpack.c.l.b16 %v176
    %v746 = vunpack.c.h.b16 %v176
    %v747 = vunpack.c.l.b16 %v177
    %v748 = vunpack.c.h.b16 %v177
    %v749 = vunpack.c.l.b16 %v178
    %v750 = vunpack.c.h.b16 %v178
    %v751 = vunpack.c.l.b16 %v179
    %v752 = vunpack.c.h.b16 %v179
    %v753 = vunpack.c.l.b16 %v180
    %v754 = vunpack.c.h.b16 %v180
    %v755 = vunpack.c.l.b16 %v181
    %v756 = vunpack.c.h.b16 %v181
    %v757 = vunpack.c.l.b16 %v182
    %v758 = vunpack.c.h.b16 %v182
    %v759 = vunpack.c.l.b16 %v183
    %v760 = vunpack.c.h.b16 %v183
    %v761 = vunpack.c.l.b16 %v184
    %v762 = vunpack.c.h.b16 %v184
    %v763 = vunpack.c.l.b16 %v185
    %v764 = vunpack.c.h.b16 %v185
    %v765 = vunpack.c.l.b16 %v186
    %v766 = vunpack.c.h.b16 %v186
    %v767 = vunpack.c.l.b16 %v187
    %v768 = vunpack.c.h.b16 %v187
    %v769 = vunpack.c.l.b16 %v188
    %v770 = vunpack.c.h.b16 %v188
    %v771 = vunpack.c.l.b16 %v189
    %v772 = vunpack.c.h.b16 %v189
    %v773 = vunpack.c.l.b16 %v190
    %v774 = vunpack.c.h.b16 %v190
    %v775 = vunpack.c.l.b16 %v191
    %v776 = vunpack.c.h.b16 %v191
    %v777 = vunpack.c.l.b16 %v192
    %v778 = vunpack.c.h.b16 %v192
    %v779 = vunpack.c.l.b16 %v193
    %v780 = vunpack.c.h.b16 %v193
    %v781 = vunpack.c.l.b16 %v194
    %v782 = vunpack.c.h.b16 %v194
    %v783 = vunpack.c.l.b16 %v195
    %v784 = vunpack.c.h.b16 %v195
    %v785 = vunpack.c.l.b16 %v196
    %v786 = vunpack.c.h.b16 %v196
    %v787 = vunpack.c.l.b16 %v197
    %v788 = vunpack.c.h.b16 %v197
    %v789 = vunpack.c.l.b16 %v198
    %v790 = vunpack.c.h.b16 %v198
    %v791 = vunpack.c.l.b16 %v199
    %v792 = vunpack.c.h.b16 %v199
    %v793 = vunpack.c.l.b16 %v200
    %v794 = vunpack.c.h.b16 %v200
    %v795 = vunpack.c.l.b16 %v201
    %v796 = vunpack.c.h.b16 %v201
    %v797 = vunpack.c.l.b16 %v202
    %v798 = vunpack.c.h.b16 %v202
    %v799 = vunpack.c.l.b16 %v203
    %v800 = vunpack.c.h.b16 %v203
    %v801 = vunpack.c.l.b16 %v204
    %v802 = vunpack.c.h.b16 %v204
    %v803 = vunpack.c.l.b16 %v205
    %v804 = vunpack.c.h.b16 %v205
    %v805 = vunpack.c.l.b16 %v206
    %v806 = vunpack.c.h.b16 %v206
    %v807 = vunpack.c.l.b16 %v207
    %v808 = vunpack.c.h.b16 %v207
    %v809 = vunpack.c.l.b16 %v208
    %v810 = vunpack.c.h.b16 %v208
    %v811 = vunpack.c.l.b16 %v209
    %v812 = vunpack.c.h.b16 %v209
    %v813 = vunpack.c.l.b16 %v210
    %v814 = vunpack.c.h.b16 %v210
    %v815 = vunpack.c.l.b16 %v211
    %v816 = vunpack.c.h.b16 %v211
    %v817 = vunpack.c.l.b16 %v212
    %v818 = vunpack.c.h.b16 %v212
    %v819 = vunpack.c.l.b16 %v213
    %v820 = vunpack.c.h.b16 %v213
    %v821 = vunpack.c.l.b16 %v214
    %v822 = vunpack.c.h.b16 %v214
    %v823 = vunpack.c.l.b16 %v215
    %v824 = vunpack.c.h.b16 %v215
    %v825 = vunpack.c.l.b16 %v216
    %v826 = vunpack.c.h.b16 %v216
    %v827 = vunpack.c.l.b16 %v217
    %v828 = vunpack.c.h.b16 %v217
    %v829 = vunpack.c.l.b16 %v218
    %v830 = vunpack.c.h.b16 %v218
    %v831 = vunpack.c.l.b16 %v219
    %v832 = vunpack.c.h.b16 %v219
    %v833 = vunpack.c.l.b16 %v220
    %v834 = vunpack.c.h.b16 %v220
    %v835 = vunpack.c.l.b16 %v221
    %v836 = vunpack.c.h.b16 %v221
    %v837 = vunpack.c.l.b16 %v222
    %v838 = vunpack.c.h.b16 %v222
    %v839 = vunpack.c.l.b16 %v223
    %v840 = vunpack.c.h.b16 %v223
    %v841 = vunpack.c.l.b16 %v224
    %v842 = vunpack.c.h.b16 %v224
    %v843 = vunpack.c.l.b16 %v225
    %v844 = vunpack.c.h.b16 %v225
    %v845 = vunpack.c.l.b16 %v226
    %v846 = vunpack.c.h.b16 %v226
    %v847 = vunpack.c.l.b16 %v227
    %v848 = vunpack.c.h.b16 %v227
    %v849 = vunpack.c.l.b16 %v228
    %v850 = vunpack.c.h.b16 %v228
    %v851 = vunpack.c.l.b16 %v229
    %v852 = vunpack.c.h.b16 %v229
    %v853 = vunpack.c.l.b16 %v230
    %v854 = vunpack.c.h.b16 %v230
    %v855 = vunpack.c.l.b16 %v231
    %v856 = vunpack.c.h.b16 %v231
    %v857 = vunpack.c.l.b16 %v232
    %v858 = vunpack.c.h.b16 %v232
    %v859 = vunpack.c.l.b16 %v233
    %v860 = vunpack.c.h.b16 %v233
    %v861 = vunpack.c.l.b16 %v234
    %v862 = vunpack.c.h.b16 %v234
    %v863 = vunpack.c.l.b16 %v235
    %v864 = vunpack.c.h.b16 %v235
    %v865 = vpack.c.b16 %v467, %v465
    %v866 = vpack.c.b16 %v468, %v466
    %v867 = vpack.c.b16 %v471, %v469
    %v868 = vpack.c.b16 %v472, %v470
    %v869 = vpack.c.b16 %v475, %v473
    %v870 = vpack.c.b16 %v476, %v474
    %v871 = vpack.c.b16 %v479, %v477
    %v872 = vpack.c.b16 %v480, %v478
    %v873 = vpack.c.b16 %v483, %v481
    %v874 = vpack.c.b16 %v484, %v482
    %v875 = vpack.c.b16 %v487, %v485
    %v876 = vpack.c.b16 %v488, %v486
    %v877 = vpack.c.b16 %v491, %v489
    %v878 = vpack.c.b16 %v492, %v490
    %v879 = vpack.c.b16 %v495, %v493
    %v880 = vpack.c.b16 %v496, %v494
    %v881 = vpack.c.b16 %v499, %v497
    %v882 = vpack.c.b16 %v500, %v498
    %v883 = vpack.c.b16 %v503, %v501
    %v884 = vpack.c.b16 %v504, %v502
    %v885 = vpack.c.b16 %v507, %v505
    %v886 = vpack.c.b16 %v508, %v506
    %v887 = vpack.c.b16 %v511, %v509
    %v888 = vpack.c.b16 %v512, %v510
    %v889 = vpack.c.b16 %v515, %v513
    %v890 = vpack.c.b16 %v516, %v514
    %v891 = vpack.c.b16 %v519, %v517
    %v892 = vpack.c.b16 %v520, %v518
    %v893 = vpack.c.b16 %v523, %v521
    %v894 = vpack.c.b16 %v524, %v522
    %v895 = vpack.c.b16 %v527, %v525
    %v896 = vpack.c.b16 %v528, %v526
    %v897 = vpack.c.b16 %v531, %v529
    %v898 = vpack.c.b16 %v532, %v530
    %v899 = vpack.c.b16 %v535, %v533
    %v900 = vpack.c.b16 %v536, %v534
    %v901 = vpack.c.b16 %v539, %v537
    %v902 = vpack.c.b16 %v540, %v538
    %v903 = vpack.c.b16 %v543, %v541
    %v904 = vpack.c.b16 %v544, %v542
    %v905 = vpack.c.b16 %v547, %v545
    %v906 = vpack.c.b16 %v548, %v546
    %v907 = vpack.c.b16 %v551, %v549
    %v908 = vpack.c.b16 %v552, %v550
    %v909 = vpack.c.b16 %v555, %v553
    %v910 = vpack.c.b16 %v556, %v554
    %v911 = vpack.c.b16 %v559, %v557
    %v912 = vpack.c.b16 %v560, %v558
    %v913 = vpack.c.b16 %v563, %v561
    %v914 = vpack.c.b16 %v564, %v562
    %v915 = vpack.c.b16 %v567, %v565
    %v916 = vpack.c.b16 %v568, %v566
    %v917 = vpack.c.b16 %v571, %v569
    %v918 = vpack.c.b16 %v572, %v570
    %v919 = vpack.c.b16 %v575, %v573
    %v920 = vpack.c.b16 %v576, %v574
    %v921 = vpack.c.b16 %v579, %v577
    %v922 = vpack.c.b16 %v580, %v578
    %v923 = vpack.c.b16 %v583, %v581
    %v924 = vpack.c.b16 %v584, %v582
    %v925 = vpack.c.b16 %v587, %v585
    %v926 = vpack.c.b16 %v588, %v586
    %v927 = vpack.c.b16 %v591, %v589
    %v928 = vpack.c.b16 %v592, %v590
    %v929 = vpack.c.b16 %v595, %v593
    %v930 = vpack.c.b16 %v596, %v594
    %v931 = vpack.c.b16 %v599, %v597
    %v932 = vpack.c.b16 %v600, %v598
    %v933 = vpack.c.b16 %v603, %v601
    %v934 = vpack.c.b16 %v604, %v602
    %v935 = vpack.c.b16 %v607, %v605
    %v936 = vpack.c.b16 %v608, %v606
    %v937 = vpack.c.b16 %v611, %v609
    %v938 = vpack.c.b16 %v612, %v610
    %v939 = vpack.c.b16 %v615, %v613
    %v940 = vpack.c.b16 %v616, %v614
    %v941 = vpack.c.b16 %v619, %v617
    %v942 = vpack.c.b16 %v620, %v618
    %v943 = vpack.c.b16 %v623, %v621
    %v944 = vpack.c.b16 %v624, %v622
    %v945 = vpack.c.b16 %v627, %v625
    %v946 = vpack.c.b16 %v628, %v626
    %v947 = vpack.c.b16 %v631, %v629
    %v948 = vpack.c.b16 %v632, %v630
    %v949 = vpack.c.b16 %v635, %v633
    %v950 = vpack.c.b16 %v636, %v634
    %v951 = vpack.c.b16 %v639, %v637
    %v952 = vpack.c.b16 %v640, %v638
    %v953 = vpack.c.b16 %v643, %v641
    %v954 = vpack.c.b16 %v644, %v642
    %v955 = vpack.c.b16 %v647, %v645
    %v956 = vpack.c.b16 %v648, %v646
    %v957 = vpack.c.b16 %v651, %v649
    %v958 = vpack.c.b16 %v652, %v650
    %v959 = vpack.c.b16 %v655, %v653
    %v960 = vpack.c.b16 %v656, %v654
    %v961 = vpack.c.b16 %v659, %v657
    %v962 = vpack.c.b16 %v660, %v658
    %v963 = vpack.c.b16 %v663, %v661
    %v964 = vpack.c.b16 %v664, %v662
    %v965 = vpack.c.b16 %v667, %v665
    %v966 = vpack.c.b16 %v668, %v666
    %v967 = vpack.c.b16 %v671, %v669
    %v968 = vpack.c.b16 %v672, %v670
    %v969 = vpack.c.b16 %v675, %v673
    %v970 = vpack.c.b16 %v676, %v674
    %v971 = vpack.c.b16 %v679, %v677
    %v972 = vpack.c.b16 %v680, %v678
    %v973 = vpack.c.b16 %v683, %v681
    %v974 = vpack.c.b16 %v684, %v682
    %v975 = vpack.c.b16 %v687, %v685
    %v976 = vpack.c.b16 %v688, %v686
    %v977 = vpack.c.b16 %v691, %v689
    %v978 = vpack.c.b16 %v692, %v690
    %v979 = vpack.c.b16 %v695, %v693
    %v980 = vpack.c.b16 %v696, %v694
    %v981 = vpack.c.b16 %v699, %v697
    %v982 = vpack.c.b16 %v700, %v698
    %v983 = vpack.c.b16 %v703, %v701
    %v984 = vpack.c.b16 %v704, %v702
    %v985 = vpack.c.b16 %v707, %v705
    %v986 = vpack.c.b16 %v708, %v706
    %v987 = vpack.c.b16 %v711, %v709
    %v988 = vpack.c.b16 %v712, %v710
    %v989 = vpack.c.b16 %v715, %v713
    %v990 = vpack.c.b16 %v716, %v714
    %v991 = vpack.c.b16 %v719, %v717
    %v992 = vpack.c.b16 %v720, %v718
    %v993 = vpack.c.b16 %v723, %v721
    %v994 = vpack.c.b16 %v724, %v722
    %v995 = vpack.c.b16 %v727, %v725
    %v996 = vpack.c.b16 %v728, %v726
    %v997 = vpack.c.b16 %v731, %v729
    %v998 = vpack.c.b16 %v732, %v730
    %v999 = vpack.c.b16 %v735, %v733
    %v1000 = vpack.c.b16 %v736, %v734
    %v1001 = vpack.c.b16 %v739, %v737
    %v1002 = vpack.c.b16 %v740, %v738
    %v1003 = vpack.c.b16 %v743, %v741
    %v1004 = vpack.c.b16 %v744, %v742
    %v1005 = vpack.c.b16 %v747, %v745
    %v1006 = vpack.c.b16 %v748, %v746
    %v1007 = vpack.c.b16 %v751, %v749
    %v1008 = vpack.c.b16 %v752, %v750
    %v1009 = vpack.c.b16 %v755, %v753
    %v1010 = vpack.c.b16 %v756, %v754
    %v1011 = vpack.c.b16 %v759, %v757
    %v1012 = vpack.c.b16 %v760, %v758
    %v1013 = vpack.c.b16 %v763, %v761
    %v1014 = vpack.c.b16 %v764, %v762
    %v1015 = vpack.c.b16 %v767, %v765
    %v1016 = vpack.c.b16 %v768, %v766
    %v1017 = vpack.c.b16 %v771, %v769
    %v1018 = vpack.c.b16 %v772, %v770
    %v1019 = vpack.c.b16 %v775, %v773
    %v1020 = vpack.c.b16 %v776, %v774
    %v1021 = vpack.c.b16 %v779, %v777
    %v1022 = vpack.c.b16 %v780, %v778
    %v1023 = vpack.c.b16 %v783, %v781
    %v1024 = vpack.c.b16 %v784, %v782
    %v1025 = vpack.c.b16 %v787, %v785
    %v1026 = vpack.c.b16 %v788, %v786
    %v1027 = vpack.c.b16 %v791, %v789
    %v1028 = vpack.c.b16 %v792, %v790
    %v1029 = vpack.c.b16 %v795, %v793
    %v1030 = vpack.c.b16 %v796, %v794
    %v1031 = vpack.c.b16 %v799, %v797
    %v1032 = vpack.c.b16 %v800, %v798
    %v1033 = vpack.c.b16 %v803, %v801
    %v1034 = vpack.c.b16 %v804, %v802
    %v1035 = vpack.c.b16 %v807, %v805
    %v1036 = vpack.c.b16 %v808, %v806
    %v1037 = vpack.c.b16 %v811, %v809
    %v1038 = vpack.c.b16 %v812, %v810
    %v1039 = vpack.c.b16 %v815, %v813
    %v1040 = vpack.c.b16 %v816, %v814
    %v1041 = vpack.c.b16 %v819, %v817
    %v1042 = vpack.c.b16 %v820, %v818
    %v1043 = vpack.c.b16 %v823, %v821
    %v1044 = vpack.c.b16 %v824, %v822
    %v1045 = vpack.c.b16 %v827, %v825
    %v1046 = vpack.c.b16 %v828, %v826
    %v1047 = vpack.c.b16 %v831, %v829
    %v1048 = vpack.c.b16 %v832, %v830
    %v1049 = vpack.c.b16 %v835, %v833
    %v1050 = vpack.c.b16 %v836, %v834
    %v1051 = vpack.c.b16 %v839, %v837
    %v1052 = vpack.c.b16 %v840, %v838
    %v1053 = vpack.c.b16 %v843, %v841
    %v1054 = vpack.c.b16 %v844, %v842
    %v1055 = vpack.c.b16 %v847, %v845
    %v1056 = vpack.c.b16 %v848, %v846
    %v1057 = vpack.c.b16 %v851, %v849
    %v1058 = vpack.c.b16 %v852, %v850
    %v1059 = vpack.c.b16 %v855, %v853
    %v1060 = vpack.c.b16 %v856, %v854
    %v1061 = vpack.c.b16 %v859, %v857
    %v1062 = vpack.c.b16 %v860, %v858
    %v1063 = vpack.c.b16 %v863, %v861
    %v1064 = vpack.c.b16 %v864, %v862
    %vm1265 = vcmask 523264
    %v1266 = vsel %vm1265, %v252, 0
    %1268 = vmatpush.bf16.msra.mxu0 %v879
    %1269 = vmatpush.bf16.msra.mxu0 %v877
    %1270 = vmatpush.bf16.msra.mxu0 %v875
    %1271 = vmatpush.bf16.msra.mxu0 %v873
    %1272 = vmatpush.bf16.msra.mxu0 %v871
    %1273 = vmatpush.bf16.msra.mxu0 %v869
    %1274 = vmatpush.bf16.msra.mxu0 %v867
    %1275 = vmatpush.bf16.msra.mxu0 %v865
    %1276 = vmatmul.bf16.gmra.mxu0 %v238
    %v1277 = vpop.f32.mrf.mxu0
    %v1278 = vadd.f32 0.0, %v1277
    %v1279 = vpop.f32.mrf.mxu0
    %1280 = vdwg.mxu0
    %1281 = vmatpush.bf16.msra.mxu0 %v895
    %1282 = vmatpush.bf16.msra.mxu0 %v893
    %1283 = vmatpush.bf16.msra.mxu0 %v891
    %1284 = vmatpush.bf16.msra.mxu0 %v889
    %1285 = vmatpush.bf16.msra.mxu0 %v887
    %1286 = vmatpush.bf16.msra.mxu0 %v885
    %1287 = vmatpush.bf16.msra.mxu0 %v883
    %1288 = vmatpush.bf16.msra.mxu0 %v881
    %1289 = vmatmul.bf16.gmra.mxu0 %v239
    %v1290 = vpop.f32.mrf.mxu0
    %v1291 = vadd.f32 %v1278, %v1290
    %v1292 = vpop.f32.mrf.mxu0
    %1293 = vdwg.mxu0
    %1294 = vmatpush.bf16.msra.mxu0 %v911
    %1295 = vmatpush.bf16.msra.mxu0 %v909
    %1296 = vmatpush.bf16.msra.mxu0 %v907
    %1297 = vmatpush.bf16.msra.mxu0 %v905
    %1298 = vmatpush.bf16.msra.mxu0 %v903
    %1299 = vmatpush.bf16.msra.mxu0 %v901
    %1300 = vmatpush.bf16.msra.mxu0 %v899
    %1301 = vmatpush.bf16.msra.mxu0 %v897
    %1302 = vmatmul.bf16.gmra.mxu0 %v240
    %v1303 = vpop.f32.mrf.mxu0
    %v1304 = vadd.f32 %v1291, %v1303
    %v1305 = vpop.f32.mrf.mxu0
    %1306 = vdwg.mxu0
    %1307 = vmatpush.bf16.msra.mxu0 %v927
    %1308 = vmatpush.bf16.msra.mxu0 %v925
    %1309 = vmatpush.bf16.msra.mxu0 %v923
    %1310 = vmatpush.bf16.msra.mxu0 %v921
    %1311 = vmatpush.bf16.msra.mxu0 %v919
    %1312 = vmatpush.bf16.msra.mxu0 %v917
    %1313 = vmatpush.bf16.msra.mxu0 %v915
    %1314 = vmatpush.bf16.msra.mxu0 %v913
    %1315 = vmatmul.bf16.gmra.mxu0 %v241
    %v1316 = vpop.f32.mrf.mxu0
    %v1317 = vadd.f32 %v1304, %v1316
    %v1318 = vpop.f32.mrf.mxu0
    %1319 = vdwg.mxu0
    %1320 = vmatpush.bf16.msra.mxu0 %v943
    %1321 = vmatpush.bf16.msra.mxu0 %v941
    %1322 = vmatpush.bf16.msra.mxu0 %v939
    %1323 = vmatpush.bf16.msra.mxu0 %v937
    %1324 = vmatpush.bf16.msra.mxu0 %v935
    %1325 = vmatpush.bf16.msra.mxu0 %v933
    %1326 = vmatpush.bf16.msra.mxu0 %v931
    %1327 = vmatpush.bf16.msra.mxu0 %v929
    %1328 = vmatmul.bf16.gmra.mxu0 %v242
    %v1329 = vpop.f32.mrf.mxu0
    %v1330 = vadd.f32 %v1317, %v1329
    %v1331 = vpop.f32.mrf.mxu0
    %1332 = vdwg.mxu0
    %1333 = vmatpush.bf16.msra.mxu0 %v959
    %1334 = vmatpush.bf16.msra.mxu0 %v957
    %1335 = vmatpush.bf16.msra.mxu0 %v955
    %1336 = vmatpush.bf16.msra.mxu0 %v953
    %1337 = vmatpush.bf16.msra.mxu0 %v951
    %1338 = vmatpush.bf16.msra.mxu0 %v949
    %1339 = vmatpush.bf16.msra.mxu0 %v947
    %1340 = vmatpush.bf16.msra.mxu0 %v945
    %1341 = vmatmul.bf16.gmra.mxu0 %v243
    %v1342 = vpop.f32.mrf.mxu0
    %v1343 = vadd.f32 %v1330, %v1342
    %v1344 = vpop.f32.mrf.mxu0
    %1345 = vdwg.mxu0
    %1346 = vmatpush.bf16.msra.mxu0 %v975
    %1347 = vmatpush.bf16.msra.mxu0 %v973
    %1348 = vmatpush.bf16.msra.mxu0 %v971
    %1349 = vmatpush.bf16.msra.mxu0 %v969
    %1350 = vmatpush.bf16.msra.mxu0 %v967
    %1351 = vmatpush.bf16.msra.mxu0 %v965
    %1352 = vmatpush.bf16.msra.mxu0 %v963
    %1353 = vmatpush.bf16.msra.mxu0 %v961
    %1354 = vmatmul.bf16.gmra.mxu0 %v244
    %v1355 = vpop.f32.mrf.mxu0
    %v1356 = vadd.f32 %v1343, %v1355
    %v1357 = vpop.f32.mrf.mxu0
    %1358 = vdwg.mxu0
    %1359 = vmatpush.bf16.msra.mxu0 %v991
    %1360 = vmatpush.bf16.msra.mxu0 %v989
    %1361 = vmatpush.bf16.msra.mxu0 %v987
    %1362 = vmatpush.bf16.msra.mxu0 %v985
    %1363 = vmatpush.bf16.msra.mxu0 %v983
    %1364 = vmatpush.bf16.msra.mxu0 %v981
    %1365 = vmatpush.bf16.msra.mxu0 %v979
    %1366 = vmatpush.bf16.msra.mxu0 %v977
    %1367 = vmatmul.bf16.gmra.mxu0 %v245
    %v1368 = vpop.f32.mrf.mxu0
    %v1369 = vadd.f32 %v1356, %v1368
    %v1370 = vpop.f32.mrf.mxu0
    %1371 = vdwg.mxu0
    %1372 = vmatpush.bf16.msra.mxu0 %v1007
    %1373 = vmatpush.bf16.msra.mxu0 %v1005
    %1374 = vmatpush.bf16.msra.mxu0 %v1003
    %1375 = vmatpush.bf16.msra.mxu0 %v1001
    %1376 = vmatpush.bf16.msra.mxu0 %v999
    %1377 = vmatpush.bf16.msra.mxu0 %v997
    %1378 = vmatpush.bf16.msra.mxu0 %v995
    %1379 = vmatpush.bf16.msra.mxu0 %v993
    %1380 = vmatmul.bf16.gmra.mxu0 %v248
    %v1381 = vpop.f32.mrf.mxu0
    %v1382 = vadd.f32 %v1369, %v1381
    %v1383 = vpop.f32.mrf.mxu0
    %1384 = vdwg.mxu0
    %1385 = vmatpush.bf16.msra.mxu0 %v1023
    %1386 = vmatpush.bf16.msra.mxu0 %v1021
    %1387 = vmatpush.bf16.msra.mxu0 %v1019
    %1388 = vmatpush.bf16.msra.mxu0 %v1017
    %1389 = vmatpush.bf16.msra.mxu0 %v1015
    %1390 = vmatpush.bf16.msra.mxu0 %v1013
    %1391 = vmatpush.bf16.msra.mxu0 %v1011
    %1392 = vmatpush.bf16.msra.mxu0 %v1009
    %1393 = vmatmul.bf16.gmra.mxu0 %v249
    %v1394 = vpop.f32.mrf.mxu0
    %v1395 = vadd.f32 %v1382, %v1394
    %v1396 = vpop.f32.mrf.mxu0
    %1397 = vdwg.mxu0
    %1398 = vmatpush.bf16.msra.mxu0 %v1039
    %1399 = vmatpush.bf16.msra.mxu0 %v1037
    %1400 = vmatpush.bf16.msra.mxu0 %v1035
    %1401 = vmatpush.bf16.msra.mxu0 %v1033
    %1402 = vmatpush.bf16.msra.mxu0 %v1031
    %1403 = vmatpush.bf16.msra.mxu0 %v1029
    %1404 = vmatpush.bf16.msra.mxu0 %v1027
    %1405 = vmatpush.bf16.msra.mxu0 %v1025
    %1406 = vmatmul.bf16.gmra.mxu0 %v250
    %v1407 = vpop.f32.mrf.mxu0
    %v1408 = vadd.f32 %v1395, %v1407
    %v1409 = vpop.f32.mrf.mxu0
    %1410 = vdwg.mxu0
    %1411 = vmatpush.bf16.msra.mxu0 %v1055
    %1412 = vmatpush.bf16.msra.mxu0 %v1053
    %1413 = vmatpush.bf16.msra.mxu0 %v1051
    %1414 = vmatpush.bf16.msra.mxu0 %v1049
    %1415 = vmatpush.bf16.msra.mxu0 %v1047
    %1416 = vmatpush.bf16.msra.mxu0 %v1045
    %1417 = vmatpush.bf16.msra.mxu0 %v1043
    %1418 = vmatpush.bf16.msra.mxu0 %v1041
    %1419 = vmatmul.bf16.gmra.mxu0 %v251
    %v1420 = vpop.f32.mrf.mxu0
    %v1421 = vadd.f32 %v1408, %v1420
    %v1422 = vpop.f32.mrf.mxu0
    %1423 = vdwg.mxu0
    %1424 = vmatpush.bf16.msra.mxu0 0
    %1425 = vmatpush.bf16.msra.mxu0 0
    %1426 = vmatpush.bf16.msra.mxu0 0
    %1427 = vmatpush.bf16.msra.mxu0 0
    %1428 = vmatpush.bf16.msra.mxu0 %v1063
    %1429 = vmatpush.bf16.msra.mxu0 %v1061
    %1430 = vmatpush.bf16.msra.mxu0 %v1059
    %1431 = vmatpush.bf16.msra.mxu0 %v1057
    %1432 = vmatmul.bf16.gmra.mxu0 %v1266
    %v1433 = vpop.f32.mrf.mxu0
    %v1434 = vadd.f32 %v1421, %v1433
    %v1435 = vpop.f32.mrf.mxu0
    %1436 = vdwg.mxu0
    %1437 = vmatpush.bf16.msra.mxu0 %v880
    %1438 = vmatpush.bf16.msra.mxu0 %v878
    %1439 = vmatpush.bf16.msra.mxu0 %v876
    %1440 = vmatpush.bf16.msra.mxu0 %v874
    %1441 = vmatpush.bf16.msra.mxu0 %v872
    %1442 = vmatpush.bf16.msra.mxu0 %v870
    %1443 = vmatpush.bf16.msra.mxu0 %v868
    %1444 = vmatpush.bf16.msra.mxu0 %v866
    %1445 = vmatmul.bf16.gmra.mxu0 %v238
    %v1446 = vpop.f32.mrf.mxu0
    %v1447 = vadd.f32 0.0, %v1446
    %v1448 = vpop.f32.mrf.mxu0
    %1449 = vdwg.mxu0
    %1450 = vmatpush.bf16.msra.mxu0 %v896
    %1451 = vmatpush.bf16.msra.mxu0 %v894
    %1452 = vmatpush.bf16.msra.mxu0 %v892
    %1453 = vmatpush.bf16.msra.mxu0 %v890
    %1454 = vmatpush.bf16.msra.mxu0 %v888
    %1455 = vmatpush.bf16.msra.mxu0 %v886
    %1456 = vmatpush.bf16.msra.mxu0 %v884
    %1457 = vmatpush.bf16.msra.mxu0 %v882
    %1458 = vmatmul.bf16.gmra.mxu0 %v239
    %v1459 = vpop.f32.mrf.mxu0
    %v1460 = vadd.f32 %v1447, %v1459
    %v1461 = vpop.f32.mrf.mxu0
    %1462 = vdwg.mxu0
    %1463 = vmatpush.bf16.msra.mxu0 %v912
    %1464 = vmatpush.bf16.msra.mxu0 %v910
    %1465 = vmatpush.bf16.msra.mxu0 %v908
    %1466 = vmatpush.bf16.msra.mxu0 %v906
    %1467 = vmatpush.bf16.msra.mxu0 %v904
    %1468 = vmatpush.bf16.msra.mxu0 %v902
    %1469 = vmatpush.bf16.msra.mxu0 %v900
    %1470 = vmatpush.bf16.msra.mxu0 %v898
    %1471 = vmatmul.bf16.gmra.mxu0 %v240
    %v1472 = vpop.f32.mrf.mxu0
    %v1473 = vadd.f32 %v1460, %v1472
    %v1474 = vpop.f32.mrf.mxu0
    %1475 = vdwg.mxu0
    %1476 = vmatpush.bf16.msra.mxu0 %v928
    %1477 = vmatpush.bf16.msra.mxu0 %v926
    %1478 = vmatpush.bf16.msra.mxu0 %v924
    %1479 = vmatpush.bf16.msra.mxu0 %v922
    %1480 = vmatpush.bf16.msra.mxu0 %v920
    %1481 = vmatpush.bf16.msra.mxu0 %v918
    %1482 = vmatpush.bf16.msra.mxu0 %v916
    %1483 = vmatpush.bf16.msra.mxu0 %v914
    %1484 = vmatmul.bf16.gmra.mxu0 %v241
    %v1485 = vpop.f32.mrf.mxu0
    %v1486 = vadd.f32 %v1473, %v1485
    %v1487 = vpop.f32.mrf.mxu0
    %1488 = vdwg.mxu0
    %1489 = vmatpush.bf16.msra.mxu0 %v944
    %1490 = vmatpush.bf16.msra.mxu0 %v942
    %1491 = vmatpush.bf16.msra.mxu0 %v940
    %1492 = vmatpush.bf16.msra.mxu0 %v938
    %1493 = vmatpush.bf16.msra.mxu0 %v936
    %1494 = vmatpush.bf16.msra.mxu0 %v934
    %1495 = vmatpush.bf16.msra.mxu0 %v932
    %1496 = vmatpush.bf16.msra.mxu0 %v930
    %1497 = vmatmul.bf16.gmra.mxu0 %v242
    %v1498 = vpop.f32.mrf.mxu0
    %v1499 = vadd.f32 %v1486, %v1498
    %v1500 = vpop.f32.mrf.mxu0
    %1501 = vdwg.mxu0
    %1502 = vmatpush.bf16.msra.mxu0 %v960
    %1503 = vmatpush.bf16.msra.mxu0 %v958
    %1504 = vmatpush.bf16.msra.mxu0 %v956
    %1505 = vmatpush.bf16.msra.mxu0 %v954
    %1506 = vmatpush.bf16.msra.mxu0 %v952
    %1507 = vmatpush.bf16.msra.mxu0 %v950
    %1508 = vmatpush.bf16.msra.mxu0 %v948
    %1509 = vmatpush.bf16.msra.mxu0 %v946
    %1510 = vmatmul.bf16.gmra.mxu0 %v243
    %v1511 = vpop.f32.mrf.mxu0
    %v1512 = vadd.f32 %v1499, %v1511
    %v1513 = vpop.f32.mrf.mxu0
    %1514 = vdwg.mxu0
    %1515 = vmatpush.bf16.msra.mxu0 %v976
    %1516 = vmatpush.bf16.msra.mxu0 %v974
    %1517 = vmatpush.bf16.msra.mxu0 %v972
    %1518 = vmatpush.bf16.msra.mxu0 %v970
    %1519 = vmatpush.bf16.msra.mxu0 %v968
    %1520 = vmatpush.bf16.msra.mxu0 %v966
    %1521 = vmatpush.bf16.msra.mxu0 %v964
    %1522 = vmatpush.bf16.msra.mxu0 %v962
    %1523 = vmatmul.bf16.gmra.mxu0 %v244
    %v1524 = vpop.f32.mrf.mxu0
    %v1525 = vadd.f32 %v1512, %v1524
    %v1526 = vpop.f32.mrf.mxu0
    %1527 = vdwg.mxu0
    %1528 = vmatpush.bf16.msra.mxu0 %v992
    %1529 = vmatpush.bf16.msra.mxu0 %v990
    %1530 = vmatpush.bf16.msra.mxu0 %v988
    %1531 = vmatpush.bf16.msra.mxu0 %v986
    %1532 = vmatpush.bf16.msra.mxu0 %v984
    %1533 = vmatpush.bf16.msra.mxu0 %v982
    %1534 = vmatpush.bf16.msra.mxu0 %v980
    %1535 = vmatpush.bf16.msra.mxu0 %v978
    %1536 = vmatmul.bf16.gmra.mxu0 %v245
    %v1537 = vpop.f32.mrf.mxu0
    %v1538 = vadd.f32 %v1525, %v1537
    %v1539 = vpop.f32.mrf.mxu0
    %1540 = vdwg.mxu0
    %1541 = vmatpush.bf16.msra.mxu0 %v1008
    %1542 = vmatpush.bf16.msra.mxu0 %v1006
    %1543 = vmatpush.bf16.msra.mxu0 %v1004
    %1544 = vmatpush.bf16.msra.mxu0 %v1002
    %1545 = vmatpush.bf16.msra.mxu0 %v1000
    %1546 = vmatpush.bf16.msra.mxu0 %v998
    %1547 = vmatpush.bf16.msra.mxu0 %v996
    %1548 = vmatpush.bf16.msra.mxu0 %v994
    %1549 = vmatmul.bf16.gmra.mxu0 %v248
    %v1550 = vpop.f32.mrf.mxu0
    %v1551 = vadd.f32 %v1538, %v1550
    %v1552 = vpop.f32.mrf.mxu0
    %1553 = vdwg.mxu0
    %1554 = vmatpush.bf16.msra.mxu0 %v1024
    %1555 = vmatpush.bf16.msra.mxu0 %v1022
    %1556 = vmatpush.bf16.msra.mxu0 %v1020
    %1557 = vmatpush.bf16.msra.mxu0 %v1018
    %1558 = vmatpush.bf16.msra.mxu0 %v1016
    %1559 = vmatpush.bf16.msra.mxu0 %v1014
    %1560 = vmatpush.bf16.msra.mxu0 %v1012
    %1561 = vmatpush.bf16.msra.mxu0 %v1010
    %1562 = vmatmul.bf16.gmra.mxu0 %v249
    %v1563 = vpop.f32.mrf.mxu0
    %v1564 = vadd.f32 %v1551, %v1563
    %v1565 = vpop.f32.mrf.mxu0
    %1566 = vdwg.mxu0
    %1567 = vmatpush.bf16.msra.mxu0 %v1040
    %1568 = vmatpush.bf16.msra.mxu0 %v1038
    %1569 = vmatpush.bf16.msra.mxu0 %v1036
    %1570 = vmatpush.bf16.msra.mxu0 %v1034
    %1571 = vmatpush.bf16.msra.mxu0 %v1032
    %1572 = vmatpush.bf16.msra.mxu0 %v1030
    %1573 = vmatpush.bf16.msra.mxu0 %v1028
    %1574 = vmatpush.bf16.msra.mxu0 %v1026
    %1575 = vmatmul.bf16.gmra.mxu0 %v250
    %v1576 = vpop.f32.mrf.mxu0
    %v1577 = vadd.f32 %v1564, %v1576
    %v1578 = vpop.f32.mrf.mxu0
    %1579 = vdwg.mxu0
    %1580 = vmatpush.bf16.msra.mxu0 %v1056
    %1581 = vmatpush.bf16.msra.mxu0 %v1054
    %1582 = vmatpush.bf16.msra.mxu0 %v1052
    %1583 = vmatpush.bf16.msra.mxu0 %v1050
    %1584 = vmatpush.bf16.msra.mxu0 %v1048
    %1585 = vmatpush.bf16.msra.mxu0 %v1046
    %1586 = vmatpush.bf16.msra.mxu0 %v1044
    %1587 = vmatpush.bf16.msra.mxu0 %v1042
    %1588 = vmatmul.bf16.gmra.mxu0 %v251
    %v1589 = vpop.f32.mrf.mxu0
    %v1590 = vadd.f32 %v1577, %v1589
    %v1591 = vpop.f32.mrf.mxu0
    %1592 = vdwg.mxu0
    %1593 = vmatpush.bf16.msra.mxu0 0
    %1594 = vmatpush.bf16.msra.mxu0 0
    %1595 = vmatpush.bf16.msra.mxu0 0
    %1596 = vmatpush.bf16.msra.mxu0 0
    %1597 = vmatpush.bf16.msra.mxu0 %v1064
    %1598 = vmatpush.bf16.msra.mxu0 %v1062
    %1599 = vmatpush.bf16.msra.mxu0 %v1060
    %1600 = vmatpush.bf16.msra.mxu0 %v1058
    %1601 = vmatmul.bf16.gmra.mxu0 %v1266
    %v1602 = vpop.f32.mrf.mxu0
    %v1603 = vadd.f32 %v1590, %v1602
    %v1604 = vpop.f32.mrf.mxu0
    %1605 = vdwg.mxu0
    %v1608 = vrot.slane %v1603, 6
    %vm1609 = vcmask 1041408
    %v1610 = vsel %vm1609, %v1434, %v1608
    %v1612 = vadd.f32 %v33, %v1610
    %1613 = vst [vmem:[#allocation2] sm:$0xf] %v1612
    // Predicated region
    $region34: #{cnn_forward.3} parent=1 // pred_check
      %p1614 = pneg %p28
    $region35: #{cnn_forward.3} parent=1 // pred_check_branch
      %1616 = sbr.rel (%p1614) target = $region37
    $region36: #{cnn_forward.3} parent=1 // pred_region
      %v1617 = vld [vmem:[#allocation2] sm:$0xf]
      %v1618 = vld [vmem:[%s2] sm:$0x3]
      %v1620 = vperm.slane %v1618, 0
      %v1621 = vperm.slane %v1618, 1
      %v1622 = vrot.slane %v1621, 6
      %v1623 = vsel %vm1609, %v1620, %v1622
      %v1625 = vadd.f32 %v1617, %v1623
      %v1626 = vmax.f32 %v1625, 0.0
      %1628 = vst [vmem:[#allocation1] ss:$4 sm:$0xff] %v1626
      %v1629 = vld.sshfl [vmem:[#allocation1] sm:$0xff pattern:$0x73625140]
      %v1630 = vld.sshfl [vmem:[#allocation1 + $0x8] sm:$0xff pattern:$0x73625140]
      %v1633 = vpack.c.bf16 %v1629, %v1629
      %v1634 = vpack.c.bf16 %v1630, %v1630
      %v1635 = vld [vmem:[%s3] sm:$0xf]
      %v1636 = vld [vmem:[%s3 + $0x4] sm:$0xf]
      %v1637 = vld [vmem:[%s3 + $0x8] sm:$0xf]
      %v1638 = vld [vmem:[%s3 + $0xc] sm:$0xf]
      %v1639 = vld [vmem:[%s3 + $0x10] sm:$0xf]
      %v1640 = vld [vmem:[%s3 + $0x14] sm:$0xf]
      %v1641 = vld [vmem:[%s3 + $0x18] sm:$0xf]
      %v1642 = vld [vmem:[%s3 + $0x1c] sm:$0xf]
      %v1643 = vld [vmem:[%s3 + $0x20] sm:$0xf]
      %v1644 = vld [vmem:[%s3 + $0x24] sm:$0xf]
      %v1645 = vld [vmem:[%s3 + $0x28] sm:$0xf]
      %v1646 = vld [vmem:[%s3 + $0x2c] sm:$0xf]
      %v1647 = vld [vmem:[%s3 + $0x30] sm:$0xf]
      %v1648 = vld [vmem:[%s3 + $0x34] sm:$0xf]
      %v1649 = vld [vmem:[%s3 + $0x38] sm:$0xf]
      %v1650 = vld [vmem:[%s3 + $0x3c] sm:$0xf]
      %v1651 = vld [vmem:[%s3 + $0x40] sm:$0xf]
      %v1652 = vld [vmem:[%s3 + $0x44] sm:$0xf]
      %v1653 = vld [vmem:[%s3 + $0x48] sm:$0xf]
      %v1654 = vld [vmem:[%s3 + $0x4c] sm:$0xf]
      %v1655 = vld [vmem:[%s3 + $0x50] sm:$0xf]
      %v1656 = vld [vmem:[%s3 + $0x54] sm:$0xf]
      %v1657 = vld [vmem:[%s3 + $0x58] sm:$0xf]
      %v1658 = vld [vmem:[%s3 + $0x5c] sm:$0xf]
      %v1659 = vld [vmem:[%s3 + $0x60] sm:$0xf]
      %v1660 = vld [vmem:[%s3 + $0x64] sm:$0xf]
      %v1661 = vld [vmem:[%s3 + $0x68] sm:$0xf]
      %v1662 = vld [vmem:[%s3 + $0x6c] sm:$0xf]
      %v1663 = vld [vmem:[%s3 + $0x70] sm:$0xf]
      %v1664 = vld [vmem:[%s3 + $0x74] sm:$0xf]
      %v1665 = vld [vmem:[%s3 + $0x78] sm:$0xf]
      %v1666 = vld [vmem:[%s3 + $0x7c] sm:$0xf]
      %v1667 = vld [vmem:[%s4] sm:$0x1]
      %v1669 = vperm.slane %v1667, 0
      %v1703 = vunpack.c.l.b16 %v1635
      %v1704 = vunpack.c.l.b16 %v1636
      %v1705 = vunpack.c.l.b16 %v1637
      %v1706 = vunpack.c.l.b16 %v1638
      %v1707 = vunpack.c.l.b16 %v1639
      %v1708 = vunpack.c.l.b16 %v1640
      %v1709 = vunpack.c.l.b16 %v1641
      %v1710 = vunpack.c.l.b16 %v1642
      %v1711 = vunpack.c.l.b16 %v1643
      %v1712 = vunpack.c.l.b16 %v1644
      %v1713 = vunpack.c.l.b16 %v1645
      %v1714 = vunpack.c.l.b16 %v1646
      %v1715 = vunpack.c.l.b16 %v1647
      %v1716 = vunpack.c.l.b16 %v1648
      %v1717 = vunpack.c.l.b16 %v1649
      %v1718 = vunpack.c.l.b16 %v1650
      %v1719 = vunpack.c.l.b16 %v1651
      %v1720 = vunpack.c.l.b16 %v1652
      %v1721 = vunpack.c.l.b16 %v1653
      %v1722 = vunpack.c.l.b16 %v1654
      %v1723 = vunpack.c.l.b16 %v1655
      %v1724 = vunpack.c.l.b16 %v1656
      %v1725 = vunpack.c.l.b16 %v1657
      %v1726 = vunpack.c.l.b16 %v1658
      %v1727 = vunpack.c.l.b16 %v1659
      %v1728 = vunpack.c.l.b16 %v1660
      %v1729 = vunpack.c.l.b16 %v1661
      %v1730 = vunpack.c.l.b16 %v1662
      %v1731 = vunpack.c.l.b16 %v1663
      %v1732 = vunpack.c.l.b16 %v1664
      %v1733 = vunpack.c.l.b16 %v1665
      %v1734 = vunpack.c.l.b16 %v1666
      %v1735 = vpack.c.b16 %v1704, %v1703
      %v1736 = vpack.c.b16 %v1706, %v1705
      %v1737 = vpack.c.b16 %v1708, %v1707
      %v1738 = vpack.c.b16 %v1710, %v1709
      %v1739 = vpack.c.b16 %v1712, %v1711
      %v1740 = vpack.c.b16 %v1714, %v1713
      %v1741 = vpack.c.b16 %v1716, %v1715
      %v1742 = vpack.c.b16 %v1718, %v1717
      %v1743 = vpack.c.b16 %v1720, %v1719
      %v1744 = vpack.c.b16 %v1722, %v1721
      %v1745 = vpack.c.b16 %v1724, %v1723
      %v1746 = vpack.c.b16 %v1726, %v1725
      %v1747 = vpack.c.b16 %v1728, %v1727
      %v1748 = vpack.c.b16 %v1730, %v1729
      %v1749 = vpack.c.b16 %v1732, %v1731
      %v1750 = vpack.c.b16 %v1734, %v1733
      %1767 = vmatpush.bf16.msra.mxu0 %v1742
      %1768 = vmatpush.bf16.msra.mxu0 %v1741
      %1769 = vmatpush.bf16.msra.mxu0 %v1740
      %1770 = vmatpush.bf16.msra.mxu0 %v1739
      %1771 = vmatpush.bf16.msra.mxu0 %v1738
      %1772 = vmatpush.bf16.msra.mxu0 %v1737
      %1773 = vmatpush.bf16.msra.mxu0 %v1736
      %1774 = vmatpush.bf16.msra.mxu0 %v1735
      %1775 = vmatmul.bf16.gmra.mxu0 %v1633
      %v1776 = vpop.f32.mrf.mxu0
      %v1777 = vadd.f32 %v1669, %v1776
      %v1778 = vpop.f32.mrf.mxu0
      %1779 = vdwg.mxu0
      %1780 = vmatpush.bf16.msra.mxu0 %v1750
      %1781 = vmatpush.bf16.msra.mxu0 %v1749
      %1782 = vmatpush.bf16.msra.mxu0 %v1748
      %1783 = vmatpush.bf16.msra.mxu0 %v1747
      %1784 = vmatpush.bf16.msra.mxu0 %v1746
      %1785 = vmatpush.bf16.msra.mxu0 %v1745
      %1786 = vmatpush.bf16.msra.mxu0 %v1744
      %1787 = vmatpush.bf16.msra.mxu0 %v1743
      %1788 = vmatmul.bf16.gmra.mxu0 %v1634
      %v1789 = vpop.f32.mrf.mxu0
      %v1790 = vadd.f32 %v1777, %v1789
      %v1791 = vpop.f32.mrf.mxu0
      %1792 = vdwg.mxu0
      %v1793 = vmax.f32 %v1790, 0.0
      %v1794 = vpack.c.bf16 %v1793, %v1793
      %v1795 = vld [vmem:[%s5] sm:$0xf]
      %v1796 = vld [vmem:[%s5 + $0x4] sm:$0xf]
      %v1797 = vld [vmem:[%s5 + $0x8] sm:$0xf]
      %v1798 = vld [vmem:[%s5 + $0xc] sm:$0xf]
      %v1799 = vld [vmem:[%s5 + $0x10] sm:$0xf]
      %v1800 = vld [vmem:[%s5 + $0x14] sm:$0xf]
      %v1801 = vld [vmem:[%s5 + $0x18] sm:$0xf]
      %v1802 = vld [vmem:[%s5 + $0x1c] sm:$0xf]
      %v1803 = vld [vmem:[%s5 + $0x20] sm:$0xf]
      %v1804 = vld [vmem:[%s5 + $0x24] sm:$0xf]
      %v1805 = vld [vmem:[%s5 + $0x28] sm:$0xf]
      %v1806 = vld [vmem:[%s5 + $0x2c] sm:$0xf]
      %v1807 = vld [vmem:[%s5 + $0x30] sm:$0xf]
      %v1808 = vld [vmem:[%s5 + $0x34] sm:$0xf]
      %v1809 = vld [vmem:[%s5 + $0x38] sm:$0xf]
      %v1810 = vld [vmem:[%s5 + $0x3c] sm:$0xf]
      %v1811 = vld [vmem:[%s6] sm:$0x1]
      %v1813 = vperm.slane %v1811, 0
      %v1831 = vunpack.c.l.b16 %v1795
      %v1832 = vunpack.c.l.b16 %v1796
      %v1833 = vunpack.c.l.b16 %v1797
      %v1834 = vunpack.c.l.b16 %v1798
      %v1835 = vunpack.c.l.b16 %v1799
      %v1836 = vunpack.c.l.b16 %v1800
      %v1837 = vunpack.c.l.b16 %v1801
      %v1838 = vunpack.c.l.b16 %v1802
      %v1839 = vunpack.c.l.b16 %v1803
      %v1840 = vunpack.c.l.b16 %v1804
      %v1841 = vunpack.c.l.b16 %v1805
      %v1842 = vunpack.c.l.b16 %v1806
      %v1843 = vunpack.c.l.b16 %v1807
      %v1844 = vunpack.c.l.b16 %v1808
      %v1845 = vunpack.c.l.b16 %v1809
      %v1846 = vunpack.c.l.b16 %v1810
      %v1847 = vpack.c.b16 %v1832, %v1831
      %v1848 = vpack.c.b16 %v1834, %v1833
      %v1849 = vpack.c.b16 %v1836, %v1835
      %v1850 = vpack.c.b16 %v1838, %v1837
      %v1851 = vpack.c.b16 %v1840, %v1839
      %v1852 = vpack.c.b16 %v1842, %v1841
      %v1853 = vpack.c.b16 %v1844, %v1843
      %v1854 = vpack.c.b16 %v1846, %v1845
      %1863 = vmatpush.bf16.msra.mxu0 %v1854
      %1864 = vmatpush.bf16.msra.mxu0 %v1853
      %1865 = vmatpush.bf16.msra.mxu0 %v1852
      %1866 = vmatpush.bf16.msra.mxu0 %v1851
      %1867 = vmatpush.bf16.msra.mxu0 %v1850
      %1868 = vmatpush.bf16.msra.mxu0 %v1849
      %1869 = vmatpush.bf16.msra.mxu0 %v1848
      %1870 = vmatpush.bf16.msra.mxu0 %v1847
      %1871 = vmatmul.bf16.gmra.mxu0 %v1794
      %v1872 = vpop.f32.mrf.mxu0
      %v1873 = vadd.f32 %v1813, %v1872
      %v1874 = vpop.f32.mrf.mxu0
      %1875 = vdwg.mxu0
      %vm1876 = vcmask 74752
      %1877 = vst.msk [vmem:[#allocation3] sm:$0x3] %vm1876, %v1873
    $region37: #{cnn_forward.3} parent=1 // pred_fallthru
      _
    // Predicated region
    $region38: #{cnn_forward.3} parent=1 // pred_check
      _
    $region39: #{cnn_forward.3} parent=1 // pred_check_branch
      %1879 = sbr.rel (0) target = $region41
    $region40: #{cnn_forward.3} parent=1 // pred_region
      %1881 = vsyncadd [#allocation4], 0
      %s1883 = sshll.u32 [#allocation3], 4
      %s1884 = int_to_ptr.vmem [resolvable:$true] %s1883
      %s1885 = sshll.u32 %s7, 4
      %s1886 = int_to_ptr.hbm [resolvable:$true] %s1885
      %1888 = dma.vmem_to_hbm [thread:$0]  %s1884, 32, %s1886, [#allocation4]
    $region41: #{cnn_forward.3} parent=1 // pred_fallthru
      _
    // Predicated region
    $region42: #{cnn_forward.3} parent=1 // pred_check
      _
    $region43: #{cnn_forward.3} parent=1 // pred_check_branch
      %1890 = sbr.rel (0) target = $region45
    $region44: #{cnn_forward.3} parent=1 // pred_region
      %1892 = dma.done [#allocation4], 32
    $region45: #{cnn_forward.3} parent=1 // pred_fallthru
      _
    %1893 = vsyncpa [#allocation4], 1

// kernel: cnn_forward.2
$region0: #{cnn_forward.2}
  #allocation0 [shape = 'u32[]', space=smem, size = 0x4, offset = 0x4, fixed_abs, tag = 'smem constant byte address 0x4 - core index']
  #allocation1 [shape = 'u32[72,128]{1,0:T(1,128)}', space=vmem, size = 0x9000, scoped, tag = 'internal scratch']
  #allocation2 [shape = 'f32[456,32]{1,0:T(8,128)}', space=vmem, size = 0x39000, scoped, tag = 'scratch operand']
  #allocation3 [shape = 'f32[80,64]{1,0:T(8,128)}', space=vmem, size = 0xa000, scoped, tag = 'scratch operand']
  %s0 = inlined_call_operand.vmem [shape: f32[2,1024,15], index: 0, kind: input, shape index: {}]
  %s1 = inlined_call_operand.vmem [shape: bf16[5,15,32], index: 1, kind: input, shape index: {}]
  %s2 = inlined_call_operand.vmem [shape: f32[1,32], index: 2, kind: input, shape index: {}]
  %s3 = inlined_call_operand.vmem [shape: bf16[25,32,64], index: 3, kind: input, shape index: {}]
  %s4 = inlined_call_operand.vmem [shape: f32[1,64], index: 4, kind: input, shape index: {}]
  %s5 = inlined_call_operand.vmem [shape: bf16[2,25,64], index: 5, kind: output, shape index: {}]
  %s6 = sld [smem:[#allocation0]]
  $region53: #{cnn_forward.2} parent=0
    _
  %s8 = ssub.s32 1, %s6
  %s9 = scalar_select 0, %s8, %s6
  loop: start=0, step=1, limit=4
  $region2: #{cnn_forward.2} parent=0 // loop_pre_header
    _
  $region3: #{cnn_forward.2} parent=0 // loop_header
    %s11 = sphi 0, %s15
    %p12 = scmp.ge.s32.totalorder %s11, 4
    %s21 = sphi 0, %s23
    %s24 = sphi 0, %s21
    %s25 = sphi 0, %s24
    %s41 = sphi 0, %s25
    %s45 = sphi 0, %s45
    %s47 = sphi 0, %s45
    %s48 = sphi 0, %s47
    %s62 = sphi 0, %s48
    %s66 = sphi 0, %s66
    %s68 = sphi 0, %s66
    %s69 = sphi 0, %s68
    %s83 = sphi 0, %s69
    %s87 = sphi 0, %s87
    %s89 = sphi 0, %s87
    %s90 = sphi 0, %s89
    %s104 = sphi 0, %s90
    %s108 = sphi 0, %s108
    %s110 = sphi 0, %s108
    %s111 = sphi 0, %s110
    %s125 = sphi 0, %s111
    %s131 = sphi 0, %s133
    %s134 = sphi 0, %s131
    %s135 = sphi 0, %s134
    %s151 = sphi 0, %s135
  $region4: #{cnn_forward.2} parent=0 // loop_header_branch
    %14 = sbr.rel (%p12) target = $region8
  $region5: #{cnn_forward.2} parent=0 // loop_body
    %s16 = ssub.s32 %s11, 1
    %s17 = ssub.s32 %s11, 2
    %s18 = sadd.s32 %s11, 1
    %s19 = ssub.s32 %s11, %s18
    %p20 = scmp.eq.s32.totalorder %s19, 0
    %s22 = sadd.s32 %s21, 1
    %s23 = scalar_select %p20, %s21, %s22
    %p26 = pneg %p20
    %p27 = scmp.eq.s32.totalorder %s11, 1
    %p28 = por %p26, %p27
    %p29 = scmp.ne.s32.totalorder %s21, %s24
    %p30 = scmp.eq.s32.totalorder %s11, 0
    %p31 = por %p29, %p30
    %p32 = scmp.ne.s32.totalorder %s21, %s24
    %p33 = scmp.eq.s32.totalorder %s16, 1
    %p34 = por %p32, %p33
    %p35 = scmp.ne.s32.totalorder %s24, %s25
    %p36 = scmp.eq.s32.totalorder %s16, 0
    %p37 = por %p35, %p36
    %p38 = scmp.ne.s32.totalorder %s24, %s25
    %p39 = scmp.eq.s32.totalorder %s17, 1
    %p40 = por %p38, %p39
    %p42 = scmp.ne.s32.totalorder %s25, %s41
    %p43 = scmp.eq.s32.totalorder %s17, 0
    %p44 = por %p42, %p43
    %s46 = sadd.s32 %s45, 1
    %p49 = scmp.eq.s32.totalorder %s11, 1
    %p50 = scmp.ne.s32.totalorder %s45, %s47
    %p51 = scmp.eq.s32.totalorder %s11, 0
    %p52 = por %p50, %p51
    %p53 = scmp.ne.s32.totalorder %s45, %s47
    %p54 = scmp.eq.s32.totalorder %s16, 1
    %p55 = por %p53, %p54
    %p56 = scmp.ne.s32.totalorder %s47, %s48
    %p57 = scmp.eq.s32.totalorder %s16, 0
    %p58 = por %p56, %p57
    %p59 = scmp.ne.s32.totalorder %s47, %s48
    %p60 = scmp.eq.s32.totalorder %s17, 1
    %p61 = por %p59, %p60
    %p63 = scmp.ne.s32.totalorder %s48, %s62
    %p64 = scmp.eq.s32.totalorder %s17, 0
    %p65 = por %p63, %p64
    %s67 = sadd.s32 %s66, 1
    %p70 = scmp.eq.s32.totalorder %s11, 1
    %p71 = scmp.ne.s32.totalorder %s66, %s68
    %p72 = scmp.eq.s32.totalorder %s11, 0
    %p73 = por %p71, %p72
    %p74 = scmp.ne.s32.totalorder %s66, %s68
    %p75 = scmp.eq.s32.totalorder %s16, 1
    %p76 = por %p74, %p75
    %p77 = scmp.ne.s32.totalorder %s68, %s69
    %p78 = scmp.eq.s32.totalorder %s16, 0
    %p79 = por %p77, %p78
    %p80 = scmp.ne.s32.totalorder %s68, %s69
    %p81 = scmp.eq.s32.totalorder %s17, 1
    %p82 = por %p80, %p81
    %p84 = scmp.ne.s32.totalorder %s69, %s83
    %p85 = scmp.eq.s32.totalorder %s17, 0
    %p86 = por %p84, %p85
    %s88 = sadd.s32 %s87, 1
    %p91 = scmp.eq.s32.totalorder %s11, 1
    %p92 = scmp.ne.s32.totalorder %s87, %s89
    %p93 = scmp.eq.s32.totalorder %s11, 0
    %p94 = por %p92, %p93
    %p95 = scmp.ne.s32.totalorder %s87, %s89
    %p96 = scmp.eq.s32.totalorder %s16, 1
    %p97 = por %p95, %p96
    %p98 = scmp.ne.s32.totalorder %s89, %s90
    %p99 = scmp.eq.s32.totalorder %s16, 0
    %p100 = por %p98, %p99
    %p101 = scmp.ne.s32.totalorder %s89, %s90
    %p102 = scmp.eq.s32.totalorder %s17, 1
    %p103 = por %p101, %p102
    %p105 = scmp.ne.s32.totalorder %s90, %s104
    %p106 = scmp.eq.s32.totalorder %s17, 0
    %p107 = por %p105, %p106
    %s109 = sadd.s32 %s108, 1
    %p112 = scmp.eq.s32.totalorder %s11, 1
    %p113 = scmp.ne.s32.totalorder %s108, %s110
    %p114 = scmp.eq.s32.totalorder %s11, 0
    %p115 = por %p113, %p114
    %p116 = scmp.ne.s32.totalorder %s108, %s110
    %p117 = scmp.eq.s32.totalorder %s16, 1
    %p118 = por %p116, %p117
    %p119 = scmp.ne.s32.totalorder %s110, %s111
    %p120 = scmp.eq.s32.totalorder %s16, 0
    %p121 = por %p119, %p120
    %p122 = scmp.ne.s32.totalorder %s110, %s111
    %p123 = scmp.eq.s32.totalorder %s17, 1
    %p124 = por %p122, %p123
    %p126 = scmp.ne.s32.totalorder %s111, %s125
    %p127 = scmp.eq.s32.totalorder %s17, 0
    %p128 = por %p126, %p127
    %s129 = ssub.s32 %s11, %s18
    %p130 = scmp.eq.s32.totalorder %s129, 0
    %s132 = sadd.s32 %s131, 1
    %s133 = scalar_select %p130, %s131, %s132
    %p136 = pneg %p130
    %p137 = scmp.eq.s32.totalorder %s11, 1
    %p138 = por %p136, %p137
    %p139 = scmp.ne.s32.totalorder %s131, %s134
    %p140 = scmp.eq.s32.totalorder %s11, 0
    %p141 = por %p139, %p140
    %p142 = scmp.ne.s32.totalorder %s131, %s134
    %p143 = scmp.eq.s32.totalorder %s16, 1
    %p144 = por %p142, %p143
    %p145 = scmp.ne.s32.totalorder %s134, %s135
    %p146 = scmp.eq.s32.totalorder %s16, 0
    %p147 = por %p145, %p146
    %p148 = scmp.ne.s32.totalorder %s134, %s135
    %p149 = scmp.eq.s32.totalorder %s17, 1
    %p150 = por %p148, %p149
    %p152 = scmp.ne.s32.totalorder %s135, %s151
    %p153 = scmp.eq.s32.totalorder %s17, 0
    %p154 = por %p152, %p153
    %p155 = scmp.le.s32.totalorder 1, %s11
    %p156 = scmp.lt.s32.totalorder %s11, 3
    %p157 = pnand %p155, %p156
    %p158 = pneg %p157
    // Predicated region
    $region9: #{cnn_forward.2} parent=5 // pred_check
      _
    $region10: #{cnn_forward.2} parent=5 // pred_check_branch
      %160 = sbr.rel (%p157) target = $region12
    $region11: #{cnn_forward.2} parent=5 // pred_region
      %s161 = ssub.s32 %s11, 1
      // Predicated region
      $region13: #{cnn_forward.2} parent=11 // pred_check
        %p162 = pneg %p58
      $region14: #{cnn_forward.2} parent=11 // pred_check_branch
        %164 = sbr.rel (%p162) target = $region16
      $region15: #{cnn_forward.2} parent=11 // pred_region
        _
      $region16: #{cnn_forward.2} parent=11 // pred_fallthru
        _
      // Predicated region
      $region17: #{cnn_forward.2} parent=11 // pred_check
        %p165 = pneg %p79
      $region18: #{cnn_forward.2} parent=11 // pred_check_branch
        %167 = sbr.rel (%p165) target = $region20
      $region19: #{cnn_forward.2} parent=11 // pred_region
        _
      $region20: #{cnn_forward.2} parent=11 // pred_fallthru
        _
      // Predicated region
      $region21: #{cnn_forward.2} parent=11 // pred_check
        %p168 = pneg %p100
      $region22: #{cnn_forward.2} parent=11 // pred_check_branch
        %170 = sbr.rel (%p168) target = $region24
      $region23: #{cnn_forward.2} parent=11 // pred_region
        _
      $region24: #{cnn_forward.2} parent=11 // pred_fallthru
        _
      // Predicated region
      $region25: #{cnn_forward.2} parent=11 // pred_check
        %p171 = pneg %p121
      $region26: #{cnn_forward.2} parent=11 // pred_check_branch
        %173 = sbr.rel (%p171) target = $region28
      $region27: #{cnn_forward.2} parent=11 // pred_region
        _
      $region28: #{cnn_forward.2} parent=11 // pred_fallthru
        _
    $region12: #{cnn_forward.2} parent=5 // pred_fallthru
      _
    %p174 = scmp.lt.s32.totalorder %s11, 2
    // Predicated region
    $region29: #{cnn_forward.2} parent=5 // pred_check
      %p175 = pneg %p174
    $region30: #{cnn_forward.2} parent=5 // pred_check_branch
      %177 = sbr.rel (%p175) target = $region32
    $region31: #{cnn_forward.2} parent=5 // pred_region
      // Predicated region
      $region33: #{cnn_forward.2} parent=31 // pred_check
        %p178 = pneg %p31
      $region34: #{cnn_forward.2} parent=31 // pred_check_branch
        %180 = sbr.rel (%p178) target = $region36
      $region35: #{cnn_forward.2} parent=31 // pred_region
        %p181 = scmp.lt.s32.totalorder %s11, 1
        %s182 = scalar_select %p181, %s11, 1
        %s183 = smul.addr %s182, 128
        %s184 = smul.addr %s183, 8
        %s185 = scalar_lea.vmem %s0, %s184
      $region36: #{cnn_forward.2} parent=31 // pred_fallthru
        _
    $region32: #{cnn_forward.2} parent=5 // pred_fallthru
      _
    %p186 = scmp.le.s32.totalorder 1, %s11
    %p187 = scmp.lt.s32.totalorder %s11, 3
    %p188 = pnand %p186, %p187
    %p189 = pneg %p188
    // Predicated region
    $region37: #{cnn_forward.2} parent=5 // pred_check
      _
    $region38: #{cnn_forward.2} parent=5 // pred_check_branch
      %191 = sbr.rel (%p188) target = $region40
    $region39: #{cnn_forward.2} parent=5 // pred_region
      %s192 = ssub.s32 %s11, 1
      %p193 = scmp.lt.s32.totalorder %s16, 1
      %s194 = scalar_select %p193, %s16, 1
      %s195 = smul.addr %s194, 128
      %s196 = smul.addr %s195, 8
      %s197 = scalar_lea.vmem %s0, %s196
      %p198 = pneg %p37
      %p199 = pneg %p34
      %p200 = pneg %p58
      %p201 = pneg %p55
      %p202 = pneg %p79
      %p203 = pneg %p76
      %p204 = pneg %p100
      %p205 = pneg %p97
      %p206 = pneg %p121
      %p207 = pneg %p118
      %p208 = pneg %p147
      %p209 = pneg %p144
      %p210 = scmp.lt.s32.totalorder %s16, 1
      %s211 = scalar_select %p210, %s16, 1
      %s212 = smul.addr %s211, 4
      %s213 = smul.addr %s212, 4
      %s214 = scalar_lea.vmem %s5, %s213
      %p215 = scmp.lt.s32.totalorder %s16, 1
      %s216 = scalar_select %p215, %s16, 1
      %s217 = smul.addr %s216, 128
      %s218 = smul.addr %s217, 8
      %s219 = scalar_lea.vmem %s0, %s218
      %p220 = scmp.lt.s32.totalorder %s16, 1
      %s221 = scalar_select %p220, %s16, 1
      %s222 = smul.addr %s221, 4
      %s223 = smul.addr %s222, 4
      %s224 = scalar_lea.vmem %s5, %s223
      %v226 = vld [vmem:[%s219] sm:$0xff]
      %v227 = vld [vmem:[%s219 + $0x8] sm:$0xff]
      %v228 = vld [vmem:[%s219 + $0x10] sm:$0xff]
      %v229 = vld [vmem:[%s219 + $0x18] sm:$0xff]
      %v230 = vld [vmem:[%s219 + $0x20] sm:$0xff]
      %v231 = vld [vmem:[%s219 + $0x28] sm:$0xff]
      %v232 = vld [vmem:[%s219 + $0x30] sm:$0xff]
      %v233 = vld [vmem:[%s219 + $0x38] sm:$0xff]
      %v234 = vld [vmem:[%s219 + $0x40] sm:$0xff]
      %v235 = vld [vmem:[%s219 + $0x48] sm:$0xff]
      %v236 = vld [vmem:[%s219 + $0x50] sm:$0xff]
      %v237 = vld [vmem:[%s219 + $0x58] sm:$0xff]
      %v238 = vld [vmem:[%s219 + $0x60] sm:$0xff]
      %v239 = vld [vmem:[%s219 + $0x68] sm:$0xff]
      %v240 = vld [vmem:[%s219 + $0x70] sm:$0xff]
      %v241 = vld [vmem:[%s219 + $0x78] sm:$0xff]
      %v242 = vld [vmem:[%s219 + $0x80] sm:$0xff]
      %v243 = vld [vmem:[%s219 + $0x88] sm:$0xff]
      %v244 = vld [vmem:[%s219 + $0x90] sm:$0xff]
      %v245 = vld [vmem:[%s219 + $0x98] sm:$0xff]
      %v246 = vld [vmem:[%s219 + $0xa0] sm:$0xff]
      %v247 = vld [vmem:[%s219 + $0xa8] sm:$0xff]
      %v248 = vld [vmem:[%s219 + $0xb0] sm:$0xff]
      %v249 = vld [vmem:[%s219 + $0xb8] sm:$0xff]
      %v250 = vld [vmem:[%s219 + $0xc0] sm:$0xff]
      %v251 = vld [vmem:[%s219 + $0xc8] sm:$0xff]
      %v252 = vld [vmem:[%s219 + $0xd0] sm:$0xff]
      %v253 = vld [vmem:[%s219 + $0xd8] sm:$0xff]
      %v254 = vld [vmem:[%s219 + $0xe0] sm:$0xff]
      %v255 = vld [vmem:[%s219 + $0xe8] sm:$0xff]
      %v256 = vld [vmem:[%s219 + $0xf0] sm:$0xff]
      %v257 = vld [vmem:[%s219 + $0xf8] sm:$0xff]
      %v258 = vld [vmem:[%s219 + $0x100] sm:$0xff]
      %v259 = vld [vmem:[%s219 + $0x108] sm:$0xff]
      %v260 = vld [vmem:[%s219 + $0x110] sm:$0xff]
      %v261 = vld [vmem:[%s219 + $0x118] sm:$0xff]
      %v262 = vld [vmem:[%s219 + $0x120] sm:$0xff]
      %v263 = vld [vmem:[%s219 + $0x128] sm:$0xff]
      %v264 = vld [vmem:[%s219 + $0x130] sm:$0xff]
      %v265 = vld [vmem:[%s219 + $0x138] sm:$0xff]
      %v266 = vld [vmem:[%s219 + $0x140] sm:$0xff]
      %v267 = vld [vmem:[%s219 + $0x148] sm:$0xff]
      %v268 = vld [vmem:[%s219 + $0x150] sm:$0xff]
      %v269 = vld [vmem:[%s219 + $0x158] sm:$0xff]
      %v270 = vld [vmem:[%s219 + $0x160] sm:$0xff]
      %v271 = vld [vmem:[%s219 + $0x168] sm:$0xff]
      %v272 = vld [vmem:[%s219 + $0x170] sm:$0xff]
      %v273 = vld [vmem:[%s219 + $0x178] sm:$0xff]
      %v274 = vld [vmem:[%s219 + $0x180] sm:$0xff]
      %v275 = vld [vmem:[%s219 + $0x188] sm:$0xff]
      %v276 = vld [vmem:[%s219 + $0x190] sm:$0xff]
      %v277 = vld [vmem:[%s219 + $0x198] sm:$0xff]
      %v278 = vld [vmem:[%s219 + $0x1a0] sm:$0xff]
      %v279 = vld [vmem:[%s219 + $0x1a8] sm:$0xff]
      %v280 = vld [vmem:[%s219 + $0x1b0] sm:$0xff]
      %v281 = vld [vmem:[%s219 + $0x1b8] sm:$0xff]
      %v282 = vld [vmem:[%s219 + $0x1c0] sm:$0xff]
      %v283 = vld [vmem:[%s219 + $0x1c8] sm:$0xff]
      %v284 = vld [vmem:[%s219 + $0x1d0] sm:$0xff]
      %v285 = vld [vmem:[%s219 + $0x1d8] sm:$0xff]
      %v286 = vld [vmem:[%s219 + $0x1e0] sm:$0xff]
      %v287 = vld [vmem:[%s219 + $0x1e8] sm:$0xff]
      %v288 = vld [vmem:[%s219 + $0x1f0] sm:$0xff]
      %v289 = vld [vmem:[%s219 + $0x1f8] sm:$0xff]
      %v290 = vld [vmem:[%s219 + $0x200] sm:$0xff]
      %v291 = vld [vmem:[%s219 + $0x208] sm:$0xff]
      %v292 = vld [vmem:[%s219 + $0x210] sm:$0xff]
      %v293 = vld [vmem:[%s219 + $0x218] sm:$0xff]
      %v294 = vld [vmem:[%s219 + $0x220] sm:$0xff]
      %v295 = vld [vmem:[%s219 + $0x228] sm:$0xff]
      %v296 = vld [vmem:[%s219 + $0x230] sm:$0xff]
      %v297 = vld [vmem:[%s219 + $0x238] sm:$0xff]
      %v298 = vld [vmem:[%s219 + $0x240] sm:$0xff]
      %v299 = vld [vmem:[%s219 + $0x248] sm:$0xff]
      %v300 = vld [vmem:[%s219 + $0x250] sm:$0xff]
      %v301 = vld [vmem:[%s219 + $0x258] sm:$0xff]
      %v302 = vld [vmem:[%s219 + $0x260] sm:$0xff]
      %v303 = vld [vmem:[%s219 + $0x268] sm:$0xff]
      %v304 = vld [vmem:[%s219 + $0x270] sm:$0xff]
      %v305 = vld [vmem:[%s219 + $0x278] sm:$0xff]
      %v306 = vld [vmem:[%s219 + $0x280] sm:$0xff]
      %v307 = vld [vmem:[%s219 + $0x288] sm:$0xff]
      %v308 = vld [vmem:[%s219 + $0x290] sm:$0xff]
      %v309 = vld [vmem:[%s219 + $0x298] sm:$0xff]
      %v310 = vld [vmem:[%s219 + $0x2a0] sm:$0xff]
      %v311 = vld [vmem:[%s219 + $0x2a8] sm:$0xff]
      %v312 = vld [vmem:[%s219 + $0x2b0] sm:$0xff]
      %v313 = vld [vmem:[%s219 + $0x2b8] sm:$0xff]
      %v314 = vld [vmem:[%s219 + $0x2c0] sm:$0xff]
      %v315 = vld [vmem:[%s219 + $0x2c8] sm:$0xff]
      %v316 = vld [vmem:[%s219 + $0x2d0] sm:$0xff]
      %v317 = vld [vmem:[%s219 + $0x2d8] sm:$0xff]
      %v318 = vld [vmem:[%s219 + $0x2e0] sm:$0xff]
      %v319 = vld [vmem:[%s219 + $0x2e8] sm:$0xff]
      %v320 = vld [vmem:[%s219 + $0x2f0] sm:$0xff]
      %v321 = vld [vmem:[%s219 + $0x2f8] sm:$0xff]
      %v322 = vld [vmem:[%s219 + $0x300] sm:$0xff]
      %v323 = vld [vmem:[%s219 + $0x308] sm:$0xff]
      %v324 = vld [vmem:[%s219 + $0x310] sm:$0xff]
      %v325 = vld [vmem:[%s219 + $0x318] sm:$0xff]
      %v326 = vld [vmem:[%s219 + $0x320] sm:$0xff]
      %v327 = vld [vmem:[%s219 + $0x328] sm:$0xff]
      %v328 = vld [vmem:[%s219 + $0x330] sm:$0xff]
      %v329 = vld [vmem:[%s219 + $0x338] sm:$0xff]
      %v330 = vld [vmem:[%s219 + $0x340] sm:$0xff]
      %v331 = vld [vmem:[%s219 + $0x348] sm:$0xff]
      %v332 = vld [vmem:[%s219 + $0x350] sm:$0xff]
      %v333 = vld [vmem:[%s219 + $0x358] sm:$0xff]
      %v334 = vld [vmem:[%s219 + $0x360] sm:$0xff]
      %v335 = vld [vmem:[%s219 + $0x368] sm:$0xff]
      %v336 = vld [vmem:[%s219 + $0x370] sm:$0xff]
      %v337 = vld [vmem:[%s219 + $0x378] sm:$0xff]
      %v338 = vld [vmem:[%s219 + $0x380] sm:$0xff]
      %v339 = vld [vmem:[%s219 + $0x388] sm:$0xff]
      %v340 = vld [vmem:[%s219 + $0x390] sm:$0xff]
      %v341 = vld [vmem:[%s219 + $0x398] sm:$0xff]
      %v342 = vld [vmem:[%s219 + $0x3a0] sm:$0xff]
      %v343 = vld [vmem:[%s219 + $0x3a8] sm:$0xff]
      %v344 = vld [vmem:[%s219 + $0x3b0] sm:$0xff]
      %v345 = vld [vmem:[%s219 + $0x3b8] sm:$0xff]
      %v346 = vld [vmem:[%s219 + $0x3c0] sm:$0xff]
      %v347 = vld [vmem:[%s219 + $0x3c8] sm:$0xff]
      %v348 = vld [vmem:[%s219 + $0x3d0] sm:$0xff]
      %v349 = vld [vmem:[%s219 + $0x3d8] sm:$0xff]
      %v350 = vld [vmem:[%s219 + $0x3e0] sm:$0xff]
      %v351 = vld [vmem:[%s219 + $0x3e8] sm:$0xff]
      %v352 = vld [vmem:[%s219 + $0x3f0] sm:$0xff]
      %v353 = vld [vmem:[%s219 + $0x3f8] sm:$0xff]
      %v354 = vpack.c.bf16 %v226, %v226
      %v355 = vpack.c.bf16 %v227, %v227
      %v356 = vpack.c.bf16 %v228, %v228
      %v357 = vpack.c.bf16 %v229, %v229
      %v358 = vpack.c.bf16 %v230, %v230
      %v359 = vpack.c.bf16 %v231, %v231
      %v360 = vpack.c.bf16 %v232, %v232
      %v361 = vpack.c.bf16 %v233, %v233
      %v362 = vpack.c.bf16 %v234, %v234
      %v363 = vpack.c.bf16 %v235, %v235
      %v364 = vpack.c.bf16 %v236, %v236
      %v365 = vpack.c.bf16 %v237, %v237
      %v366 = vpack.c.bf16 %v238, %v238
      %v367 = vpack.c.bf16 %v239, %v239
      %v368 = vpack.c.bf16 %v240, %v240
      %v369 = vpack.c.bf16 %v241, %v241
      %v370 = vpack.c.bf16 %v242, %v242
      %v371 = vpack.c.bf16 %v243, %v243
      %v372 = vpack.c.bf16 %v244, %v244
      %v373 = vpack.c.bf16 %v245, %v245
      %v374 = vpack.c.bf16 %v246, %v246
      %v375 = vpack.c.bf16 %v247, %v247
      %v376 = vpack.c.bf16 %v248, %v248
      %v377 = vpack.c.bf16 %v249, %v249
      %v378 = vpack.c.bf16 %v250, %v250
      %v379 = vpack.c.bf16 %v251, %v251
      %v380 = vpack.c.bf16 %v252, %v252
      %v381 = vpack.c.bf16 %v253, %v253
      %v382 = vpack.c.bf16 %v254, %v254
      %v383 = vpack.c.bf16 %v255, %v255
      %v384 = vpack.c.bf16 %v256, %v256
      %v385 = vpack.c.bf16 %v257, %v257
      %v386 = vpack.c.bf16 %v258, %v258
      %v387 = vpack.c.bf16 %v259, %v259
      %v388 = vpack.c.bf16 %v260, %v260
      %v389 = vpack.c.bf16 %v261, %v261
      %v390 = vpack.c.bf16 %v262, %v262
      %v391 = vpack.c.bf16 %v263, %v263
      %v392 = vpack.c.bf16 %v264, %v264
      %v393 = vpack.c.bf16 %v265, %v265
      %v394 = vpack.c.bf16 %v266, %v266
      %v395 = vpack.c.bf16 %v267, %v267
      %v396 = vpack.c.bf16 %v268, %v268
      %v397 = vpack.c.bf16 %v269, %v269
      %v398 = vpack.c.bf16 %v270, %v270
      %v399 = vpack.c.bf16 %v271, %v271
      %v400 = vpack.c.bf16 %v272, %v272
      %v401 = vpack.c.bf16 %v273, %v273
      %v402 = vpack.c.bf16 %v274, %v274
      %v403 = vpack.c.bf16 %v275, %v275
      %v404 = vpack.c.bf16 %v276, %v276
      %v405 = vpack.c.bf16 %v277, %v277
      %v406 = vpack.c.bf16 %v278, %v278
      %v407 = vpack.c.bf16 %v279, %v279
      %v408 = vpack.c.bf16 %v280, %v280
      %v409 = vpack.c.bf16 %v281, %v281
      %v410 = vpack.c.bf16 %v282, %v282
      %v411 = vpack.c.bf16 %v283, %v283
      %v412 = vpack.c.bf16 %v284, %v284
      %v413 = vpack.c.bf16 %v285, %v285
      %v414 = vpack.c.bf16 %v286, %v286
      %v415 = vpack.c.bf16 %v287, %v287
      %v416 = vpack.c.bf16 %v288, %v288
      %v417 = vpack.c.bf16 %v289, %v289
      %v418 = vpack.c.bf16 %v290, %v290
      %v419 = vpack.c.bf16 %v291, %v291
      %v420 = vpack.c.bf16 %v292, %v292
      %v421 = vpack.c.bf16 %v293, %v293
      %v422 = vpack.c.bf16 %v294, %v294
      %v423 = vpack.c.bf16 %v295, %v295
      %v424 = vpack.c.bf16 %v296, %v296
      %v425 = vpack.c.bf16 %v297, %v297
      %v426 = vpack.c.bf16 %v298, %v298
      %v427 = vpack.c.bf16 %v299, %v299
      %v428 = vpack.c.bf16 %v300, %v300
      %v429 = vpack.c.bf16 %v301, %v301
      %v430 = vpack.c.bf16 %v302, %v302
      %v431 = vpack.c.bf16 %v303, %v303
      %v432 = vpack.c.bf16 %v304, %v304
      %v433 = vpack.c.bf16 %v305, %v305
      %v434 = vpack.c.bf16 %v306, %v306
      %v435 = vpack.c.bf16 %v307, %v307
      %v436 = vpack.c.bf16 %v308, %v308
      %v437 = vpack.c.bf16 %v309, %v309
      %v438 = vpack.c.bf16 %v310, %v310
      %v439 = vpack.c.bf16 %v311, %v311
      %v440 = vpack.c.bf16 %v312, %v312
      %v441 = vpack.c.bf16 %v313, %v313
      %v442 = vpack.c.bf16 %v314, %v314
      %v443 = vpack.c.bf16 %v315, %v315
      %v444 = vpack.c.bf16 %v316, %v316
      %v445 = vpack.c.bf16 %v317, %v317
      %v446 = vpack.c.bf16 %v318, %v318
      %v447 = vpack.c.bf16 %v319, %v319
      %v448 = vpack.c.bf16 %v320, %v320
      %v449 = vpack.c.bf16 %v321, %v321
      %v450 = vpack.c.bf16 %v322, %v322
      %v451 = vpack.c.bf16 %v323, %v323
      %v452 = vpack.c.bf16 %v324, %v324
      %v453 = vpack.c.bf16 %v325, %v325
      %v454 = vpack.c.bf16 %v326, %v326
      %v455 = vpack.c.bf16 %v327, %v327
      %v456 = vpack.c.bf16 %v328, %v328
      %v457 = vpack.c.bf16 %v329, %v329
      %v458 = vpack.c.bf16 %v330, %v330
      %v459 = vpack.c.bf16 %v331, %v331
      %v460 = vpack.c.bf16 %v332, %v332
      %v461 = vpack.c.bf16 %v333, %v333
      %v462 = vpack.c.bf16 %v334, %v334
      %v463 = vpack.c.bf16 %v335, %v335
      %v464 = vpack.c.bf16 %v336, %v336
      %v465 = vpack.c.bf16 %v337, %v337
      %v466 = vpack.c.bf16 %v338, %v338
      %v467 = vpack.c.bf16 %v339, %v339
      %v468 = vpack.c.bf16 %v340, %v340
      %v469 = vpack.c.bf16 %v341, %v341
      %v470 = vpack.c.bf16 %v342, %v342
      %v471 = vpack.c.bf16 %v343, %v343
      %v472 = vpack.c.bf16 %v344, %v344
      %v473 = vpack.c.bf16 %v345, %v345
      %v474 = vpack.c.bf16 %v346, %v346
      %v475 = vpack.c.bf16 %v347, %v347
      %v476 = vpack.c.bf16 %v348, %v348
      %v477 = vpack.c.bf16 %v349, %v349
      %v478 = vpack.c.bf16 %v350, %v350
      %v479 = vpack.c.bf16 %v351, %v351
      %v480 = vpack.c.bf16 %v352, %v352
      %v481 = vpack.c.bf16 %v353, %v353
      %v482 = vld [vmem:[%s1] sm:$0xf]
      %v483 = vld [vmem:[%s1 + $0x4] sm:$0xf]
      %s484 = scalar_lea.vmem %s1, 8
      %v485 = vld [vmem:[%s484] sm:$0xf]
      %v486 = vld [vmem:[%s484 + $0x4] sm:$0xf]
      %v599 = vunpack.c.l.b16 %v358
      %v600 = vunpack.c.l.b16 %v359
      %v601 = vunpack.c.l.b16 %v360
      %v602 = vunpack.c.l.b16 %v361
      %v603 = vunpack.c.l.b16 %v362
      %v604 = vunpack.c.l.b16 %v363
      %v605 = vunpack.c.l.b16 %v364
      %v606 = vunpack.c.l.b16 %v365
      %v607 = vunpack.c.l.b16 %v366
      %v608 = vunpack.c.l.b16 %v367
      %v609 = vunpack.c.l.b16 %v368
      %v610 = vunpack.c.l.b16 %v369
      %v611 = vunpack.c.l.b16 %v370
      %v612 = vunpack.c.l.b16 %v371
      %v613 = vunpack.c.l.b16 %v372
      %v614 = vunpack.c.l.b16 %v373
      %v615 = vunpack.c.l.b16 %v374
      %v616 = vunpack.c.l.b16 %v375
      %v617 = vunpack.c.l.b16 %v376
      %v618 = vunpack.c.l.b16 %v377
      %v619 = vunpack.c.l.b16 %v378
      %v620 = vunpack.c.l.b16 %v379
      %v621 = vunpack.c.l.b16 %v380
      %v622 = vunpack.c.l.b16 %v381
      %v623 = vunpack.c.l.b16 %v382
      %v624 = vunpack.c.l.b16 %v383
      %v625 = vunpack.c.l.b16 %v384
      %v626 = vunpack.c.l.b16 %v385
      %v627 = vunpack.c.l.b16 %v386
      %v628 = vunpack.c.l.b16 %v387
      %v629 = vunpack.c.l.b16 %v388
      %v630 = vunpack.c.l.b16 %v389
      %v631 = vunpack.c.l.b16 %v390
      %v632 = vunpack.c.l.b16 %v391
      %v633 = vunpack.c.l.b16 %v392
      %v634 = vunpack.c.l.b16 %v393
      %v635 = vunpack.c.l.b16 %v394
      %v636 = vunpack.c.l.b16 %v395
      %v637 = vunpack.c.l.b16 %v396
      %v638 = vunpack.c.l.b16 %v397
      %v639 = vunpack.c.l.b16 %v398
      %v640 = vunpack.c.l.b16 %v399
      %v641 = vunpack.c.l.b16 %v400
      %v642 = vunpack.c.l.b16 %v401
      %v643 = vunpack.c.l.b16 %v402
      %v644 = vunpack.c.l.b16 %v403
      %v645 = vunpack.c.l.b16 %v404
      %v646 = vunpack.c.l.b16 %v405
      %v647 = vunpack.c.l.b16 %v406
      %v648 = vunpack.c.l.b16 %v407
      %v649 = vunpack.c.l.b16 %v408
      %v650 = vunpack.c.l.b16 %v409
      %v651 = vunpack.c.l.b16 %v410
      %v652 = vunpack.c.l.b16 %v411
      %v653 = vunpack.c.l.b16 %v412
      %v654 = vunpack.c.l.b16 %v413
      %v655 = vunpack.c.l.b16 %v414
      %v656 = vunpack.c.l.b16 %v415
      %v657 = vunpack.c.l.b16 %v416
      %v658 = vunpack.c.l.b16 %v417
      %v659 = vunpack.c.l.b16 %v418
      %v660 = vunpack.c.l.b16 %v419
      %v661 = vunpack.c.l.b16 %v420
      %v662 = vunpack.c.l.b16 %v421
      %v663 = vunpack.c.l.b16 %v422
      %v664 = vunpack.c.l.b16 %v423
      %v665 = vunpack.c.l.b16 %v424
      %v666 = vunpack.c.l.b16 %v425
      %v667 = vunpack.c.l.b16 %v426
      %v668 = vunpack.c.l.b16 %v427
      %v669 = vunpack.c.l.b16 %v428
      %v670 = vunpack.c.l.b16 %v429
      %v671 = vunpack.c.l.b16 %v430
      %v672 = vunpack.c.l.b16 %v431
      %v673 = vunpack.c.l.b16 %v432
      %v674 = vunpack.c.l.b16 %v433
      %v675 = vunpack.c.l.b16 %v434
      %v676 = vunpack.c.l.b16 %v435
      %v677 = vunpack.c.l.b16 %v436
      %v678 = vunpack.c.l.b16 %v437
      %v679 = vunpack.c.l.b16 %v438
      %v680 = vunpack.c.l.b16 %v439
      %v681 = vunpack.c.l.b16 %v440
      %v682 = vunpack.c.l.b16 %v441
      %v683 = vunpack.c.l.b16 %v442
      %v684 = vunpack.c.l.b16 %v443
      %v685 = vunpack.c.l.b16 %v444
      %v686 = vunpack.c.l.b16 %v445
      %v687 = vunpack.c.l.b16 %v446
      %v688 = vunpack.c.l.b16 %v447
      %v689 = vunpack.c.l.b16 %v448
      %v690 = vunpack.c.l.b16 %v449
      %v691 = vunpack.c.l.b16 %v450
      %v692 = vunpack.c.l.b16 %v451
      %v693 = vunpack.c.l.b16 %v452
      %v694 = vunpack.c.l.b16 %v453
      %v695 = vunpack.c.l.b16 %v454
      %v696 = vunpack.c.l.b16 %v455
      %v697 = vunpack.c.l.b16 %v456
      %v698 = vunpack.c.l.b16 %v457
      %v699 = vunpack.c.l.b16 %v458
      %v700 = vunpack.c.l.b16 %v459
      %v701 = vunpack.c.l.b16 %v460
      %v702 = vunpack.c.l.b16 %v461
      %v703 = vunpack.c.l.b16 %v462
      %v704 = vunpack.c.l.b16 %v463
      %v705 = vunpack.c.l.b16 %v464
      %v706 = vunpack.c.l.b16 %v465
      %v707 = vunpack.c.l.b16 %v466
      %v708 = vunpack.c.l.b16 %v467
      %v709 = vunpack.c.l.b16 %v468
      %v710 = vunpack.c.l.b16 %v469
      %v711 = vpack.c.b16 %v600, %v599
      %v712 = vpack.c.b16 %v602, %v601
      %v713 = vpack.c.b16 %v604, %v603
      %v714 = vpack.c.b16 %v606, %v605
      %v715 = vpack.c.b16 %v608, %v607
      %v716 = vpack.c.b16 %v610, %v609
      %v717 = vpack.c.b16 %v612, %v611
      %v718 = vpack.c.b16 %v614, %v613
      %v719 = vpack.c.b16 %v616, %v615
      %v720 = vpack.c.b16 %v618, %v617
      %v721 = vpack.c.b16 %v620, %v619
      %v722 = vpack.c.b16 %v622, %v621
      %v723 = vpack.c.b16 %v624, %v623
      %v724 = vpack.c.b16 %v626, %v625
      %v725 = vpack.c.b16 %v628, %v627
      %v726 = vpack.c.b16 %v630, %v629
      %v727 = vpack.c.b16 %v632, %v631
      %v728 = vpack.c.b16 %v634, %v633
      %v729 = vpack.c.b16 %v636, %v635
      %v730 = vpack.c.b16 %v638, %v637
      %v731 = vpack.c.b16 %v640, %v639
      %v732 = vpack.c.b16 %v642, %v641
      %v733 = vpack.c.b16 %v644, %v643
      %v734 = vpack.c.b16 %v646, %v645
      %v735 = vpack.c.b16 %v648, %v647
      %v736 = vpack.c.b16 %v650, %v649
      %v737 = vpack.c.b16 %v652, %v651
      %v738 = vpack.c.b16 %v654, %v653
      %v739 = vpack.c.b16 %v656, %v655
      %v740 = vpack.c.b16 %v658, %v657
      %v741 = vpack.c.b16 %v660, %v659
      %v742 = vpack.c.b16 %v662, %v661
      %v743 = vpack.c.b16 %v664, %v663
      %v744 = vpack.c.b16 %v666, %v665
      %v745 = vpack.c.b16 %v668, %v667
      %v746 = vpack.c.b16 %v670, %v669
      %v747 = vpack.c.b16 %v672, %v671
      %v748 = vpack.c.b16 %v674, %v673
      %v749 = vpack.c.b16 %v676, %v675
      %v750 = vpack.c.b16 %v678, %v677
      %v751 = vpack.c.b16 %v680, %v679
      %v752 = vpack.c.b16 %v682, %v681
      %v753 = vpack.c.b16 %v684, %v683
      %v754 = vpack.c.b16 %v686, %v685
      %v755 = vpack.c.b16 %v688, %v687
      %v756 = vpack.c.b16 %v690, %v689
      %v757 = vpack.c.b16 %v692, %v691
      %v758 = vpack.c.b16 %v694, %v693
      %v759 = vpack.c.b16 %v696, %v695
      %v760 = vpack.c.b16 %v698, %v697
      %v761 = vpack.c.b16 %v700, %v699
      %v762 = vpack.c.b16 %v702, %v701
      %v763 = vpack.c.b16 %v704, %v703
      %v764 = vpack.c.b16 %v706, %v705
      %v765 = vpack.c.b16 %v708, %v707
      %v766 = vpack.c.b16 %v710, %v709
      %v769 = vunpack.c.l.b16 %v485
      %v770 = vunpack.c.l.b16 %v486
      %v771 = vpack.c.b16 %v770, %v769
      %vm772 = vcmask 121856
      %v774 = vsel %vm772, %v711, 0
      %v777 = vsel %vm772, %v712, 0
      %v780 = vsel %vm772, %v713, 0
      %v783 = vsel %vm772, %v714, 0
      %v786 = vsel %vm772, %v715, 0
      %v789 = vsel %vm772, %v716, 0
      %v792 = vsel %vm772, %v717, 0
      %v795 = vsel %vm772, %v718, 0
      %v798 = vsel %vm772, %v719, 0
      %v801 = vsel %vm772, %v720, 0
      %v804 = vsel %vm772, %v721, 0
      %v807 = vsel %vm772, %v722, 0
      %v810 = vsel %vm772, %v723, 0
      %v813 = vsel %vm772, %v724, 0
      %v816 = vsel %vm772, %v725, 0
      %v819 = vsel %vm772, %v726, 0
      %v822 = vsel %vm772, %v727, 0
      %v825 = vsel %vm772, %v728, 0
      %v828 = vsel %vm772, %v729, 0
      %v831 = vsel %vm772, %v730, 0
      %v834 = vsel %vm772, %v731, 0
      %v837 = vsel %vm772, %v732, 0
      %v840 = vsel %vm772, %v733, 0
      %v843 = vsel %vm772, %v734, 0
      %v846 = vsel %vm772, %v735, 0
      %v849 = vsel %vm772, %v736, 0
      %v852 = vsel %vm772, %v737, 0
      %v855 = vsel %vm772, %v738, 0
      %v858 = vsel %vm772, %v739, 0
      %v861 = vsel %vm772, %v740, 0
      %v864 = vsel %vm772, %v741, 0
      %v867 = vsel %vm772, %v742, 0
      %v870 = vsel %vm772, %v743, 0
      %v873 = vsel %vm772, %v744, 0
      %v876 = vsel %vm772, %v745, 0
      %v879 = vsel %vm772, %v746, 0
      %v882 = vsel %vm772, %v747, 0
      %v885 = vsel %vm772, %v748, 0
      %v888 = vsel %vm772, %v749, 0
      %v891 = vsel %vm772, %v750, 0
      %v894 = vsel %vm772, %v751, 0
      %v897 = vsel %vm772, %v752, 0
      %v900 = vsel %vm772, %v753, 0
      %v903 = vsel %vm772, %v754, 0
      %v906 = vsel %vm772, %v755, 0
      %v909 = vsel %vm772, %v756, 0
      %v912 = vsel %vm772, %v757, 0
      %v915 = vsel %vm772, %v758, 0
      %v918 = vsel %vm772, %v759, 0
      %v921 = vsel %vm772, %v760, 0
      %v924 = vsel %vm772, %v761, 0
      %v927 = vsel %vm772, %v762, 0
      %v930 = vsel %vm772, %v763, 0
      %v933 = vsel %vm772, %v764, 0
      %v936 = vsel %vm772, %v765, 0
      %v939 = vsel %vm772, %v766, 0
      %vm941 = vcmask 1046528
      %vm942 = vcmask 1047552
      %v943 = vsel %vm941, 4294967295, 65535
      %v944 = vsel %vm942, %v943, 0
      %v946 = vand.u32 %v771, %v944
      %948 = vmatpush.bf16.msra.mxu0 0
      %949 = vmatpush.bf16.msra.mxu0 0
      %950 = vmatpush.bf16.msra.mxu0 0
      %951 = vmatpush.bf16.msra.mxu0 0
      %952 = vmatpush.bf16.msra.mxu0 0
      %953 = vmatpush.bf16.msra.mxu0 0
      %954 = vmatpush.bf16.msra.mxu0 0
      %955 = vmatpush.bf16.msra.mxu0 %v946
      %956 = vmatmul.bf16.gmra.mxu0 %v774
      %v957 = vpop.f32.mrf.mxu0
      %v958 = vadd.f32 0.0, %v957
      %v959 = vpop.f32.mrf.mxu0
      %v960 = vadd.f32 0.0, %v959
      %961 = vmatmul.bf16.gmra.mxu0 %v777
      %v962 = vpop.f32.mrf.mxu0
      %v963 = vadd.f32 0.0, %v962
      %v964 = vpop.f32.mrf.mxu0
      %v965 = vadd.f32 0.0, %v964
      %966 = vmatmul.bf16.gmra.mxu0 %v780
      %v967 = vpop.f32.mrf.mxu0
      %v968 = vadd.f32 0.0, %v967
      %v969 = vpop.f32.mrf.mxu0
      %v970 = vadd.f32 0.0, %v969
      %971 = vmatmul.bf16.gmra.mxu0 %v783
      %v972 = vpop.f32.mrf.mxu0
      %v973 = vadd.f32 0.0, %v972
      %v974 = vpop.f32.mrf.mxu0
      %v975 = vadd.f32 0.0, %v974
      %976 = vmatmul.bf16.gmra.mxu0 %v786
      %v977 = vpop.f32.mrf.mxu0
      %v978 = vadd.f32 0.0, %v977
      %v979 = vpop.f32.mrf.mxu0
      %v980 = vadd.f32 0.0, %v979
      %981 = vmatmul.bf16.gmra.mxu0 %v789
      %v982 = vpop.f32.mrf.mxu0
      %v983 = vadd.f32 0.0, %v982
      %v984 = vpop.f32.mrf.mxu0
      %v985 = vadd.f32 0.0, %v984
      %986 = vmatmul.bf16.gmra.mxu0 %v792
      %v987 = vpop.f32.mrf.mxu0
      %v988 = vadd.f32 0.0, %v987
      %v989 = vpop.f32.mrf.mxu0
      %v990 = vadd.f32 0.0, %v989
      %991 = vmatmul.bf16.gmra.mxu0 %v795
      %v992 = vpop.f32.mrf.mxu0
      %v993 = vadd.f32 0.0, %v992
      %v994 = vpop.f32.mrf.mxu0
      %v995 = vadd.f32 0.0, %v994
      %996 = vmatmul.bf16.gmra.mxu0 %v798
      %v997 = vpop.f32.mrf.mxu0
      %v998 = vadd.f32 0.0, %v997
      %v999 = vpop.f32.mrf.mxu0
      %v1000 = vadd.f32 0.0, %v999
      %1001 = vmatmul.bf16.gmra.mxu0 %v801
      %v1002 = vpop.f32.mrf.mxu0
      %v1003 = vadd.f32 0.0, %v1002
      %v1004 = vpop.f32.mrf.mxu0
      %v1005 = vadd.f32 0.0, %v1004
      %1006 = vmatmul.bf16.gmra.mxu0 %v804
      %v1007 = vpop.f32.mrf.mxu0
      %v1008 = vadd.f32 0.0, %v1007
      %v1009 = vpop.f32.mrf.mxu0
      %v1010 = vadd.f32 0.0, %v1009
      %1011 = vmatmul.bf16.gmra.mxu0 %v807
      %v1012 = vpop.f32.mrf.mxu0
      %v1013 = vadd.f32 0.0, %v1012
      %v1014 = vpop.f32.mrf.mxu0
      %v1015 = vadd.f32 0.0, %v1014
      %1016 = vmatmul.bf16.gmra.mxu0 %v810
      %v1017 = vpop.f32.mrf.mxu0
      %v1018 = vadd.f32 0.0, %v1017
      %v1019 = vpop.f32.mrf.mxu0
      %v1020 = vadd.f32 0.0, %v1019
      %1021 = vmatmul.bf16.gmra.mxu0 %v813
      %v1022 = vpop.f32.mrf.mxu0
      %v1023 = vadd.f32 0.0, %v1022
      %v1024 = vpop.f32.mrf.mxu0
      %v1025 = vadd.f32 0.0, %v1024
      %1026 = vmatmul.bf16.gmra.mxu0 %v816
      %v1027 = vpop.f32.mrf.mxu0
      %v1028 = vadd.f32 0.0, %v1027
      %v1029 = vpop.f32.mrf.mxu0
      %v1030 = vadd.f32 0.0, %v1029
      %1031 = vmatmul.bf16.gmra.mxu0 %v819
      %v1032 = vpop.f32.mrf.mxu0
      %v1033 = vadd.f32 0.0, %v1032
      %v1034 = vpop.f32.mrf.mxu0
      %v1035 = vadd.f32 0.0, %v1034
      %1036 = vmatmul.bf16.gmra.mxu0 %v822
      %v1037 = vpop.f32.mrf.mxu0
      %v1038 = vadd.f32 0.0, %v1037
      %v1039 = vpop.f32.mrf.mxu0
      %v1040 = vadd.f32 0.0, %v1039
      %1041 = vmatmul.bf16.gmra.mxu0 %v825
      %v1042 = vpop.f32.mrf.mxu0
      %v1043 = vadd.f32 0.0, %v1042
      %v1044 = vpop.f32.mrf.mxu0
      %v1045 = vadd.f32 0.0, %v1044
      %1046 = vmatmul.bf16.gmra.mxu0 %v828
      %v1047 = vpop.f32.mrf.mxu0
      %v1048 = vadd.f32 0.0, %v1047
      %v1049 = vpop.f32.mrf.mxu0
      %v1050 = vadd.f32 0.0, %v1049
      %1051 = vmatmul.bf16.gmra.mxu0 %v831
      %v1052 = vpop.f32.mrf.mxu0
      %v1053 = vadd.f32 0.0, %v1052
      %v1054 = vpop.f32.mrf.mxu0
      %v1055 = vadd.f32 0.0, %v1054
      %1056 = vmatmul.bf16.gmra.mxu0 %v834
      %v1057 = vpop.f32.mrf.mxu0
      %v1058 = vadd.f32 0.0, %v1057
      %v1059 = vpop.f32.mrf.mxu0
      %v1060 = vadd.f32 0.0, %v1059
      %1061 = vmatmul.bf16.gmra.mxu0 %v837
      %v1062 = vpop.f32.mrf.mxu0
      %v1063 = vadd.f32 0.0, %v1062
      %v1064 = vpop.f32.mrf.mxu0
      %v1065 = vadd.f32 0.0, %v1064
      %1066 = vmatmul.bf16.gmra.mxu0 %v840
      %v1067 = vpop.f32.mrf.mxu0
      %v1068 = vadd.f32 0.0, %v1067
      %v1069 = vpop.f32.mrf.mxu0
      %v1070 = vadd.f32 0.0, %v1069
      %1071 = vmatmul.bf16.gmra.mxu0 %v843
      %v1072 = vpop.f32.mrf.mxu0
      %v1073 = vadd.f32 0.0, %v1072
      %v1074 = vpop.f32.mrf.mxu0
      %v1075 = vadd.f32 0.0, %v1074
      %1076 = vmatmul.bf16.gmra.mxu0 %v846
      %v1077 = vpop.f32.mrf.mxu0
      %v1078 = vadd.f32 0.0, %v1077
      %v1079 = vpop.f32.mrf.mxu0
      %v1080 = vadd.f32 0.0, %v1079
      %1081 = vmatmul.bf16.gmra.mxu0 %v849
      %v1082 = vpop.f32.mrf.mxu0
      %v1083 = vadd.f32 0.0, %v1082
      %v1084 = vpop.f32.mrf.mxu0
      %v1085 = vadd.f32 0.0, %v1084
      %1086 = vmatmul.bf16.gmra.mxu0 %v852
      %v1087 = vpop.f32.mrf.mxu0
      %v1088 = vadd.f32 0.0, %v1087
      %v1089 = vpop.f32.mrf.mxu0
      %v1090 = vadd.f32 0.0, %v1089
      %1091 = vmatmul.bf16.gmra.mxu0 %v855
      %v1092 = vpop.f32.mrf.mxu0
      %v1093 = vadd.f32 0.0, %v1092
      %v1094 = vpop.f32.mrf.mxu0
      %v1095 = vadd.f32 0.0, %v1094
      %1096 = vmatmul.bf16.gmra.mxu0 %v858
      %v1097 = vpop.f32.mrf.mxu0
      %v1098 = vadd.f32 0.0, %v1097
      %v1099 = vpop.f32.mrf.mxu0
      %v1100 = vadd.f32 0.0, %v1099
      %1101 = vmatmul.bf16.gmra.mxu0 %v861
      %v1102 = vpop.f32.mrf.mxu0
      %v1103 = vadd.f32 0.0, %v1102
      %v1104 = vpop.f32.mrf.mxu0
      %v1105 = vadd.f32 0.0, %v1104
      %1106 = vmatmul.bf16.gmra.mxu0 %v864
      %v1107 = vpop.f32.mrf.mxu0
      %v1108 = vadd.f32 0.0, %v1107
      %v1109 = vpop.f32.mrf.mxu0
      %v1110 = vadd.f32 0.0, %v1109
      %1111 = vmatmul.bf16.gmra.mxu0 %v867
      %v1112 = vpop.f32.mrf.mxu0
      %v1113 = vadd.f32 0.0, %v1112
      %v1114 = vpop.f32.mrf.mxu0
      %v1115 = vadd.f32 0.0, %v1114
      %1116 = vmatmul.bf16.gmra.mxu0 %v870
      %v1117 = vpop.f32.mrf.mxu0
      %v1118 = vadd.f32 0.0, %v1117
      %v1119 = vpop.f32.mrf.mxu0
      %v1120 = vadd.f32 0.0, %v1119
      %1121 = vmatmul.bf16.gmra.mxu0 %v873
      %v1122 = vpop.f32.mrf.mxu0
      %v1123 = vadd.f32 0.0, %v1122
      %v1124 = vpop.f32.mrf.mxu0
      %v1125 = vadd.f32 0.0, %v1124
      %1126 = vmatmul.bf16.gmra.mxu0 %v876
      %v1127 = vpop.f32.mrf.mxu0
      %v1128 = vadd.f32 0.0, %v1127
      %v1129 = vpop.f32.mrf.mxu0
      %v1130 = vadd.f32 0.0, %v1129
      %1131 = vmatmul.bf16.gmra.mxu0 %v879
      %v1132 = vpop.f32.mrf.mxu0
      %v1133 = vadd.f32 0.0, %v1132
      %v1134 = vpop.f32.mrf.mxu0
      %v1135 = vadd.f32 0.0, %v1134
      %1136 = vmatmul.bf16.gmra.mxu0 %v882
      %v1137 = vpop.f32.mrf.mxu0
      %v1138 = vadd.f32 0.0, %v1137
      %v1139 = vpop.f32.mrf.mxu0
      %v1140 = vadd.f32 0.0, %v1139
      %1141 = vmatmul.bf16.gmra.mxu0 %v885
      %v1142 = vpop.f32.mrf.mxu0
      %v1143 = vadd.f32 0.0, %v1142
      %v1144 = vpop.f32.mrf.mxu0
      %v1145 = vadd.f32 0.0, %v1144
      %1146 = vmatmul.bf16.gmra.mxu0 %v888
      %v1147 = vpop.f32.mrf.mxu0
      %v1148 = vadd.f32 0.0, %v1147
      %v1149 = vpop.f32.mrf.mxu0
      %v1150 = vadd.f32 0.0, %v1149
      %1151 = vmatmul.bf16.gmra.mxu0 %v891
      %v1152 = vpop.f32.mrf.mxu0
      %v1153 = vadd.f32 0.0, %v1152
      %v1154 = vpop.f32.mrf.mxu0
      %v1155 = vadd.f32 0.0, %v1154
      %1156 = vmatmul.bf16.gmra.mxu0 %v894
      %v1157 = vpop.f32.mrf.mxu0
      %v1158 = vadd.f32 0.0, %v1157
      %v1159 = vpop.f32.mrf.mxu0
      %v1160 = vadd.f32 0.0, %v1159
      %1161 = vmatmul.bf16.gmra.mxu0 %v897
      %v1162 = vpop.f32.mrf.mxu0
      %v1163 = vadd.f32 0.0, %v1162
      %v1164 = vpop.f32.mrf.mxu0
      %v1165 = vadd.f32 0.0, %v1164
      %1166 = vmatmul.bf16.gmra.mxu0 %v900
      %v1167 = vpop.f32.mrf.mxu0
      %v1168 = vadd.f32 0.0, %v1167
      %v1169 = vpop.f32.mrf.mxu0
      %v1170 = vadd.f32 0.0, %v1169
      %1171 = vmatmul.bf16.gmra.mxu0 %v903
      %v1172 = vpop.f32.mrf.mxu0
      %v1173 = vadd.f32 0.0, %v1172
      %v1174 = vpop.f32.mrf.mxu0
      %v1175 = vadd.f32 0.0, %v1174
      %1176 = vmatmul.bf16.gmra.mxu0 %v906
      %v1177 = vpop.f32.mrf.mxu0
      %v1178 = vadd.f32 0.0, %v1177
      %v1179 = vpop.f32.mrf.mxu0
      %v1180 = vadd.f32 0.0, %v1179
      %1181 = vmatmul.bf16.gmra.mxu0 %v909
      %v1182 = vpop.f32.mrf.mxu0
      %v1183 = vadd.f32 0.0, %v1182
      %v1184 = vpop.f32.mrf.mxu0
      %v1185 = vadd.f32 0.0, %v1184
      %1186 = vmatmul.bf16.gmra.mxu0 %v912
      %v1187 = vpop.f32.mrf.mxu0
      %v1188 = vadd.f32 0.0, %v1187
      %v1189 = vpop.f32.mrf.mxu0
      %v1190 = vadd.f32 0.0, %v1189
      %1191 = vmatmul.bf16.gmra.mxu0 %v915
      %v1192 = vpop.f32.mrf.mxu0
      %v1193 = vadd.f32 0.0, %v1192
      %v1194 = vpop.f32.mrf.mxu0
      %v1195 = vadd.f32 0.0, %v1194
      %1196 = vmatmul.bf16.gmra.mxu0 %v918
      %v1197 = vpop.f32.mrf.mxu0
      %v1198 = vadd.f32 0.0, %v1197
      %v1199 = vpop.f32.mrf.mxu0
      %v1200 = vadd.f32 0.0, %v1199
      %1201 = vmatmul.bf16.gmra.mxu0 %v921
      %v1202 = vpop.f32.mrf.mxu0
      %v1203 = vadd.f32 0.0, %v1202
      %v1204 = vpop.f32.mrf.mxu0
      %v1205 = vadd.f32 0.0, %v1204
      %1206 = vmatmul.bf16.gmra.mxu0 %v924
      %v1207 = vpop.f32.mrf.mxu0
      %v1208 = vadd.f32 0.0, %v1207
      %v1209 = vpop.f32.mrf.mxu0
      %v1210 = vadd.f32 0.0, %v1209
      %1211 = vmatmul.bf16.gmra.mxu0 %v927
      %v1212 = vpop.f32.mrf.mxu0
      %v1213 = vadd.f32 0.0, %v1212
      %v1214 = vpop.f32.mrf.mxu0
      %v1215 = vadd.f32 0.0, %v1214
      %1216 = vmatmul.bf16.gmra.mxu0 %v930
      %v1217 = vpop.f32.mrf.mxu0
      %v1218 = vadd.f32 0.0, %v1217
      %v1219 = vpop.f32.mrf.mxu0
      %v1220 = vadd.f32 0.0, %v1219
      %1221 = vmatmul.bf16.gmra.mxu0 %v933
      %v1222 = vpop.f32.mrf.mxu0
      %v1223 = vadd.f32 0.0, %v1222
      %v1224 = vpop.f32.mrf.mxu0
      %v1225 = vadd.f32 0.0, %v1224
      %1226 = vmatmul.bf16.gmra.mxu0 %v936
      %v1227 = vpop.f32.mrf.mxu0
      %v1228 = vadd.f32 0.0, %v1227
      %v1229 = vpop.f32.mrf.mxu0
      %v1230 = vadd.f32 0.0, %v1229
      %1231 = vmatmul.bf16.gmra.mxu0 %v939
      %v1232 = vpop.f32.mrf.mxu0
      %v1233 = vadd.f32 0.0, %v1232
      %v1234 = vpop.f32.mrf.mxu0
      %v1235 = vadd.f32 0.0, %v1234
      %1236 = vdwg.mxu0
      %v1241 = vunpack.c.l.b16 %v354
      %v1242 = vunpack.c.l.b16 %v355
      %v1243 = vunpack.c.l.b16 %v356
      %v1244 = vunpack.c.l.b16 %v357
      %v1245 = vpack.c.b16 %v1242, %v1241
      %v1246 = vpack.c.b16 %v1244, %v1243
      %v1249 = vunpack.c.l.b16 %v482
      %v1250 = vunpack.c.l.b16 %v483
      %v1251 = vpack.c.b16 %v1250, %v1249
      %v1253 = vsel %vm772, %v1245, 0
      %v1256 = vsel %vm772, %v1246, 0
      %v1259 = vand.u32 %v1251, %v944
      %1261 = vmatpush.bf16.msra.mxu0 0
      %1262 = vmatpush.bf16.msra.mxu0 0
      %1263 = vmatpush.bf16.msra.mxu0 0
      %1264 = vmatpush.bf16.msra.mxu0 0
      %1265 = vmatpush.bf16.msra.mxu0 0
      %1266 = vmatpush.bf16.msra.mxu0 0
      %1267 = vmatpush.bf16.msra.mxu0 0
      %1268 = vmatpush.bf16.msra.mxu0 %v1259
      %1269 = vmatmul.bf16.gmra.mxu0 %v1253
      %v1270 = vpop.f32.mrf.mxu0
      %v1271 = vadd.f32 %v958, %v1270
      %v1272 = vpop.f32.mrf.mxu0
      %v1273 = vadd.f32 %v960, %v1272
      %1274 = vmatmul.bf16.gmra.mxu0 %v1256
      %v1275 = vpop.f32.mrf.mxu0
      %v1276 = vadd.f32 %v963, %v1275
      %v1277 = vpop.f32.mrf.mxu0
      %v1278 = vadd.f32 %v965, %v1277
      %1279 = vmatmul.bf16.gmra.mxu0 %v774
      %v1280 = vpop.f32.mrf.mxu0
      %v1281 = vadd.f32 %v968, %v1280
      %v1282 = vpop.f32.mrf.mxu0
      %v1283 = vadd.f32 %v970, %v1282
      %1284 = vmatmul.bf16.gmra.mxu0 %v777
      %v1285 = vpop.f32.mrf.mxu0
      %v1286 = vadd.f32 %v973, %v1285
      %v1287 = vpop.f32.mrf.mxu0
      %v1288 = vadd.f32 %v975, %v1287
      %1289 = vmatmul.bf16.gmra.mxu0 %v780
      %v1290 = vpop.f32.mrf.mxu0
      %v1291 = vadd.f32 %v978, %v1290
      %v1292 = vpop.f32.mrf.mxu0
      %v1293 = vadd.f32 %v980, %v1292
      %1294 = vmatmul.bf16.gmra.mxu0 %v783
      %v1295 = vpop.f32.mrf.mxu0
      %v1296 = vadd.f32 %v983, %v1295
      %v1297 = vpop.f32.mrf.mxu0
      %v1298 = vadd.f32 %v985, %v1297
      %1299 = vmatmul.bf16.gmra.mxu0 %v786
      %v1300 = vpop.f32.mrf.mxu0
      %v1301 = vadd.f32 %v988, %v1300
      %v1302 = vpop.f32.mrf.mxu0
      %v1303 = vadd.f32 %v990, %v1302
      %1304 = vmatmul.bf16.gmra.mxu0 %v789
      %v1305 = vpop.f32.mrf.mxu0
      %v1306 = vadd.f32 %v993, %v1305
      %v1307 = vpop.f32.mrf.mxu0
      %v1308 = vadd.f32 %v995, %v1307
      %1309 = vmatmul.bf16.gmra.mxu0 %v792
      %v1310 = vpop.f32.mrf.mxu0
      %v1311 = vadd.f32 %v998, %v1310
      %v1312 = vpop.f32.mrf.mxu0
      %v1313 = vadd.f32 %v1000, %v1312
      %1314 = vmatmul.bf16.gmra.mxu0 %v795
      %v1315 = vpop.f32.mrf.mxu0
      %v1316 = vadd.f32 %v1003, %v1315
      %v1317 = vpop.f32.mrf.mxu0
      %v1318 = vadd.f32 %v1005, %v1317
      %1319 = vmatmul.bf16.gmra.mxu0 %v798
      %v1320 = vpop.f32.mrf.mxu0
      %v1321 = vadd.f32 %v1008, %v1320
      %v1322 = vpop.f32.mrf.mxu0
      %v1323 = vadd.f32 %v1010, %v1322
      %1324 = vmatmul.bf16.gmra.mxu0 %v801
      %v1325 = vpop.f32.mrf.mxu0
      %v1326 = vadd.f32 %v1013, %v1325
      %v1327 = vpop.f32.mrf.mxu0
      %v1328 = vadd.f32 %v1015, %v1327
      %1329 = vmatmul.bf16.gmra.mxu0 %v804
      %v1330 = vpop.f32.mrf.mxu0
      %v1331 = vadd.f32 %v1018, %v1330
      %v1332 = vpop.f32.mrf.mxu0
      %v1333 = vadd.f32 %v1020, %v1332
      %1334 = vmatmul.bf16.gmra.mxu0 %v807
      %v1335 = vpop.f32.mrf.mxu0
      %v1336 = vadd.f32 %v1023, %v1335
      %v1337 = vpop.f32.mrf.mxu0
      %v1338 = vadd.f32 %v1025, %v1337
      %1339 = vmatmul.bf16.gmra.mxu0 %v810
      %v1340 = vpop.f32.mrf.mxu0
      %v1341 = vadd.f32 %v1028, %v1340
      %v1342 = vpop.f32.mrf.mxu0
      %v1343 = vadd.f32 %v1030, %v1342
      %1344 = vmatmul.bf16.gmra.mxu0 %v813
      %v1345 = vpop.f32.mrf.mxu0
      %v1346 = vadd.f32 %v1033, %v1345
      %v1347 = vpop.f32.mrf.mxu0
      %v1348 = vadd.f32 %v1035, %v1347
      %1349 = vmatmul.bf16.gmra.mxu0 %v816
      %v1350 = vpop.f32.mrf.mxu0
      %v1351 = vadd.f32 %v1038, %v1350
      %v1352 = vpop.f32.mrf.mxu0
      %v1353 = vadd.f32 %v1040, %v1352
      %1354 = vmatmul.bf16.gmra.mxu0 %v819
      %v1355 = vpop.f32.mrf.mxu0
      %v1356 = vadd.f32 %v1043, %v1355
      %v1357 = vpop.f32.mrf.mxu0
      %v1358 = vadd.f32 %v1045, %v1357
      %1359 = vmatmul.bf16.gmra.mxu0 %v822
      %v1360 = vpop.f32.mrf.mxu0
      %v1361 = vadd.f32 %v1048, %v1360
      %v1362 = vpop.f32.mrf.mxu0
      %v1363 = vadd.f32 %v1050, %v1362
      %1364 = vmatmul.bf16.gmra.mxu0 %v825
      %v1365 = vpop.f32.mrf.mxu0
      %v1366 = vadd.f32 %v1053, %v1365
      %v1367 = vpop.f32.mrf.mxu0
      %v1368 = vadd.f32 %v1055, %v1367
      %1369 = vmatmul.bf16.gmra.mxu0 %v828
      %v1370 = vpop.f32.mrf.mxu0
      %v1371 = vadd.f32 %v1058, %v1370
      %v1372 = vpop.f32.mrf.mxu0
      %v1373 = vadd.f32 %v1060, %v1372
      %1374 = vmatmul.bf16.gmra.mxu0 %v831
      %v1375 = vpop.f32.mrf.mxu0
      %v1376 = vadd.f32 %v1063, %v1375
      %v1377 = vpop.f32.mrf.mxu0
      %v1378 = vadd.f32 %v1065, %v1377
      %1379 = vmatmul.bf16.gmra.mxu0 %v834
      %v1380 = vpop.f32.mrf.mxu0
      %v1381 = vadd.f32 %v1068, %v1380
      %v1382 = vpop.f32.mrf.mxu0
      %v1383 = vadd.f32 %v1070, %v1382
      %1384 = vmatmul.bf16.gmra.mxu0 %v837
      %v1385 = vpop.f32.mrf.mxu0
      %v1386 = vadd.f32 %v1073, %v1385
      %v1387 = vpop.f32.mrf.mxu0
      %v1388 = vadd.f32 %v1075, %v1387
      %1389 = vmatmul.bf16.gmra.mxu0 %v840
      %v1390 = vpop.f32.mrf.mxu0
      %v1391 = vadd.f32 %v1078, %v1390
      %v1392 = vpop.f32.mrf.mxu0
      %v1393 = vadd.f32 %v1080, %v1392
      %1394 = vmatmul.bf16.gmra.mxu0 %v843
      %v1395 = vpop.f32.mrf.mxu0
      %v1396 = vadd.f32 %v1083, %v1395
      %v1397 = vpop.f32.mrf.mxu0
      %v1398 = vadd.f32 %v1085, %v1397
      %1399 = vmatmul.bf16.gmra.mxu0 %v846
      %v1400 = vpop.f32.mrf.mxu0
      %v1401 = vadd.f32 %v1088, %v1400
      %v1402 = vpop.f32.mrf.mxu0
      %v1403 = vadd.f32 %v1090, %v1402
      %1404 = vmatmul.bf16.gmra.mxu0 %v849
      %v1405 = vpop.f32.mrf.mxu0
      %v1406 = vadd.f32 %v1093, %v1405
      %v1407 = vpop.f32.mrf.mxu0
      %v1408 = vadd.f32 %v1095, %v1407
      %1409 = vmatmul.bf16.gmra.mxu0 %v852
      %v1410 = vpop.f32.mrf.mxu0
      %v1411 = vadd.f32 %v1098, %v1410
      %v1412 = vpop.f32.mrf.mxu0
      %v1413 = vadd.f32 %v1100, %v1412
      %1414 = vmatmul.bf16.gmra.mxu0 %v855
      %v1415 = vpop.f32.mrf.mxu0
      %v1416 = vadd.f32 %v1103, %v1415
      %v1417 = vpop.f32.mrf.mxu0
      %v1418 = vadd.f32 %v1105, %v1417
      %1419 = vmatmul.bf16.gmra.mxu0 %v858
      %v1420 = vpop.f32.mrf.mxu0
      %v1421 = vadd.f32 %v1108, %v1420
      %v1422 = vpop.f32.mrf.mxu0
      %v1423 = vadd.f32 %v1110, %v1422
      %1424 = vmatmul.bf16.gmra.mxu0 %v861
      %v1425 = vpop.f32.mrf.mxu0
      %v1426 = vadd.f32 %v1113, %v1425
      %v1427 = vpop.f32.mrf.mxu0
      %v1428 = vadd.f32 %v1115, %v1427
      %1429 = vmatmul.bf16.gmra.mxu0 %v864
      %v1430 = vpop.f32.mrf.mxu0
      %v1431 = vadd.f32 %v1118, %v1430
      %v1432 = vpop.f32.mrf.mxu0
      %v1433 = vadd.f32 %v1120, %v1432
      %1434 = vmatmul.bf16.gmra.mxu0 %v867
      %v1435 = vpop.f32.mrf.mxu0
      %v1436 = vadd.f32 %v1123, %v1435
      %v1437 = vpop.f32.mrf.mxu0
      %v1438 = vadd.f32 %v1125, %v1437
      %1439 = vmatmul.bf16.gmra.mxu0 %v870
      %v1440 = vpop.f32.mrf.mxu0
      %v1441 = vadd.f32 %v1128, %v1440
      %v1442 = vpop.f32.mrf.mxu0
      %v1443 = vadd.f32 %v1130, %v1442
      %1444 = vmatmul.bf16.gmra.mxu0 %v873
      %v1445 = vpop.f32.mrf.mxu0
      %v1446 = vadd.f32 %v1133, %v1445
      %v1447 = vpop.f32.mrf.mxu0
      %v1448 = vadd.f32 %v1135, %v1447
      %1449 = vmatmul.bf16.gmra.mxu0 %v876
      %v1450 = vpop.f32.mrf.mxu0
      %v1451 = vadd.f32 %v1138, %v1450
      %v1452 = vpop.f32.mrf.mxu0
      %v1453 = vadd.f32 %v1140, %v1452
      %1454 = vmatmul.bf16.gmra.mxu0 %v879
      %v1455 = vpop.f32.mrf.mxu0
      %v1456 = vadd.f32 %v1143, %v1455
      %v1457 = vpop.f32.mrf.mxu0
      %v1458 = vadd.f32 %v1145, %v1457
      %1459 = vmatmul.bf16.gmra.mxu0 %v882
      %v1460 = vpop.f32.mrf.mxu0
      %v1461 = vadd.f32 %v1148, %v1460
      %v1462 = vpop.f32.mrf.mxu0
      %v1463 = vadd.f32 %v1150, %v1462
      %1464 = vmatmul.bf16.gmra.mxu0 %v885
      %v1465 = vpop.f32.mrf.mxu0
      %v1466 = vadd.f32 %v1153, %v1465
      %v1467 = vpop.f32.mrf.mxu0
      %v1468 = vadd.f32 %v1155, %v1467
      %1469 = vmatmul.bf16.gmra.mxu0 %v888
      %v1470 = vpop.f32.mrf.mxu0
      %v1471 = vadd.f32 %v1158, %v1470
      %v1472 = vpop.f32.mrf.mxu0
      %v1473 = vadd.f32 %v1160, %v1472
      %1474 = vmatmul.bf16.gmra.mxu0 %v891
      %v1475 = vpop.f32.mrf.mxu0
      %v1476 = vadd.f32 %v1163, %v1475
      %v1477 = vpop.f32.mrf.mxu0
      %v1478 = vadd.f32 %v1165, %v1477
      %1479 = vmatmul.bf16.gmra.mxu0 %v894
      %v1480 = vpop.f32.mrf.mxu0
      %v1481 = vadd.f32 %v1168, %v1480
      %v1482 = vpop.f32.mrf.mxu0
      %v1483 = vadd.f32 %v1170, %v1482
      %1484 = vmatmul.bf16.gmra.mxu0 %v897
      %v1485 = vpop.f32.mrf.mxu0
      %v1486 = vadd.f32 %v1173, %v1485
      %v1487 = vpop.f32.mrf.mxu0
      %v1488 = vadd.f32 %v1175, %v1487
      %1489 = vmatmul.bf16.gmra.mxu0 %v900
      %v1490 = vpop.f32.mrf.mxu0
      %v1491 = vadd.f32 %v1178, %v1490
      %v1492 = vpop.f32.mrf.mxu0
      %v1493 = vadd.f32 %v1180, %v1492
      %1494 = vmatmul.bf16.gmra.mxu0 %v903
      %v1495 = vpop.f32.mrf.mxu0
      %v1496 = vadd.f32 %v1183, %v1495
      %v1497 = vpop.f32.mrf.mxu0
      %v1498 = vadd.f32 %v1185, %v1497
      %1499 = vmatmul.bf16.gmra.mxu0 %v906
      %v1500 = vpop.f32.mrf.mxu0
      %v1501 = vadd.f32 %v1188, %v1500
      %v1502 = vpop.f32.mrf.mxu0
      %v1503 = vadd.f32 %v1190, %v1502
      %1504 = vmatmul.bf16.gmra.mxu0 %v909
      %v1505 = vpop.f32.mrf.mxu0
      %v1506 = vadd.f32 %v1193, %v1505
      %v1507 = vpop.f32.mrf.mxu0
      %v1508 = vadd.f32 %v1195, %v1507
      %1509 = vmatmul.bf16.gmra.mxu0 %v912
      %v1510 = vpop.f32.mrf.mxu0
      %v1511 = vadd.f32 %v1198, %v1510
      %v1512 = vpop.f32.mrf.mxu0
      %v1513 = vadd.f32 %v1200, %v1512
      %1514 = vmatmul.bf16.gmra.mxu0 %v915
      %v1515 = vpop.f32.mrf.mxu0
      %v1516 = vadd.f32 %v1203, %v1515
      %v1517 = vpop.f32.mrf.mxu0
      %v1518 = vadd.f32 %v1205, %v1517
      %1519 = vmatmul.bf16.gmra.mxu0 %v918
      %v1520 = vpop.f32.mrf.mxu0
      %v1521 = vadd.f32 %v1208, %v1520
      %v1522 = vpop.f32.mrf.mxu0
      %v1523 = vadd.f32 %v1210, %v1522
      %1524 = vmatmul.bf16.gmra.mxu0 %v921
      %v1525 = vpop.f32.mrf.mxu0
      %v1526 = vadd.f32 %v1213, %v1525
      %v1527 = vpop.f32.mrf.mxu0
      %v1528 = vadd.f32 %v1215, %v1527
      %1529 = vmatmul.bf16.gmra.mxu0 %v924
      %v1530 = vpop.f32.mrf.mxu0
      %v1531 = vadd.f32 %v1218, %v1530
      %v1532 = vpop.f32.mrf.mxu0
      %v1533 = vadd.f32 %v1220, %v1532
      %1534 = vmatmul.bf16.gmra.mxu0 %v927
      %v1535 = vpop.f32.mrf.mxu0
      %v1536 = vadd.f32 %v1223, %v1535
      %v1537 = vpop.f32.mrf.mxu0
      %v1538 = vadd.f32 %v1225, %v1537
      %1539 = vmatmul.bf16.gmra.mxu0 %v930
      %v1540 = vpop.f32.mrf.mxu0
      %v1541 = vadd.f32 %v1228, %v1540
      %v1542 = vpop.f32.mrf.mxu0
      %v1543 = vadd.f32 %v1230, %v1542
      %1544 = vmatmul.bf16.gmra.mxu0 %v933
      %v1545 = vpop.f32.mrf.mxu0
      %v1546 = vadd.f32 %v1233, %v1545
      %v1547 = vpop.f32.mrf.mxu0
      %v1548 = vadd.f32 %v1235, %v1547
      %1549 = vdwg.mxu0
      %s1550 = scalar_lea.vmem %s1, 16
      %v1551 = vld [vmem:[%s1550] sm:$0xf]
      %v1552 = vld [vmem:[%s1550 + $0x4] sm:$0xf]
      %v1557 = vunpack.c.l.b16 %v470
      %v1558 = vunpack.c.l.b16 %v471
      %v1559 = vunpack.c.l.b16 %v472
      %v1560 = vunpack.c.l.b16 %v473
      %v1561 = vpack.c.b16 %v1558, %v1557
      %v1562 = vpack.c.b16 %v1560, %v1559
      %v1565 = vunpack.c.l.b16 %v1551
      %v1566 = vunpack.c.l.b16 %v1552
      %v1567 = vpack.c.b16 %v1566, %v1565
      %v1569 = vsel %vm772, %v1561, 0
      %v1572 = vsel %vm772, %v1562, 0
      %v1575 = vand.u32 %v1567, %v944
      %1577 = vmatpush.bf16.msra.mxu0 0
      %1578 = vmatpush.bf16.msra.mxu0 0
      %1579 = vmatpush.bf16.msra.mxu0 0
      %1580 = vmatpush.bf16.msra.mxu0 0
      %1581 = vmatpush.bf16.msra.mxu0 0
      %1582 = vmatpush.bf16.msra.mxu0 0
      %1583 = vmatpush.bf16.msra.mxu0 0
      %1584 = vmatpush.bf16.msra.mxu0 %v1575
      %1585 = vmatmul.bf16.gmra.mxu0 %v780
      %v1586 = vpop.f32.mrf.mxu0
      %v1587 = vadd.f32 0.0, %v1586
      %v1588 = vpop.f32.mrf.mxu0
      %v1589 = vadd.f32 0.0, %v1588
      %1590 = vmatmul.bf16.gmra.mxu0 %v783
      %v1591 = vpop.f32.mrf.mxu0
      %v1592 = vadd.f32 0.0, %v1591
      %v1593 = vpop.f32.mrf.mxu0
      %v1594 = vadd.f32 0.0, %v1593
      %1595 = vmatmul.bf16.gmra.mxu0 %v786
      %v1596 = vpop.f32.mrf.mxu0
      %v1597 = vadd.f32 0.0, %v1596
      %v1598 = vpop.f32.mrf.mxu0
      %v1599 = vadd.f32 0.0, %v1598
      %1600 = vmatmul.bf16.gmra.mxu0 %v789
      %v1601 = vpop.f32.mrf.mxu0
      %v1602 = vadd.f32 0.0, %v1601
      %v1603 = vpop.f32.mrf.mxu0
      %v1604 = vadd.f32 0.0, %v1603
      %1605 = vmatmul.bf16.gmra.mxu0 %v792
      %v1606 = vpop.f32.mrf.mxu0
      %v1607 = vadd.f32 0.0, %v1606
      %v1608 = vpop.f32.mrf.mxu0
      %v1609 = vadd.f32 0.0, %v1608
      %1610 = vmatmul.bf16.gmra.mxu0 %v795
      %v1611 = vpop.f32.mrf.mxu0
      %v1612 = vadd.f32 0.0, %v1611
      %v1613 = vpop.f32.mrf.mxu0
      %v1614 = vadd.f32 0.0, %v1613
      %1615 = vmatmul.bf16.gmra.mxu0 %v798
      %v1616 = vpop.f32.mrf.mxu0
      %v1617 = vadd.f32 0.0, %v1616
      %v1618 = vpop.f32.mrf.mxu0
      %v1619 = vadd.f32 0.0, %v1618
      %1620 = vmatmul.bf16.gmra.mxu0 %v801
      %v1621 = vpop.f32.mrf.mxu0
      %v1622 = vadd.f32 0.0, %v1621
      %v1623 = vpop.f32.mrf.mxu0
      %v1624 = vadd.f32 0.0, %v1623
      %1625 = vmatmul.bf16.gmra.mxu0 %v804
      %v1626 = vpop.f32.mrf.mxu0
      %v1627 = vadd.f32 0.0, %v1626
      %v1628 = vpop.f32.mrf.mxu0
      %v1629 = vadd.f32 0.0, %v1628
      %1630 = vmatmul.bf16.gmra.mxu0 %v807
      %v1631 = vpop.f32.mrf.mxu0
      %v1632 = vadd.f32 0.0, %v1631
      %v1633 = vpop.f32.mrf.mxu0
      %v1634 = vadd.f32 0.0, %v1633
      %1635 = vmatmul.bf16.gmra.mxu0 %v810
      %v1636 = vpop.f32.mrf.mxu0
      %v1637 = vadd.f32 0.0, %v1636
      %v1638 = vpop.f32.mrf.mxu0
      %v1639 = vadd.f32 0.0, %v1638
      %1640 = vmatmul.bf16.gmra.mxu0 %v813
      %v1641 = vpop.f32.mrf.mxu0
      %v1642 = vadd.f32 0.0, %v1641
      %v1643 = vpop.f32.mrf.mxu0
      %v1644 = vadd.f32 0.0, %v1643
      %1645 = vmatmul.bf16.gmra.mxu0 %v816
      %v1646 = vpop.f32.mrf.mxu0
      %v1647 = vadd.f32 0.0, %v1646
      %v1648 = vpop.f32.mrf.mxu0
      %v1649 = vadd.f32 0.0, %v1648
      %1650 = vmatmul.bf16.gmra.mxu0 %v819
      %v1651 = vpop.f32.mrf.mxu0
      %v1652 = vadd.f32 0.0, %v1651
      %v1653 = vpop.f32.mrf.mxu0
      %v1654 = vadd.f32 0.0, %v1653
      %1655 = vmatmul.bf16.gmra.mxu0 %v822
      %v1656 = vpop.f32.mrf.mxu0
      %v1657 = vadd.f32 0.0, %v1656
      %v1658 = vpop.f32.mrf.mxu0
      %v1659 = vadd.f32 0.0, %v1658
      %1660 = vmatmul.bf16.gmra.mxu0 %v825
      %v1661 = vpop.f32.mrf.mxu0
      %v1662 = vadd.f32 0.0, %v1661
      %v1663 = vpop.f32.mrf.mxu0
      %v1664 = vadd.f32 0.0, %v1663
      %1665 = vmatmul.bf16.gmra.mxu0 %v828
      %v1666 = vpop.f32.mrf.mxu0
      %v1667 = vadd.f32 0.0, %v1666
      %v1668 = vpop.f32.mrf.mxu0
      %v1669 = vadd.f32 0.0, %v1668
      %1670 = vmatmul.bf16.gmra.mxu0 %v831
      %v1671 = vpop.f32.mrf.mxu0
      %v1672 = vadd.f32 0.0, %v1671
      %v1673 = vpop.f32.mrf.mxu0
      %v1674 = vadd.f32 0.0, %v1673
      %1675 = vmatmul.bf16.gmra.mxu0 %v834
      %v1676 = vpop.f32.mrf.mxu0
      %v1677 = vadd.f32 0.0, %v1676
      %v1678 = vpop.f32.mrf.mxu0
      %v1679 = vadd.f32 0.0, %v1678
      %1680 = vmatmul.bf16.gmra.mxu0 %v837
      %v1681 = vpop.f32.mrf.mxu0
      %v1682 = vadd.f32 0.0, %v1681
      %v1683 = vpop.f32.mrf.mxu0
      %v1684 = vadd.f32 0.0, %v1683
      %1685 = vmatmul.bf16.gmra.mxu0 %v840
      %v1686 = vpop.f32.mrf.mxu0
      %v1687 = vadd.f32 0.0, %v1686
      %v1688 = vpop.f32.mrf.mxu0
      %v1689 = vadd.f32 0.0, %v1688
      %1690 = vmatmul.bf16.gmra.mxu0 %v843
      %v1691 = vpop.f32.mrf.mxu0
      %v1692 = vadd.f32 0.0, %v1691
      %v1693 = vpop.f32.mrf.mxu0
      %v1694 = vadd.f32 0.0, %v1693
      %1695 = vmatmul.bf16.gmra.mxu0 %v846
      %v1696 = vpop.f32.mrf.mxu0
      %v1697 = vadd.f32 0.0, %v1696
      %v1698 = vpop.f32.mrf.mxu0
      %v1699 = vadd.f32 0.0, %v1698
      %1700 = vmatmul.bf16.gmra.mxu0 %v849
      %v1701 = vpop.f32.mrf.mxu0
      %v1702 = vadd.f32 0.0, %v1701
      %v1703 = vpop.f32.mrf.mxu0
      %v1704 = vadd.f32 0.0, %v1703
      %1705 = vmatmul.bf16.gmra.mxu0 %v852
      %v1706 = vpop.f32.mrf.mxu0
      %v1707 = vadd.f32 0.0, %v1706
      %v1708 = vpop.f32.mrf.mxu0
      %v1709 = vadd.f32 0.0, %v1708
      %1710 = vmatmul.bf16.gmra.mxu0 %v855
      %v1711 = vpop.f32.mrf.mxu0
      %v1712 = vadd.f32 0.0, %v1711
      %v1713 = vpop.f32.mrf.mxu0
      %v1714 = vadd.f32 0.0, %v1713
      %1715 = vmatmul.bf16.gmra.mxu0 %v858
      %v1716 = vpop.f32.mrf.mxu0
      %v1717 = vadd.f32 0.0, %v1716
      %v1718 = vpop.f32.mrf.mxu0
      %v1719 = vadd.f32 0.0, %v1718
      %1720 = vmatmul.bf16.gmra.mxu0 %v861
      %v1721 = vpop.f32.mrf.mxu0
      %v1722 = vadd.f32 0.0, %v1721
      %v1723 = vpop.f32.mrf.mxu0
      %v1724 = vadd.f32 0.0, %v1723
      %1725 = vmatmul.bf16.gmra.mxu0 %v864
      %v1726 = vpop.f32.mrf.mxu0
      %v1727 = vadd.f32 0.0, %v1726
      %v1728 = vpop.f32.mrf.mxu0
      %v1729 = vadd.f32 0.0, %v1728
      %1730 = vmatmul.bf16.gmra.mxu0 %v867
      %v1731 = vpop.f32.mrf.mxu0
      %v1732 = vadd.f32 0.0, %v1731
      %v1733 = vpop.f32.mrf.mxu0
      %v1734 = vadd.f32 0.0, %v1733
      %1735 = vmatmul.bf16.gmra.mxu0 %v870
      %v1736 = vpop.f32.mrf.mxu0
      %v1737 = vadd.f32 0.0, %v1736
      %v1738 = vpop.f32.mrf.mxu0
      %v1739 = vadd.f32 0.0, %v1738
      %1740 = vmatmul.bf16.gmra.mxu0 %v873
      %v1741 = vpop.f32.mrf.mxu0
      %v1742 = vadd.f32 0.0, %v1741
      %v1743 = vpop.f32.mrf.mxu0
      %v1744 = vadd.f32 0.0, %v1743
      %1745 = vmatmul.bf16.gmra.mxu0 %v876
      %v1746 = vpop.f32.mrf.mxu0
      %v1747 = vadd.f32 0.0, %v1746
      %v1748 = vpop.f32.mrf.mxu0
      %v1749 = vadd.f32 0.0, %v1748
      %1750 = vmatmul.bf16.gmra.mxu0 %v879
      %v1751 = vpop.f32.mrf.mxu0
      %v1752 = vadd.f32 0.0, %v1751
      %v1753 = vpop.f32.mrf.mxu0
      %v1754 = vadd.f32 0.0, %v1753
      %1755 = vmatmul.bf16.gmra.mxu0 %v882
      %v1756 = vpop.f32.mrf.mxu0
      %v1757 = vadd.f32 0.0, %v1756
      %v1758 = vpop.f32.mrf.mxu0
      %v1759 = vadd.f32 0.0, %v1758
      %1760 = vmatmul.bf16.gmra.mxu0 %v885
      %v1761 = vpop.f32.mrf.mxu0
      %v1762 = vadd.f32 0.0, %v1761
      %v1763 = vpop.f32.mrf.mxu0
      %v1764 = vadd.f32 0.0, %v1763
      %1765 = vmatmul.bf16.gmra.mxu0 %v888
      %v1766 = vpop.f32.mrf.mxu0
      %v1767 = vadd.f32 0.0, %v1766
      %v1768 = vpop.f32.mrf.mxu0
      %v1769 = vadd.f32 0.0, %v1768
      %1770 = vmatmul.bf16.gmra.mxu0 %v891
      %v1771 = vpop.f32.mrf.mxu0
      %v1772 = vadd.f32 0.0, %v1771
      %v1773 = vpop.f32.mrf.mxu0
      %v1774 = vadd.f32 0.0, %v1773
      %1775 = vmatmul.bf16.gmra.mxu0 %v894
      %v1776 = vpop.f32.mrf.mxu0
      %v1777 = vadd.f32 0.0, %v1776
      %v1778 = vpop.f32.mrf.mxu0
      %v1779 = vadd.f32 0.0, %v1778
      %1780 = vmatmul.bf16.gmra.mxu0 %v897
      %v1781 = vpop.f32.mrf.mxu0
      %v1782 = vadd.f32 0.0, %v1781
      %v1783 = vpop.f32.mrf.mxu0
      %v1784 = vadd.f32 0.0, %v1783
      %1785 = vmatmul.bf16.gmra.mxu0 %v900
      %v1786 = vpop.f32.mrf.mxu0
      %v1787 = vadd.f32 0.0, %v1786
      %v1788 = vpop.f32.mrf.mxu0
      %v1789 = vadd.f32 0.0, %v1788
      %1790 = vmatmul.bf16.gmra.mxu0 %v903
      %v1791 = vpop.f32.mrf.mxu0
      %v1792 = vadd.f32 0.0, %v1791
      %v1793 = vpop.f32.mrf.mxu0
      %v1794 = vadd.f32 0.0, %v1793
      %1795 = vmatmul.bf16.gmra.mxu0 %v906
      %v1796 = vpop.f32.mrf.mxu0
      %v1797 = vadd.f32 0.0, %v1796
      %v1798 = vpop.f32.mrf.mxu0
      %v1799 = vadd.f32 0.0, %v1798
      %1800 = vmatmul.bf16.gmra.mxu0 %v909
      %v1801 = vpop.f32.mrf.mxu0
      %v1802 = vadd.f32 0.0, %v1801
      %v1803 = vpop.f32.mrf.mxu0
      %v1804 = vadd.f32 0.0, %v1803
      %1805 = vmatmul.bf16.gmra.mxu0 %v912
      %v1806 = vpop.f32.mrf.mxu0
      %v1807 = vadd.f32 0.0, %v1806
      %v1808 = vpop.f32.mrf.mxu0
      %v1809 = vadd.f32 0.0, %v1808
      %1810 = vmatmul.bf16.gmra.mxu0 %v915
      %v1811 = vpop.f32.mrf.mxu0
      %v1812 = vadd.f32 0.0, %v1811
      %v1813 = vpop.f32.mrf.mxu0
      %v1814 = vadd.f32 0.0, %v1813
      %1815 = vmatmul.bf16.gmra.mxu0 %v918
      %v1816 = vpop.f32.mrf.mxu0
      %v1817 = vadd.f32 0.0, %v1816
      %v1818 = vpop.f32.mrf.mxu0
      %v1819 = vadd.f32 0.0, %v1818
      %1820 = vmatmul.bf16.gmra.mxu0 %v921
      %v1821 = vpop.f32.mrf.mxu0
      %v1822 = vadd.f32 0.0, %v1821
      %v1823 = vpop.f32.mrf.mxu0
      %v1824 = vadd.f32 0.0, %v1823
      %1825 = vmatmul.bf16.gmra.mxu0 %v924
      %v1826 = vpop.f32.mrf.mxu0
      %v1827 = vadd.f32 0.0, %v1826
      %v1828 = vpop.f32.mrf.mxu0
      %v1829 = vadd.f32 0.0, %v1828
      %1830 = vmatmul.bf16.gmra.mxu0 %v927
      %v1831 = vpop.f32.mrf.mxu0
      %v1832 = vadd.f32 0.0, %v1831
      %v1833 = vpop.f32.mrf.mxu0
      %v1834 = vadd.f32 0.0, %v1833
      %1835 = vmatmul.bf16.gmra.mxu0 %v930
      %v1836 = vpop.f32.mrf.mxu0
      %v1837 = vadd.f32 0.0, %v1836
      %v1838 = vpop.f32.mrf.mxu0
      %v1839 = vadd.f32 0.0, %v1838
      %1840 = vmatmul.bf16.gmra.mxu0 %v933
      %v1841 = vpop.f32.mrf.mxu0
      %v1842 = vadd.f32 0.0, %v1841
      %v1843 = vpop.f32.mrf.mxu0
      %v1844 = vadd.f32 0.0, %v1843
      %1845 = vmatmul.bf16.gmra.mxu0 %v936
      %v1846 = vpop.f32.mrf.mxu0
      %v1847 = vadd.f32 0.0, %v1846
      %v1848 = vpop.f32.mrf.mxu0
      %v1849 = vadd.f32 0.0, %v1848
      %1850 = vmatmul.bf16.gmra.mxu0 %v939
      %v1851 = vpop.f32.mrf.mxu0
      %v1852 = vadd.f32 0.0, %v1851
      %v1853 = vpop.f32.mrf.mxu0
      %v1854 = vadd.f32 0.0, %v1853
      %1855 = vmatmul.bf16.gmra.mxu0 %v1569
      %v1856 = vpop.f32.mrf.mxu0
      %v1857 = vadd.f32 0.0, %v1856
      %v1858 = vpop.f32.mrf.mxu0
      %v1859 = vadd.f32 0.0, %v1858
      %1860 = vmatmul.bf16.gmra.mxu0 %v1572
      %v1861 = vpop.f32.mrf.mxu0
      %v1862 = vadd.f32 0.0, %v1861
      %v1863 = vpop.f32.mrf.mxu0
      %v1864 = vadd.f32 0.0, %v1863
      %1865 = vdwg.mxu0
      %v1866 = vadd.f32 %v1271, %v1587
      %v1867 = vadd.f32 %v1273, %v1589
      %v1868 = vadd.f32 %v1276, %v1592
      %v1869 = vadd.f32 %v1278, %v1594
      %v1870 = vadd.f32 %v1281, %v1597
      %v1871 = vadd.f32 %v1283, %v1599
      %v1872 = vadd.f32 %v1286, %v1602
      %v1873 = vadd.f32 %v1288, %v1604
      %v1874 = vadd.f32 %v1291, %v1607
      %v1875 = vadd.f32 %v1293, %v1609
      %v1876 = vadd.f32 %v1296, %v1612
      %v1877 = vadd.f32 %v1298, %v1614
      %v1878 = vadd.f32 %v1301, %v1617
      %v1879 = vadd.f32 %v1303, %v1619
      %v1880 = vadd.f32 %v1306, %v1622
      %v1881 = vadd.f32 %v1308, %v1624
      %v1882 = vadd.f32 %v1311, %v1627
      %v1883 = vadd.f32 %v1313, %v1629
      %v1884 = vadd.f32 %v1316, %v1632
      %v1885 = vadd.f32 %v1318, %v1634
      %v1886 = vadd.f32 %v1321, %v1637
      %v1887 = vadd.f32 %v1323, %v1639
      %v1888 = vadd.f32 %v1326, %v1642
      %v1889 = vadd.f32 %v1328, %v1644
      %v1890 = vadd.f32 %v1331, %v1647
      %v1891 = vadd.f32 %v1333, %v1649
      %v1892 = vadd.f32 %v1336, %v1652
      %v1893 = vadd.f32 %v1338, %v1654
      %v1894 = vadd.f32 %v1341, %v1657
      %v1895 = vadd.f32 %v1343, %v1659
      %v1896 = vadd.f32 %v1346, %v1662
      %v1897 = vadd.f32 %v1348, %v1664
      %v1898 = vadd.f32 %v1351, %v1667
      %v1899 = vadd.f32 %v1353, %v1669
      %v1900 = vadd.f32 %v1356, %v1672
      %v1901 = vadd.f32 %v1358, %v1674
      %v1902 = vadd.f32 %v1361, %v1677
      %v1903 = vadd.f32 %v1363, %v1679
      %v1904 = vadd.f32 %v1366, %v1682
      %v1905 = vadd.f32 %v1368, %v1684
      %v1906 = vadd.f32 %v1371, %v1687
      %v1907 = vadd.f32 %v1373, %v1689
      %v1908 = vadd.f32 %v1376, %v1692
      %v1909 = vadd.f32 %v1378, %v1694
      %v1910 = vadd.f32 %v1381, %v1697
      %v1911 = vadd.f32 %v1383, %v1699
      %v1912 = vadd.f32 %v1386, %v1702
      %v1913 = vadd.f32 %v1388, %v1704
      %v1914 = vadd.f32 %v1391, %v1707
      %v1915 = vadd.f32 %v1393, %v1709
      %v1916 = vadd.f32 %v1396, %v1712
      %v1917 = vadd.f32 %v1398, %v1714
      %v1918 = vadd.f32 %v1401, %v1717
      %v1919 = vadd.f32 %v1403, %v1719
      %v1920 = vadd.f32 %v1406, %v1722
      %v1921 = vadd.f32 %v1408, %v1724
      %v1922 = vadd.f32 %v1411, %v1727
      %v1923 = vadd.f32 %v1413, %v1729
      %v1924 = vadd.f32 %v1416, %v1732
      %v1925 = vadd.f32 %v1418, %v1734
      %v1926 = vadd.f32 %v1421, %v1737
      %v1927 = vadd.f32 %v1423, %v1739
      %v1928 = vadd.f32 %v1426, %v1742
      %v1929 = vadd.f32 %v1428, %v1744
      %v1930 = vadd.f32 %v1431, %v1747
      %v1931 = vadd.f32 %v1433, %v1749
      %v1932 = vadd.f32 %v1436, %v1752
      %v1933 = vadd.f32 %v1438, %v1754
      %v1934 = vadd.f32 %v1441, %v1757
      %v1935 = vadd.f32 %v1443, %v1759
      %v1936 = vadd.f32 %v1446, %v1762
      %v1937 = vadd.f32 %v1448, %v1764
      %v1938 = vadd.f32 %v1451, %v1767
      %v1939 = vadd.f32 %v1453, %v1769
      %v1940 = vadd.f32 %v1456, %v1772
      %v1941 = vadd.f32 %v1458, %v1774
      %v1942 = vadd.f32 %v1461, %v1777
      %v1943 = vadd.f32 %v1463, %v1779
      %v1944 = vadd.f32 %v1466, %v1782
      %v1945 = vadd.f32 %v1468, %v1784
      %v1946 = vadd.f32 %v1471, %v1787
      %v1947 = vadd.f32 %v1473, %v1789
      %v1948 = vadd.f32 %v1476, %v1792
      %v1949 = vadd.f32 %v1478, %v1794
      %v1950 = vadd.f32 %v1481, %v1797
      %v1951 = vadd.f32 %v1483, %v1799
      %v1952 = vadd.f32 %v1486, %v1802
      %v1953 = vadd.f32 %v1488, %v1804
      %v1954 = vadd.f32 %v1491, %v1807
      %v1955 = vadd.f32 %v1493, %v1809
      %v1956 = vadd.f32 %v1496, %v1812
      %v1957 = vadd.f32 %v1498, %v1814
      %v1958 = vadd.f32 %v1501, %v1817
      %v1959 = vadd.f32 %v1503, %v1819
      %v1960 = vadd.f32 %v1506, %v1822
      %v1961 = vadd.f32 %v1508, %v1824
      %v1962 = vadd.f32 %v1511, %v1827
      %v1963 = vadd.f32 %v1513, %v1829
      %v1964 = vadd.f32 %v1516, %v1832
      %v1965 = vadd.f32 %v1518, %v1834
      %v1966 = vadd.f32 %v1521, %v1837
      %v1967 = vadd.f32 %v1523, %v1839
      %v1968 = vadd.f32 %v1526, %v1842
      %v1969 = vadd.f32 %v1528, %v1844
      %v1970 = vadd.f32 %v1531, %v1847
      %v1971 = vadd.f32 %v1533, %v1849
      %v1972 = vadd.f32 %v1536, %v1852
      %v1973 = vadd.f32 %v1538, %v1854
      %v1974 = vadd.f32 %v1541, %v1857
      %v1975 = vadd.f32 %v1543, %v1859
      %v1976 = vadd.f32 %v1546, %v1862
      %v1977 = vadd.f32 %v1548, %v1864
      %s1978 = scalar_lea.vmem %s1, 24
      %v1979 = vld [vmem:[%s1978] sm:$0xf]
      %v1980 = vld [vmem:[%s1978 + $0x4] sm:$0xf]
      %v1985 = vunpack.c.l.b16 %v474
      %v1986 = vunpack.c.l.b16 %v475
      %v1987 = vunpack.c.l.b16 %v476
      %v1988 = vunpack.c.l.b16 %v477
      %v1989 = vpack.c.b16 %v1986, %v1985
      %v1990 = vpack.c.b16 %v1988, %v1987
      %v1993 = vunpack.c.l.b16 %v1979
      %v1994 = vunpack.c.l.b16 %v1980
      %v1995 = vpack.c.b16 %v1994, %v1993
      %v1997 = vsel %vm772, %v1989, 0
      %v2000 = vsel %vm772, %v1990, 0
      %v2003 = vand.u32 %v1995, %v944
      %2005 = vmatpush.bf16.msra.mxu0 0
      %2006 = vmatpush.bf16.msra.mxu0 0
      %2007 = vmatpush.bf16.msra.mxu0 0
      %2008 = vmatpush.bf16.msra.mxu0 0
      %2009 = vmatpush.bf16.msra.mxu0 0
      %2010 = vmatpush.bf16.msra.mxu0 0
      %2011 = vmatpush.bf16.msra.mxu0 0
      %2012 = vmatpush.bf16.msra.mxu0 %v2003
      %2013 = vmatmul.bf16.gmra.mxu0 %v786
      %v2014 = vpop.f32.mrf.mxu0
      %v2015 = vadd.f32 0.0, %v2014
      %v2016 = vpop.f32.mrf.mxu0
      %v2017 = vadd.f32 0.0, %v2016
      %2018 = vmatmul.bf16.gmra.mxu0 %v789
      %v2019 = vpop.f32.mrf.mxu0
      %v2020 = vadd.f32 0.0, %v2019
      %v2021 = vpop.f32.mrf.mxu0
      %v2022 = vadd.f32 0.0, %v2021
      %2023 = vmatmul.bf16.gmra.mxu0 %v792
      %v2024 = vpop.f32.mrf.mxu0
      %v2025 = vadd.f32 0.0, %v2024
      %v2026 = vpop.f32.mrf.mxu0
      %v2027 = vadd.f32 0.0, %v2026
      %2028 = vmatmul.bf16.gmra.mxu0 %v795
      %v2029 = vpop.f32.mrf.mxu0
      %v2030 = vadd.f32 0.0, %v2029
      %v2031 = vpop.f32.mrf.mxu0
      %v2032 = vadd.f32 0.0, %v2031
      %2033 = vmatmul.bf16.gmra.mxu0 %v798
      %v2034 = vpop.f32.mrf.mxu0
      %v2035 = vadd.f32 0.0, %v2034
      %v2036 = vpop.f32.mrf.mxu0
      %v2037 = vadd.f32 0.0, %v2036
      %2038 = vmatmul.bf16.gmra.mxu0 %v801
      %v2039 = vpop.f32.mrf.mxu0
      %v2040 = vadd.f32 0.0, %v2039
      %v2041 = vpop.f32.mrf.mxu0
      %v2042 = vadd.f32 0.0, %v2041
      %2043 = vmatmul.bf16.gmra.mxu0 %v804
      %v2044 = vpop.f32.mrf.mxu0
      %v2045 = vadd.f32 0.0, %v2044
      %v2046 = vpop.f32.mrf.mxu0
      %v2047 = vadd.f32 0.0, %v2046
      %2048 = vmatmul.bf16.gmra.mxu0 %v807
      %v2049 = vpop.f32.mrf.mxu0
      %v2050 = vadd.f32 0.0, %v2049
      %v2051 = vpop.f32.mrf.mxu0
      %v2052 = vadd.f32 0.0, %v2051
      %2053 = vmatmul.bf16.gmra.mxu0 %v810
      %v2054 = vpop.f32.mrf.mxu0
      %v2055 = vadd.f32 0.0, %v2054
      %v2056 = vpop.f32.mrf.mxu0
      %v2057 = vadd.f32 0.0, %v2056
      %2058 = vmatmul.bf16.gmra.mxu0 %v813
      %v2059 = vpop.f32.mrf.mxu0
      %v2060 = vadd.f32 0.0, %v2059
      %v2061 = vpop.f32.mrf.mxu0
      %v2062 = vadd.f32 0.0, %v2061
      %2063 = vmatmul.bf16.gmra.mxu0 %v816
      %v2064 = vpop.f32.mrf.mxu0
      %v2065 = vadd.f32 0.0, %v2064
      %v2066 = vpop.f32.mrf.mxu0
      %v2067 = vadd.f32 0.0, %v2066
      %2068 = vmatmul.bf16.gmra.mxu0 %v819
      %v2069 = vpop.f32.mrf.mxu0
      %v2070 = vadd.f32 0.0, %v2069
      %v2071 = vpop.f32.mrf.mxu0
      %v2072 = vadd.f32 0.0, %v2071
      %2073 = vmatmul.bf16.gmra.mxu0 %v822
      %v2074 = vpop.f32.mrf.mxu0
      %v2075 = vadd.f32 0.0, %v2074
      %v2076 = vpop.f32.mrf.mxu0
      %v2077 = vadd.f32 0.0, %v2076
      %2078 = vmatmul.bf16.gmra.mxu0 %v825
      %v2079 = vpop.f32.mrf.mxu0
      %v2080 = vadd.f32 0.0, %v2079
      %v2081 = vpop.f32.mrf.mxu0
      %v2082 = vadd.f32 0.0, %v2081
      %2083 = vmatmul.bf16.gmra.mxu0 %v828
      %v2084 = vpop.f32.mrf.mxu0
      %v2085 = vadd.f32 0.0, %v2084
      %v2086 = vpop.f32.mrf.mxu0
      %v2087 = vadd.f32 0.0, %v2086
      %2088 = vmatmul.bf16.gmra.mxu0 %v831
      %v2089 = vpop.f32.mrf.mxu0
      %v2090 = vadd.f32 0.0, %v2089
      %v2091 = vpop.f32.mrf.mxu0
      %v2092 = vadd.f32 0.0, %v2091
      %2093 = vmatmul.bf16.gmra.mxu0 %v834
      %v2094 = vpop.f32.mrf.mxu0
      %v2095 = vadd.f32 0.0, %v2094
      %v2096 = vpop.f32.mrf.mxu0
      %v2097 = vadd.f32 0.0, %v2096
      %2098 = vmatmul.bf16.gmra.mxu0 %v837
      %v2099 = vpop.f32.mrf.mxu0
      %v2100 = vadd.f32 0.0, %v2099
      %v2101 = vpop.f32.mrf.mxu0
      %v2102 = vadd.f32 0.0, %v2101
      %2103 = vmatmul.bf16.gmra.mxu0 %v840
      %v2104 = vpop.f32.mrf.mxu0
      %v2105 = vadd.f32 0.0, %v2104
      %v2106 = vpop.f32.mrf.mxu0
      %v2107 = vadd.f32 0.0, %v2106
      %2108 = vmatmul.bf16.gmra.mxu0 %v843
      %v2109 = vpop.f32.mrf.mxu0
      %v2110 = vadd.f32 0.0, %v2109
      %v2111 = vpop.f32.mrf.mxu0
      %v2112 = vadd.f32 0.0, %v2111
      %2113 = vmatmul.bf16.gmra.mxu0 %v846
      %v2114 = vpop.f32.mrf.mxu0
      %v2115 = vadd.f32 0.0, %v2114
      %v2116 = vpop.f32.mrf.mxu0
      %v2117 = vadd.f32 0.0, %v2116
      %2118 = vmatmul.bf16.gmra.mxu0 %v849
      %v2119 = vpop.f32.mrf.mxu0
      %v2120 = vadd.f32 0.0, %v2119
      %v2121 = vpop.f32.mrf.mxu0
      %v2122 = vadd.f32 0.0, %v2121
      %2123 = vmatmul.bf16.gmra.mxu0 %v852
      %v2124 = vpop.f32.mrf.mxu0
      %v2125 = vadd.f32 0.0, %v2124
      %v2126 = vpop.f32.mrf.mxu0
      %v2127 = vadd.f32 0.0, %v2126
      %2128 = vmatmul.bf16.gmra.mxu0 %v855
      %v2129 = vpop.f32.mrf.mxu0
      %v2130 = vadd.f32 0.0, %v2129
      %v2131 = vpop.f32.mrf.mxu0
      %v2132 = vadd.f32 0.0, %v2131
      %2133 = vmatmul.bf16.gmra.mxu0 %v858
      %v2134 = vpop.f32.mrf.mxu0
      %v2135 = vadd.f32 0.0, %v2134
      %v2136 = vpop.f32.mrf.mxu0
      %v2137 = vadd.f32 0.0, %v2136
      %2138 = vmatmul.bf16.gmra.mxu0 %v861
      %v2139 = vpop.f32.mrf.mxu0
      %v2140 = vadd.f32 0.0, %v2139
      %v2141 = vpop.f32.mrf.mxu0
      %v2142 = vadd.f32 0.0, %v2141
      %2143 = vmatmul.bf16.gmra.mxu0 %v864
      %v2144 = vpop.f32.mrf.mxu0
      %v2145 = vadd.f32 0.0, %v2144
      %v2146 = vpop.f32.mrf.mxu0
      %v2147 = vadd.f32 0.0, %v2146
      %2148 = vmatmul.bf16.gmra.mxu0 %v867
      %v2149 = vpop.f32.mrf.mxu0
      %v2150 = vadd.f32 0.0, %v2149
      %v2151 = vpop.f32.mrf.mxu0
      %v2152 = vadd.f32 0.0, %v2151
      %2153 = vmatmul.bf16.gmra.mxu0 %v870
      %v2154 = vpop.f32.mrf.mxu0
      %v2155 = vadd.f32 0.0, %v2154
      %v2156 = vpop.f32.mrf.mxu0
      %v2157 = vadd.f32 0.0, %v2156
      %2158 = vmatmul.bf16.gmra.mxu0 %v873
      %v2159 = vpop.f32.mrf.mxu0
      %v2160 = vadd.f32 0.0, %v2159
      %v2161 = vpop.f32.mrf.mxu0
      %v2162 = vadd.f32 0.0, %v2161
      %2163 = vmatmul.bf16.gmra.mxu0 %v876
      %v2164 = vpop.f32.mrf.mxu0
      %v2165 = vadd.f32 0.0, %v2164
      %v2166 = vpop.f32.mrf.mxu0
      %v2167 = vadd.f32 0.0, %v2166
      %2168 = vmatmul.bf16.gmra.mxu0 %v879
      %v2169 = vpop.f32.mrf.mxu0
      %v2170 = vadd.f32 0.0, %v2169
      %v2171 = vpop.f32.mrf.mxu0
      %v2172 = vadd.f32 0.0, %v2171
      %2173 = vmatmul.bf16.gmra.mxu0 %v882
      %v2174 = vpop.f32.mrf.mxu0
      %v2175 = vadd.f32 0.0, %v2174
      %v2176 = vpop.f32.mrf.mxu0
      %v2177 = vadd.f32 0.0, %v2176
      %2178 = vmatmul.bf16.gmra.mxu0 %v885
      %v2179 = vpop.f32.mrf.mxu0
      %v2180 = vadd.f32 0.0, %v2179
      %v2181 = vpop.f32.mrf.mxu0
      %v2182 = vadd.f32 0.0, %v2181
      %2183 = vmatmul.bf16.gmra.mxu0 %v888
      %v2184 = vpop.f32.mrf.mxu0
      %v2185 = vadd.f32 0.0, %v2184
      %v2186 = vpop.f32.mrf.mxu0
      %v2187 = vadd.f32 0.0, %v2186
      %2188 = vmatmul.bf16.gmra.mxu0 %v891
      %v2189 = vpop.f32.mrf.mxu0
      %v2190 = vadd.f32 0.0, %v2189
      %v2191 = vpop.f32.mrf.mxu0
      %v2192 = vadd.f32 0.0, %v2191
      %2193 = vmatmul.bf16.gmra.mxu0 %v894
      %v2194 = vpop.f32.mrf.mxu0
      %v2195 = vadd.f32 0.0, %v2194
      %v2196 = vpop.f32.mrf.mxu0
      %v2197 = vadd.f32 0.0, %v2196
      %2198 = vmatmul.bf16.gmra.mxu0 %v897
      %v2199 = vpop.f32.mrf.mxu0
      %v2200 = vadd.f32 0.0, %v2199
      %v2201 = vpop.f32.mrf.mxu0
      %v2202 = vadd.f32 0.0, %v2201
      %2203 = vmatmul.bf16.gmra.mxu0 %v900
      %v2204 = vpop.f32.mrf.mxu0
      %v2205 = vadd.f32 0.0, %v2204
      %v2206 = vpop.f32.mrf.mxu0
      %v2207 = vadd.f32 0.0, %v2206
      %2208 = vmatmul.bf16.gmra.mxu0 %v903
      %v2209 = vpop.f32.mrf.mxu0
      %v2210 = vadd.f32 0.0, %v2209
      %v2211 = vpop.f32.mrf.mxu0
      %v2212 = vadd.f32 0.0, %v2211
      %2213 = vmatmul.bf16.gmra.mxu0 %v906
      %v2214 = vpop.f32.mrf.mxu0
      %v2215 = vadd.f32 0.0, %v2214
      %v2216 = vpop.f32.mrf.mxu0
      %v2217 = vadd.f32 0.0, %v2216
      %2218 = vmatmul.bf16.gmra.mxu0 %v909
      %v2219 = vpop.f32.mrf.mxu0
      %v2220 = vadd.f32 0.0, %v2219
      %v2221 = vpop.f32.mrf.mxu0
      %v2222 = vadd.f32 0.0, %v2221
      %2223 = vmatmul.bf16.gmra.mxu0 %v912
      %v2224 = vpop.f32.mrf.mxu0
      %v2225 = vadd.f32 0.0, %v2224
      %v2226 = vpop.f32.mrf.mxu0
      %v2227 = vadd.f32 0.0, %v2226
      %2228 = vmatmul.bf16.gmra.mxu0 %v915
      %v2229 = vpop.f32.mrf.mxu0
      %v2230 = vadd.f32 0.0, %v2229
      %v2231 = vpop.f32.mrf.mxu0
      %v2232 = vadd.f32 0.0, %v2231
      %2233 = vmatmul.bf16.gmra.mxu0 %v918
      %v2234 = vpop.f32.mrf.mxu0
      %v2235 = vadd.f32 0.0, %v2234
      %v2236 = vpop.f32.mrf.mxu0
      %v2237 = vadd.f32 0.0, %v2236
      %2238 = vmatmul.bf16.gmra.mxu0 %v921
      %v2239 = vpop.f32.mrf.mxu0
      %v2240 = vadd.f32 0.0, %v2239
      %v2241 = vpop.f32.mrf.mxu0
      %v2242 = vadd.f32 0.0, %v2241
      %2243 = vmatmul.bf16.gmra.mxu0 %v924
      %v2244 = vpop.f32.mrf.mxu0
      %v2245 = vadd.f32 0.0, %v2244
      %v2246 = vpop.f32.mrf.mxu0
      %v2247 = vadd.f32 0.0, %v2246
      %2248 = vmatmul.bf16.gmra.mxu0 %v927
      %v2249 = vpop.f32.mrf.mxu0
      %v2250 = vadd.f32 0.0, %v2249
      %v2251 = vpop.f32.mrf.mxu0
      %v2252 = vadd.f32 0.0, %v2251
      %2253 = vmatmul.bf16.gmra.mxu0 %v930
      %v2254 = vpop.f32.mrf.mxu0
      %v2255 = vadd.f32 0.0, %v2254
      %v2256 = vpop.f32.mrf.mxu0
      %v2257 = vadd.f32 0.0, %v2256
      %2258 = vmatmul.bf16.gmra.mxu0 %v933
      %v2259 = vpop.f32.mrf.mxu0
      %v2260 = vadd.f32 0.0, %v2259
      %v2261 = vpop.f32.mrf.mxu0
      %v2262 = vadd.f32 0.0, %v2261
      %2263 = vmatmul.bf16.gmra.mxu0 %v936
      %v2264 = vpop.f32.mrf.mxu0
      %v2265 = vadd.f32 0.0, %v2264
      %v2266 = vpop.f32.mrf.mxu0
      %v2267 = vadd.f32 0.0, %v2266
      %2268 = vmatmul.bf16.gmra.mxu0 %v939
      %v2269 = vpop.f32.mrf.mxu0
      %v2270 = vadd.f32 0.0, %v2269
      %v2271 = vpop.f32.mrf.mxu0
      %v2272 = vadd.f32 0.0, %v2271
      %2273 = vmatmul.bf16.gmra.mxu0 %v1569
      %v2274 = vpop.f32.mrf.mxu0
      %v2275 = vadd.f32 0.0, %v2274
      %v2276 = vpop.f32.mrf.mxu0
      %v2277 = vadd.f32 0.0, %v2276
      %2278 = vmatmul.bf16.gmra.mxu0 %v1572
      %v2279 = vpop.f32.mrf.mxu0
      %v2280 = vadd.f32 0.0, %v2279
      %v2281 = vpop.f32.mrf.mxu0
      %v2282 = vadd.f32 0.0, %v2281
      %2283 = vmatmul.bf16.gmra.mxu0 %v1997
      %v2284 = vpop.f32.mrf.mxu0
      %v2285 = vadd.f32 0.0, %v2284
      %v2286 = vpop.f32.mrf.mxu0
      %v2287 = vadd.f32 0.0, %v2286
      %2288 = vmatmul.bf16.gmra.mxu0 %v2000
      %v2289 = vpop.f32.mrf.mxu0
      %v2290 = vadd.f32 0.0, %v2289
      %v2291 = vpop.f32.mrf.mxu0
      %v2292 = vadd.f32 0.0, %v2291
      %2293 = vdwg.mxu0
      %v2294 = vadd.f32 %v1866, %v2015
      %v2295 = vadd.f32 %v1867, %v2017
      %v2296 = vadd.f32 %v1868, %v2020
      %v2297 = vadd.f32 %v1869, %v2022
      %v2298 = vadd.f32 %v1870, %v2025
      %v2299 = vadd.f32 %v1871, %v2027
      %v2300 = vadd.f32 %v1872, %v2030
      %v2301 = vadd.f32 %v1873, %v2032
      %v2302 = vadd.f32 %v1874, %v2035
      %v2303 = vadd.f32 %v1875, %v2037
      %v2304 = vadd.f32 %v1876, %v2040
      %v2305 = vadd.f32 %v1877, %v2042
      %v2306 = vadd.f32 %v1878, %v2045
      %v2307 = vadd.f32 %v1879, %v2047
      %v2308 = vadd.f32 %v1880, %v2050
      %v2309 = vadd.f32 %v1881, %v2052
      %v2310 = vadd.f32 %v1882, %v2055
      %v2311 = vadd.f32 %v1883, %v2057
      %v2312 = vadd.f32 %v1884, %v2060
      %v2313 = vadd.f32 %v1885, %v2062
      %v2314 = vadd.f32 %v1886, %v2065
      %v2315 = vadd.f32 %v1887, %v2067
      %v2316 = vadd.f32 %v1888, %v2070
      %v2317 = vadd.f32 %v1889, %v2072
      %v2318 = vadd.f32 %v1890, %v2075
      %v2319 = vadd.f32 %v1891, %v2077
      %v2320 = vadd.f32 %v1892, %v2080
      %v2321 = vadd.f32 %v1893, %v2082
      %v2322 = vadd.f32 %v1894, %v2085
      %v2323 = vadd.f32 %v1895, %v2087
      %v2324 = vadd.f32 %v1896, %v2090
      %v2325 = vadd.f32 %v1897, %v2092
      %v2326 = vadd.f32 %v1898, %v2095
      %v2327 = vadd.f32 %v1899, %v2097
      %v2328 = vadd.f32 %v1900, %v2100
      %v2329 = vadd.f32 %v1901, %v2102
      %v2330 = vadd.f32 %v1902, %v2105
      %v2331 = vadd.f32 %v1903, %v2107
      %v2332 = vadd.f32 %v1904, %v2110
      %v2333 = vadd.f32 %v1905, %v2112
      %v2334 = vadd.f32 %v1906, %v2115
      %v2335 = vadd.f32 %v1907, %v2117
      %v2336 = vadd.f32 %v1908, %v2120
      %v2337 = vadd.f32 %v1909, %v2122
      %v2338 = vadd.f32 %v1910, %v2125
      %v2339 = vadd.f32 %v1911, %v2127
      %v2340 = vadd.f32 %v1912, %v2130
      %v2341 = vadd.f32 %v1913, %v2132
      %v2342 = vadd.f32 %v1914, %v2135
      %v2343 = vadd.f32 %v1915, %v2137
      %v2344 = vadd.f32 %v1916, %v2140
      %v2345 = vadd.f32 %v1917, %v2142
      %v2346 = vadd.f32 %v1918, %v2145
      %v2347 = vadd.f32 %v1919, %v2147
      %v2348 = vadd.f32 %v1920, %v2150
      %v2349 = vadd.f32 %v1921, %v2152
      %v2350 = vadd.f32 %v1922, %v2155
      %v2351 = vadd.f32 %v1923, %v2157
      %v2352 = vadd.f32 %v1924, %v2160
      %v2353 = vadd.f32 %v1925, %v2162
      %v2354 = vadd.f32 %v1926, %v2165
      %v2355 = vadd.f32 %v1927, %v2167
      %v2356 = vadd.f32 %v1928, %v2170
      %v2357 = vadd.f32 %v1929, %v2172
      %v2358 = vadd.f32 %v1930, %v2175
      %v2359 = vadd.f32 %v1931, %v2177
      %v2360 = vadd.f32 %v1932, %v2180
      %v2361 = vadd.f32 %v1933, %v2182
      %v2362 = vadd.f32 %v1934, %v2185
      %v2363 = vadd.f32 %v1935, %v2187
      %v2364 = vadd.f32 %v1936, %v2190
      %v2365 = vadd.f32 %v1937, %v2192
      %v2366 = vadd.f32 %v1938, %v2195
      %v2367 = vadd.f32 %v1939, %v2197
      %v2368 = vadd.f32 %v1940, %v2200
      %v2369 = vadd.f32 %v1941, %v2202
      %v2370 = vadd.f32 %v1942, %v2205
      %v2371 = vadd.f32 %v1943, %v2207
      %v2372 = vadd.f32 %v1944, %v2210
      %v2373 = vadd.f32 %v1945, %v2212
      %v2374 = vadd.f32 %v1946, %v2215
      %v2375 = vadd.f32 %v1947, %v2217
      %v2376 = vadd.f32 %v1948, %v2220
      %v2377 = vadd.f32 %v1949, %v2222
      %v2378 = vadd.f32 %v1950, %v2225
      %v2379 = vadd.f32 %v1951, %v2227
      %v2380 = vadd.f32 %v1952, %v2230
      %v2381 = vadd.f32 %v1953, %v2232
      %v2382 = vadd.f32 %v1954, %v2235
      %v2383 = vadd.f32 %v1955, %v2237
      %v2384 = vadd.f32 %v1956, %v2240
      %v2385 = vadd.f32 %v1957, %v2242
      %v2386 = vadd.f32 %v1958, %v2245
      %v2387 = vadd.f32 %v1959, %v2247
      %v2388 = vadd.f32 %v1960, %v2250
      %v2389 = vadd.f32 %v1961, %v2252
      %v2390 = vadd.f32 %v1962, %v2255
      %v2391 = vadd.f32 %v1963, %v2257
      %v2392 = vadd.f32 %v1964, %v2260
      %v2393 = vadd.f32 %v1965, %v2262
      %v2394 = vadd.f32 %v1966, %v2265
      %v2395 = vadd.f32 %v1967, %v2267
      %v2396 = vadd.f32 %v1968, %v2270
      %v2397 = vadd.f32 %v1969, %v2272
      %v2398 = vadd.f32 %v1970, %v2275
      %v2399 = vadd.f32 %v1971, %v2277
      %v2400 = vadd.f32 %v1972, %v2280
      %v2401 = vadd.f32 %v1973, %v2282
      %v2402 = vadd.f32 %v1974, %v2285
      %v2403 = vadd.f32 %v1975, %v2287
      %v2404 = vadd.f32 %v1976, %v2290
      %v2405 = vadd.f32 %v1977, %v2292
      %s2406 = scalar_lea.vmem %s1, 32
      %v2407 = vld [vmem:[%s2406] sm:$0xf]
      %v2408 = vld [vmem:[%s2406 + $0x4] sm:$0xf]
      %v2413 = vunpack.c.l.b16 %v478
      %v2414 = vunpack.c.l.b16 %v479
      %v2415 = vunpack.c.l.b16 %v480
      %v2416 = vunpack.c.l.b16 %v481
      %v2417 = vpack.c.b16 %v2414, %v2413
      %v2418 = vpack.c.b16 %v2416, %v2415
      %v2421 = vunpack.c.l.b16 %v2407
      %v2422 = vunpack.c.l.b16 %v2408
      %v2423 = vpack.c.b16 %v2422, %v2421
      %v2425 = vsel %vm772, %v2417, 0
      %v2428 = vsel %vm772, %v2418, 0
      %v2431 = vand.u32 %v2423, %v944
      %2433 = vmatpush.bf16.msra.mxu0 0
      %2434 = vmatpush.bf16.msra.mxu0 0
      %2435 = vmatpush.bf16.msra.mxu0 0
      %2436 = vmatpush.bf16.msra.mxu0 0
      %2437 = vmatpush.bf16.msra.mxu0 0
      %2438 = vmatpush.bf16.msra.mxu0 0
      %2439 = vmatpush.bf16.msra.mxu0 0
      %2440 = vmatpush.bf16.msra.mxu0 %v2431
      %2441 = vmatmul.bf16.gmra.mxu0 %v792
      %v2442 = vpop.f32.mrf.mxu0
      %v2443 = vadd.f32 0.0, %v2442
      %v2444 = vpop.f32.mrf.mxu0
      %v2445 = vadd.f32 0.0, %v2444
      %2446 = vmatmul.bf16.gmra.mxu0 %v795
      %v2447 = vpop.f32.mrf.mxu0
      %v2448 = vadd.f32 0.0, %v2447
      %v2449 = vpop.f32.mrf.mxu0
      %v2450 = vadd.f32 0.0, %v2449
      %2451 = vmatmul.bf16.gmra.mxu0 %v798
      %v2452 = vpop.f32.mrf.mxu0
      %v2453 = vadd.f32 0.0, %v2452
      %v2454 = vpop.f32.mrf.mxu0
      %v2455 = vadd.f32 0.0, %v2454
      %2456 = vmatmul.bf16.gmra.mxu0 %v801
      %v2457 = vpop.f32.mrf.mxu0
      %v2458 = vadd.f32 0.0, %v2457
      %v2459 = vpop.f32.mrf.mxu0
      %v2460 = vadd.f32 0.0, %v2459
      %2461 = vmatmul.bf16.gmra.mxu0 %v804
      %v2462 = vpop.f32.mrf.mxu0
      %v2463 = vadd.f32 0.0, %v2462
      %v2464 = vpop.f32.mrf.mxu0
      %v2465 = vadd.f32 0.0, %v2464
      %2466 = vmatmul.bf16.gmra.mxu0 %v807
      %v2467 = vpop.f32.mrf.mxu0
      %v2468 = vadd.f32 0.0, %v2467
      %v2469 = vpop.f32.mrf.mxu0
      %v2470 = vadd.f32 0.0, %v2469
      %2471 = vmatmul.bf16.gmra.mxu0 %v810
      %v2472 = vpop.f32.mrf.mxu0
      %v2473 = vadd.f32 0.0, %v2472
      %v2474 = vpop.f32.mrf.mxu0
      %v2475 = vadd.f32 0.0, %v2474
      %2476 = vmatmul.bf16.gmra.mxu0 %v813
      %v2477 = vpop.f32.mrf.mxu0
      %v2478 = vadd.f32 0.0, %v2477
      %v2479 = vpop.f32.mrf.mxu0
      %v2480 = vadd.f32 0.0, %v2479
      %2481 = vmatmul.bf16.gmra.mxu0 %v816
      %v2482 = vpop.f32.mrf.mxu0
      %v2483 = vadd.f32 0.0, %v2482
      %v2484 = vpop.f32.mrf.mxu0
      %v2485 = vadd.f32 0.0, %v2484
      %2486 = vmatmul.bf16.gmra.mxu0 %v819
      %v2487 = vpop.f32.mrf.mxu0
      %v2488 = vadd.f32 0.0, %v2487
      %v2489 = vpop.f32.mrf.mxu0
      %v2490 = vadd.f32 0.0, %v2489
      %2491 = vmatmul.bf16.gmra.mxu0 %v822
      %v2492 = vpop.f32.mrf.mxu0
      %v2493 = vadd.f32 0.0, %v2492
      %v2494 = vpop.f32.mrf.mxu0
      %v2495 = vadd.f32 0.0, %v2494
      %2496 = vmatmul.bf16.gmra.mxu0 %v825
      %v2497 = vpop.f32.mrf.mxu0
      %v2498 = vadd.f32 0.0, %v2497
      %v2499 = vpop.f32.mrf.mxu0
      %v2500 = vadd.f32 0.0, %v2499
      %2501 = vmatmul.bf16.gmra.mxu0 %v828
      %v2502 = vpop.f32.mrf.mxu0
      %v2503 = vadd.f32 0.0, %v2502
      %v2504 = vpop.f32.mrf.mxu0
      %v2505 = vadd.f32 0.0, %v2504
      %2506 = vmatmul.bf16.gmra.mxu0 %v831
      %v2507 = vpop.f32.mrf.mxu0
      %v2508 = vadd.f32 0.0, %v2507
      %v2509 = vpop.f32.mrf.mxu0
      %v2510 = vadd.f32 0.0, %v2509
      %2511 = vmatmul.bf16.gmra.mxu0 %v834
      %v2512 = vpop.f32.mrf.mxu0
      %v2513 = vadd.f32 0.0, %v2512
      %v2514 = vpop.f32.mrf.mxu0
      %v2515 = vadd.f32 0.0, %v2514
      %2516 = vmatmul.bf16.gmra.mxu0 %v837
      %v2517 = vpop.f32.mrf.mxu0
      %v2518 = vadd.f32 0.0, %v2517
      %v2519 = vpop.f32.mrf.mxu0
      %v2520 = vadd.f32 0.0, %v2519
      %2521 = vmatmul.bf16.gmra.mxu0 %v840
      %v2522 = vpop.f32.mrf.mxu0
      %v2523 = vadd.f32 0.0, %v2522
      %v2524 = vpop.f32.mrf.mxu0
      %v2525 = vadd.f32 0.0, %v2524
      %2526 = vmatmul.bf16.gmra.mxu0 %v843
      %v2527 = vpop.f32.mrf.mxu0
      %v2528 = vadd.f32 0.0, %v2527
      %v2529 = vpop.f32.mrf.mxu0
      %v2530 = vadd.f32 0.0, %v2529
      %2531 = vmatmul.bf16.gmra.mxu0 %v846
      %v2532 = vpop.f32.mrf.mxu0
      %v2533 = vadd.f32 0.0, %v2532
      %v2534 = vpop.f32.mrf.mxu0
      %v2535 = vadd.f32 0.0, %v2534
      %2536 = vmatmul.bf16.gmra.mxu0 %v849
      %v2537 = vpop.f32.mrf.mxu0
      %v2538 = vadd.f32 0.0, %v2537
      %v2539 = vpop.f32.mrf.mxu0
      %v2540 = vadd.f32 0.0, %v2539
      %2541 = vmatmul.bf16.gmra.mxu0 %v852
      %v2542 = vpop.f32.mrf.mxu0
      %v2543 = vadd.f32 0.0, %v2542
      %v2544 = vpop.f32.mrf.mxu0
      %v2545 = vadd.f32 0.0, %v2544
      %2546 = vmatmul.bf16.gmra.mxu0 %v855
      %v2547 = vpop.f32.mrf.mxu0
      %v2548 = vadd.f32 0.0, %v2547
      %v2549 = vpop.f32.mrf.mxu0
      %v2550 = vadd.f32 0.0, %v2549
      %2551 = vmatmul.bf16.gmra.mxu0 %v858
      %v2552 = vpop.f32.mrf.mxu0
      %v2553 = vadd.f32 0.0, %v2552
      %v2554 = vpop.f32.mrf.mxu0
      %v2555 = vadd.f32 0.0, %v2554
      %2556 = vmatmul.bf16.gmra.mxu0 %v861
      %v2557 = vpop.f32.mrf.mxu0
      %v2558 = vadd.f32 0.0, %v2557
      %v2559 = vpop.f32.mrf.mxu0
      %v2560 = vadd.f32 0.0, %v2559
      %2561 = vmatmul.bf16.gmra.mxu0 %v864
      %v2562 = vpop.f32.mrf.mxu0
      %v2563 = vadd.f32 0.0, %v2562
      %v2564 = vpop.f32.mrf.mxu0
      %v2565 = vadd.f32 0.0, %v2564
      %2566 = vmatmul.bf16.gmra.mxu0 %v867
      %v2567 = vpop.f32.mrf.mxu0
      %v2568 = vadd.f32 0.0, %v2567
      %v2569 = vpop.f32.mrf.mxu0
      %v2570 = vadd.f32 0.0, %v2569
      %2571 = vmatmul.bf16.gmra.mxu0 %v870
      %v2572 = vpop.f32.mrf.mxu0
      %v2573 = vadd.f32 0.0, %v2572
      %v2574 = vpop.f32.mrf.mxu0
      %v2575 = vadd.f32 0.0, %v2574
      %2576 = vmatmul.bf16.gmra.mxu0 %v873
      %v2577 = vpop.f32.mrf.mxu0
      %v2578 = vadd.f32 0.0, %v2577
      %v2579 = vpop.f32.mrf.mxu0
      %v2580 = vadd.f32 0.0, %v2579
      %2581 = vmatmul.bf16.gmra.mxu0 %v876
      %v2582 = vpop.f32.mrf.mxu0
      %v2583 = vadd.f32 0.0, %v2582
      %v2584 = vpop.f32.mrf.mxu0
      %v2585 = vadd.f32 0.0, %v2584
      %2586 = vmatmul.bf16.gmra.mxu0 %v879
      %v2587 = vpop.f32.mrf.mxu0
      %v2588 = vadd.f32 0.0, %v2587
      %v2589 = vpop.f32.mrf.mxu0
      %v2590 = vadd.f32 0.0, %v2589
      %2591 = vmatmul.bf16.gmra.mxu0 %v882
      %v2592 = vpop.f32.mrf.mxu0
      %v2593 = vadd.f32 0.0, %v2592
      %v2594 = vpop.f32.mrf.mxu0
      %v2595 = vadd.f32 0.0, %v2594
      %2596 = vmatmul.bf16.gmra.mxu0 %v885
      %v2597 = vpop.f32.mrf.mxu0
      %v2598 = vadd.f32 0.0, %v2597
      %v2599 = vpop.f32.mrf.mxu0
      %v2600 = vadd.f32 0.0, %v2599
      %2601 = vmatmul.bf16.gmra.mxu0 %v888
      %v2602 = vpop.f32.mrf.mxu0
      %v2603 = vadd.f32 0.0, %v2602
      %v2604 = vpop.f32.mrf.mxu0
      %v2605 = vadd.f32 0.0, %v2604
      %2606 = vmatmul.bf16.gmra.mxu0 %v891
      %v2607 = vpop.f32.mrf.mxu0
      %v2608 = vadd.f32 0.0, %v2607
      %v2609 = vpop.f32.mrf.mxu0
      %v2610 = vadd.f32 0.0, %v2609
      %2611 = vmatmul.bf16.gmra.mxu0 %v894
      %v2612 = vpop.f32.mrf.mxu0
      %v2613 = vadd.f32 0.0, %v2612
      %v2614 = vpop.f32.mrf.mxu0
      %v2615 = vadd.f32 0.0, %v2614
      %2616 = vmatmul.bf16.gmra.mxu0 %v897
      %v2617 = vpop.f32.mrf.mxu0
      %v2618 = vadd.f32 0.0, %v2617
      %v2619 = vpop.f32.mrf.mxu0
      %v2620 = vadd.f32 0.0, %v2619
      %2621 = vmatmul.bf16.gmra.mxu0 %v900
      %v2622 = vpop.f32.mrf.mxu0
      %v2623 = vadd.f32 0.0, %v2622
      %v2624 = vpop.f32.mrf.mxu0
      %v2625 = vadd.f32 0.0, %v2624
      %2626 = vmatmul.bf16.gmra.mxu0 %v903
      %v2627 = vpop.f32.mrf.mxu0
      %v2628 = vadd.f32 0.0, %v2627
      %v2629 = vpop.f32.mrf.mxu0
      %v2630 = vadd.f32 0.0, %v2629
      %2631 = vmatmul.bf16.gmra.mxu0 %v906
      %v2632 = vpop.f32.mrf.mxu0
      %v2633 = vadd.f32 0.0, %v2632
      %v2634 = vpop.f32.mrf.mxu0
      %v2635 = vadd.f32 0.0, %v2634
      %2636 = vmatmul.bf16.gmra.mxu0 %v909
      %v2637 = vpop.f32.mrf.mxu0
      %v2638 = vadd.f32 0.0, %v2637
      %v2639 = vpop.f32.mrf.mxu0
      %v2640 = vadd.f32 0.0, %v2639
      %2641 = vmatmul.bf16.gmra.mxu0 %v912
      %v2642 = vpop.f32.mrf.mxu0
      %v2643 = vadd.f32 0.0, %v2642
      %v2644 = vpop.f32.mrf.mxu0
      %v2645 = vadd.f32 0.0, %v2644
      %2646 = vmatmul.bf16.gmra.mxu0 %v915
      %v2647 = vpop.f32.mrf.mxu0
      %v2648 = vadd.f32 0.0, %v2647
      %v2649 = vpop.f32.mrf.mxu0
      %v2650 = vadd.f32 0.0, %v2649
      %2651 = vmatmul.bf16.gmra.mxu0 %v918
      %v2652 = vpop.f32.mrf.mxu0
      %v2653 = vadd.f32 0.0, %v2652
      %v2654 = vpop.f32.mrf.mxu0
      %v2655 = vadd.f32 0.0, %v2654
      %2656 = vmatmul.bf16.gmra.mxu0 %v921
      %v2657 = vpop.f32.mrf.mxu0
      %v2658 = vadd.f32 0.0, %v2657
      %v2659 = vpop.f32.mrf.mxu0
      %v2660 = vadd.f32 0.0, %v2659
      %2661 = vmatmul.bf16.gmra.mxu0 %v924
      %v2662 = vpop.f32.mrf.mxu0
      %v2663 = vadd.f32 0.0, %v2662
      %v2664 = vpop.f32.mrf.mxu0
      %v2665 = vadd.f32 0.0, %v2664
      %2666 = vmatmul.bf16.gmra.mxu0 %v927
      %v2667 = vpop.f32.mrf.mxu0
      %v2668 = vadd.f32 0.0, %v2667
      %v2669 = vpop.f32.mrf.mxu0
      %v2670 = vadd.f32 0.0, %v2669
      %2671 = vmatmul.bf16.gmra.mxu0 %v930
      %v2672 = vpop.f32.mrf.mxu0
      %v2673 = vadd.f32 0.0, %v2672
      %v2674 = vpop.f32.mrf.mxu0
      %v2675 = vadd.f32 0.0, %v2674
      %2676 = vmatmul.bf16.gmra.mxu0 %v933
      %v2677 = vpop.f32.mrf.mxu0
      %v2678 = vadd.f32 0.0, %v2677
      %v2679 = vpop.f32.mrf.mxu0
      %v2680 = vadd.f32 0.0, %v2679
      %2681 = vmatmul.bf16.gmra.mxu0 %v936
      %v2682 = vpop.f32.mrf.mxu0
      %v2683 = vadd.f32 0.0, %v2682
      %v2684 = vpop.f32.mrf.mxu0
      %v2685 = vadd.f32 0.0, %v2684
      %2686 = vmatmul.bf16.gmra.mxu0 %v939
      %v2687 = vpop.f32.mrf.mxu0
      %v2688 = vadd.f32 0.0, %v2687
      %v2689 = vpop.f32.mrf.mxu0
      %v2690 = vadd.f32 0.0, %v2689
      %2691 = vmatmul.bf16.gmra.mxu0 %v1569
      %v2692 = vpop.f32.mrf.mxu0
      %v2693 = vadd.f32 0.0, %v2692
      %v2694 = vpop.f32.mrf.mxu0
      %v2695 = vadd.f32 0.0, %v2694
      %2696 = vmatmul.bf16.gmra.mxu0 %v1572
      %v2697 = vpop.f32.mrf.mxu0
      %v2698 = vadd.f32 0.0, %v2697
      %v2699 = vpop.f32.mrf.mxu0
      %v2700 = vadd.f32 0.0, %v2699
      %2701 = vmatmul.bf16.gmra.mxu0 %v1997
      %v2702 = vpop.f32.mrf.mxu0
      %v2703 = vadd.f32 0.0, %v2702
      %v2704 = vpop.f32.mrf.mxu0
      %v2705 = vadd.f32 0.0, %v2704
      %2706 = vmatmul.bf16.gmra.mxu0 %v2000
      %v2707 = vpop.f32.mrf.mxu0
      %v2708 = vadd.f32 0.0, %v2707
      %v2709 = vpop.f32.mrf.mxu0
      %v2710 = vadd.f32 0.0, %v2709
      %2711 = vmatmul.bf16.gmra.mxu0 %v2425
      %v2712 = vpop.f32.mrf.mxu0
      %v2713 = vadd.f32 0.0, %v2712
      %v2714 = vpop.f32.mrf.mxu0
      %v2715 = vadd.f32 0.0, %v2714
      %2716 = vmatmul.bf16.gmra.mxu0 %v2428
      %v2717 = vpop.f32.mrf.mxu0
      %v2718 = vadd.f32 0.0, %v2717
      %v2719 = vpop.f32.mrf.mxu0
      %v2720 = vadd.f32 0.0, %v2719
      %2721 = vdwg.mxu0
      %v2722 = vadd.f32 %v2294, %v2443
      %v2723 = vadd.f32 %v2295, %v2445
      %v2724 = vadd.f32 %v2296, %v2448
      %v2725 = vadd.f32 %v2297, %v2450
      %v2726 = vadd.f32 %v2298, %v2453
      %v2727 = vadd.f32 %v2299, %v2455
      %v2728 = vadd.f32 %v2300, %v2458
      %v2729 = vadd.f32 %v2301, %v2460
      %v2730 = vadd.f32 %v2302, %v2463
      %v2731 = vadd.f32 %v2303, %v2465
      %v2732 = vadd.f32 %v2304, %v2468
      %v2733 = vadd.f32 %v2305, %v2470
      %v2734 = vadd.f32 %v2306, %v2473
      %v2735 = vadd.f32 %v2307, %v2475
      %v2736 = vadd.f32 %v2308, %v2478
      %v2737 = vadd.f32 %v2309, %v2480
      %v2738 = vadd.f32 %v2310, %v2483
      %v2739 = vadd.f32 %v2311, %v2485
      %v2740 = vadd.f32 %v2312, %v2488
      %v2741 = vadd.f32 %v2313, %v2490
      %v2742 = vadd.f32 %v2314, %v2493
      %v2743 = vadd.f32 %v2315, %v2495
      %v2744 = vadd.f32 %v2316, %v2498
      %v2745 = vadd.f32 %v2317, %v2500
      %v2746 = vadd.f32 %v2318, %v2503
      %v2747 = vadd.f32 %v2319, %v2505
      %v2748 = vadd.f32 %v2320, %v2508
      %v2749 = vadd.f32 %v2321, %v2510
      %v2750 = vadd.f32 %v2322, %v2513
      %v2751 = vadd.f32 %v2323, %v2515
      %v2752 = vadd.f32 %v2324, %v2518
      %v2753 = vadd.f32 %v2325, %v2520
      %v2754 = vadd.f32 %v2326, %v2523
      %v2755 = vadd.f32 %v2327, %v2525
      %v2756 = vadd.f32 %v2328, %v2528
      %v2757 = vadd.f32 %v2329, %v2530
      %v2758 = vadd.f32 %v2330, %v2533
      %v2759 = vadd.f32 %v2331, %v2535
      %v2760 = vadd.f32 %v2332, %v2538
      %v2761 = vadd.f32 %v2333, %v2540
      %v2762 = vadd.f32 %v2334, %v2543
      %v2763 = vadd.f32 %v2335, %v2545
      %v2764 = vadd.f32 %v2336, %v2548
      %v2765 = vadd.f32 %v2337, %v2550
      %v2766 = vadd.f32 %v2338, %v2553
      %v2767 = vadd.f32 %v2339, %v2555
      %v2768 = vadd.f32 %v2340, %v2558
      %v2769 = vadd.f32 %v2341, %v2560
      %v2770 = vadd.f32 %v2342, %v2563
      %v2771 = vadd.f32 %v2343, %v2565
      %v2772 = vadd.f32 %v2344, %v2568
      %v2773 = vadd.f32 %v2345, %v2570
      %v2774 = vadd.f32 %v2346, %v2573
      %v2775 = vadd.f32 %v2347, %v2575
      %v2776 = vadd.f32 %v2348, %v2578
      %v2777 = vadd.f32 %v2349, %v2580
      %v2778 = vadd.f32 %v2350, %v2583
      %v2779 = vadd.f32 %v2351, %v2585
      %v2780 = vadd.f32 %v2352, %v2588
      %v2781 = vadd.f32 %v2353, %v2590
      %v2782 = vadd.f32 %v2354, %v2593
      %v2783 = vadd.f32 %v2355, %v2595
      %v2784 = vadd.f32 %v2356, %v2598
      %v2785 = vadd.f32 %v2357, %v2600
      %v2786 = vadd.f32 %v2358, %v2603
      %v2787 = vadd.f32 %v2359, %v2605
      %v2788 = vadd.f32 %v2360, %v2608
      %v2789 = vadd.f32 %v2361, %v2610
      %v2790 = vadd.f32 %v2362, %v2613
      %v2791 = vadd.f32 %v2363, %v2615
      %v2792 = vadd.f32 %v2364, %v2618
      %v2793 = vadd.f32 %v2365, %v2620
      %v2794 = vadd.f32 %v2366, %v2623
      %v2795 = vadd.f32 %v2367, %v2625
      %v2796 = vadd.f32 %v2368, %v2628
      %v2797 = vadd.f32 %v2369, %v2630
      %v2798 = vadd.f32 %v2370, %v2633
      %v2799 = vadd.f32 %v2371, %v2635
      %v2800 = vadd.f32 %v2372, %v2638
      %v2801 = vadd.f32 %v2373, %v2640
      %v2802 = vadd.f32 %v2374, %v2643
      %v2803 = vadd.f32 %v2375, %v2645
      %v2804 = vadd.f32 %v2376, %v2648
      %v2805 = vadd.f32 %v2377, %v2650
      %v2806 = vadd.f32 %v2378, %v2653
      %v2807 = vadd.f32 %v2379, %v2655
      %v2808 = vadd.f32 %v2380, %v2658
      %v2809 = vadd.f32 %v2381, %v2660
      %v2810 = vadd.f32 %v2382, %v2663
      %v2811 = vadd.f32 %v2383, %v2665
      %v2812 = vadd.f32 %v2384, %v2668
      %v2813 = vadd.f32 %v2385, %v2670
      %v2814 = vadd.f32 %v2386, %v2673
      %v2815 = vadd.f32 %v2387, %v2675
      %v2816 = vadd.f32 %v2388, %v2678
      %v2817 = vadd.f32 %v2389, %v2680
      %v2818 = vadd.f32 %v2390, %v2683
      %v2819 = vadd.f32 %v2391, %v2685
      %v2820 = vadd.f32 %v2392, %v2688
      %v2821 = vadd.f32 %v2393, %v2690
      %v2822 = vadd.f32 %v2394, %v2693
      %v2823 = vadd.f32 %v2395, %v2695
      %v2824 = vadd.f32 %v2396, %v2698
      %v2825 = vadd.f32 %v2397, %v2700
      %v2826 = vadd.f32 %v2398, %v2703
      %v2827 = vadd.f32 %v2399, %v2705
      %v2828 = vadd.f32 %v2400, %v2708
      %v2829 = vadd.f32 %v2401, %v2710
      %v2830 = vadd.f32 %v2402, %v2713
      %v2831 = vadd.f32 %v2403, %v2715
      %v2832 = vadd.f32 %v2404, %v2718
      %v2833 = vadd.f32 %v2405, %v2720
      %v2834 = vld [vmem:[%s2] sm:$0x1]
      %v2836 = vperm.slane %v2834, 0
      %v2838 = vadd.f32 %v2722, %v2836
      %v2839 = vadd.f32 %v2723, %v2836
      %v2840 = vadd.f32 %v2724, %v2836
      %v2841 = vadd.f32 %v2725, %v2836
      %v2842 = vadd.f32 %v2726, %v2836
      %v2843 = vadd.f32 %v2727, %v2836
      %v2844 = vadd.f32 %v2728, %v2836
      %v2845 = vadd.f32 %v2729, %v2836
      %v2846 = vadd.f32 %v2730, %v2836
      %v2847 = vadd.f32 %v2731, %v2836
      %v2848 = vadd.f32 %v2732, %v2836
      %v2849 = vadd.f32 %v2733, %v2836
      %v2850 = vadd.f32 %v2734, %v2836
      %v2851 = vadd.f32 %v2735, %v2836
      %v2852 = vadd.f32 %v2736, %v2836
      %v2853 = vadd.f32 %v2737, %v2836
      %v2854 = vadd.f32 %v2738, %v2836
      %v2855 = vadd.f32 %v2739, %v2836
      %v2856 = vadd.f32 %v2740, %v2836
      %v2857 = vadd.f32 %v2741, %v2836
      %v2858 = vadd.f32 %v2742, %v2836
      %v2859 = vadd.f32 %v2743, %v2836
      %v2860 = vadd.f32 %v2744, %v2836
      %v2861 = vadd.f32 %v2745, %v2836
      %v2862 = vadd.f32 %v2746, %v2836
      %v2863 = vadd.f32 %v2747, %v2836
      %v2864 = vadd.f32 %v2748, %v2836
      %v2865 = vadd.f32 %v2749, %v2836
      %v2866 = vadd.f32 %v2750, %v2836
      %v2867 = vadd.f32 %v2751, %v2836
      %v2868 = vadd.f32 %v2752, %v2836
      %v2869 = vadd.f32 %v2753, %v2836
      %v2870 = vadd.f32 %v2754, %v2836
      %v2871 = vadd.f32 %v2755, %v2836
      %v2872 = vadd.f32 %v2756, %v2836
      %v2873 = vadd.f32 %v2757, %v2836
      %v2874 = vadd.f32 %v2758, %v2836
      %v2875 = vadd.f32 %v2759, %v2836
      %v2876 = vadd.f32 %v2760, %v2836
      %v2877 = vadd.f32 %v2761, %v2836
      %v2878 = vadd.f32 %v2762, %v2836
      %v2879 = vadd.f32 %v2763, %v2836
      %v2880 = vadd.f32 %v2764, %v2836
      %v2881 = vadd.f32 %v2765, %v2836
      %v2882 = vadd.f32 %v2766, %v2836
      %v2883 = vadd.f32 %v2767, %v2836
      %v2884 = vadd.f32 %v2768, %v2836
      %v2885 = vadd.f32 %v2769, %v2836
      %v2886 = vadd.f32 %v2770, %v2836
      %v2887 = vadd.f32 %v2771, %v2836
      %v2888 = vadd.f32 %v2772, %v2836
      %v2889 = vadd.f32 %v2773, %v2836
      %v2890 = vadd.f32 %v2774, %v2836
      %v2891 = vadd.f32 %v2775, %v2836
      %v2892 = vadd.f32 %v2776, %v2836
      %v2893 = vadd.f32 %v2777, %v2836
      %v2894 = vadd.f32 %v2778, %v2836
      %v2895 = vadd.f32 %v2779, %v2836
      %v2896 = vadd.f32 %v2780, %v2836
      %v2897 = vadd.f32 %v2781, %v2836
      %v2898 = vadd.f32 %v2782, %v2836
      %v2899 = vadd.f32 %v2783, %v2836
      %v2900 = vadd.f32 %v2784, %v2836
      %v2901 = vadd.f32 %v2785, %v2836
      %v2902 = vadd.f32 %v2786, %v2836
      %v2903 = vadd.f32 %v2787, %v2836
      %v2904 = vadd.f32 %v2788, %v2836
      %v2905 = vadd.f32 %v2789, %v2836
      %v2906 = vadd.f32 %v2790, %v2836
      %v2907 = vadd.f32 %v2791, %v2836
      %v2908 = vadd.f32 %v2792, %v2836
      %v2909 = vadd.f32 %v2793, %v2836
      %v2910 = vadd.f32 %v2794, %v2836
      %v2911 = vadd.f32 %v2795, %v2836
      %v2912 = vadd.f32 %v2796, %v2836
      %v2913 = vadd.f32 %v2797, %v2836
      %v2914 = vadd.f32 %v2798, %v2836
      %v2915 = vadd.f32 %v2799, %v2836
      %v2916 = vadd.f32 %v2800, %v2836
      %v2917 = vadd.f32 %v2801, %v2836
      %v2918 = vadd.f32 %v2802, %v2836
      %v2919 = vadd.f32 %v2803, %v2836
      %v2920 = vadd.f32 %v2804, %v2836
      %v2921 = vadd.f32 %v2805, %v2836
      %v2922 = vadd.f32 %v2806, %v2836
      %v2923 = vadd.f32 %v2807, %v2836
      %v2924 = vadd.f32 %v2808, %v2836
      %v2925 = vadd.f32 %v2809, %v2836
      %v2926 = vadd.f32 %v2810, %v2836
      %v2927 = vadd.f32 %v2811, %v2836
      %v2928 = vadd.f32 %v2812, %v2836
      %v2929 = vadd.f32 %v2813, %v2836
      %v2930 = vadd.f32 %v2814, %v2836
      %v2931 = vadd.f32 %v2815, %v2836
      %v2932 = vadd.f32 %v2816, %v2836
      %v2933 = vadd.f32 %v2817, %v2836
      %v2934 = vadd.f32 %v2818, %v2836
      %v2935 = vadd.f32 %v2819, %v2836
      %v2936 = vadd.f32 %v2820, %v2836
      %v2937 = vadd.f32 %v2821, %v2836
      %v2938 = vadd.f32 %v2822, %v2836
      %v2939 = vadd.f32 %v2823, %v2836
      %v2940 = vadd.f32 %v2824, %v2836
      %v2941 = vadd.f32 %v2825, %v2836
      %v2942 = vadd.f32 %v2826, %v2836
      %v2943 = vadd.f32 %v2827, %v2836
      %v2944 = vadd.f32 %v2828, %v2836
      %v2945 = vadd.f32 %v2829, %v2836
      %v2946 = vadd.f32 %v2830, %v2836
      %v2947 = vadd.f32 %v2831, %v2836
      %v2948 = vadd.f32 %v2832, %v2836
      %v2949 = vadd.f32 %v2833, %v2836
      %v2950 = vmax.f32 %v2838, %v2842
      %v2951 = vmax.f32 %v2839, %v2843
      %v2952 = vmax.f32 %v2840, %v2844
      %v2953 = vmax.f32 %v2841, %v2845
      %v2954 = vmax.f32 %v2846, %v2850
      %v2955 = vmax.f32 %v2847, %v2851
      %v2956 = vmax.f32 %v2848, %v2852
      %v2957 = vmax.f32 %v2849, %v2853
      %v2958 = vmax.f32 %v2854, %v2858
      %v2959 = vmax.f32 %v2855, %v2859
      %v2960 = vmax.f32 %v2856, %v2860
      %v2961 = vmax.f32 %v2857, %v2861
      %v2962 = vmax.f32 %v2862, %v2866
      %v2963 = vmax.f32 %v2863, %v2867
      %v2964 = vmax.f32 %v2864, %v2868
      %v2965 = vmax.f32 %v2865, %v2869
      %v2966 = vmax.f32 %v2870, %v2874
      %v2967 = vmax.f32 %v2871, %v2875
      %v2968 = vmax.f32 %v2872, %v2876
      %v2969 = vmax.f32 %v2873, %v2877
      %v2970 = vmax.f32 %v2878, %v2882
      %v2971 = vmax.f32 %v2879, %v2883
      %v2972 = vmax.f32 %v2880, %v2884
      %v2973 = vmax.f32 %v2881, %v2885
      %v2974 = vmax.f32 %v2886, %v2890
      %v2975 = vmax.f32 %v2887, %v2891
      %v2976 = vmax.f32 %v2888, %v2892
      %v2977 = vmax.f32 %v2889, %v2893
      %v2978 = vmax.f32 %v2894, %v2898
      %v2979 = vmax.f32 %v2895, %v2899
      %v2980 = vmax.f32 %v2896, %v2900
      %v2981 = vmax.f32 %v2897, %v2901
      %v2982 = vmax.f32 %v2902, %v2906
      %v2983 = vmax.f32 %v2903, %v2907
      %v2984 = vmax.f32 %v2904, %v2908
      %v2985 = vmax.f32 %v2905, %v2909
      %v2986 = vmax.f32 %v2910, %v2914
      %v2987 = vmax.f32 %v2911, %v2915
      %v2988 = vmax.f32 %v2912, %v2916
      %v2989 = vmax.f32 %v2913, %v2917
      %v2990 = vmax.f32 %v2918, %v2922
      %v2991 = vmax.f32 %v2919, %v2923
      %v2992 = vmax.f32 %v2920, %v2924
      %v2993 = vmax.f32 %v2921, %v2925
      %v2994 = vmax.f32 %v2926, %v2930
      %v2995 = vmax.f32 %v2927, %v2931
      %v2996 = vmax.f32 %v2928, %v2932
      %v2997 = vmax.f32 %v2929, %v2933
      %v2998 = vmax.f32 %v2934, %v2938
      %v2999 = vmax.f32 %v2935, %v2939
      %v3000 = vmax.f32 %v2936, %v2940
      %v3001 = vmax.f32 %v2937, %v2941
      %v3002 = vmax.f32 %v2942, %v2946
      %v3003 = vmax.f32 %v2943, %v2947
      %v3004 = vmax.f32 %v2944, %v2948
      %v3005 = vmax.f32 %v2945, %v2949
      %vm3006 = vcmask 261120
      %3007 = vst.msk [vmem:[#allocation2] sm:$0xff] %vm3006, %v2950
      %3008 = vst.msk [vmem:[#allocation2 + $0x8] sm:$0xff] %vm3006, %v2951
      %3009 = vst.msk [vmem:[#allocation2 + $0x10] sm:$0xff] %vm3006, %v2952
      %3010 = vst.msk [vmem:[#allocation2 + $0x18] sm:$0xff] %vm3006, %v2953
      %3011 = vst.msk [vmem:[#allocation2 + $0x20] sm:$0xff] %vm3006, %v2954
      %3012 = vst.msk [vmem:[#allocation2 + $0x28] sm:$0xff] %vm3006, %v2955
      %3013 = vst.msk [vmem:[#allocation2 + $0x30] sm:$0xff] %vm3006, %v2956
      %3014 = vst.msk [vmem:[#allocation2 + $0x38] sm:$0xff] %vm3006, %v2957
      %3015 = vst.msk [vmem:[#allocation2 + $0x40] sm:$0xff] %vm3006, %v2958
      %3016 = vst.msk [vmem:[#allocation2 + $0x48] sm:$0xff] %vm3006, %v2959
      %3017 = vst.msk [vmem:[#allocation2 + $0x50] sm:$0xff] %vm3006, %v2960
      %3018 = vst.msk [vmem:[#allocation2 + $0x58] sm:$0xff] %vm3006, %v2961
      %3019 = vst.msk [vmem:[#allocation2 + $0x60] sm:$0xff] %vm3006, %v2962
      %3020 = vst.msk [vmem:[#allocation2 + $0x68] sm:$0xff] %vm3006, %v2963
      %3021 = vst.msk [vmem:[#allocation2 + $0x70] sm:$0xff] %vm3006, %v2964
      %3022 = vst.msk [vmem:[#allocation2 + $0x78] sm:$0xff] %vm3006, %v2965
      %3023 = vst.msk [vmem:[#allocation2 + $0x80] sm:$0xff] %vm3006, %v2966
      %3024 = vst.msk [vmem:[#allocation2 + $0x88] sm:$0xff] %vm3006, %v2967
      %3025 = vst.msk [vmem:[#allocation2 + $0x90] sm:$0xff] %vm3006, %v2968
      %3026 = vst.msk [vmem:[#allocation2 + $0x98] sm:$0xff] %vm3006, %v2969
      %3027 = vst.msk [vmem:[#allocation2 + $0xa0] sm:$0xff] %vm3006, %v2970
      %3028 = vst.msk [vmem:[#allocation2 + $0xa8] sm:$0xff] %vm3006, %v2971
      %3029 = vst.msk [vmem:[#allocation2 + $0xb0] sm:$0xff] %vm3006, %v2972
      %3030 = vst.msk [vmem:[#allocation2 + $0xb8] sm:$0xff] %vm3006, %v2973
      %3031 = vst.msk [vmem:[#allocation2 + $0xc0] sm:$0xff] %vm3006, %v2974
      %3032 = vst.msk [vmem:[#allocation2 + $0xc8] sm:$0xff] %vm3006, %v2975
      %3033 = vst.msk [vmem:[#allocation2 + $0xd0] sm:$0xff] %vm3006, %v2976
      %3034 = vst.msk [vmem:[#allocation2 + $0xd8] sm:$0xff] %vm3006, %v2977
      %3035 = vst.msk [vmem:[#allocation2 + $0xe0] sm:$0xff] %vm3006, %v2978
      %3036 = vst.msk [vmem:[#allocation2 + $0xe8] sm:$0xff] %vm3006, %v2979
      %3037 = vst.msk [vmem:[#allocation2 + $0xf0] sm:$0xff] %vm3006, %v2980
      %3038 = vst.msk [vmem:[#allocation2 + $0xf8] sm:$0xff] %vm3006, %v2981
      %3039 = vst.msk [vmem:[#allocation2 + $0x100] sm:$0xff] %vm3006, %v2982
      %3040 = vst.msk [vmem:[#allocation2 + $0x108] sm:$0xff] %vm3006, %v2983
      %3041 = vst.msk [vmem:[#allocation2 + $0x110] sm:$0xff] %vm3006, %v2984
      %3042 = vst.msk [vmem:[#allocation2 + $0x118] sm:$0xff] %vm3006, %v2985
      %3043 = vst.msk [vmem:[#allocation2 + $0x120] sm:$0xff] %vm3006, %v2986
      %3044 = vst.msk [vmem:[#allocation2 + $0x128] sm:$0xff] %vm3006, %v2987
      %3045 = vst.msk [vmem:[#allocation2 + $0x130] sm:$0xff] %vm3006, %v2988
      %3046 = vst.msk [vmem:[#allocation2 + $0x138] sm:$0xff] %vm3006, %v2989
      %3047 = vst.msk [vmem:[#allocation2 + $0x140] sm:$0xff] %vm3006, %v2990
      %3048 = vst.msk [vmem:[#allocation2 + $0x148] sm:$0xff] %vm3006, %v2991
      %3049 = vst.msk [vmem:[#allocation2 + $0x150] sm:$0xff] %vm3006, %v2992
      %3050 = vst.msk [vmem:[#allocation2 + $0x158] sm:$0xff] %vm3006, %v2993
      %3051 = vst.msk [vmem:[#allocation2 + $0x160] sm:$0xff] %vm3006, %v2994
      %3052 = vst.msk [vmem:[#allocation2 + $0x168] sm:$0xff] %vm3006, %v2995
      %3053 = vst.msk [vmem:[#allocation2 + $0x170] sm:$0xff] %vm3006, %v2996
      %3054 = vst.msk [vmem:[#allocation2 + $0x178] sm:$0xff] %vm3006, %v2997
      %3055 = vst.msk [vmem:[#allocation2 + $0x180] sm:$0xff] %vm3006, %v2998
      %3056 = vst.msk [vmem:[#allocation2 + $0x188] sm:$0xff] %vm3006, %v2999
      %3057 = vst.msk [vmem:[#allocation2 + $0x190] sm:$0xff] %vm3006, %v3000
      %3058 = vst.msk [vmem:[#allocation2 + $0x198] sm:$0xff] %vm3006, %v3001
      %3059 = vst.msk [vmem:[#allocation2 + $0x1a0] sm:$0xff] %vm3006, %v3002
      %3060 = vst.msk [vmem:[#allocation2 + $0x1a8] sm:$0xff] %vm3006, %v3003
      %3061 = vst.msk [vmem:[#allocation2 + $0x1b0] sm:$0xff] %vm3006, %v3004
      %3062 = vst.msk [vmem:[#allocation2 + $0x1b8] sm:$0xff] %vm3006, %v3005
      %3063 = vst.msk [vmem:[#allocation2 + $0x1c0] sm:$0xff] %vm3006, 0.0
      %v3064 = vld [vmem:[#allocation2] ss:$2 sm:$0xff]
      %s3065 = scalar_lea.vmem [#allocation2], 16
      %v3066 = vld [vmem:[%s3065] ss:$2 sm:$0xff]
      %s3067 = scalar_lea.vmem [#allocation2], 32
      %v3068 = vld [vmem:[%s3067] ss:$2 sm:$0xff]
      %s3069 = scalar_lea.vmem [#allocation2], 48
      %v3070 = vld [vmem:[%s3069] ss:$2 sm:$0xff]
      %s3071 = scalar_lea.vmem [#allocation2], 64
      %v3072 = vld [vmem:[%s3071] ss:$2 sm:$0xff]
      %s3073 = scalar_lea.vmem [#allocation2], 80
      %v3074 = vld [vmem:[%s3073] ss:$2 sm:$0xff]
      %s3075 = scalar_lea.vmem [#allocation2], 96
      %v3076 = vld [vmem:[%s3075] ss:$2 sm:$0xff]
      %s3077 = scalar_lea.vmem [#allocation2], 112
      %v3078 = vld [vmem:[%s3077] ss:$2 sm:$0xff]
      %s3079 = scalar_lea.vmem [#allocation2], 128
      %v3080 = vld [vmem:[%s3079] ss:$2 sm:$0xff]
      %s3081 = scalar_lea.vmem [#allocation2], 144
      %v3082 = vld [vmem:[%s3081] ss:$2 sm:$0xff]
      %s3083 = scalar_lea.vmem [#allocation2], 160
      %v3084 = vld [vmem:[%s3083] ss:$2 sm:$0xff]
      %s3085 = scalar_lea.vmem [#allocation2], 176
      %v3086 = vld [vmem:[%s3085] ss:$2 sm:$0xff]
      %s3087 = scalar_lea.vmem [#allocation2], 192
      %v3088 = vld [vmem:[%s3087] ss:$2 sm:$0xff]
      %s3089 = scalar_lea.vmem [#allocation2], 208
      %v3090 = vld [vmem:[%s3089] ss:$2 sm:$0xff]
      %s3091 = scalar_lea.vmem [#allocation2], 224
      %v3092 = vld [vmem:[%s3091] ss:$2 sm:$0xff]
      %s3093 = scalar_lea.vmem [#allocation2], 240
      %v3094 = vld [vmem:[%s3093] ss:$2 sm:$0xff]
      %s3095 = scalar_lea.vmem [#allocation2], 256
      %v3096 = vld [vmem:[%s3095] ss:$2 sm:$0xff]
      %s3097 = scalar_lea.vmem [#allocation2], 272
      %v3098 = vld [vmem:[%s3097] ss:$2 sm:$0xff]
      %s3099 = scalar_lea.vmem [#allocation2], 288
      %v3100 = vld [vmem:[%s3099] ss:$2 sm:$0xff]
      %s3101 = scalar_lea.vmem [#allocation2], 304
      %v3102 = vld [vmem:[%s3101] ss:$2 sm:$0xff]
      %s3103 = scalar_lea.vmem [#allocation2], 320
      %v3104 = vld [vmem:[%s3103] ss:$2 sm:$0xff]
      %s3105 = scalar_lea.vmem [#allocation2], 336
      %v3106 = vld [vmem:[%s3105] ss:$2 sm:$0xff]
      %s3107 = scalar_lea.vmem [#allocation2], 352
      %v3108 = vld [vmem:[%s3107] ss:$2 sm:$0xff]
      %s3109 = scalar_lea.vmem [#allocation2], 368
      %v3110 = vld [vmem:[%s3109] ss:$2 sm:$0xff]
      %s3111 = scalar_lea.vmem [#allocation2], 384
      %v3112 = vld [vmem:[%s3111] ss:$2 sm:$0xff]
      %s3113 = scalar_lea.vmem [#allocation2], 400
      %v3114 = vld [vmem:[%s3113] ss:$2 sm:$0xff]
      %s3115 = scalar_lea.vmem [#allocation2], 416
      %v3116 = vld [vmem:[%s3115] ss:$2 sm:$0xff]
      %s3117 = scalar_lea.vmem [#allocation2], 432
      %v3118 = vld [vmem:[%s3117] ss:$2 sm:$0xff]
      %s3119 = scalar_lea.vmem [#allocation2], 1
      %v3120 = vld [vmem:[%s3119] ss:$2 sm:$0xff]
      %s3121 = scalar_lea.vmem [#allocation2], 17
      %v3122 = vld [vmem:[%s3121] ss:$2 sm:$0xff]
      %s3123 = scalar_lea.vmem [#allocation2], 33
      %v3124 = vld [vmem:[%s3123] ss:$2 sm:$0xff]
      %s3125 = scalar_lea.vmem [#allocation2], 49
      %v3126 = vld [vmem:[%s3125] ss:$2 sm:$0xff]
      %s3127 = scalar_lea.vmem [#allocation2], 65
      %v3128 = vld [vmem:[%s3127] ss:$2 sm:$0xff]
      %s3129 = scalar_lea.vmem [#allocation2], 81
      %v3130 = vld [vmem:[%s3129] ss:$2 sm:$0xff]
      %s3131 = scalar_lea.vmem [#allocation2], 97
      %v3132 = vld [vmem:[%s3131] ss:$2 sm:$0xff]
      %s3133 = scalar_lea.vmem [#allocation2], 113
      %v3134 = vld [vmem:[%s3133] ss:$2 sm:$0xff]
      %s3135 = scalar_lea.vmem [#allocation2], 129
      %v3136 = vld [vmem:[%s3135] ss:$2 sm:$0xff]
      %s3137 = scalar_lea.vmem [#allocation2], 145
      %v3138 = vld [vmem:[%s3137] ss:$2 sm:$0xff]
      %s3139 = scalar_lea.vmem [#allocation2], 161
      %v3140 = vld [vmem:[%s3139] ss:$2 sm:$0xff]
      %s3141 = scalar_lea.vmem [#allocation2], 177
      %v3142 = vld [vmem:[%s3141] ss:$2 sm:$0xff]
      %s3143 = scalar_lea.vmem [#allocation2], 193
      %v3144 = vld [vmem:[%s3143] ss:$2 sm:$0xff]
      %s3145 = scalar_lea.vmem [#allocation2], 209
      %v3146 = vld [vmem:[%s3145] ss:$2 sm:$0xff]
      %s3147 = scalar_lea.vmem [#allocation2], 225
      %v3148 = vld [vmem:[%s3147] ss:$2 sm:$0xff]
      %s3149 = scalar_lea.vmem [#allocation2], 241
      %v3150 = vld [vmem:[%s3149] ss:$2 sm:$0xff]
      %s3151 = scalar_lea.vmem [#allocation2], 257
      %v3152 = vld [vmem:[%s3151] ss:$2 sm:$0xff]
      %s3153 = scalar_lea.vmem [#allocation2], 273
      %v3154 = vld [vmem:[%s3153] ss:$2 sm:$0xff]
      %s3155 = scalar_lea.vmem [#allocation2], 289
      %v3156 = vld [vmem:[%s3155] ss:$2 sm:$0xff]
      %s3157 = scalar_lea.vmem [#allocation2], 305
      %v3158 = vld [vmem:[%s3157] ss:$2 sm:$0xff]
      %s3159 = scalar_lea.vmem [#allocation2], 321
      %v3160 = vld [vmem:[%s3159] ss:$2 sm:$0xff]
      %s3161 = scalar_lea.vmem [#allocation2], 337
      %v3162 = vld [vmem:[%s3161] ss:$2 sm:$0xff]
      %s3163 = scalar_lea.vmem [#allocation2], 353
      %v3164 = vld [vmem:[%s3163] ss:$2 sm:$0xff]
      %s3165 = scalar_lea.vmem [#allocation2], 369
      %v3166 = vld [vmem:[%s3165] ss:$2 sm:$0xff]
      %s3167 = scalar_lea.vmem [#allocation2], 385
      %v3168 = vld [vmem:[%s3167] ss:$2 sm:$0xff]
      %s3169 = scalar_lea.vmem [#allocation2], 401
      %v3170 = vld [vmem:[%s3169] ss:$2 sm:$0xff]
      %s3171 = scalar_lea.vmem [#allocation2], 417
      %v3172 = vld [vmem:[%s3171] ss:$2 sm:$0xff]
      %s3173 = scalar_lea.vmem [#allocation2], 433
      %v3174 = vld [vmem:[%s3173] ss:$2 sm:$0xff]
      %v3175 = vmax.f32 %v3064, %v3120
      %v3176 = vmax.f32 %v3066, %v3122
      %v3177 = vmax.f32 %v3068, %v3124
      %v3178 = vmax.f32 %v3070, %v3126
      %v3179 = vmax.f32 %v3072, %v3128
      %v3180 = vmax.f32 %v3074, %v3130
      %v3181 = vmax.f32 %v3076, %v3132
      %v3182 = vmax.f32 %v3078, %v3134
      %v3183 = vmax.f32 %v3080, %v3136
      %v3184 = vmax.f32 %v3082, %v3138
      %v3185 = vmax.f32 %v3084, %v3140
      %v3186 = vmax.f32 %v3086, %v3142
      %v3187 = vmax.f32 %v3088, %v3144
      %v3188 = vmax.f32 %v3090, %v3146
      %v3189 = vmax.f32 %v3092, %v3148
      %v3190 = vmax.f32 %v3094, %v3150
      %v3191 = vmax.f32 %v3096, %v3152
      %v3192 = vmax.f32 %v3098, %v3154
      %v3193 = vmax.f32 %v3100, %v3156
      %v3194 = vmax.f32 %v3102, %v3158
      %v3195 = vmax.f32 %v3104, %v3160
      %v3196 = vmax.f32 %v3106, %v3162
      %v3197 = vmax.f32 %v3108, %v3164
      %v3198 = vmax.f32 %v3110, %v3166
      %v3199 = vmax.f32 %v3112, %v3168
      %v3200 = vmax.f32 %v3114, %v3170
      %v3201 = vmax.f32 %v3116, %v3172
      %v3202 = vmax.f32 %v3118, %v3174
      %v3203 = vpack.c.bf16 %v3175, %v3175
      %v3204 = vpack.c.bf16 %v3176, %v3176
      %v3205 = vpack.c.bf16 %v3177, %v3177
      %v3206 = vpack.c.bf16 %v3178, %v3178
      %v3207 = vpack.c.bf16 %v3179, %v3179
      %v3208 = vpack.c.bf16 %v3180, %v3180
      %v3209 = vpack.c.bf16 %v3181, %v3181
      %v3210 = vpack.c.bf16 %v3182, %v3182
      %v3211 = vpack.c.bf16 %v3183, %v3183
      %v3212 = vpack.c.bf16 %v3184, %v3184
      %v3213 = vpack.c.bf16 %v3185, %v3185
      %v3214 = vpack.c.bf16 %v3186, %v3186
      %v3215 = vpack.c.bf16 %v3187, %v3187
      %v3216 = vpack.c.bf16 %v3188, %v3188
      %v3217 = vpack.c.bf16 %v3189, %v3189
      %v3218 = vpack.c.bf16 %v3190, %v3190
      %v3219 = vpack.c.bf16 %v3191, %v3191
      %v3220 = vpack.c.bf16 %v3192, %v3192
      %v3221 = vpack.c.bf16 %v3193, %v3193
      %v3222 = vpack.c.bf16 %v3194, %v3194
      %v3223 = vpack.c.bf16 %v3195, %v3195
      %v3224 = vpack.c.bf16 %v3196, %v3196
      %v3225 = vpack.c.bf16 %v3197, %v3197
      %v3226 = vpack.c.bf16 %v3198, %v3198
      %v3227 = vpack.c.bf16 %v3199, %v3199
      %v3228 = vpack.c.bf16 %v3200, %v3200
      %v3229 = vpack.c.bf16 %v3201, %v3201
      %v3230 = vpack.c.bf16 %v3202, %v3202
      %v3231 = vld [vmem:[%s3] sm:$0xf]
      %v3232 = vld [vmem:[%s3 + $0x4] sm:$0xf]
      %v3233 = vld [vmem:[%s3 + $0x8] sm:$0xf]
      %v3234 = vld [vmem:[%s3 + $0xc] sm:$0xf]
      %s3235 = scalar_lea.vmem %s3, 80
      %v3236 = vld [vmem:[%s3235] sm:$0xf]
      %v3237 = vld [vmem:[%s3235 + $0x4] sm:$0xf]
      %v3238 = vld [vmem:[%s3235 + $0x8] sm:$0xf]
      %v3239 = vld [vmem:[%s3235 + $0xc] sm:$0xf]
      %v3260 = vunpack.c.l.b16 %v3205
      %v3261 = vunpack.c.l.b16 %v3206
      %v3262 = vunpack.c.l.b16 %v3207
      %v3263 = vunpack.c.l.b16 %v3208
      %v3264 = vunpack.c.l.b16 %v3209
      %v3265 = vunpack.c.l.b16 %v3210
      %v3266 = vunpack.c.l.b16 %v3211
      %v3267 = vunpack.c.l.b16 %v3212
      %v3268 = vunpack.c.l.b16 %v3213
      %v3269 = vunpack.c.l.b16 %v3214
      %v3270 = vunpack.c.l.b16 %v3215
      %v3271 = vunpack.c.l.b16 %v3216
      %v3272 = vunpack.c.l.b16 %v3217
      %v3273 = vunpack.c.l.b16 %v3218
      %v3274 = vunpack.c.l.b16 %v3219
      %v3275 = vunpack.c.l.b16 %v3220
      %v3276 = vunpack.c.l.b16 %v3221
      %v3277 = vunpack.c.l.b16 %v3222
      %v3278 = vunpack.c.l.b16 %v3223
      %v3279 = vunpack.c.l.b16 %v3224
      %v3280 = vpack.c.b16 %v3261, %v3260
      %v3281 = vpack.c.b16 %v3263, %v3262
      %v3282 = vpack.c.b16 %v3265, %v3264
      %v3283 = vpack.c.b16 %v3267, %v3266
      %v3284 = vpack.c.b16 %v3269, %v3268
      %v3285 = vpack.c.b16 %v3271, %v3270
      %v3286 = vpack.c.b16 %v3273, %v3272
      %v3287 = vpack.c.b16 %v3275, %v3274
      %v3288 = vpack.c.b16 %v3277, %v3276
      %v3289 = vpack.c.b16 %v3279, %v3278
      %v3294 = vunpack.c.l.b16 %v3236
      %v3295 = vunpack.c.l.b16 %v3237
      %v3296 = vunpack.c.l.b16 %v3238
      %v3297 = vunpack.c.l.b16 %v3239
      %v3298 = vpack.c.b16 %v3295, %v3294
      %v3299 = vpack.c.b16 %v3297, %v3296
      %v3303 = vsel %vm3006, %v3280, 0
      %v3306 = vsel %vm3006, %v3281, 0
      %v3309 = vsel %vm3006, %v3282, 0
      %v3312 = vsel %vm3006, %v3283, 0
      %v3315 = vsel %vm3006, %v3284, 0
      %v3318 = vsel %vm3006, %v3285, 0
      %v3321 = vsel %vm3006, %v3286, 0
      %v3324 = vsel %vm3006, %v3287, 0
      %v3327 = vsel %vm3006, %v3288, 0
      %v3330 = vsel %vm3006, %v3289, 0
      %3332 = vmatpush.bf16.msra.mxu0 0
      %3333 = vmatpush.bf16.msra.mxu0 0
      %3334 = vmatpush.bf16.msra.mxu0 0
      %3335 = vmatpush.bf16.msra.mxu0 0
      %3336 = vmatpush.bf16.msra.mxu0 0
      %3337 = vmatpush.bf16.msra.mxu0 0
      %3338 = vmatpush.bf16.msra.mxu0 %v3299
      %3339 = vmatpush.bf16.msra.mxu0 %v3298
      %3340 = vmatmul.bf16.gmra.mxu0 %v3303
      %v3341 = vpop.f32.mrf.mxu0
      %v3342 = vadd.f32 0.0, %v3341
      %v3343 = vpop.f32.mrf.mxu0
      %v3344 = vadd.f32 0.0, %v3343
      %3345 = vmatmul.bf16.gmra.mxu0 %v3306
      %v3346 = vpop.f32.mrf.mxu0
      %v3347 = vadd.f32 0.0, %v3346
      %v3348 = vpop.f32.mrf.mxu0
      %v3349 = vadd.f32 0.0, %v3348
      %3350 = vmatmul.bf16.gmra.mxu0 %v3309
      %v3351 = vpop.f32.mrf.mxu0
      %v3352 = vadd.f32 0.0, %v3351
      %v3353 = vpop.f32.mrf.mxu0
      %v3354 = vadd.f32 0.0, %v3353
      %3355 = vmatmul.bf16.gmra.mxu0 %v3312
      %v3356 = vpop.f32.mrf.mxu0
      %v3357 = vadd.f32 0.0, %v3356
      %v3358 = vpop.f32.mrf.mxu0
      %v3359 = vadd.f32 0.0, %v3358
      %3360 = vmatmul.bf16.gmra.mxu0 %v3315
      %v3361 = vpop.f32.mrf.mxu0
      %v3362 = vadd.f32 0.0, %v3361
      %v3363 = vpop.f32.mrf.mxu0
      %v3364 = vadd.f32 0.0, %v3363
      %3365 = vmatmul.bf16.gmra.mxu0 %v3318
      %v3366 = vpop.f32.mrf.mxu0
      %v3367 = vadd.f32 0.0, %v3366
      %v3368 = vpop.f32.mrf.mxu0
      %v3369 = vadd.f32 0.0, %v3368
      %3370 = vmatmul.bf16.gmra.mxu0 %v3321
      %v3371 = vpop.f32.mrf.mxu0
      %v3372 = vadd.f32 0.0, %v3371
      %v3373 = vpop.f32.mrf.mxu0
      %v3374 = vadd.f32 0.0, %v3373
      %3375 = vmatmul.bf16.gmra.mxu0 %v3324
      %v3376 = vpop.f32.mrf.mxu0
      %v3377 = vadd.f32 0.0, %v3376
      %v3378 = vpop.f32.mrf.mxu0
      %v3379 = vadd.f32 0.0, %v3378
      %3380 = vmatmul.bf16.gmra.mxu0 %v3327
      %v3381 = vpop.f32.mrf.mxu0
      %v3382 = vadd.f32 0.0, %v3381
      %v3383 = vpop.f32.mrf.mxu0
      %v3384 = vadd.f32 0.0, %v3383
      %3385 = vmatmul.bf16.gmra.mxu0 %v3330
      %v3386 = vpop.f32.mrf.mxu0
      %v3387 = vadd.f32 0.0, %v3386
      %v3388 = vpop.f32.mrf.mxu0
      %v3389 = vadd.f32 0.0, %v3388
      %3390 = vdwg.mxu0
      %v3393 = vunpack.c.l.b16 %v3203
      %v3394 = vunpack.c.l.b16 %v3204
      %v3395 = vpack.c.b16 %v3394, %v3393
      %v3400 = vunpack.c.l.b16 %v3231
      %v3401 = vunpack.c.l.b16 %v3232
      %v3402 = vunpack.c.l.b16 %v3233
      %v3403 = vunpack.c.l.b16 %v3234
      %v3404 = vpack.c.b16 %v3401, %v3400
      %v3405 = vpack.c.b16 %v3403, %v3402
      %v3409 = vsel %vm3006, %v3395, 0
      %3411 = vmatpush.bf16.msra.mxu0 0
      %3412 = vmatpush.bf16.msra.mxu0 0
      %3413 = vmatpush.bf16.msra.mxu0 0
      %3414 = vmatpush.bf16.msra.mxu0 0
      %3415 = vmatpush.bf16.msra.mxu0 0
      %3416 = vmatpush.bf16.msra.mxu0 0
      %3417 = vmatpush.bf16.msra.mxu0 %v3405
      %3418 = vmatpush.bf16.msra.mxu0 %v3404
      %3419 = vmatmul.bf16.gmra.mxu0 %v3409
      %v3420 = vpop.f32.mrf.mxu0
      %v3421 = vadd.f32 %v3342, %v3420
      %v3422 = vpop.f32.mrf.mxu0
      %v3423 = vadd.f32 %v3344, %v3422
      %3424 = vmatmul.bf16.gmra.mxu0 %v3303
      %v3425 = vpop.f32.mrf.mxu0
      %v3426 = vadd.f32 %v3347, %v3425
      %v3427 = vpop.f32.mrf.mxu0
      %v3428 = vadd.f32 %v3349, %v3427
      %3429 = vmatmul.bf16.gmra.mxu0 %v3306
      %v3430 = vpop.f32.mrf.mxu0
      %v3431 = vadd.f32 %v3352, %v3430
      %v3432 = vpop.f32.mrf.mxu0
      %v3433 = vadd.f32 %v3354, %v3432
      %3434 = vmatmul.bf16.gmra.mxu0 %v3309
      %v3435 = vpop.f32.mrf.mxu0
      %v3436 = vadd.f32 %v3357, %v3435
      %v3437 = vpop.f32.mrf.mxu0
      %v3438 = vadd.f32 %v3359, %v3437
      %3439 = vmatmul.bf16.gmra.mxu0 %v3312
      %v3440 = vpop.f32.mrf.mxu0
      %v3441 = vadd.f32 %v3362, %v3440
      %v3442 = vpop.f32.mrf.mxu0
      %v3443 = vadd.f32 %v3364, %v3442
      %3444 = vmatmul.bf16.gmra.mxu0 %v3315
      %v3445 = vpop.f32.mrf.mxu0
      %v3446 = vadd.f32 %v3367, %v3445
      %v3447 = vpop.f32.mrf.mxu0
      %v3448 = vadd.f32 %v3369, %v3447
      %3449 = vmatmul.bf16.gmra.mxu0 %v3318
      %v3450 = vpop.f32.mrf.mxu0
      %v3451 = vadd.f32 %v3372, %v3450
      %v3452 = vpop.f32.mrf.mxu0
      %v3453 = vadd.f32 %v3374, %v3452
      %3454 = vmatmul.bf16.gmra.mxu0 %v3321
      %v3455 = vpop.f32.mrf.mxu0
      %v3456 = vadd.f32 %v3377, %v3455
      %v3457 = vpop.f32.mrf.mxu0
      %v3458 = vadd.f32 %v3379, %v3457
      %3459 = vmatmul.bf16.gmra.mxu0 %v3324
      %v3460 = vpop.f32.mrf.mxu0
      %v3461 = vadd.f32 %v3382, %v3460
      %v3462 = vpop.f32.mrf.mxu0
      %v3463 = vadd.f32 %v3384, %v3462
      %3464 = vmatmul.bf16.gmra.mxu0 %v3327
      %v3465 = vpop.f32.mrf.mxu0
      %v3466 = vadd.f32 %v3387, %v3465
      %v3467 = vpop.f32.mrf.mxu0
      %v3468 = vadd.f32 %v3389, %v3467
      %3469 = vdwg.mxu0
      %s3470 = scalar_lea.vmem %s3, 160
      %v3471 = vld [vmem:[%s3470] sm:$0xf]
      %v3472 = vld [vmem:[%s3470 + $0x4] sm:$0xf]
      %v3473 = vld [vmem:[%s3470 + $0x8] sm:$0xf]
      %v3474 = vld [vmem:[%s3470 + $0xc] sm:$0xf]
      %v3477 = vunpack.c.l.b16 %v3225
      %v3478 = vunpack.c.l.b16 %v3226
      %v3479 = vpack.c.b16 %v3478, %v3477
      %v3484 = vunpack.c.l.b16 %v3471
      %v3485 = vunpack.c.l.b16 %v3472
      %v3486 = vunpack.c.l.b16 %v3473
      %v3487 = vunpack.c.l.b16 %v3474
      %v3488 = vpack.c.b16 %v3485, %v3484
      %v3489 = vpack.c.b16 %v3487, %v3486
      %v3493 = vsel %vm3006, %v3479, 0
      %3495 = vmatpush.bf16.msra.mxu0 0
      %3496 = vmatpush.bf16.msra.mxu0 0
      %3497 = vmatpush.bf16.msra.mxu0 0
      %3498 = vmatpush.bf16.msra.mxu0 0
      %3499 = vmatpush.bf16.msra.mxu0 0
      %3500 = vmatpush.bf16.msra.mxu0 0
      %3501 = vmatpush.bf16.msra.mxu0 %v3489
      %3502 = vmatpush.bf16.msra.mxu0 %v3488
      %3503 = vmatmul.bf16.gmra.mxu0 %v3306
      %v3504 = vpop.f32.mrf.mxu0
      %v3505 = vadd.f32 0.0, %v3504
      %v3506 = vpop.f32.mrf.mxu0
      %v3507 = vadd.f32 0.0, %v3506
      %3508 = vmatmul.bf16.gmra.mxu0 %v3309
      %v3509 = vpop.f32.mrf.mxu0
      %v3510 = vadd.f32 0.0, %v3509
      %v3511 = vpop.f32.mrf.mxu0
      %v3512 = vadd.f32 0.0, %v3511
      %3513 = vmatmul.bf16.gmra.mxu0 %v3312
      %v3514 = vpop.f32.mrf.mxu0
      %v3515 = vadd.f32 0.0, %v3514
      %v3516 = vpop.f32.mrf.mxu0
      %v3517 = vadd.f32 0.0, %v3516
      %3518 = vmatmul.bf16.gmra.mxu0 %v3315
      %v3519 = vpop.f32.mrf.mxu0
      %v3520 = vadd.f32 0.0, %v3519
      %v3521 = vpop.f32.mrf.mxu0
      %v3522 = vadd.f32 0.0, %v3521
      %3523 = vmatmul.bf16.gmra.mxu0 %v3318
      %v3524 = vpop.f32.mrf.mxu0
      %v3525 = vadd.f32 0.0, %v3524
      %v3526 = vpop.f32.mrf.mxu0
      %v3527 = vadd.f32 0.0, %v3526
      %3528 = vmatmul.bf16.gmra.mxu0 %v3321
      %v3529 = vpop.f32.mrf.mxu0
      %v3530 = vadd.f32 0.0, %v3529
      %v3531 = vpop.f32.mrf.mxu0
      %v3532 = vadd.f32 0.0, %v3531
      %3533 = vmatmul.bf16.gmra.mxu0 %v3324
      %v3534 = vpop.f32.mrf.mxu0
      %v3535 = vadd.f32 0.0, %v3534
      %v3536 = vpop.f32.mrf.mxu0
      %v3537 = vadd.f32 0.0, %v3536
      %3538 = vmatmul.bf16.gmra.mxu0 %v3327
      %v3539 = vpop.f32.mrf.mxu0
      %v3540 = vadd.f32 0.0, %v3539
      %v3541 = vpop.f32.mrf.mxu0
      %v3542 = vadd.f32 0.0, %v3541
      %3543 = vmatmul.bf16.gmra.mxu0 %v3330
      %v3544 = vpop.f32.mrf.mxu0
      %v3545 = vadd.f32 0.0, %v3544
      %v3546 = vpop.f32.mrf.mxu0
      %v3547 = vadd.f32 0.0, %v3546
      %3548 = vmatmul.bf16.gmra.mxu0 %v3493
      %v3549 = vpop.f32.mrf.mxu0
      %v3550 = vadd.f32 0.0, %v3549
      %v3551 = vpop.f32.mrf.mxu0
      %v3552 = vadd.f32 0.0, %v3551
      %3553 = vdwg.mxu0
      %v3554 = vadd.f32 %v3421, %v3505
      %v3555 = vadd.f32 %v3423, %v3507
      %v3556 = vadd.f32 %v3426, %v3510
      %v3557 = vadd.f32 %v3428, %v3512
      %v3558 = vadd.f32 %v3431, %v3515
      %v3559 = vadd.f32 %v3433, %v3517
      %v3560 = vadd.f32 %v3436, %v3520
      %v3561 = vadd.f32 %v3438, %v3522
      %v3562 = vadd.f32 %v3441, %v3525
      %v3563 = vadd.f32 %v3443, %v3527
      %v3564 = vadd.f32 %v3446, %v3530
      %v3565 = vadd.f32 %v3448, %v3532
      %v3566 = vadd.f32 %v3451, %v3535
      %v3567 = vadd.f32 %v3453, %v3537
      %v3568 = vadd.f32 %v3456, %v3540
      %v3569 = vadd.f32 %v3458, %v3542
      %v3570 = vadd.f32 %v3461, %v3545
      %v3571 = vadd.f32 %v3463, %v3547
      %v3572 = vadd.f32 %v3466, %v3550
      %v3573 = vadd.f32 %v3468, %v3552
      %s3574 = scalar_lea.vmem %s3, 240
      %v3575 = vld [vmem:[%s3574] sm:$0xf]
      %v3576 = vld [vmem:[%s3574 + $0x4] sm:$0xf]
      %v3577 = vld [vmem:[%s3574 + $0x8] sm:$0xf]
      %v3578 = vld [vmem:[%s3574 + $0xc] sm:$0xf]
      %v3581 = vunpack.c.l.b16 %v3227
      %v3582 = vunpack.c.l.b16 %v3228
      %v3583 = vpack.c.b16 %v3582, %v3581
      %v3588 = vunpack.c.l.b16 %v3575
      %v3589 = vunpack.c.l.b16 %v3576
      %v3590 = vunpack.c.l.b16 %v3577
      %v3591 = vunpack.c.l.b16 %v3578
      %v3592 = vpack.c.b16 %v3589, %v3588
      %v3593 = vpack.c.b16 %v3591, %v3590
      %v3597 = vsel %vm3006, %v3583, 0
      %3599 = vmatpush.bf16.msra.mxu0 0
      %3600 = vmatpush.bf16.msra.mxu0 0
      %3601 = vmatpush.bf16.msra.mxu0 0
      %3602 = vmatpush.bf16.msra.mxu0 0
      %3603 = vmatpush.bf16.msra.mxu0 0
      %3604 = vmatpush.bf16.msra.mxu0 0
      %3605 = vmatpush.bf16.msra.mxu0 %v3593
      %3606 = vmatpush.bf16.msra.mxu0 %v3592
      %3607 = vmatmul.bf16.gmra.mxu0 %v3309
      %v3608 = vpop.f32.mrf.mxu0
      %v3609 = vadd.f32 0.0, %v3608
      %v3610 = vpop.f32.mrf.mxu0
      %v3611 = vadd.f32 0.0, %v3610
      %3612 = vmatmul.bf16.gmra.mxu0 %v3312
      %v3613 = vpop.f32.mrf.mxu0
      %v3614 = vadd.f32 0.0, %v3613
      %v3615 = vpop.f32.mrf.mxu0
      %v3616 = vadd.f32 0.0, %v3615
      %3617 = vmatmul.bf16.gmra.mxu0 %v3315
      %v3618 = vpop.f32.mrf.mxu0
      %v3619 = vadd.f32 0.0, %v3618
      %v3620 = vpop.f32.mrf.mxu0
      %v3621 = vadd.f32 0.0, %v3620
      %3622 = vmatmul.bf16.gmra.mxu0 %v3318
      %v3623 = vpop.f32.mrf.mxu0
      %v3624 = vadd.f32 0.0, %v3623
      %v3625 = vpop.f32.mrf.mxu0
      %v3626 = vadd.f32 0.0, %v3625
      %3627 = vmatmul.bf16.gmra.mxu0 %v3321
      %v3628 = vpop.f32.mrf.mxu0
      %v3629 = vadd.f32 0.0, %v3628
      %v3630 = vpop.f32.mrf.mxu0
      %v3631 = vadd.f32 0.0, %v3630
      %3632 = vmatmul.bf16.gmra.mxu0 %v3324
      %v3633 = vpop.f32.mrf.mxu0
      %v3634 = vadd.f32 0.0, %v3633
      %v3635 = vpop.f32.mrf.mxu0
      %v3636 = vadd.f32 0.0, %v3635
      %3637 = vmatmul.bf16.gmra.mxu0 %v3327
      %v3638 = vpop.f32.mrf.mxu0
      %v3639 = vadd.f32 0.0, %v3638
      %v3640 = vpop.f32.mrf.mxu0
      %v3641 = vadd.f32 0.0, %v3640
      %3642 = vmatmul.bf16.gmra.mxu0 %v3330
      %v3643 = vpop.f32.mrf.mxu0
      %v3644 = vadd.f32 0.0, %v3643
      %v3645 = vpop.f32.mrf.mxu0
      %v3646 = vadd.f32 0.0, %v3645
      %3647 = vmatmul.bf16.gmra.mxu0 %v3493
      %v3648 = vpop.f32.mrf.mxu0
      %v3649 = vadd.f32 0.0, %v3648
      %v3650 = vpop.f32.mrf.mxu0
      %v3651 = vadd.f32 0.0, %v3650
      %3652 = vmatmul.bf16.gmra.mxu0 %v3597
      %v3653 = vpop.f32.mrf.mxu0
      %v3654 = vadd.f32 0.0, %v3653
      %v3655 = vpop.f32.mrf.mxu0
      %v3656 = vadd.f32 0.0, %v3655
      %3657 = vdwg.mxu0
      %v3658 = vadd.f32 %v3554, %v3609
      %v3659 = vadd.f32 %v3555, %v3611
      %v3660 = vadd.f32 %v3556, %v3614
      %v3661 = vadd.f32 %v3557, %v3616
      %v3662 = vadd.f32 %v3558, %v3619
      %v3663 = vadd.f32 %v3559, %v3621
      %v3664 = vadd.f32 %v3560, %v3624
      %v3665 = vadd.f32 %v3561, %v3626
      %v3666 = vadd.f32 %v3562, %v3629
      %v3667 = vadd.f32 %v3563, %v3631
      %v3668 = vadd.f32 %v3564, %v3634
      %v3669 = vadd.f32 %v3565, %v3636
      %v3670 = vadd.f32 %v3566, %v3639
      %v3671 = vadd.f32 %v3567, %v3641
      %v3672 = vadd.f32 %v3568, %v3644
      %v3673 = vadd.f32 %v3569, %v3646
      %v3674 = vadd.f32 %v3570, %v3649
      %v3675 = vadd.f32 %v3571, %v3651
      %v3676 = vadd.f32 %v3572, %v3654
      %v3677 = vadd.f32 %v3573, %v3656
      %s3678 = scalar_lea.vmem %s3, 320
      %v3679 = vld [vmem:[%s3678] sm:$0xf]
      %v3680 = vld [vmem:[%s3678 + $0x4] sm:$0xf]
      %v3681 = vld [vmem:[%s3678 + $0x8] sm:$0xf]
      %v3682 = vld [vmem:[%s3678 + $0xc] sm:$0xf]
      %v3685 = vunpack.c.l.b16 %v3229
      %v3686 = vunpack.c.l.b16 %v3230
      %v3687 = vpack.c.b16 %v3686, %v3685
      %v3692 = vunpack.c.l.b16 %v3679
      %v3693 = vunpack.c.l.b16 %v3680
      %v3694 = vunpack.c.l.b16 %v3681
      %v3695 = vunpack.c.l.b16 %v3682
      %v3696 = vpack.c.b16 %v3693, %v3692
      %v3697 = vpack.c.b16 %v3695, %v3694
      %v3701 = vsel %vm3006, %v3687, 0
      %3703 = vmatpush.bf16.msra.mxu0 0
      %3704 = vmatpush.bf16.msra.mxu0 0
      %3705 = vmatpush.bf16.msra.mxu0 0
      %3706 = vmatpush.bf16.msra.mxu0 0
      %3707 = vmatpush.bf16.msra.mxu0 0
      %3708 = vmatpush.bf16.msra.mxu0 0
      %3709 = vmatpush.bf16.msra.mxu0 %v3697
      %3710 = vmatpush.bf16.msra.mxu0 %v3696
      %3711 = vmatmul.bf16.gmra.mxu0 %v3312
      %v3712 = vpop.f32.mrf.mxu0
      %v3713 = vadd.f32 0.0, %v3712
      %v3714 = vpop.f32.mrf.mxu0
      %v3715 = vadd.f32 0.0, %v3714
      %3716 = vmatmul.bf16.gmra.mxu0 %v3315
      %v3717 = vpop.f32.mrf.mxu0
      %v3718 = vadd.f32 0.0, %v3717
      %v3719 = vpop.f32.mrf.mxu0
      %v3720 = vadd.f32 0.0, %v3719
      %3721 = vmatmul.bf16.gmra.mxu0 %v3318
      %v3722 = vpop.f32.mrf.mxu0
      %v3723 = vadd.f32 0.0, %v3722
      %v3724 = vpop.f32.mrf.mxu0
      %v3725 = vadd.f32 0.0, %v3724
      %3726 = vmatmul.bf16.gmra.mxu0 %v3321
      %v3727 = vpop.f32.mrf.mxu0
      %v3728 = vadd.f32 0.0, %v3727
      %v3729 = vpop.f32.mrf.mxu0
      %v3730 = vadd.f32 0.0, %v3729
      %3731 = vmatmul.bf16.gmra.mxu0 %v3324
      %v3732 = vpop.f32.mrf.mxu0
      %v3733 = vadd.f32 0.0, %v3732
      %v3734 = vpop.f32.mrf.mxu0
      %v3735 = vadd.f32 0.0, %v3734
      %3736 = vmatmul.bf16.gmra.mxu0 %v3327
      %v3737 = vpop.f32.mrf.mxu0
      %v3738 = vadd.f32 0.0, %v3737
      %v3739 = vpop.f32.mrf.mxu0
      %v3740 = vadd.f32 0.0, %v3739
      %3741 = vmatmul.bf16.gmra.mxu0 %v3330
      %v3742 = vpop.f32.mrf.mxu0
      %v3743 = vadd.f32 0.0, %v3742
      %v3744 = vpop.f32.mrf.mxu0
      %v3745 = vadd.f32 0.0, %v3744
      %3746 = vmatmul.bf16.gmra.mxu0 %v3493
      %v3747 = vpop.f32.mrf.mxu0
      %v3748 = vadd.f32 0.0, %v3747
      %v3749 = vpop.f32.mrf.mxu0
      %v3750 = vadd.f32 0.0, %v3749
      %3751 = vmatmul.bf16.gmra.mxu0 %v3597
      %v3752 = vpop.f32.mrf.mxu0
      %v3753 = vadd.f32 0.0, %v3752
      %v3754 = vpop.f32.mrf.mxu0
      %v3755 = vadd.f32 0.0, %v3754
      %3756 = vmatmul.bf16.gmra.mxu0 %v3701
      %v3757 = vpop.f32.mrf.mxu0
      %v3758 = vadd.f32 0.0, %v3757
      %v3759 = vpop.f32.mrf.mxu0
      %v3760 = vadd.f32 0.0, %v3759
      %3761 = vdwg.mxu0
      %v3762 = vadd.f32 %v3658, %v3713
      %v3763 = vadd.f32 %v3659, %v3715
      %v3764 = vadd.f32 %v3660, %v3718
      %v3765 = vadd.f32 %v3661, %v3720
      %v3766 = vadd.f32 %v3662, %v3723
      %v3767 = vadd.f32 %v3663, %v3725
      %v3768 = vadd.f32 %v3664, %v3728
      %v3769 = vadd.f32 %v3665, %v3730
      %v3770 = vadd.f32 %v3666, %v3733
      %v3771 = vadd.f32 %v3667, %v3735
      %v3772 = vadd.f32 %v3668, %v3738
      %v3773 = vadd.f32 %v3669, %v3740
      %v3774 = vadd.f32 %v3670, %v3743
      %v3775 = vadd.f32 %v3671, %v3745
      %v3776 = vadd.f32 %v3672, %v3748
      %v3777 = vadd.f32 %v3673, %v3750
      %v3778 = vadd.f32 %v3674, %v3753
      %v3779 = vadd.f32 %v3675, %v3755
      %v3780 = vadd.f32 %v3676, %v3758
      %v3781 = vadd.f32 %v3677, %v3760
      %s3782 = scalar_lea.vmem [#allocation2], 2
      %v3783 = vld [vmem:[%s3782] ss:$2 sm:$0xff]
      %s3784 = scalar_lea.vmem [#allocation2], 18
      %v3785 = vld [vmem:[%s3784] ss:$2 sm:$0xff]
      %s3786 = scalar_lea.vmem [#allocation2], 34
      %v3787 = vld [vmem:[%s3786] ss:$2 sm:$0xff]
      %s3788 = scalar_lea.vmem [#allocation2], 50
      %v3789 = vld [vmem:[%s3788] ss:$2 sm:$0xff]
      %s3790 = scalar_lea.vmem [#allocation2], 66
      %v3791 = vld [vmem:[%s3790] ss:$2 sm:$0xff]
      %s3792 = scalar_lea.vmem [#allocation2], 82
      %v3793 = vld [vmem:[%s3792] ss:$2 sm:$0xff]
      %s3794 = scalar_lea.vmem [#allocation2], 98
      %v3795 = vld [vmem:[%s3794] ss:$2 sm:$0xff]
      %s3796 = scalar_lea.vmem [#allocation2], 114
      %v3797 = vld [vmem:[%s3796] ss:$2 sm:$0xff]
      %s3798 = scalar_lea.vmem [#allocation2], 130
      %v3799 = vld [vmem:[%s3798] ss:$2 sm:$0xff]
      %s3800 = scalar_lea.vmem [#allocation2], 146
      %v3801 = vld [vmem:[%s3800] ss:$2 sm:$0xff]
      %s3802 = scalar_lea.vmem [#allocation2], 162
      %v3803 = vld [vmem:[%s3802] ss:$2 sm:$0xff]
      %s3804 = scalar_lea.vmem [#allocation2], 178
      %v3805 = vld [vmem:[%s3804] ss:$2 sm:$0xff]
      %s3806 = scalar_lea.vmem [#allocation2], 194
      %v3807 = vld [vmem:[%s3806] ss:$2 sm:$0xff]
      %s3808 = scalar_lea.vmem [#allocation2], 210
      %v3809 = vld [vmem:[%s3808] ss:$2 sm:$0xff]
      %s3810 = scalar_lea.vmem [#allocation2], 226
      %v3811 = vld [vmem:[%s3810] ss:$2 sm:$0xff]
      %s3812 = scalar_lea.vmem [#allocation2], 242
      %v3813 = vld [vmem:[%s3812] ss:$2 sm:$0xff]
      %s3814 = scalar_lea.vmem [#allocation2], 258
      %v3815 = vld [vmem:[%s3814] ss:$2 sm:$0xff]
      %s3816 = scalar_lea.vmem [#allocation2], 274
      %v3817 = vld [vmem:[%s3816] ss:$2 sm:$0xff]
      %s3818 = scalar_lea.vmem [#allocation2], 290
      %v3819 = vld [vmem:[%s3818] ss:$2 sm:$0xff]
      %s3820 = scalar_lea.vmem [#allocation2], 306
      %v3821 = vld [vmem:[%s3820] ss:$2 sm:$0xff]
      %s3822 = scalar_lea.vmem [#allocation2], 322
      %v3823 = vld [vmem:[%s3822] ss:$2 sm:$0xff]
      %s3824 = scalar_lea.vmem [#allocation2], 338
      %v3825 = vld [vmem:[%s3824] ss:$2 sm:$0xff]
      %s3826 = scalar_lea.vmem [#allocation2], 354
      %v3827 = vld [vmem:[%s3826] ss:$2 sm:$0xff]
      %s3828 = scalar_lea.vmem [#allocation2], 370
      %v3829 = vld [vmem:[%s3828] ss:$2 sm:$0xff]
      %s3830 = scalar_lea.vmem [#allocation2], 386
      %v3831 = vld [vmem:[%s3830] ss:$2 sm:$0xff]
      %s3832 = scalar_lea.vmem [#allocation2], 402
      %v3833 = vld [vmem:[%s3832] ss:$2 sm:$0xff]
      %s3834 = scalar_lea.vmem [#allocation2], 418
      %v3835 = vld [vmem:[%s3834] ss:$2 sm:$0xff]
      %s3836 = scalar_lea.vmem [#allocation2], 434
      %v3837 = vld [vmem:[%s3836] ss:$2 sm:$0xff]
      %s3838 = scalar_lea.vmem [#allocation2], 3
      %v3839 = vld [vmem:[%s3838] ss:$2 sm:$0xff]
      %s3840 = scalar_lea.vmem [#allocation2], 19
      %v3841 = vld [vmem:[%s3840] ss:$2 sm:$0xff]
      %s3842 = scalar_lea.vmem [#allocation2], 35
      %v3843 = vld [vmem:[%s3842] ss:$2 sm:$0xff]
      %s3844 = scalar_lea.vmem [#allocation2], 51
      %v3845 = vld [vmem:[%s3844] ss:$2 sm:$0xff]
      %s3846 = scalar_lea.vmem [#allocation2], 67
      %v3847 = vld [vmem:[%s3846] ss:$2 sm:$0xff]
      %s3848 = scalar_lea.vmem [#allocation2], 83
      %v3849 = vld [vmem:[%s3848] ss:$2 sm:$0xff]
      %s3850 = scalar_lea.vmem [#allocation2], 99
      %v3851 = vld [vmem:[%s3850] ss:$2 sm:$0xff]
      %s3852 = scalar_lea.vmem [#allocation2], 115
      %v3853 = vld [vmem:[%s3852] ss:$2 sm:$0xff]
      %s3854 = scalar_lea.vmem [#allocation2], 131
      %v3855 = vld [vmem:[%s3854] ss:$2 sm:$0xff]
      %s3856 = scalar_lea.vmem [#allocation2], 147
      %v3857 = vld [vmem:[%s3856] ss:$2 sm:$0xff]
      %s3858 = scalar_lea.vmem [#allocation2], 163
      %v3859 = vld [vmem:[%s3858] ss:$2 sm:$0xff]
      %s3860 = scalar_lea.vmem [#allocation2], 179
      %v3861 = vld [vmem:[%s3860] ss:$2 sm:$0xff]
      %s3862 = scalar_lea.vmem [#allocation2], 195
      %v3863 = vld [vmem:[%s3862] ss:$2 sm:$0xff]
      %s3864 = scalar_lea.vmem [#allocation2], 211
      %v3865 = vld [vmem:[%s3864] ss:$2 sm:$0xff]
      %s3866 = scalar_lea.vmem [#allocation2], 227
      %v3867 = vld [vmem:[%s3866] ss:$2 sm:$0xff]
      %s3868 = scalar_lea.vmem [#allocation2], 243
      %v3869 = vld [vmem:[%s3868] ss:$2 sm:$0xff]
      %s3870 = scalar_lea.vmem [#allocation2], 259
      %v3871 = vld [vmem:[%s3870] ss:$2 sm:$0xff]
      %s3872 = scalar_lea.vmem [#allocation2], 275
      %v3873 = vld [vmem:[%s3872] ss:$2 sm:$0xff]
      %s3874 = scalar_lea.vmem [#allocation2], 291
      %v3875 = vld [vmem:[%s3874] ss:$2 sm:$0xff]
      %s3876 = scalar_lea.vmem [#allocation2], 307
      %v3877 = vld [vmem:[%s3876] ss:$2 sm:$0xff]
      %s3878 = scalar_lea.vmem [#allocation2], 323
      %v3879 = vld [vmem:[%s3878] ss:$2 sm:$0xff]
      %s3880 = scalar_lea.vmem [#allocation2], 339
      %v3881 = vld [vmem:[%s3880] ss:$2 sm:$0xff]
      %s3882 = scalar_lea.vmem [#allocation2], 355
      %v3883 = vld [vmem:[%s3882] ss:$2 sm:$0xff]
      %s3884 = scalar_lea.vmem [#allocation2], 371
      %v3885 = vld [vmem:[%s3884] ss:$2 sm:$0xff]
      %s3886 = scalar_lea.vmem [#allocation2], 387
      %v3887 = vld [vmem:[%s3886] ss:$2 sm:$0xff]
      %s3888 = scalar_lea.vmem [#allocation2], 403
      %v3889 = vld [vmem:[%s3888] ss:$2 sm:$0xff]
      %s3890 = scalar_lea.vmem [#allocation2], 419
      %v3891 = vld [vmem:[%s3890] ss:$2 sm:$0xff]
      %s3892 = scalar_lea.vmem [#allocation2], 435
      %v3893 = vld [vmem:[%s3892] ss:$2 sm:$0xff]
      %v3894 = vmax.f32 %v3783, %v3839
      %v3895 = vmax.f32 %v3785, %v3841
      %v3896 = vmax.f32 %v3787, %v3843
      %v3897 = vmax.f32 %v3789, %v3845
      %v3898 = vmax.f32 %v3791, %v3847
      %v3899 = vmax.f32 %v3793, %v3849
      %v3900 = vmax.f32 %v3795, %v3851
      %v3901 = vmax.f32 %v3797, %v3853
      %v3902 = vmax.f32 %v3799, %v3855
      %v3903 = vmax.f32 %v3801, %v3857
      %v3904 = vmax.f32 %v3803, %v3859
      %v3905 = vmax.f32 %v3805, %v3861
      %v3906 = vmax.f32 %v3807, %v3863
      %v3907 = vmax.f32 %v3809, %v3865
      %v3908 = vmax.f32 %v3811, %v3867
      %v3909 = vmax.f32 %v3813, %v3869
      %v3910 = vmax.f32 %v3815, %v3871
      %v3911 = vmax.f32 %v3817, %v3873
      %v3912 = vmax.f32 %v3819, %v3875
      %v3913 = vmax.f32 %v3821, %v3877
      %v3914 = vmax.f32 %v3823, %v3879
      %v3915 = vmax.f32 %v3825, %v3881
      %v3916 = vmax.f32 %v3827, %v3883
      %v3917 = vmax.f32 %v3829, %v3885
      %v3918 = vmax.f32 %v3831, %v3887
      %v3919 = vmax.f32 %v3833, %v3889
      %v3920 = vmax.f32 %v3835, %v3891
      %v3921 = vmax.f32 %v3837, %v3893
      %v3922 = vpack.c.bf16 %v3894, %v3894
      %v3923 = vpack.c.bf16 %v3895, %v3895
      %v3924 = vpack.c.bf16 %v3896, %v3896
      %v3925 = vpack.c.bf16 %v3897, %v3897
      %v3926 = vpack.c.bf16 %v3898, %v3898
      %v3927 = vpack.c.bf16 %v3899, %v3899
      %v3928 = vpack.c.bf16 %v3900, %v3900
      %v3929 = vpack.c.bf16 %v3901, %v3901
      %v3930 = vpack.c.bf16 %v3902, %v3902
      %v3931 = vpack.c.bf16 %v3903, %v3903
      %v3932 = vpack.c.bf16 %v3904, %v3904
      %v3933 = vpack.c.bf16 %v3905, %v3905
      %v3934 = vpack.c.bf16 %v3906, %v3906
      %v3935 = vpack.c.bf16 %v3907, %v3907
      %v3936 = vpack.c.bf16 %v3908, %v3908
      %v3937 = vpack.c.bf16 %v3909, %v3909
      %v3938 = vpack.c.bf16 %v3910, %v3910
      %v3939 = vpack.c.bf16 %v3911, %v3911
      %v3940 = vpack.c.bf16 %v3912, %v3912
      %v3941 = vpack.c.bf16 %v3913, %v3913
      %v3942 = vpack.c.bf16 %v3914, %v3914
      %v3943 = vpack.c.bf16 %v3915, %v3915
      %v3944 = vpack.c.bf16 %v3916, %v3916
      %v3945 = vpack.c.bf16 %v3917, %v3917
      %v3946 = vpack.c.bf16 %v3918, %v3918
      %v3947 = vpack.c.bf16 %v3919, %v3919
      %v3948 = vpack.c.bf16 %v3920, %v3920
      %v3949 = vpack.c.bf16 %v3921, %v3921
      %s3950 = scalar_lea.vmem %s3, 16
      %v3951 = vld [vmem:[%s3950] sm:$0xf]
      %v3952 = vld [vmem:[%s3950 + $0x4] sm:$0xf]
      %v3953 = vld [vmem:[%s3950 + $0x8] sm:$0xf]
      %v3954 = vld [vmem:[%s3950 + $0xc] sm:$0xf]
      %v3975 = vunpack.c.l.b16 %v3922
      %v3976 = vunpack.c.l.b16 %v3923
      %v3977 = vunpack.c.l.b16 %v3924
      %v3978 = vunpack.c.l.b16 %v3925
      %v3979 = vunpack.c.l.b16 %v3926
      %v3980 = vunpack.c.l.b16 %v3927
      %v3981 = vunpack.c.l.b16 %v3928
      %v3982 = vunpack.c.l.b16 %v3929
      %v3983 = vunpack.c.l.b16 %v3930
      %v3984 = vunpack.c.l.b16 %v3931
      %v3985 = vunpack.c.l.b16 %v3932
      %v3986 = vunpack.c.l.b16 %v3933
      %v3987 = vunpack.c.l.b16 %v3934
      %v3988 = vunpack.c.l.b16 %v3935
      %v3989 = vunpack.c.l.b16 %v3936
      %v3990 = vunpack.c.l.b16 %v3937
      %v3991 = vunpack.c.l.b16 %v3938
      %v3992 = vunpack.c.l.b16 %v3939
      %v3993 = vunpack.c.l.b16 %v3940
      %v3994 = vunpack.c.l.b16 %v3941
      %v3995 = vpack.c.b16 %v3976, %v3975
      %v3996 = vpack.c.b16 %v3978, %v3977
      %v3997 = vpack.c.b16 %v3980, %v3979
      %v3998 = vpack.c.b16 %v3982, %v3981
      %v3999 = vpack.c.b16 %v3984, %v3983
      %v4000 = vpack.c.b16 %v3986, %v3985
      %v4001 = vpack.c.b16 %v3988, %v3987
      %v4002 = vpack.c.b16 %v3990, %v3989
      %v4003 = vpack.c.b16 %v3992, %v3991
      %v4004 = vpack.c.b16 %v3994, %v3993
      %v4009 = vunpack.c.l.b16 %v3951
      %v4010 = vunpack.c.l.b16 %v3952
      %v4011 = vunpack.c.l.b16 %v3953
      %v4012 = vunpack.c.l.b16 %v3954
      %v4013 = vpack.c.b16 %v4010, %v4009
      %v4014 = vpack.c.b16 %v4012, %v4011
      %v4018 = vsel %vm3006, %v3995, 0
      %v4021 = vsel %vm3006, %v3996, 0
      %v4024 = vsel %vm3006, %v3997, 0
      %v4027 = vsel %vm3006, %v3998, 0
      %v4030 = vsel %vm3006, %v3999, 0
      %v4033 = vsel %vm3006, %v4000, 0
      %v4036 = vsel %vm3006, %v4001, 0
      %v4039 = vsel %vm3006, %v4002, 0
      %v4042 = vsel %vm3006, %v4003, 0
      %v4045 = vsel %vm3006, %v4004, 0
      %4047 = vmatpush.bf16.msra.mxu0 0
      %4048 = vmatpush.bf16.msra.mxu0 0
      %4049 = vmatpush.bf16.msra.mxu0 0
      %4050 = vmatpush.bf16.msra.mxu0 0
      %4051 = vmatpush.bf16.msra.mxu0 0
      %4052 = vmatpush.bf16.msra.mxu0 0
      %4053 = vmatpush.bf16.msra.mxu0 %v4014
      %4054 = vmatpush.bf16.msra.mxu0 %v4013
      %4055 = vmatmul.bf16.gmra.mxu0 %v4018
      %v4056 = vpop.f32.mrf.mxu0
      %v4057 = vadd.f32 0.0, %v4056
      %v4058 = vpop.f32.mrf.mxu0
      %v4059 = vadd.f32 0.0, %v4058
      %4060 = vmatmul.bf16.gmra.mxu0 %v4021
      %v4061 = vpop.f32.mrf.mxu0
      %v4062 = vadd.f32 0.0, %v4061
      %v4063 = vpop.f32.mrf.mxu0
      %v4064 = vadd.f32 0.0, %v4063
      %4065 = vmatmul.bf16.gmra.mxu0 %v4024
      %v4066 = vpop.f32.mrf.mxu0
      %v4067 = vadd.f32 0.0, %v4066
      %v4068 = vpop.f32.mrf.mxu0
      %v4069 = vadd.f32 0.0, %v4068
      %4070 = vmatmul.bf16.gmra.mxu0 %v4027
      %v4071 = vpop.f32.mrf.mxu0
      %v4072 = vadd.f32 0.0, %v4071
      %v4073 = vpop.f32.mrf.mxu0
      %v4074 = vadd.f32 0.0, %v4073
      %4075 = vmatmul.bf16.gmra.mxu0 %v4030
      %v4076 = vpop.f32.mrf.mxu0
      %v4077 = vadd.f32 0.0, %v4076
      %v4078 = vpop.f32.mrf.mxu0
      %v4079 = vadd.f32 0.0, %v4078
      %4080 = vmatmul.bf16.gmra.mxu0 %v4033
      %v4081 = vpop.f32.mrf.mxu0
      %v4082 = vadd.f32 0.0, %v4081
      %v4083 = vpop.f32.mrf.mxu0
      %v4084 = vadd.f32 0.0, %v4083
      %4085 = vmatmul.bf16.gmra.mxu0 %v4036
      %v4086 = vpop.f32.mrf.mxu0
      %v4087 = vadd.f32 0.0, %v4086
      %v4088 = vpop.f32.mrf.mxu0
      %v4089 = vadd.f32 0.0, %v4088
      %4090 = vmatmul.bf16.gmra.mxu0 %v4039
      %v4091 = vpop.f32.mrf.mxu0
      %v4092 = vadd.f32 0.0, %v4091
      %v4093 = vpop.f32.mrf.mxu0
      %v4094 = vadd.f32 0.0, %v4093
      %4095 = vmatmul.bf16.gmra.mxu0 %v4042
      %v4096 = vpop.f32.mrf.mxu0
      %v4097 = vadd.f32 0.0, %v4096
      %v4098 = vpop.f32.mrf.mxu0
      %v4099 = vadd.f32 0.0, %v4098
      %4100 = vmatmul.bf16.gmra.mxu0 %v4045
      %v4101 = vpop.f32.mrf.mxu0
      %v4102 = vadd.f32 0.0, %v4101
      %v4103 = vpop.f32.mrf.mxu0
      %v4104 = vadd.f32 0.0, %v4103
      %4105 = vdwg.mxu0
      %v4106 = vadd.f32 %v3762, %v4057
      %v4107 = vadd.f32 %v3763, %v4059
      %v4108 = vadd.f32 %v3764, %v4062
      %v4109 = vadd.f32 %v3765, %v4064
      %v4110 = vadd.f32 %v3766, %v4067
      %v4111 = vadd.f32 %v3767, %v4069
      %v4112 = vadd.f32 %v3768, %v4072
      %v4113 = vadd.f32 %v3769, %v4074
      %v4114 = vadd.f32 %v3770, %v4077
      %v4115 = vadd.f32 %v3771, %v4079
      %v4116 = vadd.f32 %v3772, %v4082
      %v4117 = vadd.f32 %v3773, %v4084
      %v4118 = vadd.f32 %v3774, %v4087
      %v4119 = vadd.f32 %v3775, %v4089
      %v4120 = vadd.f32 %v3776, %v4092
      %v4121 = vadd.f32 %v3777, %v4094
      %v4122 = vadd.f32 %v3778, %v4097
      %v4123 = vadd.f32 %v3779, %v4099
      %v4124 = vadd.f32 %v3780, %v4102
      %v4125 = vadd.f32 %v3781, %v4104
      %s4126 = scalar_lea.vmem %s3, 96
      %v4127 = vld [vmem:[%s4126] sm:$0xf]
      %v4128 = vld [vmem:[%s4126 + $0x4] sm:$0xf]
      %v4129 = vld [vmem:[%s4126 + $0x8] sm:$0xf]
      %v4130 = vld [vmem:[%s4126 + $0xc] sm:$0xf]
      %v4133 = vunpack.c.l.b16 %v3942
      %v4134 = vunpack.c.l.b16 %v3943
      %v4135 = vpack.c.b16 %v4134, %v4133
      %v4140 = vunpack.c.l.b16 %v4127
      %v4141 = vunpack.c.l.b16 %v4128
      %v4142 = vunpack.c.l.b16 %v4129
      %v4143 = vunpack.c.l.b16 %v4130
      %v4144 = vpack.c.b16 %v4141, %v4140
      %v4145 = vpack.c.b16 %v4143, %v4142
      %v4149 = vsel %vm3006, %v4135, 0
      %4151 = vmatpush.bf16.msra.mxu0 0
      %4152 = vmatpush.bf16.msra.mxu0 0
      %4153 = vmatpush.bf16.msra.mxu0 0
      %4154 = vmatpush.bf16.msra.mxu0 0
      %4155 = vmatpush.bf16.msra.mxu0 0
      %4156 = vmatpush.bf16.msra.mxu0 0
      %4157 = vmatpush.bf16.msra.mxu0 %v4145
      %4158 = vmatpush.bf16.msra.mxu0 %v4144
      %4159 = vmatmul.bf16.gmra.mxu0 %v4021
      %v4160 = vpop.f32.mrf.mxu0
      %v4161 = vadd.f32 0.0, %v4160
      %v4162 = vpop.f32.mrf.mxu0
      %v4163 = vadd.f32 0.0, %v4162
      %4164 = vmatmul.bf16.gmra.mxu0 %v4024
      %v4165 = vpop.f32.mrf.mxu0
      %v4166 = vadd.f32 0.0, %v4165
      %v4167 = vpop.f32.mrf.mxu0
      %v4168 = vadd.f32 0.0, %v4167
      %4169 = vmatmul.bf16.gmra.mxu0 %v4027
      %v4170 = vpop.f32.mrf.mxu0
      %v4171 = vadd.f32 0.0, %v4170
      %v4172 = vpop.f32.mrf.mxu0
      %v4173 = vadd.f32 0.0, %v4172
      %4174 = vmatmul.bf16.gmra.mxu0 %v4030
      %v4175 = vpop.f32.mrf.mxu0
      %v4176 = vadd.f32 0.0, %v4175
      %v4177 = vpop.f32.mrf.mxu0
      %v4178 = vadd.f32 0.0, %v4177
      %4179 = vmatmul.bf16.gmra.mxu0 %v4033
      %v4180 = vpop.f32.mrf.mxu0
      %v4181 = vadd.f32 0.0, %v4180
      %v4182 = vpop.f32.mrf.mxu0
      %v4183 = vadd.f32 0.0, %v4182
      %4184 = vmatmul.bf16.gmra.mxu0 %v4036
      %v4185 = vpop.f32.mrf.mxu0
      %v4186 = vadd.f32 0.0, %v4185
      %v4187 = vpop.f32.mrf.mxu0
      %v4188 = vadd.f32 0.0, %v4187
      %4189 = vmatmul.bf16.gmra.mxu0 %v4039
      %v4190 = vpop.f32.mrf.mxu0
      %v4191 = vadd.f32 0.0, %v4190
      %v4192 = vpop.f32.mrf.mxu0
      %v4193 = vadd.f32 0.0, %v4192
      %4194 = vmatmul.bf16.gmra.mxu0 %v4042
      %v4195 = vpop.f32.mrf.mxu0
      %v4196 = vadd.f32 0.0, %v4195
      %v4197 = vpop.f32.mrf.mxu0
      %v4198 = vadd.f32 0.0, %v4197
      %4199 = vmatmul.bf16.gmra.mxu0 %v4045
      %v4200 = vpop.f32.mrf.mxu0
      %v4201 = vadd.f32 0.0, %v4200
      %v4202 = vpop.f32.mrf.mxu0
      %v4203 = vadd.f32 0.0, %v4202
      %4204 = vmatmul.bf16.gmra.mxu0 %v4149
      %v4205 = vpop.f32.mrf.mxu0
      %v4206 = vadd.f32 0.0, %v4205
      %v4207 = vpop.f32.mrf.mxu0
      %v4208 = vadd.f32 0.0, %v4207
      %4209 = vdwg.mxu0
      %v4210 = vadd.f32 %v4106, %v4161
      %v4211 = vadd.f32 %v4107, %v4163
      %v4212 = vadd.f32 %v4108, %v4166
      %v4213 = vadd.f32 %v4109, %v4168
      %v4214 = vadd.f32 %v4110, %v4171
      %v4215 = vadd.f32 %v4111, %v4173
      %v4216 = vadd.f32 %v4112, %v4176
      %v4217 = vadd.f32 %v4113, %v4178
      %v4218 = vadd.f32 %v4114, %v4181
      %v4219 = vadd.f32 %v4115, %v4183
      %v4220 = vadd.f32 %v4116, %v4186
      %v4221 = vadd.f32 %v4117, %v4188
      %v4222 = vadd.f32 %v4118, %v4191
      %v4223 = vadd.f32 %v4119, %v4193
      %v4224 = vadd.f32 %v4120, %v4196
      %v4225 = vadd.f32 %v4121, %v4198
      %v4226 = vadd.f32 %v4122, %v4201
      %v4227 = vadd.f32 %v4123, %v4203
      %v4228 = vadd.f32 %v4124, %v4206
      %v4229 = vadd.f32 %v4125, %v4208
      %s4230 = scalar_lea.vmem %s3, 176
      %v4231 = vld [vmem:[%s4230] sm:$0xf]
      %v4232 = vld [vmem:[%s4230 + $0x4] sm:$0xf]
      %v4233 = vld [vmem:[%s4230 + $0x8] sm:$0xf]
      %v4234 = vld [vmem:[%s4230 + $0xc] sm:$0xf]
      %v4237 = vunpack.c.l.b16 %v3944
      %v4238 = vunpack.c.l.b16 %v3945
      %v4239 = vpack.c.b16 %v4238, %v4237
      %v4244 = vunpack.c.l.b16 %v4231
      %v4245 = vunpack.c.l.b16 %v4232
      %v4246 = vunpack.c.l.b16 %v4233
      %v4247 = vunpack.c.l.b16 %v4234
      %v4248 = vpack.c.b16 %v4245, %v4244
      %v4249 = vpack.c.b16 %v4247, %v4246
      %v4253 = vsel %vm3006, %v4239, 0
      %4255 = vmatpush.bf16.msra.mxu0 0
      %4256 = vmatpush.bf16.msra.mxu0 0
      %4257 = vmatpush.bf16.msra.mxu0 0
      %4258 = vmatpush.bf16.msra.mxu0 0
      %4259 = vmatpush.bf16.msra.mxu0 0
      %4260 = vmatpush.bf16.msra.mxu0 0
      %4261 = vmatpush.bf16.msra.mxu0 %v4249
      %4262 = vmatpush.bf16.msra.mxu0 %v4248
      %4263 = vmatmul.bf16.gmra.mxu0 %v4024
      %v4264 = vpop.f32.mrf.mxu0
      %v4265 = vadd.f32 0.0, %v4264
      %v4266 = vpop.f32.mrf.mxu0
      %v4267 = vadd.f32 0.0, %v4266
      %4268 = vmatmul.bf16.gmra.mxu0 %v4027
      %v4269 = vpop.f32.mrf.mxu0
      %v4270 = vadd.f32 0.0, %v4269
      %v4271 = vpop.f32.mrf.mxu0
      %v4272 = vadd.f32 0.0, %v4271
      %4273 = vmatmul.bf16.gmra.mxu0 %v4030
      %v4274 = vpop.f32.mrf.mxu0
      %v4275 = vadd.f32 0.0, %v4274
      %v4276 = vpop.f32.mrf.mxu0
      %v4277 = vadd.f32 0.0, %v4276
      %4278 = vmatmul.bf16.gmra.mxu0 %v4033
      %v4279 = vpop.f32.mrf.mxu0
      %v4280 = vadd.f32 0.0, %v4279
      %v4281 = vpop.f32.mrf.mxu0
      %v4282 = vadd.f32 0.0, %v4281
      %4283 = vmatmul.bf16.gmra.mxu0 %v4036
      %v4284 = vpop.f32.mrf.mxu0
      %v4285 = vadd.f32 0.0, %v4284
      %v4286 = vpop.f32.mrf.mxu0
      %v4287 = vadd.f32 0.0, %v4286
      %4288 = vmatmul.bf16.gmra.mxu0 %v4039
      %v4289 = vpop.f32.mrf.mxu0
      %v4290 = vadd.f32 0.0, %v4289
      %v4291 = vpop.f32.mrf.mxu0
      %v4292 = vadd.f32 0.0, %v4291
      %4293 = vmatmul.bf16.gmra.mxu0 %v4042
      %v4294 = vpop.f32.mrf.mxu0
      %v4295 = vadd.f32 0.0, %v4294
      %v4296 = vpop.f32.mrf.mxu0
      %v4297 = vadd.f32 0.0, %v4296
      %4298 = vmatmul.bf16.gmra.mxu0 %v4045
      %v4299 = vpop.f32.mrf.mxu0
      %v4300 = vadd.f32 0.0, %v4299
      %v4301 = vpop.f32.mrf.mxu0
      %v4302 = vadd.f32 0.0, %v4301
      %4303 = vmatmul.bf16.gmra.mxu0 %v4149
      %v4304 = vpop.f32.mrf.mxu0
      %v4305 = vadd.f32 0.0, %v4304
      %v4306 = vpop.f32.mrf.mxu0
      %v4307 = vadd.f32 0.0, %v4306
      %4308 = vmatmul.bf16.gmra.mxu0 %v4253
      %v4309 = vpop.f32.mrf.mxu0
      %v4310 = vadd.f32 0.0, %v4309
      %v4311 = vpop.f32.mrf.mxu0
      %v4312 = vadd.f32 0.0, %v4311
      %4313 = vdwg.mxu0
      %v4314 = vadd.f32 %v4210, %v4265
      %v4315 = vadd.f32 %v4211, %v4267
      %v4316 = vadd.f32 %v4212, %v4270
      %v4317 = vadd.f32 %v4213, %v4272
      %v4318 = vadd.f32 %v4214, %v4275
      %v4319 = vadd.f32 %v4215, %v4277
      %v4320 = vadd.f32 %v4216, %v4280
      %v4321 = vadd.f32 %v4217, %v4282
      %v4322 = vadd.f32 %v4218, %v4285
      %v4323 = vadd.f32 %v4219, %v4287
      %v4324 = vadd.f32 %v4220, %v4290
      %v4325 = vadd.f32 %v4221, %v4292
      %v4326 = vadd.f32 %v4222, %v4295
      %v4327 = vadd.f32 %v4223, %v4297
      %v4328 = vadd.f32 %v4224, %v4300
      %v4329 = vadd.f32 %v4225, %v4302
      %v4330 = vadd.f32 %v4226, %v4305
      %v4331 = vadd.f32 %v4227, %v4307
      %v4332 = vadd.f32 %v4228, %v4310
      %v4333 = vadd.f32 %v4229, %v4312
      %s4334 = scalar_lea.vmem %s3, 256
      %v4335 = vld [vmem:[%s4334] sm:$0xf]
      %v4336 = vld [vmem:[%s4334 + $0x4] sm:$0xf]
      %v4337 = vld [vmem:[%s4334 + $0x8] sm:$0xf]
      %v4338 = vld [vmem:[%s4334 + $0xc] sm:$0xf]
      %v4341 = vunpack.c.l.b16 %v3946
      %v4342 = vunpack.c.l.b16 %v3947
      %v4343 = vpack.c.b16 %v4342, %v4341
      %v4348 = vunpack.c.l.b16 %v4335
      %v4349 = vunpack.c.l.b16 %v4336
      %v4350 = vunpack.c.l.b16 %v4337
      %v4351 = vunpack.c.l.b16 %v4338
      %v4352 = vpack.c.b16 %v4349, %v4348
      %v4353 = vpack.c.b16 %v4351, %v4350
      %v4357 = vsel %vm3006, %v4343, 0
      %4359 = vmatpush.bf16.msra.mxu0 0
      %4360 = vmatpush.bf16.msra.mxu0 0
      %4361 = vmatpush.bf16.msra.mxu0 0
      %4362 = vmatpush.bf16.msra.mxu0 0
      %4363 = vmatpush.bf16.msra.mxu0 0
      %4364 = vmatpush.bf16.msra.mxu0 0
      %4365 = vmatpush.bf16.msra.mxu0 %v4353
      %4366 = vmatpush.bf16.msra.mxu0 %v4352
      %4367 = vmatmul.bf16.gmra.mxu0 %v4027
      %v4368 = vpop.f32.mrf.mxu0
      %v4369 = vadd.f32 0.0, %v4368
      %v4370 = vpop.f32.mrf.mxu0
      %v4371 = vadd.f32 0.0, %v4370
      %4372 = vmatmul.bf16.gmra.mxu0 %v4030
      %v4373 = vpop.f32.mrf.mxu0
      %v4374 = vadd.f32 0.0, %v4373
      %v4375 = vpop.f32.mrf.mxu0
      %v4376 = vadd.f32 0.0, %v4375
      %4377 = vmatmul.bf16.gmra.mxu0 %v4033
      %v4378 = vpop.f32.mrf.mxu0
      %v4379 = vadd.f32 0.0, %v4378
      %v4380 = vpop.f32.mrf.mxu0
      %v4381 = vadd.f32 0.0, %v4380
      %4382 = vmatmul.bf16.gmra.mxu0 %v4036
      %v4383 = vpop.f32.mrf.mxu0
      %v4384 = vadd.f32 0.0, %v4383
      %v4385 = vpop.f32.mrf.mxu0
      %v4386 = vadd.f32 0.0, %v4385
      %4387 = vmatmul.bf16.gmra.mxu0 %v4039
      %v4388 = vpop.f32.mrf.mxu0
      %v4389 = vadd.f32 0.0, %v4388
      %v4390 = vpop.f32.mrf.mxu0
      %v4391 = vadd.f32 0.0, %v4390
      %4392 = vmatmul.bf16.gmra.mxu0 %v4042
      %v4393 = vpop.f32.mrf.mxu0
      %v4394 = vadd.f32 0.0, %v4393
      %v4395 = vpop.f32.mrf.mxu0
      %v4396 = vadd.f32 0.0, %v4395
      %4397 = vmatmul.bf16.gmra.mxu0 %v4045
      %v4398 = vpop.f32.mrf.mxu0
      %v4399 = vadd.f32 0.0, %v4398
      %v4400 = vpop.f32.mrf.mxu0
      %v4401 = vadd.f32 0.0, %v4400
      %4402 = vmatmul.bf16.gmra.mxu0 %v4149
      %v4403 = vpop.f32.mrf.mxu0
      %v4404 = vadd.f32 0.0, %v4403
      %v4405 = vpop.f32.mrf.mxu0
      %v4406 = vadd.f32 0.0, %v4405
      %4407 = vmatmul.bf16.gmra.mxu0 %v4253
      %v4408 = vpop.f32.mrf.mxu0
      %v4409 = vadd.f32 0.0, %v4408
      %v4410 = vpop.f32.mrf.mxu0
      %v4411 = vadd.f32 0.0, %v4410
      %4412 = vmatmul.bf16.gmra.mxu0 %v4357
      %v4413 = vpop.f32.mrf.mxu0
      %v4414 = vadd.f32 0.0, %v4413
      %v4415 = vpop.f32.mrf.mxu0
      %v4416 = vadd.f32 0.0, %v4415
      %4417 = vdwg.mxu0
      %v4418 = vadd.f32 %v4314, %v4369
      %v4419 = vadd.f32 %v4315, %v4371
      %v4420 = vadd.f32 %v4316, %v4374
      %v4421 = vadd.f32 %v4317, %v4376
      %v4422 = vadd.f32 %v4318, %v4379
      %v4423 = vadd.f32 %v4319, %v4381
      %v4424 = vadd.f32 %v4320, %v4384
      %v4425 = vadd.f32 %v4321, %v4386
      %v4426 = vadd.f32 %v4322, %v4389
      %v4427 = vadd.f32 %v4323, %v4391
      %v4428 = vadd.f32 %v4324, %v4394
      %v4429 = vadd.f32 %v4325, %v4396
      %v4430 = vadd.f32 %v4326, %v4399
      %v4431 = vadd.f32 %v4327, %v4401
      %v4432 = vadd.f32 %v4328, %v4404
      %v4433 = vadd.f32 %v4329, %v4406
      %v4434 = vadd.f32 %v4330, %v4409
      %v4435 = vadd.f32 %v4331, %v4411
      %v4436 = vadd.f32 %v4332, %v4414
      %v4437 = vadd.f32 %v4333, %v4416
      %s4438 = scalar_lea.vmem %s3, 336
      %v4439 = vld [vmem:[%s4438] sm:$0xf]
      %v4440 = vld [vmem:[%s4438 + $0x4] sm:$0xf]
      %v4441 = vld [vmem:[%s4438 + $0x8] sm:$0xf]
      %v4442 = vld [vmem:[%s4438 + $0xc] sm:$0xf]
      %v4445 = vunpack.c.l.b16 %v3948
      %v4446 = vunpack.c.l.b16 %v3949
      %v4447 = vpack.c.b16 %v4446, %v4445
      %v4452 = vunpack.c.l.b16 %v4439
      %v4453 = vunpack.c.l.b16 %v4440
      %v4454 = vunpack.c.l.b16 %v4441
      %v4455 = vunpack.c.l.b16 %v4442
      %v4456 = vpack.c.b16 %v4453, %v4452
      %v4457 = vpack.c.b16 %v4455, %v4454
      %v4461 = vsel %vm3006, %v4447, 0
      %4463 = vmatpush.bf16.msra.mxu0 0
      %4464 = vmatpush.bf16.msra.mxu0 0
      %4465 = vmatpush.bf16.msra.mxu0 0
      %4466 = vmatpush.bf16.msra.mxu0 0
      %4467 = vmatpush.bf16.msra.mxu0 0
      %4468 = vmatpush.bf16.msra.mxu0 0
      %4469 = vmatpush.bf16.msra.mxu0 %v4457
      %4470 = vmatpush.bf16.msra.mxu0 %v4456
      %4471 = vmatmul.bf16.gmra.mxu0 %v4030
      %v4472 = vpop.f32.mrf.mxu0
      %v4473 = vadd.f32 0.0, %v4472
      %v4474 = vpop.f32.mrf.mxu0
      %v4475 = vadd.f32 0.0, %v4474
      %4476 = vmatmul.bf16.gmra.mxu0 %v4033
      %v4477 = vpop.f32.mrf.mxu0
      %v4478 = vadd.f32 0.0, %v4477
      %v4479 = vpop.f32.mrf.mxu0
      %v4480 = vadd.f32 0.0, %v4479
      %4481 = vmatmul.bf16.gmra.mxu0 %v4036
      %v4482 = vpop.f32.mrf.mxu0
      %v4483 = vadd.f32 0.0, %v4482
      %v4484 = vpop.f32.mrf.mxu0
      %v4485 = vadd.f32 0.0, %v4484
      %4486 = vmatmul.bf16.gmra.mxu0 %v4039
      %v4487 = vpop.f32.mrf.mxu0
      %v4488 = vadd.f32 0.0, %v4487
      %v4489 = vpop.f32.mrf.mxu0
      %v4490 = vadd.f32 0.0, %v4489
      %4491 = vmatmul.bf16.gmra.mxu0 %v4042
      %v4492 = vpop.f32.mrf.mxu0
      %v4493 = vadd.f32 0.0, %v4492
      %v4494 = vpop.f32.mrf.mxu0
      %v4495 = vadd.f32 0.0, %v4494
      %4496 = vmatmul.bf16.gmra.mxu0 %v4045
      %v4497 = vpop.f32.mrf.mxu0
      %v4498 = vadd.f32 0.0, %v4497
      %v4499 = vpop.f32.mrf.mxu0
      %v4500 = vadd.f32 0.0, %v4499
      %4501 = vmatmul.bf16.gmra.mxu0 %v4149
      %v4502 = vpop.f32.mrf.mxu0
      %v4503 = vadd.f32 0.0, %v4502
      %v4504 = vpop.f32.mrf.mxu0
      %v4505 = vadd.f32 0.0, %v4504
      %4506 = vmatmul.bf16.gmra.mxu0 %v4253
      %v4507 = vpop.f32.mrf.mxu0
      %v4508 = vadd.f32 0.0, %v4507
      %v4509 = vpop.f32.mrf.mxu0
      %v4510 = vadd.f32 0.0, %v4509
      %4511 = vmatmul.bf16.gmra.mxu0 %v4357
      %v4512 = vpop.f32.mrf.mxu0
      %v4513 = vadd.f32 0.0, %v4512
      %v4514 = vpop.f32.mrf.mxu0
      %v4515 = vadd.f32 0.0, %v4514
      %4516 = vmatmul.bf16.gmra.mxu0 %v4461
      %v4517 = vpop.f32.mrf.mxu0
      %v4518 = vadd.f32 0.0, %v4517
      %v4519 = vpop.f32.mrf.mxu0
      %v4520 = vadd.f32 0.0, %v4519
      %4521 = vdwg.mxu0
      %v4522 = vadd.f32 %v4418, %v4473
      %v4523 = vadd.f32 %v4419, %v4475
      %v4524 = vadd.f32 %v4420, %v4478
      %v4525 = vadd.f32 %v4421, %v4480
      %v4526 = vadd.f32 %v4422, %v4483
      %v4527 = vadd.f32 %v4423, %v4485
      %v4528 = vadd.f32 %v4424, %v4488
      %v4529 = vadd.f32 %v4425, %v4490
      %v4530 = vadd.f32 %v4426, %v4493
      %v4531 = vadd.f32 %v4427, %v4495
      %v4532 = vadd.f32 %v4428, %v4498
      %v4533 = vadd.f32 %v4429, %v4500
      %v4534 = vadd.f32 %v4430, %v4503
      %v4535 = vadd.f32 %v4431, %v4505
      %v4536 = vadd.f32 %v4432, %v4508
      %v4537 = vadd.f32 %v4433, %v4510
      %v4538 = vadd.f32 %v4434, %v4513
      %v4539 = vadd.f32 %v4435, %v4515
      %v4540 = vadd.f32 %v4436, %v4518
      %v4541 = vadd.f32 %v4437, %v4520
      %s4542 = scalar_lea.vmem [#allocation2], 4
      %v4543 = vld [vmem:[%s4542] ss:$2 sm:$0xff]
      %s4544 = scalar_lea.vmem [#allocation2], 20
      %v4545 = vld [vmem:[%s4544] ss:$2 sm:$0xff]
      %s4546 = scalar_lea.vmem [#allocation2], 36
      %v4547 = vld [vmem:[%s4546] ss:$2 sm:$0xff]
      %s4548 = scalar_lea.vmem [#allocation2], 52
      %v4549 = vld [vmem:[%s4548] ss:$2 sm:$0xff]
      %s4550 = scalar_lea.vmem [#allocation2], 68
      %v4551 = vld [vmem:[%s4550] ss:$2 sm:$0xff]
      %s4552 = scalar_lea.vmem [#allocation2], 84
      %v4553 = vld [vmem:[%s4552] ss:$2 sm:$0xff]
      %s4554 = scalar_lea.vmem [#allocation2], 100
      %v4555 = vld [vmem:[%s4554] ss:$2 sm:$0xff]
      %s4556 = scalar_lea.vmem [#allocation2], 116
      %v4557 = vld [vmem:[%s4556] ss:$2 sm:$0xff]
      %s4558 = scalar_lea.vmem [#allocation2], 132
      %v4559 = vld [vmem:[%s4558] ss:$2 sm:$0xff]
      %s4560 = scalar_lea.vmem [#allocation2], 148
      %v4561 = vld [vmem:[%s4560] ss:$2 sm:$0xff]
      %s4562 = scalar_lea.vmem [#allocation2], 164
      %v4563 = vld [vmem:[%s4562] ss:$2 sm:$0xff]
      %s4564 = scalar_lea.vmem [#allocation2], 180
      %v4565 = vld [vmem:[%s4564] ss:$2 sm:$0xff]
      %s4566 = scalar_lea.vmem [#allocation2], 196
      %v4567 = vld [vmem:[%s4566] ss:$2 sm:$0xff]
      %s4568 = scalar_lea.vmem [#allocation2], 212
      %v4569 = vld [vmem:[%s4568] ss:$2 sm:$0xff]
      %s4570 = scalar_lea.vmem [#allocation2], 228
      %v4571 = vld [vmem:[%s4570] ss:$2 sm:$0xff]
      %s4572 = scalar_lea.vmem [#allocation2], 244
      %v4573 = vld [vmem:[%s4572] ss:$2 sm:$0xff]
      %s4574 = scalar_lea.vmem [#allocation2], 260
      %v4575 = vld [vmem:[%s4574] ss:$2 sm:$0xff]
      %s4576 = scalar_lea.vmem [#allocation2], 276
      %v4577 = vld [vmem:[%s4576] ss:$2 sm:$0xff]
      %s4578 = scalar_lea.vmem [#allocation2], 292
      %v4579 = vld [vmem:[%s4578] ss:$2 sm:$0xff]
      %s4580 = scalar_lea.vmem [#allocation2], 308
      %v4581 = vld [vmem:[%s4580] ss:$2 sm:$0xff]
      %s4582 = scalar_lea.vmem [#allocation2], 324
      %v4583 = vld [vmem:[%s4582] ss:$2 sm:$0xff]
      %s4584 = scalar_lea.vmem [#allocation2], 340
      %v4585 = vld [vmem:[%s4584] ss:$2 sm:$0xff]
      %s4586 = scalar_lea.vmem [#allocation2], 356
      %v4587 = vld [vmem:[%s4586] ss:$2 sm:$0xff]
      %s4588 = scalar_lea.vmem [#allocation2], 372
      %v4589 = vld [vmem:[%s4588] ss:$2 sm:$0xff]
      %s4590 = scalar_lea.vmem [#allocation2], 388
      %v4591 = vld [vmem:[%s4590] ss:$2 sm:$0xff]
      %s4592 = scalar_lea.vmem [#allocation2], 404
      %v4593 = vld [vmem:[%s4592] ss:$2 sm:$0xff]
      %s4594 = scalar_lea.vmem [#allocation2], 420
      %v4595 = vld [vmem:[%s4594] ss:$2 sm:$0xff]
      %s4596 = scalar_lea.vmem [#allocation2], 436
      %v4597 = vld [vmem:[%s4596] ss:$2 sm:$0xff]
      %s4598 = scalar_lea.vmem [#allocation2], 5
      %v4599 = vld [vmem:[%s4598] ss:$2 sm:$0xff]
      %s4600 = scalar_lea.vmem [#allocation2], 21
      %v4601 = vld [vmem:[%s4600] ss:$2 sm:$0xff]
      %s4602 = scalar_lea.vmem [#allocation2], 37
      %v4603 = vld [vmem:[%s4602] ss:$2 sm:$0xff]
      %s4604 = scalar_lea.vmem [#allocation2], 53
      %v4605 = vld [vmem:[%s4604] ss:$2 sm:$0xff]
      %s4606 = scalar_lea.vmem [#allocation2], 69
      %v4607 = vld [vmem:[%s4606] ss:$2 sm:$0xff]
      %s4608 = scalar_lea.vmem [#allocation2], 85
      %v4609 = vld [vmem:[%s4608] ss:$2 sm:$0xff]
      %s4610 = scalar_lea.vmem [#allocation2], 101
      %v4611 = vld [vmem:[%s4610] ss:$2 sm:$0xff]
      %s4612 = scalar_lea.vmem [#allocation2], 117
      %v4613 = vld [vmem:[%s4612] ss:$2 sm:$0xff]
      %s4614 = scalar_lea.vmem [#allocation2], 133
      %v4615 = vld [vmem:[%s4614] ss:$2 sm:$0xff]
      %s4616 = scalar_lea.vmem [#allocation2], 149
      %v4617 = vld [vmem:[%s4616] ss:$2 sm:$0xff]
      %s4618 = scalar_lea.vmem [#allocation2], 165
      %v4619 = vld [vmem:[%s4618] ss:$2 sm:$0xff]
      %s4620 = scalar_lea.vmem [#allocation2], 181
      %v4621 = vld [vmem:[%s4620] ss:$2 sm:$0xff]
      %s4622 = scalar_lea.vmem [#allocation2], 197
      %v4623 = vld [vmem:[%s4622] ss:$2 sm:$0xff]
      %s4624 = scalar_lea.vmem [#allocation2], 213
      %v4625 = vld [vmem:[%s4624] ss:$2 sm:$0xff]
      %s4626 = scalar_lea.vmem [#allocation2], 229
      %v4627 = vld [vmem:[%s4626] ss:$2 sm:$0xff]
      %s4628 = scalar_lea.vmem [#allocation2], 245
      %v4629 = vld [vmem:[%s4628] ss:$2 sm:$0xff]
      %s4630 = scalar_lea.vmem [#allocation2], 261
      %v4631 = vld [vmem:[%s4630] ss:$2 sm:$0xff]
      %s4632 = scalar_lea.vmem [#allocation2], 277
      %v4633 = vld [vmem:[%s4632] ss:$2 sm:$0xff]
      %s4634 = scalar_lea.vmem [#allocation2], 293
      %v4635 = vld [vmem:[%s4634] ss:$2 sm:$0xff]
      %s4636 = scalar_lea.vmem [#allocation2], 309
      %v4637 = vld [vmem:[%s4636] ss:$2 sm:$0xff]
      %s4638 = scalar_lea.vmem [#allocation2], 325
      %v4639 = vld [vmem:[%s4638] ss:$2 sm:$0xff]
      %s4640 = scalar_lea.vmem [#allocation2], 341
      %v4641 = vld [vmem:[%s4640] ss:$2 sm:$0xff]
      %s4642 = scalar_lea.vmem [#allocation2], 357
      %v4643 = vld [vmem:[%s4642] ss:$2 sm:$0xff]
      %s4644 = scalar_lea.vmem [#allocation2], 373
      %v4645 = vld [vmem:[%s4644] ss:$2 sm:$0xff]
      %s4646 = scalar_lea.vmem [#allocation2], 389
      %v4647 = vld [vmem:[%s4646] ss:$2 sm:$0xff]
      %s4648 = scalar_lea.vmem [#allocation2], 405
      %v4649 = vld [vmem:[%s4648] ss:$2 sm:$0xff]
      %s4650 = scalar_lea.vmem [#allocation2], 421
      %v4651 = vld [vmem:[%s4650] ss:$2 sm:$0xff]
      %s4652 = scalar_lea.vmem [#allocation2], 437
      %v4653 = vld [vmem:[%s4652] ss:$2 sm:$0xff]
      %v4654 = vmax.f32 %v4543, %v4599
      %v4655 = vmax.f32 %v4545, %v4601
      %v4656 = vmax.f32 %v4547, %v4603
      %v4657 = vmax.f32 %v4549, %v4605
      %v4658 = vmax.f32 %v4551, %v4607
      %v4659 = vmax.f32 %v4553, %v4609
      %v4660 = vmax.f32 %v4555, %v4611
      %v4661 = vmax.f32 %v4557, %v4613
      %v4662 = vmax.f32 %v4559, %v4615
      %v4663 = vmax.f32 %v4561, %v4617
      %v4664 = vmax.f32 %v4563, %v4619
      %v4665 = vmax.f32 %v4565, %v4621
      %v4666 = vmax.f32 %v4567, %v4623
      %v4667 = vmax.f32 %v4569, %v4625
      %v4668 = vmax.f32 %v4571, %v4627
      %v4669 = vmax.f32 %v4573, %v4629
      %v4670 = vmax.f32 %v4575, %v4631
      %v4671 = vmax.f32 %v4577, %v4633
      %v4672 = vmax.f32 %v4579, %v4635
      %v4673 = vmax.f32 %v4581, %v4637
      %v4674 = vmax.f32 %v4583, %v4639
      %v4675 = vmax.f32 %v4585, %v4641
      %v4676 = vmax.f32 %v4587, %v4643
      %v4677 = vmax.f32 %v4589, %v4645
      %v4678 = vmax.f32 %v4591, %v4647
      %v4679 = vmax.f32 %v4593, %v4649
      %v4680 = vmax.f32 %v4595, %v4651
      %v4681 = vmax.f32 %v4597, %v4653
      %v4682 = vpack.c.bf16 %v4654, %v4654
      %v4683 = vpack.c.bf16 %v4655, %v4655
      %v4684 = vpack.c.bf16 %v4656, %v4656
      %v4685 = vpack.c.bf16 %v4657, %v4657
      %v4686 = vpack.c.bf16 %v4658, %v4658
      %v4687 = vpack.c.bf16 %v4659, %v4659
      %v4688 = vpack.c.bf16 %v4660, %v4660
      %v4689 = vpack.c.bf16 %v4661, %v4661
      %v4690 = vpack.c.bf16 %v4662, %v4662
      %v4691 = vpack.c.bf16 %v4663, %v4663
      %v4692 = vpack.c.bf16 %v4664, %v4664
      %v4693 = vpack.c.bf16 %v4665, %v4665
      %v4694 = vpack.c.bf16 %v4666, %v4666
      %v4695 = vpack.c.bf16 %v4667, %v4667
      %v4696 = vpack.c.bf16 %v4668, %v4668
      %v4697 = vpack.c.bf16 %v4669, %v4669
      %v4698 = vpack.c.bf16 %v4670, %v4670
      %v4699 = vpack.c.bf16 %v4671, %v4671
      %v4700 = vpack.c.bf16 %v4672, %v4672
      %v4701 = vpack.c.bf16 %v4673, %v4673
      %v4702 = vpack.c.bf16 %v4674, %v4674
      %v4703 = vpack.c.bf16 %v4675, %v4675
      %v4704 = vpack.c.bf16 %v4676, %v4676
      %v4705 = vpack.c.bf16 %v4677, %v4677
      %v4706 = vpack.c.bf16 %v4678, %v4678
      %v4707 = vpack.c.bf16 %v4679, %v4679
      %v4708 = vpack.c.bf16 %v4680, %v4680
      %v4709 = vpack.c.bf16 %v4681, %v4681
      %s4710 = scalar_lea.vmem %s3, 32
      %v4711 = vld [vmem:[%s4710] sm:$0xf]
      %v4712 = vld [vmem:[%s4710 + $0x4] sm:$0xf]
      %v4713 = vld [vmem:[%s4710 + $0x8] sm:$0xf]
      %v4714 = vld [vmem:[%s4710 + $0xc] sm:$0xf]
      %v4735 = vunpack.c.l.b16 %v4682
      %v4736 = vunpack.c.l.b16 %v4683
      %v4737 = vunpack.c.l.b16 %v4684
      %v4738 = vunpack.c.l.b16 %v4685
      %v4739 = vunpack.c.l.b16 %v4686
      %v4740 = vunpack.c.l.b16 %v4687
      %v4741 = vunpack.c.l.b16 %v4688
      %v4742 = vunpack.c.l.b16 %v4689
      %v4743 = vunpack.c.l.b16 %v4690
      %v4744 = vunpack.c.l.b16 %v4691
      %v4745 = vunpack.c.l.b16 %v4692
      %v4746 = vunpack.c.l.b16 %v4693
      %v4747 = vunpack.c.l.b16 %v4694
      %v4748 = vunpack.c.l.b16 %v4695
      %v4749 = vunpack.c.l.b16 %v4696
      %v4750 = vunpack.c.l.b16 %v4697
      %v4751 = vunpack.c.l.b16 %v4698
      %v4752 = vunpack.c.l.b16 %v4699
      %v4753 = vunpack.c.l.b16 %v4700
      %v4754 = vunpack.c.l.b16 %v4701
      %v4755 = vpack.c.b16 %v4736, %v4735
      %v4756 = vpack.c.b16 %v4738, %v4737
      %v4757 = vpack.c.b16 %v4740, %v4739
      %v4758 = vpack.c.b16 %v4742, %v4741
      %v4759 = vpack.c.b16 %v4744, %v4743
      %v4760 = vpack.c.b16 %v4746, %v4745
      %v4761 = vpack.c.b16 %v4748, %v4747
      %v4762 = vpack.c.b16 %v4750, %v4749
      %v4763 = vpack.c.b16 %v4752, %v4751
      %v4764 = vpack.c.b16 %v4754, %v4753
      %v4769 = vunpack.c.l.b16 %v4711
      %v4770 = vunpack.c.l.b16 %v4712
      %v4771 = vunpack.c.l.b16 %v4713
      %v4772 = vunpack.c.l.b16 %v4714
      %v4773 = vpack.c.b16 %v4770, %v4769
      %v4774 = vpack.c.b16 %v4772, %v4771
      %v4778 = vsel %vm3006, %v4755, 0
      %v4781 = vsel %vm3006, %v4756, 0
      %v4784 = vsel %vm3006, %v4757, 0
      %v4787 = vsel %vm3006, %v4758, 0
      %v4790 = vsel %vm3006, %v4759, 0
      %v4793 = vsel %vm3006, %v4760, 0
      %v4796 = vsel %vm3006, %v4761, 0
      %v4799 = vsel %vm3006, %v4762, 0
      %v4802 = vsel %vm3006, %v4763, 0
      %v4805 = vsel %vm3006, %v4764, 0
      %4807 = vmatpush.bf16.msra.mxu0 0
      %4808 = vmatpush.bf16.msra.mxu0 0
      %4809 = vmatpush.bf16.msra.mxu0 0
      %4810 = vmatpush.bf16.msra.mxu0 0
      %4811 = vmatpush.bf16.msra.mxu0 0
      %4812 = vmatpush.bf16.msra.mxu0 0
      %4813 = vmatpush.bf16.msra.mxu0 %v4774
      %4814 = vmatpush.bf16.msra.mxu0 %v4773
      %4815 = vmatmul.bf16.gmra.mxu0 %v4778
      %v4816 = vpop.f32.mrf.mxu0
      %v4817 = vadd.f32 0.0, %v4816
      %v4818 = vpop.f32.mrf.mxu0
      %v4819 = vadd.f32 0.0, %v4818
      %4820 = vmatmul.bf16.gmra.mxu0 %v4781
      %v4821 = vpop.f32.mrf.mxu0
      %v4822 = vadd.f32 0.0, %v4821
      %v4823 = vpop.f32.mrf.mxu0
      %v4824 = vadd.f32 0.0, %v4823
      %4825 = vmatmul.bf16.gmra.mxu0 %v4784
      %v4826 = vpop.f32.mrf.mxu0
      %v4827 = vadd.f32 0.0, %v4826
      %v4828 = vpop.f32.mrf.mxu0
      %v4829 = vadd.f32 0.0, %v4828
      %4830 = vmatmul.bf16.gmra.mxu0 %v4787
      %v4831 = vpop.f32.mrf.mxu0
      %v4832 = vadd.f32 0.0, %v4831
      %v4833 = vpop.f32.mrf.mxu0
      %v4834 = vadd.f32 0.0, %v4833
      %4835 = vmatmul.bf16.gmra.mxu0 %v4790
      %v4836 = vpop.f32.mrf.mxu0
      %v4837 = vadd.f32 0.0, %v4836
      %v4838 = vpop.f32.mrf.mxu0
      %v4839 = vadd.f32 0.0, %v4838
      %4840 = vmatmul.bf16.gmra.mxu0 %v4793
      %v4841 = vpop.f32.mrf.mxu0
      %v4842 = vadd.f32 0.0, %v4841
      %v4843 = vpop.f32.mrf.mxu0
      %v4844 = vadd.f32 0.0, %v4843
      %4845 = vmatmul.bf16.gmra.mxu0 %v4796
      %v4846 = vpop.f32.mrf.mxu0
      %v4847 = vadd.f32 0.0, %v4846
      %v4848 = vpop.f32.mrf.mxu0
      %v4849 = vadd.f32 0.0, %v4848
      %4850 = vmatmul.bf16.gmra.mxu0 %v4799
      %v4851 = vpop.f32.mrf.mxu0
      %v4852 = vadd.f32 0.0, %v4851
      %v4853 = vpop.f32.mrf.mxu0
      %v4854 = vadd.f32 0.0, %v4853
      %4855 = vmatmul.bf16.gmra.mxu0 %v4802
      %v4856 = vpop.f32.mrf.mxu0
      %v4857 = vadd.f32 0.0, %v4856
      %v4858 = vpop.f32.mrf.mxu0
      %v4859 = vadd.f32 0.0, %v4858
      %4860 = vmatmul.bf16.gmra.mxu0 %v4805
      %v4861 = vpop.f32.mrf.mxu0
      %v4862 = vadd.f32 0.0, %v4861
      %v4863 = vpop.f32.mrf.mxu0
      %v4864 = vadd.f32 0.0, %v4863
      %4865 = vdwg.mxu0
      %v4866 = vadd.f32 %v4522, %v4817
      %v4867 = vadd.f32 %v4523, %v4819
      %v4868 = vadd.f32 %v4524, %v4822
      %v4869 = vadd.f32 %v4525, %v4824
      %v4870 = vadd.f32 %v4526, %v4827
      %v4871 = vadd.f32 %v4527, %v4829
      %v4872 = vadd.f32 %v4528, %v4832
      %v4873 = vadd.f32 %v4529, %v4834
      %v4874 = vadd.f32 %v4530, %v4837
      %v4875 = vadd.f32 %v4531, %v4839
      %v4876 = vadd.f32 %v4532, %v4842
      %v4877 = vadd.f32 %v4533, %v4844
      %v4878 = vadd.f32 %v4534, %v4847
      %v4879 = vadd.f32 %v4535, %v4849
      %v4880 = vadd.f32 %v4536, %v4852
      %v4881 = vadd.f32 %v4537, %v4854
      %v4882 = vadd.f32 %v4538, %v4857
      %v4883 = vadd.f32 %v4539, %v4859
      %v4884 = vadd.f32 %v4540, %v4862
      %v4885 = vadd.f32 %v4541, %v4864
      %s4886 = scalar_lea.vmem %s3, 112
      %v4887 = vld [vmem:[%s4886] sm:$0xf]
      %v4888 = vld [vmem:[%s4886 + $0x4] sm:$0xf]
      %v4889 = vld [vmem:[%s4886 + $0x8] sm:$0xf]
      %v4890 = vld [vmem:[%s4886 + $0xc] sm:$0xf]
      %v4893 = vunpack.c.l.b16 %v4702
      %v4894 = vunpack.c.l.b16 %v4703
      %v4895 = vpack.c.b16 %v4894, %v4893
      %v4900 = vunpack.c.l.b16 %v4887
      %v4901 = vunpack.c.l.b16 %v4888
      %v4902 = vunpack.c.l.b16 %v4889
      %v4903 = vunpack.c.l.b16 %v4890
      %v4904 = vpack.c.b16 %v4901, %v4900
      %v4905 = vpack.c.b16 %v4903, %v4902
      %v4909 = vsel %vm3006, %v4895, 0
      %4911 = vmatpush.bf16.msra.mxu0 0
      %4912 = vmatpush.bf16.msra.mxu0 0
      %4913 = vmatpush.bf16.msra.mxu0 0
      %4914 = vmatpush.bf16.msra.mxu0 0
      %4915 = vmatpush.bf16.msra.mxu0 0
      %4916 = vmatpush.bf16.msra.mxu0 0
      %4917 = vmatpush.bf16.msra.mxu0 %v4905
      %4918 = vmatpush.bf16.msra.mxu0 %v4904
      %4919 = vmatmul.bf16.gmra.mxu0 %v4781
      %v4920 = vpop.f32.mrf.mxu0
      %v4921 = vadd.f32 0.0, %v4920
      %v4922 = vpop.f32.mrf.mxu0
      %v4923 = vadd.f32 0.0, %v4922
      %4924 = vmatmul.bf16.gmra.mxu0 %v4784
      %v4925 = vpop.f32.mrf.mxu0
      %v4926 = vadd.f32 0.0, %v4925
      %v4927 = vpop.f32.mrf.mxu0
      %v4928 = vadd.f32 0.0, %v4927
      %4929 = vmatmul.bf16.gmra.mxu0 %v4787
      %v4930 = vpop.f32.mrf.mxu0
      %v4931 = vadd.f32 0.0, %v4930
      %v4932 = vpop.f32.mrf.mxu0
      %v4933 = vadd.f32 0.0, %v4932
      %4934 = vmatmul.bf16.gmra.mxu0 %v4790
      %v4935 = vpop.f32.mrf.mxu0
      %v4936 = vadd.f32 0.0, %v4935
      %v4937 = vpop.f32.mrf.mxu0
      %v4938 = vadd.f32 0.0, %v4937
      %4939 = vmatmul.bf16.gmra.mxu0 %v4793
      %v4940 = vpop.f32.mrf.mxu0
      %v4941 = vadd.f32 0.0, %v4940
      %v4942 = vpop.f32.mrf.mxu0
      %v4943 = vadd.f32 0.0, %v4942
      %4944 = vmatmul.bf16.gmra.mxu0 %v4796
      %v4945 = vpop.f32.mrf.mxu0
      %v4946 = vadd.f32 0.0, %v4945
      %v4947 = vpop.f32.mrf.mxu0
      %v4948 = vadd.f32 0.0, %v4947
      %4949 = vmatmul.bf16.gmra.mxu0 %v4799
      %v4950 = vpop.f32.mrf.mxu0
      %v4951 = vadd.f32 0.0, %v4950
      %v4952 = vpop.f32.mrf.mxu0
      %v4953 = vadd.f32 0.0, %v4952
      %4954 = vmatmul.bf16.gmra.mxu0 %v4802
      %v4955 = vpop.f32.mrf.mxu0
      %v4956 = vadd.f32 0.0, %v4955
      %v4957 = vpop.f32.mrf.mxu0
      %v4958 = vadd.f32 0.0, %v4957
      %4959 = vmatmul.bf16.gmra.mxu0 %v4805
      %v4960 = vpop.f32.mrf.mxu0
      %v4961 = vadd.f32 0.0, %v4960
      %v4962 = vpop.f32.mrf.mxu0
      %v4963 = vadd.f32 0.0, %v4962
      %4964 = vmatmul.bf16.gmra.mxu0 %v4909
      %v4965 = vpop.f32.mrf.mxu0
      %v4966 = vadd.f32 0.0, %v4965
      %v4967 = vpop.f32.mrf.mxu0
      %v4968 = vadd.f32 0.0, %v4967
      %4969 = vdwg.mxu0
      %v4970 = vadd.f32 %v4866, %v4921
      %v4971 = vadd.f32 %v4867, %v4923
      %v4972 = vadd.f32 %v4868, %v4926
      %v4973 = vadd.f32 %v4869, %v4928
      %v4974 = vadd.f32 %v4870, %v4931
      %v4975 = vadd.f32 %v4871, %v4933
      %v4976 = vadd.f32 %v4872, %v4936
      %v4977 = vadd.f32 %v4873, %v4938
      %v4978 = vadd.f32 %v4874, %v4941
      %v4979 = vadd.f32 %v4875, %v4943
      %v4980 = vadd.f32 %v4876, %v4946
      %v4981 = vadd.f32 %v4877, %v4948
      %v4982 = vadd.f32 %v4878, %v4951
      %v4983 = vadd.f32 %v4879, %v4953
      %v4984 = vadd.f32 %v4880, %v4956
      %v4985 = vadd.f32 %v4881, %v4958
      %v4986 = vadd.f32 %v4882, %v4961
      %v4987 = vadd.f32 %v4883, %v4963
      %v4988 = vadd.f32 %v4884, %v4966
      %v4989 = vadd.f32 %v4885, %v4968
      %s4990 = scalar_lea.vmem %s3, 192
      %v4991 = vld [vmem:[%s4990] sm:$0xf]
      %v4992 = vld [vmem:[%s4990 + $0x4] sm:$0xf]
      %v4993 = vld [vmem:[%s4990 + $0x8] sm:$0xf]
      %v4994 = vld [vmem:[%s4990 + $0xc] sm:$0xf]
      %v4997 = vunpack.c.l.b16 %v4704
      %v4998 = vunpack.c.l.b16 %v4705
      %v4999 = vpack.c.b16 %v4998, %v4997
      %v5004 = vunpack.c.l.b16 %v4991
      %v5005 = vunpack.c.l.b16 %v4992
      %v5006 = vunpack.c.l.b16 %v4993
      %v5007 = vunpack.c.l.b16 %v4994
      %v5008 = vpack.c.b16 %v5005, %v5004
      %v5009 = vpack.c.b16 %v5007, %v5006
      %v5013 = vsel %vm3006, %v4999, 0
      %5015 = vmatpush.bf16.msra.mxu0 0
      %5016 = vmatpush.bf16.msra.mxu0 0
      %5017 = vmatpush.bf16.msra.mxu0 0
      %5018 = vmatpush.bf16.msra.mxu0 0
      %5019 = vmatpush.bf16.msra.mxu0 0
      %5020 = vmatpush.bf16.msra.mxu0 0
      %5021 = vmatpush.bf16.msra.mxu0 %v5009
      %5022 = vmatpush.bf16.msra.mxu0 %v5008
      %5023 = vmatmul.bf16.gmra.mxu0 %v4784
      %v5024 = vpop.f32.mrf.mxu0
      %v5025 = vadd.f32 0.0, %v5024
      %v5026 = vpop.f32.mrf.mxu0
      %v5027 = vadd.f32 0.0, %v5026
      %5028 = vmatmul.bf16.gmra.mxu0 %v4787
      %v5029 = vpop.f32.mrf.mxu0
      %v5030 = vadd.f32 0.0, %v5029
      %v5031 = vpop.f32.mrf.mxu0
      %v5032 = vadd.f32 0.0, %v5031
      %5033 = vmatmul.bf16.gmra.mxu0 %v4790
      %v5034 = vpop.f32.mrf.mxu0
      %v5035 = vadd.f32 0.0, %v5034
      %v5036 = vpop.f32.mrf.mxu0
      %v5037 = vadd.f32 0.0, %v5036
      %5038 = vmatmul.bf16.gmra.mxu0 %v4793
      %v5039 = vpop.f32.mrf.mxu0
      %v5040 = vadd.f32 0.0, %v5039
      %v5041 = vpop.f32.mrf.mxu0
      %v5042 = vadd.f32 0.0, %v5041
      %5043 = vmatmul.bf16.gmra.mxu0 %v4796
      %v5044 = vpop.f32.mrf.mxu0
      %v5045 = vadd.f32 0.0, %v5044
      %v5046 = vpop.f32.mrf.mxu0
      %v5047 = vadd.f32 0.0, %v5046
      %5048 = vmatmul.bf16.gmra.mxu0 %v4799
      %v5049 = vpop.f32.mrf.mxu0
      %v5050 = vadd.f32 0.0, %v5049
      %v5051 = vpop.f32.mrf.mxu0
      %v5052 = vadd.f32 0.0, %v5051
      %5053 = vmatmul.bf16.gmra.mxu0 %v4802
      %v5054 = vpop.f32.mrf.mxu0
      %v5055 = vadd.f32 0.0, %v5054
      %v5056 = vpop.f32.mrf.mxu0
      %v5057 = vadd.f32 0.0, %v5056
      %5058 = vmatmul.bf16.gmra.mxu0 %v4805
      %v5059 = vpop.f32.mrf.mxu0
      %v5060 = vadd.f32 0.0, %v5059
      %v5061 = vpop.f32.mrf.mxu0
      %v5062 = vadd.f32 0.0, %v5061
      %5063 = vmatmul.bf16.gmra.mxu0 %v4909
      %v5064 = vpop.f32.mrf.mxu0
      %v5065 = vadd.f32 0.0, %v5064
      %v5066 = vpop.f32.mrf.mxu0
      %v5067 = vadd.f32 0.0, %v5066
      %5068 = vmatmul.bf16.gmra.mxu0 %v5013
      %v5069 = vpop.f32.mrf.mxu0
      %v5070 = vadd.f32 0.0, %v5069
      %v5071 = vpop.f32.mrf.mxu0
      %v5072 = vadd.f32 0.0, %v5071
      %5073 = vdwg.mxu0
      %v5074 = vadd.f32 %v4970, %v5025
      %v5075 = vadd.f32 %v4971, %v5027
      %v5076 = vadd.f32 %v4972, %v5030
      %v5077 = vadd.f32 %v4973, %v5032
      %v5078 = vadd.f32 %v4974, %v5035
      %v5079 = vadd.f32 %v4975, %v5037
      %v5080 = vadd.f32 %v4976, %v5040
      %v5081 = vadd.f32 %v4977, %v5042
      %v5082 = vadd.f32 %v4978, %v5045
      %v5083 = vadd.f32 %v4979, %v5047
      %v5084 = vadd.f32 %v4980, %v5050
      %v5085 = vadd.f32 %v4981, %v5052
      %v5086 = vadd.f32 %v4982, %v5055
      %v5087 = vadd.f32 %v4983, %v5057
      %v5088 = vadd.f32 %v4984, %v5060
      %v5089 = vadd.f32 %v4985, %v5062
      %v5090 = vadd.f32 %v4986, %v5065
      %v5091 = vadd.f32 %v4987, %v5067
      %v5092 = vadd.f32 %v4988, %v5070
      %v5093 = vadd.f32 %v4989, %v5072
      %s5094 = scalar_lea.vmem %s3, 272
      %v5095 = vld [vmem:[%s5094] sm:$0xf]
      %v5096 = vld [vmem:[%s5094 + $0x4] sm:$0xf]
      %v5097 = vld [vmem:[%s5094 + $0x8] sm:$0xf]
      %v5098 = vld [vmem:[%s5094 + $0xc] sm:$0xf]
      %v5101 = vunpack.c.l.b16 %v4706
      %v5102 = vunpack.c.l.b16 %v4707
      %v5103 = vpack.c.b16 %v5102, %v5101
      %v5108 = vunpack.c.l.b16 %v5095
      %v5109 = vunpack.c.l.b16 %v5096
      %v5110 = vunpack.c.l.b16 %v5097
      %v5111 = vunpack.c.l.b16 %v5098
      %v5112 = vpack.c.b16 %v5109, %v5108
      %v5113 = vpack.c.b16 %v5111, %v5110
      %v5117 = vsel %vm3006, %v5103, 0
      %5119 = vmatpush.bf16.msra.mxu0 0
      %5120 = vmatpush.bf16.msra.mxu0 0
      %5121 = vmatpush.bf16.msra.mxu0 0
      %5122 = vmatpush.bf16.msra.mxu0 0
      %5123 = vmatpush.bf16.msra.mxu0 0
      %5124 = vmatpush.bf16.msra.mxu0 0
      %5125 = vmatpush.bf16.msra.mxu0 %v5113
      %5126 = vmatpush.bf16.msra.mxu0 %v5112
      %5127 = vmatmul.bf16.gmra.mxu0 %v4787
      %v5128 = vpop.f32.mrf.mxu0
      %v5129 = vadd.f32 0.0, %v5128
      %v5130 = vpop.f32.mrf.mxu0
      %v5131 = vadd.f32 0.0, %v5130
      %5132 = vmatmul.bf16.gmra.mxu0 %v4790
      %v5133 = vpop.f32.mrf.mxu0
      %v5134 = vadd.f32 0.0, %v5133
      %v5135 = vpop.f32.mrf.mxu0
      %v5136 = vadd.f32 0.0, %v5135
      %5137 = vmatmul.bf16.gmra.mxu0 %v4793
      %v5138 = vpop.f32.mrf.mxu0
      %v5139 = vadd.f32 0.0, %v5138
      %v5140 = vpop.f32.mrf.mxu0
      %v5141 = vadd.f32 0.0, %v5140
      %5142 = vmatmul.bf16.gmra.mxu0 %v4796
      %v5143 = vpop.f32.mrf.mxu0
      %v5144 = vadd.f32 0.0, %v5143
      %v5145 = vpop.f32.mrf.mxu0
      %v5146 = vadd.f32 0.0, %v5145
      %5147 = vmatmul.bf16.gmra.mxu0 %v4799
      %v5148 = vpop.f32.mrf.mxu0
      %v5149 = vadd.f32 0.0, %v5148
      %v5150 = vpop.f32.mrf.mxu0
      %v5151 = vadd.f32 0.0, %v5150
      %5152 = vmatmul.bf16.gmra.mxu0 %v4802
      %v5153 = vpop.f32.mrf.mxu0
      %v5154 = vadd.f32 0.0, %v5153
      %v5155 = vpop.f32.mrf.mxu0
      %v5156 = vadd.f32 0.0, %v5155
      %5157 = vmatmul.bf16.gmra.mxu0 %v4805
      %v5158 = vpop.f32.mrf.mxu0
      %v5159 = vadd.f32 0.0, %v5158
      %v5160 = vpop.f32.mrf.mxu0
      %v5161 = vadd.f32 0.0, %v5160
      %5162 = vmatmul.bf16.gmra.mxu0 %v4909
      %v5163 = vpop.f32.mrf.mxu0
      %v5164 = vadd.f32 0.0, %v5163
      %v5165 = vpop.f32.mrf.mxu0
      %v5166 = vadd.f32 0.0, %v5165
      %5167 = vmatmul.bf16.gmra.mxu0 %v5013
      %v5168 = vpop.f32.mrf.mxu0
      %v5169 = vadd.f32 0.0, %v5168
      %v5170 = vpop.f32.mrf.mxu0
      %v5171 = vadd.f32 0.0, %v5170
      %5172 = vmatmul.bf16.gmra.mxu0 %v5117
      %v5173 = vpop.f32.mrf.mxu0
      %v5174 = vadd.f32 0.0, %v5173
      %v5175 = vpop.f32.mrf.mxu0
      %v5176 = vadd.f32 0.0, %v5175
      %5177 = vdwg.mxu0
      %v5178 = vadd.f32 %v5074, %v5129
      %v5179 = vadd.f32 %v5075, %v5131
      %v5180 = vadd.f32 %v5076, %v5134
      %v5181 = vadd.f32 %v5077, %v5136
      %v5182 = vadd.f32 %v5078, %v5139
      %v5183 = vadd.f32 %v5079, %v5141
      %v5184 = vadd.f32 %v5080, %v5144
      %v5185 = vadd.f32 %v5081, %v5146
      %v5186 = vadd.f32 %v5082, %v5149
      %v5187 = vadd.f32 %v5083, %v5151
      %v5188 = vadd.f32 %v5084, %v5154
      %v5189 = vadd.f32 %v5085, %v5156
      %v5190 = vadd.f32 %v5086, %v5159
      %v5191 = vadd.f32 %v5087, %v5161
      %v5192 = vadd.f32 %v5088, %v5164
      %v5193 = vadd.f32 %v5089, %v5166
      %v5194 = vadd.f32 %v5090, %v5169
      %v5195 = vadd.f32 %v5091, %v5171
      %v5196 = vadd.f32 %v5092, %v5174
      %v5197 = vadd.f32 %v5093, %v5176
      %s5198 = scalar_lea.vmem %s3, 352
      %v5199 = vld [vmem:[%s5198] sm:$0xf]
      %v5200 = vld [vmem:[%s5198 + $0x4] sm:$0xf]
      %v5201 = vld [vmem:[%s5198 + $0x8] sm:$0xf]
      %v5202 = vld [vmem:[%s5198 + $0xc] sm:$0xf]
      %v5205 = vunpack.c.l.b16 %v4708
      %v5206 = vunpack.c.l.b16 %v4709
      %v5207 = vpack.c.b16 %v5206, %v5205
      %v5212 = vunpack.c.l.b16 %v5199
      %v5213 = vunpack.c.l.b16 %v5200
      %v5214 = vunpack.c.l.b16 %v5201
      %v5215 = vunpack.c.l.b16 %v5202
      %v5216 = vpack.c.b16 %v5213, %v5212
      %v5217 = vpack.c.b16 %v5215, %v5214
      %v5221 = vsel %vm3006, %v5207, 0
      %5223 = vmatpush.bf16.msra.mxu0 0
      %5224 = vmatpush.bf16.msra.mxu0 0
      %5225 = vmatpush.bf16.msra.mxu0 0
      %5226 = vmatpush.bf16.msra.mxu0 0
      %5227 = vmatpush.bf16.msra.mxu0 0
      %5228 = vmatpush.bf16.msra.mxu0 0
      %5229 = vmatpush.bf16.msra.mxu0 %v5217
      %5230 = vmatpush.bf16.msra.mxu0 %v5216
      %5231 = vmatmul.bf16.gmra.mxu0 %v4790
      %v5232 = vpop.f32.mrf.mxu0
      %v5233 = vadd.f32 0.0, %v5232
      %v5234 = vpop.f32.mrf.mxu0
      %v5235 = vadd.f32 0.0, %v5234
      %5236 = vmatmul.bf16.gmra.mxu0 %v4793
      %v5237 = vpop.f32.mrf.mxu0
      %v5238 = vadd.f32 0.0, %v5237
      %v5239 = vpop.f32.mrf.mxu0
      %v5240 = vadd.f32 0.0, %v5239
      %5241 = vmatmul.bf16.gmra.mxu0 %v4796
      %v5242 = vpop.f32.mrf.mxu0
      %v5243 = vadd.f32 0.0, %v5242
      %v5244 = vpop.f32.mrf.mxu0
      %v5245 = vadd.f32 0.0, %v5244
      %5246 = vmatmul.bf16.gmra.mxu0 %v4799
      %v5247 = vpop.f32.mrf.mxu0
      %v5248 = vadd.f32 0.0, %v5247
      %v5249 = vpop.f32.mrf.mxu0
      %v5250 = vadd.f32 0.0, %v5249
      %5251 = vmatmul.bf16.gmra.mxu0 %v4802
      %v5252 = vpop.f32.mrf.mxu0
      %v5253 = vadd.f32 0.0, %v5252
      %v5254 = vpop.f32.mrf.mxu0
      %v5255 = vadd.f32 0.0, %v5254
      %5256 = vmatmul.bf16.gmra.mxu0 %v4805
      %v5257 = vpop.f32.mrf.mxu0
      %v5258 = vadd.f32 0.0, %v5257
      %v5259 = vpop.f32.mrf.mxu0
      %v5260 = vadd.f32 0.0, %v5259
      %5261 = vmatmul.bf16.gmra.mxu0 %v4909
      %v5262 = vpop.f32.mrf.mxu0
      %v5263 = vadd.f32 0.0, %v5262
      %v5264 = vpop.f32.mrf.mxu0
      %v5265 = vadd.f32 0.0, %v5264
      %5266 = vmatmul.bf16.gmra.mxu0 %v5013
      %v5267 = vpop.f32.mrf.mxu0
      %v5268 = vadd.f32 0.0, %v5267
      %v5269 = vpop.f32.mrf.mxu0
      %v5270 = vadd.f32 0.0, %v5269
      %5271 = vmatmul.bf16.gmra.mxu0 %v5117
      %v5272 = vpop.f32.mrf.mxu0
      %v5273 = vadd.f32 0.0, %v5272
      %v5274 = vpop.f32.mrf.mxu0
      %v5275 = vadd.f32 0.0, %v5274
      %5276 = vmatmul.bf16.gmra.mxu0 %v5221
      %v5277 = vpop.f32.mrf.mxu0
      %v5278 = vadd.f32 0.0, %v5277
      %v5279 = vpop.f32.mrf.mxu0
      %v5280 = vadd.f32 0.0, %v5279
      %5281 = vdwg.mxu0
      %v5282 = vadd.f32 %v5178, %v5233
      %v5283 = vadd.f32 %v5179, %v5235
      %v5284 = vadd.f32 %v5180, %v5238
      %v5285 = vadd.f32 %v5181, %v5240
      %v5286 = vadd.f32 %v5182, %v5243
      %v5287 = vadd.f32 %v5183, %v5245
      %v5288 = vadd.f32 %v5184, %v5248
      %v5289 = vadd.f32 %v5185, %v5250
      %v5290 = vadd.f32 %v5186, %v5253
      %v5291 = vadd.f32 %v5187, %v5255
      %v5292 = vadd.f32 %v5188, %v5258
      %v5293 = vadd.f32 %v5189, %v5260
      %v5294 = vadd.f32 %v5190, %v5263
      %v5295 = vadd.f32 %v5191, %v5265
      %v5296 = vadd.f32 %v5192, %v5268
      %v5297 = vadd.f32 %v5193, %v5270
      %v5298 = vadd.f32 %v5194, %v5273
      %v5299 = vadd.f32 %v5195, %v5275
      %v5300 = vadd.f32 %v5196, %v5278
      %v5301 = vadd.f32 %v5197, %v5280
      %s5302 = scalar_lea.vmem [#allocation2], 6
      %v5303 = vld [vmem:[%s5302] ss:$2 sm:$0xff]
      %s5304 = scalar_lea.vmem [#allocation2], 22
      %v5305 = vld [vmem:[%s5304] ss:$2 sm:$0xff]
      %s5306 = scalar_lea.vmem [#allocation2], 38
      %v5307 = vld [vmem:[%s5306] ss:$2 sm:$0xff]
      %s5308 = scalar_lea.vmem [#allocation2], 54
      %v5309 = vld [vmem:[%s5308] ss:$2 sm:$0xff]
      %s5310 = scalar_lea.vmem [#allocation2], 70
      %v5311 = vld [vmem:[%s5310] ss:$2 sm:$0xff]
      %s5312 = scalar_lea.vmem [#allocation2], 86
      %v5313 = vld [vmem:[%s5312] ss:$2 sm:$0xff]
      %s5314 = scalar_lea.vmem [#allocation2], 102
      %v5315 = vld [vmem:[%s5314] ss:$2 sm:$0xff]
      %s5316 = scalar_lea.vmem [#allocation2], 118
      %v5317 = vld [vmem:[%s5316] ss:$2 sm:$0xff]
      %s5318 = scalar_lea.vmem [#allocation2], 134
      %v5319 = vld [vmem:[%s5318] ss:$2 sm:$0xff]
      %s5320 = scalar_lea.vmem [#allocation2], 150
      %v5321 = vld [vmem:[%s5320] ss:$2 sm:$0xff]
      %s5322 = scalar_lea.vmem [#allocation2], 166
      %v5323 = vld [vmem:[%s5322] ss:$2 sm:$0xff]
      %s5324 = scalar_lea.vmem [#allocation2], 182
      %v5325 = vld [vmem:[%s5324] ss:$2 sm:$0xff]
      %s5326 = scalar_lea.vmem [#allocation2], 198
      %v5327 = vld [vmem:[%s5326] ss:$2 sm:$0xff]
      %s5328 = scalar_lea.vmem [#allocation2], 214
      %v5329 = vld [vmem:[%s5328] ss:$2 sm:$0xff]
      %s5330 = scalar_lea.vmem [#allocation2], 230
      %v5331 = vld [vmem:[%s5330] ss:$2 sm:$0xff]
      %s5332 = scalar_lea.vmem [#allocation2], 246
      %v5333 = vld [vmem:[%s5332] ss:$2 sm:$0xff]
      %s5334 = scalar_lea.vmem [#allocation2], 262
      %v5335 = vld [vmem:[%s5334] ss:$2 sm:$0xff]
      %s5336 = scalar_lea.vmem [#allocation2], 278
      %v5337 = vld [vmem:[%s5336] ss:$2 sm:$0xff]
      %s5338 = scalar_lea.vmem [#allocation2], 294
      %v5339 = vld [vmem:[%s5338] ss:$2 sm:$0xff]
      %s5340 = scalar_lea.vmem [#allocation2], 310
      %v5341 = vld [vmem:[%s5340] ss:$2 sm:$0xff]
      %s5342 = scalar_lea.vmem [#allocation2], 326
      %v5343 = vld [vmem:[%s5342] ss:$2 sm:$0xff]
      %s5344 = scalar_lea.vmem [#allocation2], 342
      %v5345 = vld [vmem:[%s5344] ss:$2 sm:$0xff]
      %s5346 = scalar_lea.vmem [#allocation2], 358
      %v5347 = vld [vmem:[%s5346] ss:$2 sm:$0xff]
      %s5348 = scalar_lea.vmem [#allocation2], 374
      %v5349 = vld [vmem:[%s5348] ss:$2 sm:$0xff]
      %s5350 = scalar_lea.vmem [#allocation2], 390
      %v5351 = vld [vmem:[%s5350] ss:$2 sm:$0xff]
      %s5352 = scalar_lea.vmem [#allocation2], 406
      %v5353 = vld [vmem:[%s5352] ss:$2 sm:$0xff]
      %s5354 = scalar_lea.vmem [#allocation2], 422
      %v5355 = vld [vmem:[%s5354] ss:$2 sm:$0xff]
      %s5356 = scalar_lea.vmem [#allocation2], 438
      %v5357 = vld [vmem:[%s5356] ss:$2 sm:$0xff]
      %s5358 = scalar_lea.vmem [#allocation2], 7
      %v5359 = vld [vmem:[%s5358] ss:$2 sm:$0xff]
      %s5360 = scalar_lea.vmem [#allocation2], 23
      %v5361 = vld [vmem:[%s5360] ss:$2 sm:$0xff]
      %s5362 = scalar_lea.vmem [#allocation2], 39
      %v5363 = vld [vmem:[%s5362] ss:$2 sm:$0xff]
      %s5364 = scalar_lea.vmem [#allocation2], 55
      %v5365 = vld [vmem:[%s5364] ss:$2 sm:$0xff]
      %s5366 = scalar_lea.vmem [#allocation2], 71
      %v5367 = vld [vmem:[%s5366] ss:$2 sm:$0xff]
      %s5368 = scalar_lea.vmem [#allocation2], 87
      %v5369 = vld [vmem:[%s5368] ss:$2 sm:$0xff]
      %s5370 = scalar_lea.vmem [#allocation2], 103
      %v5371 = vld [vmem:[%s5370] ss:$2 sm:$0xff]
      %s5372 = scalar_lea.vmem [#allocation2], 119
      %v5373 = vld [vmem:[%s5372] ss:$2 sm:$0xff]
      %s5374 = scalar_lea.vmem [#allocation2], 135
      %v5375 = vld [vmem:[%s5374] ss:$2 sm:$0xff]
      %s5376 = scalar_lea.vmem [#allocation2], 151
      %v5377 = vld [vmem:[%s5376] ss:$2 sm:$0xff]
      %s5378 = scalar_lea.vmem [#allocation2], 167
      %v5379 = vld [vmem:[%s5378] ss:$2 sm:$0xff]
      %s5380 = scalar_lea.vmem [#allocation2], 183
      %v5381 = vld [vmem:[%s5380] ss:$2 sm:$0xff]
      %s5382 = scalar_lea.vmem [#allocation2], 199
      %v5383 = vld [vmem:[%s5382] ss:$2 sm:$0xff]
      %s5384 = scalar_lea.vmem [#allocation2], 215
      %v5385 = vld [vmem:[%s5384] ss:$2 sm:$0xff]
      %s5386 = scalar_lea.vmem [#allocation2], 231
      %v5387 = vld [vmem:[%s5386] ss:$2 sm:$0xff]
      %s5388 = scalar_lea.vmem [#allocation2], 247
      %v5389 = vld [vmem:[%s5388] ss:$2 sm:$0xff]
      %s5390 = scalar_lea.vmem [#allocation2], 263
      %v5391 = vld [vmem:[%s5390] ss:$2 sm:$0xff]
      %s5392 = scalar_lea.vmem [#allocation2], 279
      %v5393 = vld [vmem:[%s5392] ss:$2 sm:$0xff]
      %s5394 = scalar_lea.vmem [#allocation2], 295
      %v5395 = vld [vmem:[%s5394] ss:$2 sm:$0xff]
      %s5396 = scalar_lea.vmem [#allocation2], 311
      %v5397 = vld [vmem:[%s5396] ss:$2 sm:$0xff]
      %s5398 = scalar_lea.vmem [#allocation2], 327
      %v5399 = vld [vmem:[%s5398] ss:$2 sm:$0xff]
      %s5400 = scalar_lea.vmem [#allocation2], 343
      %v5401 = vld [vmem:[%s5400] ss:$2 sm:$0xff]
      %s5402 = scalar_lea.vmem [#allocation2], 359
      %v5403 = vld [vmem:[%s5402] ss:$2 sm:$0xff]
      %s5404 = scalar_lea.vmem [#allocation2], 375
      %v5405 = vld [vmem:[%s5404] ss:$2 sm:$0xff]
      %s5406 = scalar_lea.vmem [#allocation2], 391
      %v5407 = vld [vmem:[%s5406] ss:$2 sm:$0xff]
      %s5408 = scalar_lea.vmem [#allocation2], 407
      %v5409 = vld [vmem:[%s5408] ss:$2 sm:$0xff]
      %s5410 = scalar_lea.vmem [#allocation2], 423
      %v5411 = vld [vmem:[%s5410] ss:$2 sm:$0xff]
      %s5412 = scalar_lea.vmem [#allocation2], 439
      %v5413 = vld [vmem:[%s5412] ss:$2 sm:$0xff]
      %v5414 = vmax.f32 %v5303, %v5359
      %v5415 = vmax.f32 %v5305, %v5361
      %v5416 = vmax.f32 %v5307, %v5363
      %v5417 = vmax.f32 %v5309, %v5365
      %v5418 = vmax.f32 %v5311, %v5367
      %v5419 = vmax.f32 %v5313, %v5369
      %v5420 = vmax.f32 %v5315, %v5371
      %v5421 = vmax.f32 %v5317, %v5373
      %v5422 = vmax.f32 %v5319, %v5375
      %v5423 = vmax.f32 %v5321, %v5377
      %v5424 = vmax.f32 %v5323, %v5379
      %v5425 = vmax.f32 %v5325, %v5381
      %v5426 = vmax.f32 %v5327, %v5383
      %v5427 = vmax.f32 %v5329, %v5385
      %v5428 = vmax.f32 %v5331, %v5387
      %v5429 = vmax.f32 %v5333, %v5389
      %v5430 = vmax.f32 %v5335, %v5391
      %v5431 = vmax.f32 %v5337, %v5393
      %v5432 = vmax.f32 %v5339, %v5395
      %v5433 = vmax.f32 %v5341, %v5397
      %v5434 = vmax.f32 %v5343, %v5399
      %v5435 = vmax.f32 %v5345, %v5401
      %v5436 = vmax.f32 %v5347, %v5403
      %v5437 = vmax.f32 %v5349, %v5405
      %v5438 = vmax.f32 %v5351, %v5407
      %v5439 = vmax.f32 %v5353, %v5409
      %v5440 = vmax.f32 %v5355, %v5411
      %v5441 = vmax.f32 %v5357, %v5413
      %v5442 = vpack.c.bf16 %v5414, %v5414
      %v5443 = vpack.c.bf16 %v5415, %v5415
      %v5444 = vpack.c.bf16 %v5416, %v5416
      %v5445 = vpack.c.bf16 %v5417, %v5417
      %v5446 = vpack.c.bf16 %v5418, %v5418
      %v5447 = vpack.c.bf16 %v5419, %v5419
      %v5448 = vpack.c.bf16 %v5420, %v5420
      %v5449 = vpack.c.bf16 %v5421, %v5421
      %v5450 = vpack.c.bf16 %v5422, %v5422
      %v5451 = vpack.c.bf16 %v5423, %v5423
      %v5452 = vpack.c.bf16 %v5424, %v5424
      %v5453 = vpack.c.bf16 %v5425, %v5425
      %v5454 = vpack.c.bf16 %v5426, %v5426
      %v5455 = vpack.c.bf16 %v5427, %v5427
      %v5456 = vpack.c.bf16 %v5428, %v5428
      %v5457 = vpack.c.bf16 %v5429, %v5429
      %v5458 = vpack.c.bf16 %v5430, %v5430
      %v5459 = vpack.c.bf16 %v5431, %v5431
      %v5460 = vpack.c.bf16 %v5432, %v5432
      %v5461 = vpack.c.bf16 %v5433, %v5433
      %v5462 = vpack.c.bf16 %v5434, %v5434
      %v5463 = vpack.c.bf16 %v5435, %v5435
      %v5464 = vpack.c.bf16 %v5436, %v5436
      %v5465 = vpack.c.bf16 %v5437, %v5437
      %v5466 = vpack.c.bf16 %v5438, %v5438
      %v5467 = vpack.c.bf16 %v5439, %v5439
      %v5468 = vpack.c.bf16 %v5440, %v5440
      %v5469 = vpack.c.bf16 %v5441, %v5441
      %s5470 = scalar_lea.vmem %s3, 48
      %v5471 = vld [vmem:[%s5470] sm:$0xf]
      %v5472 = vld [vmem:[%s5470 + $0x4] sm:$0xf]
      %v5473 = vld [vmem:[%s5470 + $0x8] sm:$0xf]
      %v5474 = vld [vmem:[%s5470 + $0xc] sm:$0xf]
      %v5495 = vunpack.c.l.b16 %v5442
      %v5496 = vunpack.c.l.b16 %v5443
      %v5497 = vunpack.c.l.b16 %v5444
      %v5498 = vunpack.c.l.b16 %v5445
      %v5499 = vunpack.c.l.b16 %v5446
      %v5500 = vunpack.c.l.b16 %v5447
      %v5501 = vunpack.c.l.b16 %v5448
      %v5502 = vunpack.c.l.b16 %v5449
      %v5503 = vunpack.c.l.b16 %v5450
      %v5504 = vunpack.c.l.b16 %v5451
      %v5505 = vunpack.c.l.b16 %v5452
      %v5506 = vunpack.c.l.b16 %v5453
      %v5507 = vunpack.c.l.b16 %v5454
      %v5508 = vunpack.c.l.b16 %v5455
      %v5509 = vunpack.c.l.b16 %v5456
      %v5510 = vunpack.c.l.b16 %v5457
      %v5511 = vunpack.c.l.b16 %v5458
      %v5512 = vunpack.c.l.b16 %v5459
      %v5513 = vunpack.c.l.b16 %v5460
      %v5514 = vunpack.c.l.b16 %v5461
      %v5515 = vpack.c.b16 %v5496, %v5495
      %v5516 = vpack.c.b16 %v5498, %v5497
      %v5517 = vpack.c.b16 %v5500, %v5499
      %v5518 = vpack.c.b16 %v5502, %v5501
      %v5519 = vpack.c.b16 %v5504, %v5503
      %v5520 = vpack.c.b16 %v5506, %v5505
      %v5521 = vpack.c.b16 %v5508, %v5507
      %v5522 = vpack.c.b16 %v5510, %v5509
      %v5523 = vpack.c.b16 %v5512, %v5511
      %v5524 = vpack.c.b16 %v5514, %v5513
      %v5529 = vunpack.c.l.b16 %v5471
      %v5530 = vunpack.c.l.b16 %v5472
      %v5531 = vunpack.c.l.b16 %v5473
      %v5532 = vunpack.c.l.b16 %v5474
      %v5533 = vpack.c.b16 %v5530, %v5529
      %v5534 = vpack.c.b16 %v5532, %v5531
      %v5538 = vsel %vm3006, %v5515, 0
      %v5541 = vsel %vm3006, %v5516, 0
      %v5544 = vsel %vm3006, %v5517, 0
      %v5547 = vsel %vm3006, %v5518, 0
      %v5550 = vsel %vm3006, %v5519, 0
      %v5553 = vsel %vm3006, %v5520, 0
      %v5556 = vsel %vm3006, %v5521, 0
      %v5559 = vsel %vm3006, %v5522, 0
      %v5562 = vsel %vm3006, %v5523, 0
      %v5565 = vsel %vm3006, %v5524, 0
      %5567 = vmatpush.bf16.msra.mxu0 0
      %5568 = vmatpush.bf16.msra.mxu0 0
      %5569 = vmatpush.bf16.msra.mxu0 0
      %5570 = vmatpush.bf16.msra.mxu0 0
      %5571 = vmatpush.bf16.msra.mxu0 0
      %5572 = vmatpush.bf16.msra.mxu0 0
      %5573 = vmatpush.bf16.msra.mxu0 %v5534
      %5574 = vmatpush.bf16.msra.mxu0 %v5533
      %5575 = vmatmul.bf16.gmra.mxu0 %v5538
      %v5576 = vpop.f32.mrf.mxu0
      %v5577 = vadd.f32 0.0, %v5576
      %v5578 = vpop.f32.mrf.mxu0
      %v5579 = vadd.f32 0.0, %v5578
      %5580 = vmatmul.bf16.gmra.mxu0 %v5541
      %v5581 = vpop.f32.mrf.mxu0
      %v5582 = vadd.f32 0.0, %v5581
      %v5583 = vpop.f32.mrf.mxu0
      %v5584 = vadd.f32 0.0, %v5583
      %5585 = vmatmul.bf16.gmra.mxu0 %v5544
      %v5586 = vpop.f32.mrf.mxu0
      %v5587 = vadd.f32 0.0, %v5586
      %v5588 = vpop.f32.mrf.mxu0
      %v5589 = vadd.f32 0.0, %v5588
      %5590 = vmatmul.bf16.gmra.mxu0 %v5547
      %v5591 = vpop.f32.mrf.mxu0
      %v5592 = vadd.f32 0.0, %v5591
      %v5593 = vpop.f32.mrf.mxu0
      %v5594 = vadd.f32 0.0, %v5593
      %5595 = vmatmul.bf16.gmra.mxu0 %v5550
      %v5596 = vpop.f32.mrf.mxu0
      %v5597 = vadd.f32 0.0, %v5596
      %v5598 = vpop.f32.mrf.mxu0
      %v5599 = vadd.f32 0.0, %v5598
      %5600 = vmatmul.bf16.gmra.mxu0 %v5553
      %v5601 = vpop.f32.mrf.mxu0
      %v5602 = vadd.f32 0.0, %v5601
      %v5603 = vpop.f32.mrf.mxu0
      %v5604 = vadd.f32 0.0, %v5603
      %5605 = vmatmul.bf16.gmra.mxu0 %v5556
      %v5606 = vpop.f32.mrf.mxu0
      %v5607 = vadd.f32 0.0, %v5606
      %v5608 = vpop.f32.mrf.mxu0
      %v5609 = vadd.f32 0.0, %v5608
      %5610 = vmatmul.bf16.gmra.mxu0 %v5559
      %v5611 = vpop.f32.mrf.mxu0
      %v5612 = vadd.f32 0.0, %v5611
      %v5613 = vpop.f32.mrf.mxu0
      %v5614 = vadd.f32 0.0, %v5613
      %5615 = vmatmul.bf16.gmra.mxu0 %v5562
      %v5616 = vpop.f32.mrf.mxu0
      %v5617 = vadd.f32 0.0, %v5616
      %v5618 = vpop.f32.mrf.mxu0
      %v5619 = vadd.f32 0.0, %v5618
      %5620 = vmatmul.bf16.gmra.mxu0 %v5565
      %v5621 = vpop.f32.mrf.mxu0
      %v5622 = vadd.f32 0.0, %v5621
      %v5623 = vpop.f32.mrf.mxu0
      %v5624 = vadd.f32 0.0, %v5623
      %5625 = vdwg.mxu0
      %v5626 = vadd.f32 %v5282, %v5577
      %v5627 = vadd.f32 %v5283, %v5579
      %v5628 = vadd.f32 %v5284, %v5582
      %v5629 = vadd.f32 %v5285, %v5584
      %v5630 = vadd.f32 %v5286, %v5587
      %v5631 = vadd.f32 %v5287, %v5589
      %v5632 = vadd.f32 %v5288, %v5592
      %v5633 = vadd.f32 %v5289, %v5594
      %v5634 = vadd.f32 %v5290, %v5597
      %v5635 = vadd.f32 %v5291, %v5599
      %v5636 = vadd.f32 %v5292, %v5602
      %v5637 = vadd.f32 %v5293, %v5604
      %v5638 = vadd.f32 %v5294, %v5607
      %v5639 = vadd.f32 %v5295, %v5609
      %v5640 = vadd.f32 %v5296, %v5612
      %v5641 = vadd.f32 %v5297, %v5614
      %v5642 = vadd.f32 %v5298, %v5617
      %v5643 = vadd.f32 %v5299, %v5619
      %v5644 = vadd.f32 %v5300, %v5622
      %v5645 = vadd.f32 %v5301, %v5624
      %s5646 = scalar_lea.vmem %s3, 128
      %v5647 = vld [vmem:[%s5646] sm:$0xf]
      %v5648 = vld [vmem:[%s5646 + $0x4] sm:$0xf]
      %v5649 = vld [vmem:[%s5646 + $0x8] sm:$0xf]
      %v5650 = vld [vmem:[%s5646 + $0xc] sm:$0xf]
      %v5653 = vunpack.c.l.b16 %v5462
      %v5654 = vunpack.c.l.b16 %v5463
      %v5655 = vpack.c.b16 %v5654, %v5653
      %v5660 = vunpack.c.l.b16 %v5647
      %v5661 = vunpack.c.l.b16 %v5648
      %v5662 = vunpack.c.l.b16 %v5649
      %v5663 = vunpack.c.l.b16 %v5650
      %v5664 = vpack.c.b16 %v5661, %v5660
      %v5665 = vpack.c.b16 %v5663, %v5662
      %v5669 = vsel %vm3006, %v5655, 0
      %5671 = vmatpush.bf16.msra.mxu0 0
      %5672 = vmatpush.bf16.msra.mxu0 0
      %5673 = vmatpush.bf16.msra.mxu0 0
      %5674 = vmatpush.bf16.msra.mxu0 0
      %5675 = vmatpush.bf16.msra.mxu0 0
      %5676 = vmatpush.bf16.msra.mxu0 0
      %5677 = vmatpush.bf16.msra.mxu0 %v5665
      %5678 = vmatpush.bf16.msra.mxu0 %v5664
      %5679 = vmatmul.bf16.gmra.mxu0 %v5541
      %v5680 = vpop.f32.mrf.mxu0
      %v5681 = vadd.f32 0.0, %v5680
      %v5682 = vpop.f32.mrf.mxu0
      %v5683 = vadd.f32 0.0, %v5682
      %5684 = vmatmul.bf16.gmra.mxu0 %v5544
      %v5685 = vpop.f32.mrf.mxu0
      %v5686 = vadd.f32 0.0, %v5685
      %v5687 = vpop.f32.mrf.mxu0
      %v5688 = vadd.f32 0.0, %v5687
      %5689 = vmatmul.bf16.gmra.mxu0 %v5547
      %v5690 = vpop.f32.mrf.mxu0
      %v5691 = vadd.f32 0.0, %v5690
      %v5692 = vpop.f32.mrf.mxu0
      %v5693 = vadd.f32 0.0, %v5692
      %5694 = vmatmul.bf16.gmra.mxu0 %v5550
      %v5695 = vpop.f32.mrf.mxu0
      %v5696 = vadd.f32 0.0, %v5695
      %v5697 = vpop.f32.mrf.mxu0
      %v5698 = vadd.f32 0.0, %v5697
      %5699 = vmatmul.bf16.gmra.mxu0 %v5553
      %v5700 = vpop.f32.mrf.mxu0
      %v5701 = vadd.f32 0.0, %v5700
      %v5702 = vpop.f32.mrf.mxu0
      %v5703 = vadd.f32 0.0, %v5702
      %5704 = vmatmul.bf16.gmra.mxu0 %v5556
      %v5705 = vpop.f32.mrf.mxu0
      %v5706 = vadd.f32 0.0, %v5705
      %v5707 = vpop.f32.mrf.mxu0
      %v5708 = vadd.f32 0.0, %v5707
      %5709 = vmatmul.bf16.gmra.mxu0 %v5559
      %v5710 = vpop.f32.mrf.mxu0
      %v5711 = vadd.f32 0.0, %v5710
      %v5712 = vpop.f32.mrf.mxu0
      %v5713 = vadd.f32 0.0, %v5712
      %5714 = vmatmul.bf16.gmra.mxu0 %v5562
      %v5715 = vpop.f32.mrf.mxu0
      %v5716 = vadd.f32 0.0, %v5715
      %v5717 = vpop.f32.mrf.mxu0
      %v5718 = vadd.f32 0.0, %v5717
      %5719 = vmatmul.bf16.gmra.mxu0 %v5565
      %v5720 = vpop.f32.mrf.mxu0
      %v5721 = vadd.f32 0.0, %v5720
      %v5722 = vpop.f32.mrf.mxu0
      %v5723 = vadd.f32 0.0, %v5722
      %5724 = vmatmul.bf16.gmra.mxu0 %v5669
      %v5725 = vpop.f32.mrf.mxu0
      %v5726 = vadd.f32 0.0, %v5725
      %v5727 = vpop.f32.mrf.mxu0
      %v5728 = vadd.f32 0.0, %v5727
      %5729 = vdwg.mxu0
      %v5730 = vadd.f32 %v5626, %v5681
      %v5731 = vadd.f32 %v5627, %v5683
      %v5732 = vadd.f32 %v5628, %v5686
      %v5733 = vadd.f32 %v5629, %v5688
      %v5734 = vadd.f32 %v5630, %v5691
      %v5735 = vadd.f32 %v5631, %v5693
      %v5736 = vadd.f32 %v5632, %v5696
      %v5737 = vadd.f32 %v5633, %v5698
      %v5738 = vadd.f32 %v5634, %v5701
      %v5739 = vadd.f32 %v5635, %v5703
      %v5740 = vadd.f32 %v5636, %v5706
      %v5741 = vadd.f32 %v5637, %v5708
      %v5742 = vadd.f32 %v5638, %v5711
      %v5743 = vadd.f32 %v5639, %v5713
      %v5744 = vadd.f32 %v5640, %v5716
      %v5745 = vadd.f32 %v5641, %v5718
      %v5746 = vadd.f32 %v5642, %v5721
      %v5747 = vadd.f32 %v5643, %v5723
      %v5748 = vadd.f32 %v5644, %v5726
      %v5749 = vadd.f32 %v5645, %v5728
      %s5750 = scalar_lea.vmem %s3, 208
      %v5751 = vld [vmem:[%s5750] sm:$0xf]
      %v5752 = vld [vmem:[%s5750 + $0x4] sm:$0xf]
      %v5753 = vld [vmem:[%s5750 + $0x8] sm:$0xf]
      %v5754 = vld [vmem:[%s5750 + $0xc] sm:$0xf]
      %v5757 = vunpack.c.l.b16 %v5464
      %v5758 = vunpack.c.l.b16 %v5465
      %v5759 = vpack.c.b16 %v5758, %v5757
      %v5764 = vunpack.c.l.b16 %v5751
      %v5765 = vunpack.c.l.b16 %v5752
      %v5766 = vunpack.c.l.b16 %v5753
      %v5767 = vunpack.c.l.b16 %v5754
      %v5768 = vpack.c.b16 %v5765, %v5764
      %v5769 = vpack.c.b16 %v5767, %v5766
      %v5773 = vsel %vm3006, %v5759, 0
      %5775 = vmatpush.bf16.msra.mxu0 0
      %5776 = vmatpush.bf16.msra.mxu0 0
      %5777 = vmatpush.bf16.msra.mxu0 0
      %5778 = vmatpush.bf16.msra.mxu0 0
      %5779 = vmatpush.bf16.msra.mxu0 0
      %5780 = vmatpush.bf16.msra.mxu0 0
      %5781 = vmatpush.bf16.msra.mxu0 %v5769
      %5782 = vmatpush.bf16.msra.mxu0 %v5768
      %5783 = vmatmul.bf16.gmra.mxu0 %v5544
      %v5784 = vpop.f32.mrf.mxu0
      %v5785 = vadd.f32 0.0, %v5784
      %v5786 = vpop.f32.mrf.mxu0
      %v5787 = vadd.f32 0.0, %v5786
      %5788 = vmatmul.bf16.gmra.mxu0 %v5547
      %v5789 = vpop.f32.mrf.mxu0
      %v5790 = vadd.f32 0.0, %v5789
      %v5791 = vpop.f32.mrf.mxu0
      %v5792 = vadd.f32 0.0, %v5791
      %5793 = vmatmul.bf16.gmra.mxu0 %v5550
      %v5794 = vpop.f32.mrf.mxu0
      %v5795 = vadd.f32 0.0, %v5794
      %v5796 = vpop.f32.mrf.mxu0
      %v5797 = vadd.f32 0.0, %v5796
      %5798 = vmatmul.bf16.gmra.mxu0 %v5553
      %v5799 = vpop.f32.mrf.mxu0
      %v5800 = vadd.f32 0.0, %v5799
      %v5801 = vpop.f32.mrf.mxu0
      %v5802 = vadd.f32 0.0, %v5801
      %5803 = vmatmul.bf16.gmra.mxu0 %v5556
      %v5804 = vpop.f32.mrf.mxu0
      %v5805 = vadd.f32 0.0, %v5804
      %v5806 = vpop.f32.mrf.mxu0
      %v5807 = vadd.f32 0.0, %v5806
      %5808 = vmatmul.bf16.gmra.mxu0 %v5559
      %v5809 = vpop.f32.mrf.mxu0
      %v5810 = vadd.f32 0.0, %v5809
      %v5811 = vpop.f32.mrf.mxu0
      %v5812 = vadd.f32 0.0, %v5811
      %5813 = vmatmul.bf16.gmra.mxu0 %v5562
      %v5814 = vpop.f32.mrf.mxu0
      %v5815 = vadd.f32 0.0, %v5814
      %v5816 = vpop.f32.mrf.mxu0
      %v5817 = vadd.f32 0.0, %v5816
      %5818 = vmatmul.bf16.gmra.mxu0 %v5565
      %v5819 = vpop.f32.mrf.mxu0
      %v5820 = vadd.f32 0.0, %v5819
      %v5821 = vpop.f32.mrf.mxu0
      %v5822 = vadd.f32 0.0, %v5821
      %5823 = vmatmul.bf16.gmra.mxu0 %v5669
      %v5824 = vpop.f32.mrf.mxu0
      %v5825 = vadd.f32 0.0, %v5824
      %v5826 = vpop.f32.mrf.mxu0
      %v5827 = vadd.f32 0.0, %v5826
      %5828 = vmatmul.bf16.gmra.mxu0 %v5773
      %v5829 = vpop.f32.mrf.mxu0
      %v5830 = vadd.f32 0.0, %v5829
      %v5831 = vpop.f32.mrf.mxu0
      %v5832 = vadd.f32 0.0, %v5831
      %5833 = vdwg.mxu0
      %v5834 = vadd.f32 %v5730, %v5785
      %v5835 = vadd.f32 %v5731, %v5787
      %v5836 = vadd.f32 %v5732, %v5790
      %v5837 = vadd.f32 %v5733, %v5792
      %v5838 = vadd.f32 %v5734, %v5795
      %v5839 = vadd.f32 %v5735, %v5797
      %v5840 = vadd.f32 %v5736, %v5800
      %v5841 = vadd.f32 %v5737, %v5802
      %v5842 = vadd.f32 %v5738, %v5805
      %v5843 = vadd.f32 %v5739, %v5807
      %v5844 = vadd.f32 %v5740, %v5810
      %v5845 = vadd.f32 %v5741, %v5812
      %v5846 = vadd.f32 %v5742, %v5815
      %v5847 = vadd.f32 %v5743, %v5817
      %v5848 = vadd.f32 %v5744, %v5820
      %v5849 = vadd.f32 %v5745, %v5822
      %v5850 = vadd.f32 %v5746, %v5825
      %v5851 = vadd.f32 %v5747, %v5827
      %v5852 = vadd.f32 %v5748, %v5830
      %v5853 = vadd.f32 %v5749, %v5832
      %s5854 = scalar_lea.vmem %s3, 288
      %v5855 = vld [vmem:[%s5854] sm:$0xf]
      %v5856 = vld [vmem:[%s5854 + $0x4] sm:$0xf]
      %v5857 = vld [vmem:[%s5854 + $0x8] sm:$0xf]
      %v5858 = vld [vmem:[%s5854 + $0xc] sm:$0xf]
      %v5861 = vunpack.c.l.b16 %v5466
      %v5862 = vunpack.c.l.b16 %v5467
      %v5863 = vpack.c.b16 %v5862, %v5861
      %v5868 = vunpack.c.l.b16 %v5855
      %v5869 = vunpack.c.l.b16 %v5856
      %v5870 = vunpack.c.l.b16 %v5857
      %v5871 = vunpack.c.l.b16 %v5858
      %v5872 = vpack.c.b16 %v5869, %v5868
      %v5873 = vpack.c.b16 %v5871, %v5870
      %v5877 = vsel %vm3006, %v5863, 0
      %5879 = vmatpush.bf16.msra.mxu0 0
      %5880 = vmatpush.bf16.msra.mxu0 0
      %5881 = vmatpush.bf16.msra.mxu0 0
      %5882 = vmatpush.bf16.msra.mxu0 0
      %5883 = vmatpush.bf16.msra.mxu0 0
      %5884 = vmatpush.bf16.msra.mxu0 0
      %5885 = vmatpush.bf16.msra.mxu0 %v5873
      %5886 = vmatpush.bf16.msra.mxu0 %v5872
      %5887 = vmatmul.bf16.gmra.mxu0 %v5547
      %v5888 = vpop.f32.mrf.mxu0
      %v5889 = vadd.f32 0.0, %v5888
      %v5890 = vpop.f32.mrf.mxu0
      %v5891 = vadd.f32 0.0, %v5890
      %5892 = vmatmul.bf16.gmra.mxu0 %v5550
      %v5893 = vpop.f32.mrf.mxu0
      %v5894 = vadd.f32 0.0, %v5893
      %v5895 = vpop.f32.mrf.mxu0
      %v5896 = vadd.f32 0.0, %v5895
      %5897 = vmatmul.bf16.gmra.mxu0 %v5553
      %v5898 = vpop.f32.mrf.mxu0
      %v5899 = vadd.f32 0.0, %v5898
      %v5900 = vpop.f32.mrf.mxu0
      %v5901 = vadd.f32 0.0, %v5900
      %5902 = vmatmul.bf16.gmra.mxu0 %v5556
      %v5903 = vpop.f32.mrf.mxu0
      %v5904 = vadd.f32 0.0, %v5903
      %v5905 = vpop.f32.mrf.mxu0
      %v5906 = vadd.f32 0.0, %v5905
      %5907 = vmatmul.bf16.gmra.mxu0 %v5559
      %v5908 = vpop.f32.mrf.mxu0
      %v5909 = vadd.f32 0.0, %v5908
      %v5910 = vpop.f32.mrf.mxu0
      %v5911 = vadd.f32 0.0, %v5910
      %5912 = vmatmul.bf16.gmra.mxu0 %v5562
      %v5913 = vpop.f32.mrf.mxu0
      %v5914 = vadd.f32 0.0, %v5913
      %v5915 = vpop.f32.mrf.mxu0
      %v5916 = vadd.f32 0.0, %v5915
      %5917 = vmatmul.bf16.gmra.mxu0 %v5565
      %v5918 = vpop.f32.mrf.mxu0
      %v5919 = vadd.f32 0.0, %v5918
      %v5920 = vpop.f32.mrf.mxu0
      %v5921 = vadd.f32 0.0, %v5920
      %5922 = vmatmul.bf16.gmra.mxu0 %v5669
      %v5923 = vpop.f32.mrf.mxu0
      %v5924 = vadd.f32 0.0, %v5923
      %v5925 = vpop.f32.mrf.mxu0
      %v5926 = vadd.f32 0.0, %v5925
      %5927 = vmatmul.bf16.gmra.mxu0 %v5773
      %v5928 = vpop.f32.mrf.mxu0
      %v5929 = vadd.f32 0.0, %v5928
      %v5930 = vpop.f32.mrf.mxu0
      %v5931 = vadd.f32 0.0, %v5930
      %5932 = vmatmul.bf16.gmra.mxu0 %v5877
      %v5933 = vpop.f32.mrf.mxu0
      %v5934 = vadd.f32 0.0, %v5933
      %v5935 = vpop.f32.mrf.mxu0
      %v5936 = vadd.f32 0.0, %v5935
      %5937 = vdwg.mxu0
      %v5938 = vadd.f32 %v5834, %v5889
      %v5939 = vadd.f32 %v5835, %v5891
      %v5940 = vadd.f32 %v5836, %v5894
      %v5941 = vadd.f32 %v5837, %v5896
      %v5942 = vadd.f32 %v5838, %v5899
      %v5943 = vadd.f32 %v5839, %v5901
      %v5944 = vadd.f32 %v5840, %v5904
      %v5945 = vadd.f32 %v5841, %v5906
      %v5946 = vadd.f32 %v5842, %v5909
      %v5947 = vadd.f32 %v5843, %v5911
      %v5948 = vadd.f32 %v5844, %v5914
      %v5949 = vadd.f32 %v5845, %v5916
      %v5950 = vadd.f32 %v5846, %v5919
      %v5951 = vadd.f32 %v5847, %v5921
      %v5952 = vadd.f32 %v5848, %v5924
      %v5953 = vadd.f32 %v5849, %v5926
      %v5954 = vadd.f32 %v5850, %v5929
      %v5955 = vadd.f32 %v5851, %v5931
      %v5956 = vadd.f32 %v5852, %v5934
      %v5957 = vadd.f32 %v5853, %v5936
      %s5958 = scalar_lea.vmem %s3, 368
      %v5959 = vld [vmem:[%s5958] sm:$0xf]
      %v5960 = vld [vmem:[%s5958 + $0x4] sm:$0xf]
      %v5961 = vld [vmem:[%s5958 + $0x8] sm:$0xf]
      %v5962 = vld [vmem:[%s5958 + $0xc] sm:$0xf]
      %v5965 = vunpack.c.l.b16 %v5468
      %v5966 = vunpack.c.l.b16 %v5469
      %v5967 = vpack.c.b16 %v5966, %v5965
      %v5972 = vunpack.c.l.b16 %v5959
      %v5973 = vunpack.c.l.b16 %v5960
      %v5974 = vunpack.c.l.b16 %v5961
      %v5975 = vunpack.c.l.b16 %v5962
      %v5976 = vpack.c.b16 %v5973, %v5972
      %v5977 = vpack.c.b16 %v5975, %v5974
      %v5981 = vsel %vm3006, %v5967, 0
      %5983 = vmatpush.bf16.msra.mxu0 0
      %5984 = vmatpush.bf16.msra.mxu0 0
      %5985 = vmatpush.bf16.msra.mxu0 0
      %5986 = vmatpush.bf16.msra.mxu0 0
      %5987 = vmatpush.bf16.msra.mxu0 0
      %5988 = vmatpush.bf16.msra.mxu0 0
      %5989 = vmatpush.bf16.msra.mxu0 %v5977
      %5990 = vmatpush.bf16.msra.mxu0 %v5976
      %5991 = vmatmul.bf16.gmra.mxu0 %v5550
      %v5992 = vpop.f32.mrf.mxu0
      %v5993 = vadd.f32 0.0, %v5992
      %v5994 = vpop.f32.mrf.mxu0
      %v5995 = vadd.f32 0.0, %v5994
      %5996 = vmatmul.bf16.gmra.mxu0 %v5553
      %v5997 = vpop.f32.mrf.mxu0
      %v5998 = vadd.f32 0.0, %v5997
      %v5999 = vpop.f32.mrf.mxu0
      %v6000 = vadd.f32 0.0, %v5999
      %6001 = vmatmul.bf16.gmra.mxu0 %v5556
      %v6002 = vpop.f32.mrf.mxu0
      %v6003 = vadd.f32 0.0, %v6002
      %v6004 = vpop.f32.mrf.mxu0
      %v6005 = vadd.f32 0.0, %v6004
      %6006 = vmatmul.bf16.gmra.mxu0 %v5559
      %v6007 = vpop.f32.mrf.mxu0
      %v6008 = vadd.f32 0.0, %v6007
      %v6009 = vpop.f32.mrf.mxu0
      %v6010 = vadd.f32 0.0, %v6009
      %6011 = vmatmul.bf16.gmra.mxu0 %v5562
      %v6012 = vpop.f32.mrf.mxu0
      %v6013 = vadd.f32 0.0, %v6012
      %v6014 = vpop.f32.mrf.mxu0
      %v6015 = vadd.f32 0.0, %v6014
      %6016 = vmatmul.bf16.gmra.mxu0 %v5565
      %v6017 = vpop.f32.mrf.mxu0
      %v6018 = vadd.f32 0.0, %v6017
      %v6019 = vpop.f32.mrf.mxu0
      %v6020 = vadd.f32 0.0, %v6019
      %6021 = vmatmul.bf16.gmra.mxu0 %v5669
      %v6022 = vpop.f32.mrf.mxu0
      %v6023 = vadd.f32 0.0, %v6022
      %v6024 = vpop.f32.mrf.mxu0
      %v6025 = vadd.f32 0.0, %v6024
      %6026 = vmatmul.bf16.gmra.mxu0 %v5773
      %v6027 = vpop.f32.mrf.mxu0
      %v6028 = vadd.f32 0.0, %v6027
      %v6029 = vpop.f32.mrf.mxu0
      %v6030 = vadd.f32 0.0, %v6029
      %6031 = vmatmul.bf16.gmra.mxu0 %v5877
      %v6032 = vpop.f32.mrf.mxu0
      %v6033 = vadd.f32 0.0, %v6032
      %v6034 = vpop.f32.mrf.mxu0
      %v6035 = vadd.f32 0.0, %v6034
      %6036 = vmatmul.bf16.gmra.mxu0 %v5981
      %v6037 = vpop.f32.mrf.mxu0
      %v6038 = vadd.f32 0.0, %v6037
      %v6039 = vpop.f32.mrf.mxu0
      %v6040 = vadd.f32 0.0, %v6039
      %6041 = vdwg.mxu0
      %v6042 = vadd.f32 %v5938, %v5993
      %v6043 = vadd.f32 %v5939, %v5995
      %v6044 = vadd.f32 %v5940, %v5998
      %v6045 = vadd.f32 %v5941, %v6000
      %v6046 = vadd.f32 %v5942, %v6003
      %v6047 = vadd.f32 %v5943, %v6005
      %v6048 = vadd.f32 %v5944, %v6008
      %v6049 = vadd.f32 %v5945, %v6010
      %v6050 = vadd.f32 %v5946, %v6013
      %v6051 = vadd.f32 %v5947, %v6015
      %v6052 = vadd.f32 %v5948, %v6018
      %v6053 = vadd.f32 %v5949, %v6020
      %v6054 = vadd.f32 %v5950, %v6023
      %v6055 = vadd.f32 %v5951, %v6025
      %v6056 = vadd.f32 %v5952, %v6028
      %v6057 = vadd.f32 %v5953, %v6030
      %v6058 = vadd.f32 %v5954, %v6033
      %v6059 = vadd.f32 %v5955, %v6035
      %v6060 = vadd.f32 %v5956, %v6038
      %v6061 = vadd.f32 %v5957, %v6040
      %s6062 = scalar_lea.vmem [#allocation2], 8
      %v6063 = vld [vmem:[%s6062] ss:$2 sm:$0xff]
      %s6064 = scalar_lea.vmem [#allocation2], 24
      %v6065 = vld [vmem:[%s6064] ss:$2 sm:$0xff]
      %s6066 = scalar_lea.vmem [#allocation2], 40
      %v6067 = vld [vmem:[%s6066] ss:$2 sm:$0xff]
      %s6068 = scalar_lea.vmem [#allocation2], 56
      %v6069 = vld [vmem:[%s6068] ss:$2 sm:$0xff]
      %s6070 = scalar_lea.vmem [#allocation2], 72
      %v6071 = vld [vmem:[%s6070] ss:$2 sm:$0xff]
      %s6072 = scalar_lea.vmem [#allocation2], 88
      %v6073 = vld [vmem:[%s6072] ss:$2 sm:$0xff]
      %s6074 = scalar_lea.vmem [#allocation2], 104
      %v6075 = vld [vmem:[%s6074] ss:$2 sm:$0xff]
      %s6076 = scalar_lea.vmem [#allocation2], 120
      %v6077 = vld [vmem:[%s6076] ss:$2 sm:$0xff]
      %s6078 = scalar_lea.vmem [#allocation2], 136
      %v6079 = vld [vmem:[%s6078] ss:$2 sm:$0xff]
      %s6080 = scalar_lea.vmem [#allocation2], 152
      %v6081 = vld [vmem:[%s6080] ss:$2 sm:$0xff]
      %s6082 = scalar_lea.vmem [#allocation2], 168
      %v6083 = vld [vmem:[%s6082] ss:$2 sm:$0xff]
      %s6084 = scalar_lea.vmem [#allocation2], 184
      %v6085 = vld [vmem:[%s6084] ss:$2 sm:$0xff]
      %s6086 = scalar_lea.vmem [#allocation2], 200
      %v6087 = vld [vmem:[%s6086] ss:$2 sm:$0xff]
      %s6088 = scalar_lea.vmem [#allocation2], 216
      %v6089 = vld [vmem:[%s6088] ss:$2 sm:$0xff]
      %s6090 = scalar_lea.vmem [#allocation2], 232
      %v6091 = vld [vmem:[%s6090] ss:$2 sm:$0xff]
      %s6092 = scalar_lea.vmem [#allocation2], 248
      %v6093 = vld [vmem:[%s6092] ss:$2 sm:$0xff]
      %s6094 = scalar_lea.vmem [#allocation2], 264
      %v6095 = vld [vmem:[%s6094] ss:$2 sm:$0xff]
      %s6096 = scalar_lea.vmem [#allocation2], 280
      %v6097 = vld [vmem:[%s6096] ss:$2 sm:$0xff]
      %s6098 = scalar_lea.vmem [#allocation2], 296
      %v6099 = vld [vmem:[%s6098] ss:$2 sm:$0xff]
      %s6100 = scalar_lea.vmem [#allocation2], 312
      %v6101 = vld [vmem:[%s6100] ss:$2 sm:$0xff]
      %s6102 = scalar_lea.vmem [#allocation2], 328
      %v6103 = vld [vmem:[%s6102] ss:$2 sm:$0xff]
      %s6104 = scalar_lea.vmem [#allocation2], 344
      %v6105 = vld [vmem:[%s6104] ss:$2 sm:$0xff]
      %s6106 = scalar_lea.vmem [#allocation2], 360
      %v6107 = vld [vmem:[%s6106] ss:$2 sm:$0xff]
      %s6108 = scalar_lea.vmem [#allocation2], 376
      %v6109 = vld [vmem:[%s6108] ss:$2 sm:$0xff]
      %s6110 = scalar_lea.vmem [#allocation2], 392
      %v6111 = vld [vmem:[%s6110] ss:$2 sm:$0xff]
      %s6112 = scalar_lea.vmem [#allocation2], 408
      %v6113 = vld [vmem:[%s6112] ss:$2 sm:$0xff]
      %s6114 = scalar_lea.vmem [#allocation2], 424
      %v6115 = vld [vmem:[%s6114] ss:$2 sm:$0xff]
      %s6116 = scalar_lea.vmem [#allocation2], 440
      %v6117 = vld [vmem:[%s6116] ss:$2 sm:$0xff]
      %s6118 = scalar_lea.vmem [#allocation2], 9
      %v6119 = vld [vmem:[%s6118] ss:$2 sm:$0xff]
      %s6120 = scalar_lea.vmem [#allocation2], 25
      %v6121 = vld [vmem:[%s6120] ss:$2 sm:$0xff]
      %s6122 = scalar_lea.vmem [#allocation2], 41
      %v6123 = vld [vmem:[%s6122] ss:$2 sm:$0xff]
      %s6124 = scalar_lea.vmem [#allocation2], 57
      %v6125 = vld [vmem:[%s6124] ss:$2 sm:$0xff]
      %s6126 = scalar_lea.vmem [#allocation2], 73
      %v6127 = vld [vmem:[%s6126] ss:$2 sm:$0xff]
      %s6128 = scalar_lea.vmem [#allocation2], 89
      %v6129 = vld [vmem:[%s6128] ss:$2 sm:$0xff]
      %s6130 = scalar_lea.vmem [#allocation2], 105
      %v6131 = vld [vmem:[%s6130] ss:$2 sm:$0xff]
      %s6132 = scalar_lea.vmem [#allocation2], 121
      %v6133 = vld [vmem:[%s6132] ss:$2 sm:$0xff]
      %s6134 = scalar_lea.vmem [#allocation2], 137
      %v6135 = vld [vmem:[%s6134] ss:$2 sm:$0xff]
      %s6136 = scalar_lea.vmem [#allocation2], 153
      %v6137 = vld [vmem:[%s6136] ss:$2 sm:$0xff]
      %s6138 = scalar_lea.vmem [#allocation2], 169
      %v6139 = vld [vmem:[%s6138] ss:$2 sm:$0xff]
      %s6140 = scalar_lea.vmem [#allocation2], 185
      %v6141 = vld [vmem:[%s6140] ss:$2 sm:$0xff]
      %s6142 = scalar_lea.vmem [#allocation2], 201
      %v6143 = vld [vmem:[%s6142] ss:$2 sm:$0xff]
      %s6144 = scalar_lea.vmem [#allocation2], 217
      %v6145 = vld [vmem:[%s6144] ss:$2 sm:$0xff]
      %s6146 = scalar_lea.vmem [#allocation2], 233
      %v6147 = vld [vmem:[%s6146] ss:$2 sm:$0xff]
      %s6148 = scalar_lea.vmem [#allocation2], 249
      %v6149 = vld [vmem:[%s6148] ss:$2 sm:$0xff]
      %s6150 = scalar_lea.vmem [#allocation2], 265
      %v6151 = vld [vmem:[%s6150] ss:$2 sm:$0xff]
      %s6152 = scalar_lea.vmem [#allocation2], 281
      %v6153 = vld [vmem:[%s6152] ss:$2 sm:$0xff]
      %s6154 = scalar_lea.vmem [#allocation2], 297
      %v6155 = vld [vmem:[%s6154] ss:$2 sm:$0xff]
      %s6156 = scalar_lea.vmem [#allocation2], 313
      %v6157 = vld [vmem:[%s6156] ss:$2 sm:$0xff]
      %s6158 = scalar_lea.vmem [#allocation2], 329
      %v6159 = vld [vmem:[%s6158] ss:$2 sm:$0xff]
      %s6160 = scalar_lea.vmem [#allocation2], 345
      %v6161 = vld [vmem:[%s6160] ss:$2 sm:$0xff]
      %s6162 = scalar_lea.vmem [#allocation2], 361
      %v6163 = vld [vmem:[%s6162] ss:$2 sm:$0xff]
      %s6164 = scalar_lea.vmem [#allocation2], 377
      %v6165 = vld [vmem:[%s6164] ss:$2 sm:$0xff]
      %s6166 = scalar_lea.vmem [#allocation2], 393
      %v6167 = vld [vmem:[%s6166] ss:$2 sm:$0xff]
      %s6168 = scalar_lea.vmem [#allocation2], 409
      %v6169 = vld [vmem:[%s6168] ss:$2 sm:$0xff]
      %s6170 = scalar_lea.vmem [#allocation2], 425
      %v6171 = vld [vmem:[%s6170] ss:$2 sm:$0xff]
      %s6172 = scalar_lea.vmem [#allocation2], 441
      %v6173 = vld [vmem:[%s6172] ss:$2 sm:$0xff]
      %v6174 = vmax.f32 %v6063, %v6119
      %v6175 = vmax.f32 %v6065, %v6121
      %v6176 = vmax.f32 %v6067, %v6123
      %v6177 = vmax.f32 %v6069, %v6125
      %v6178 = vmax.f32 %v6071, %v6127
      %v6179 = vmax.f32 %v6073, %v6129
      %v6180 = vmax.f32 %v6075, %v6131
      %v6181 = vmax.f32 %v6077, %v6133
      %v6182 = vmax.f32 %v6079, %v6135
      %v6183 = vmax.f32 %v6081, %v6137
      %v6184 = vmax.f32 %v6083, %v6139
      %v6185 = vmax.f32 %v6085, %v6141
      %v6186 = vmax.f32 %v6087, %v6143
      %v6187 = vmax.f32 %v6089, %v6145
      %v6188 = vmax.f32 %v6091, %v6147
      %v6189 = vmax.f32 %v6093, %v6149
      %v6190 = vmax.f32 %v6095, %v6151
      %v6191 = vmax.f32 %v6097, %v6153
      %v6192 = vmax.f32 %v6099, %v6155
      %v6193 = vmax.f32 %v6101, %v6157
      %v6194 = vmax.f32 %v6103, %v6159
      %v6195 = vmax.f32 %v6105, %v6161
      %v6196 = vmax.f32 %v6107, %v6163
      %v6197 = vmax.f32 %v6109, %v6165
      %v6198 = vmax.f32 %v6111, %v6167
      %v6199 = vmax.f32 %v6113, %v6169
      %v6200 = vmax.f32 %v6115, %v6171
      %v6201 = vmax.f32 %v6117, %v6173
      %v6202 = vpack.c.bf16 %v6174, %v6174
      %v6203 = vpack.c.bf16 %v6175, %v6175
      %v6204 = vpack.c.bf16 %v6176, %v6176
      %v6205 = vpack.c.bf16 %v6177, %v6177
      %v6206 = vpack.c.bf16 %v6178, %v6178
      %v6207 = vpack.c.bf16 %v6179, %v6179
      %v6208 = vpack.c.bf16 %v6180, %v6180
      %v6209 = vpack.c.bf16 %v6181, %v6181
      %v6210 = vpack.c.bf16 %v6182, %v6182
      %v6211 = vpack.c.bf16 %v6183, %v6183
      %v6212 = vpack.c.bf16 %v6184, %v6184
      %v6213 = vpack.c.bf16 %v6185, %v6185
      %v6214 = vpack.c.bf16 %v6186, %v6186
      %v6215 = vpack.c.bf16 %v6187, %v6187
      %v6216 = vpack.c.bf16 %v6188, %v6188
      %v6217 = vpack.c.bf16 %v6189, %v6189
      %v6218 = vpack.c.bf16 %v6190, %v6190
      %v6219 = vpack.c.bf16 %v6191, %v6191
      %v6220 = vpack.c.bf16 %v6192, %v6192
      %v6221 = vpack.c.bf16 %v6193, %v6193
      %v6222 = vpack.c.bf16 %v6194, %v6194
      %v6223 = vpack.c.bf16 %v6195, %v6195
      %v6224 = vpack.c.bf16 %v6196, %v6196
      %v6225 = vpack.c.bf16 %v6197, %v6197
      %v6226 = vpack.c.bf16 %v6198, %v6198
      %v6227 = vpack.c.bf16 %v6199, %v6199
      %v6228 = vpack.c.bf16 %v6200, %v6200
      %v6229 = vpack.c.bf16 %v6201, %v6201
      %s6230 = scalar_lea.vmem %s3, 64
      %v6231 = vld [vmem:[%s6230] sm:$0xf]
      %v6232 = vld [vmem:[%s6230 + $0x4] sm:$0xf]
      %v6233 = vld [vmem:[%s6230 + $0x8] sm:$0xf]
      %v6234 = vld [vmem:[%s6230 + $0xc] sm:$0xf]
      %v6255 = vunpack.c.l.b16 %v6202
      %v6256 = vunpack.c.l.b16 %v6203
      %v6257 = vunpack.c.l.b16 %v6204
      %v6258 = vunpack.c.l.b16 %v6205
      %v6259 = vunpack.c.l.b16 %v6206
      %v6260 = vunpack.c.l.b16 %v6207
      %v6261 = vunpack.c.l.b16 %v6208
      %v6262 = vunpack.c.l.b16 %v6209
      %v6263 = vunpack.c.l.b16 %v6210
      %v6264 = vunpack.c.l.b16 %v6211
      %v6265 = vunpack.c.l.b16 %v6212
      %v6266 = vunpack.c.l.b16 %v6213
      %v6267 = vunpack.c.l.b16 %v6214
      %v6268 = vunpack.c.l.b16 %v6215
      %v6269 = vunpack.c.l.b16 %v6216
      %v6270 = vunpack.c.l.b16 %v6217
      %v6271 = vunpack.c.l.b16 %v6218
      %v6272 = vunpack.c.l.b16 %v6219
      %v6273 = vunpack.c.l.b16 %v6220
      %v6274 = vunpack.c.l.b16 %v6221
      %v6275 = vpack.c.b16 %v6256, %v6255
      %v6276 = vpack.c.b16 %v6258, %v6257
      %v6277 = vpack.c.b16 %v6260, %v6259
      %v6278 = vpack.c.b16 %v6262, %v6261
      %v6279 = vpack.c.b16 %v6264, %v6263
      %v6280 = vpack.c.b16 %v6266, %v6265
      %v6281 = vpack.c.b16 %v6268, %v6267
      %v6282 = vpack.c.b16 %v6270, %v6269
      %v6283 = vpack.c.b16 %v6272, %v6271
      %v6284 = vpack.c.b16 %v6274, %v6273
      %v6289 = vunpack.c.l.b16 %v6231
      %v6290 = vunpack.c.l.b16 %v6232
      %v6291 = vunpack.c.l.b16 %v6233
      %v6292 = vunpack.c.l.b16 %v6234
      %v6293 = vpack.c.b16 %v6290, %v6289
      %v6294 = vpack.c.b16 %v6292, %v6291
      %v6298 = vsel %vm3006, %v6275, 0
      %v6301 = vsel %vm3006, %v6276, 0
      %v6304 = vsel %vm3006, %v6277, 0
      %v6307 = vsel %vm3006, %v6278, 0
      %v6310 = vsel %vm3006, %v6279, 0
      %v6313 = vsel %vm3006, %v6280, 0
      %v6316 = vsel %vm3006, %v6281, 0
      %v6319 = vsel %vm3006, %v6282, 0
      %v6322 = vsel %vm3006, %v6283, 0
      %v6325 = vsel %vm3006, %v6284, 0
      %6327 = vmatpush.bf16.msra.mxu0 0
      %6328 = vmatpush.bf16.msra.mxu0 0
      %6329 = vmatpush.bf16.msra.mxu0 0
      %6330 = vmatpush.bf16.msra.mxu0 0
      %6331 = vmatpush.bf16.msra.mxu0 0
      %6332 = vmatpush.bf16.msra.mxu0 0
      %6333 = vmatpush.bf16.msra.mxu0 %v6294
      %6334 = vmatpush.bf16.msra.mxu0 %v6293
      %6335 = vmatmul.bf16.gmra.mxu0 %v6298
      %v6336 = vpop.f32.mrf.mxu0
      %v6337 = vadd.f32 0.0, %v6336
      %v6338 = vpop.f32.mrf.mxu0
      %v6339 = vadd.f32 0.0, %v6338
      %6340 = vmatmul.bf16.gmra.mxu0 %v6301
      %v6341 = vpop.f32.mrf.mxu0
      %v6342 = vadd.f32 0.0, %v6341
      %v6343 = vpop.f32.mrf.mxu0
      %v6344 = vadd.f32 0.0, %v6343
      %6345 = vmatmul.bf16.gmra.mxu0 %v6304
      %v6346 = vpop.f32.mrf.mxu0
      %v6347 = vadd.f32 0.0, %v6346
      %v6348 = vpop.f32.mrf.mxu0
      %v6349 = vadd.f32 0.0, %v6348
      %6350 = vmatmul.bf16.gmra.mxu0 %v6307
      %v6351 = vpop.f32.mrf.mxu0
      %v6352 = vadd.f32 0.0, %v6351
      %v6353 = vpop.f32.mrf.mxu0
      %v6354 = vadd.f32 0.0, %v6353
      %6355 = vmatmul.bf16.gmra.mxu0 %v6310
      %v6356 = vpop.f32.mrf.mxu0
      %v6357 = vadd.f32 0.0, %v6356
      %v6358 = vpop.f32.mrf.mxu0
      %v6359 = vadd.f32 0.0, %v6358
      %6360 = vmatmul.bf16.gmra.mxu0 %v6313
      %v6361 = vpop.f32.mrf.mxu0
      %v6362 = vadd.f32 0.0, %v6361
      %v6363 = vpop.f32.mrf.mxu0
      %v6364 = vadd.f32 0.0, %v6363
      %6365 = vmatmul.bf16.gmra.mxu0 %v6316
      %v6366 = vpop.f32.mrf.mxu0
      %v6367 = vadd.f32 0.0, %v6366
      %v6368 = vpop.f32.mrf.mxu0
      %v6369 = vadd.f32 0.0, %v6368
      %6370 = vmatmul.bf16.gmra.mxu0 %v6319
      %v6371 = vpop.f32.mrf.mxu0
      %v6372 = vadd.f32 0.0, %v6371
      %v6373 = vpop.f32.mrf.mxu0
      %v6374 = vadd.f32 0.0, %v6373
      %6375 = vmatmul.bf16.gmra.mxu0 %v6322
      %v6376 = vpop.f32.mrf.mxu0
      %v6377 = vadd.f32 0.0, %v6376
      %v6378 = vpop.f32.mrf.mxu0
      %v6379 = vadd.f32 0.0, %v6378
      %6380 = vmatmul.bf16.gmra.mxu0 %v6325
      %v6381 = vpop.f32.mrf.mxu0
      %v6382 = vadd.f32 0.0, %v6381
      %v6383 = vpop.f32.mrf.mxu0
      %v6384 = vadd.f32 0.0, %v6383
      %6385 = vdwg.mxu0
      %v6386 = vadd.f32 %v6042, %v6337
      %v6387 = vadd.f32 %v6043, %v6339
      %v6388 = vadd.f32 %v6044, %v6342
      %v6389 = vadd.f32 %v6045, %v6344
      %v6390 = vadd.f32 %v6046, %v6347
      %v6391 = vadd.f32 %v6047, %v6349
      %v6392 = vadd.f32 %v6048, %v6352
      %v6393 = vadd.f32 %v6049, %v6354
      %v6394 = vadd.f32 %v6050, %v6357
      %v6395 = vadd.f32 %v6051, %v6359
      %v6396 = vadd.f32 %v6052, %v6362
      %v6397 = vadd.f32 %v6053, %v6364
      %v6398 = vadd.f32 %v6054, %v6367
      %v6399 = vadd.f32 %v6055, %v6369
      %v6400 = vadd.f32 %v6056, %v6372
      %v6401 = vadd.f32 %v6057, %v6374
      %v6402 = vadd.f32 %v6058, %v6377
      %v6403 = vadd.f32 %v6059, %v6379
      %v6404 = vadd.f32 %v6060, %v6382
      %v6405 = vadd.f32 %v6061, %v6384
      %s6406 = scalar_lea.vmem %s3, 144
      %v6407 = vld [vmem:[%s6406] sm:$0xf]
      %v6408 = vld [vmem:[%s6406 + $0x4] sm:$0xf]
      %v6409 = vld [vmem:[%s6406 + $0x8] sm:$0xf]
      %v6410 = vld [vmem:[%s6406 + $0xc] sm:$0xf]
      %v6413 = vunpack.c.l.b16 %v6222
      %v6414 = vunpack.c.l.b16 %v6223
      %v6415 = vpack.c.b16 %v6414, %v6413
      %v6420 = vunpack.c.l.b16 %v6407
      %v6421 = vunpack.c.l.b16 %v6408
      %v6422 = vunpack.c.l.b16 %v6409
      %v6423 = vunpack.c.l.b16 %v6410
      %v6424 = vpack.c.b16 %v6421, %v6420
      %v6425 = vpack.c.b16 %v6423, %v6422
      %v6429 = vsel %vm3006, %v6415, 0
      %6431 = vmatpush.bf16.msra.mxu0 0
      %6432 = vmatpush.bf16.msra.mxu0 0
      %6433 = vmatpush.bf16.msra.mxu0 0
      %6434 = vmatpush.bf16.msra.mxu0 0
      %6435 = vmatpush.bf16.msra.mxu0 0
      %6436 = vmatpush.bf16.msra.mxu0 0
      %6437 = vmatpush.bf16.msra.mxu0 %v6425
      %6438 = vmatpush.bf16.msra.mxu0 %v6424
      %6439 = vmatmul.bf16.gmra.mxu0 %v6301
      %v6440 = vpop.f32.mrf.mxu0
      %v6441 = vadd.f32 0.0, %v6440
      %v6442 = vpop.f32.mrf.mxu0
      %v6443 = vadd.f32 0.0, %v6442
      %6444 = vmatmul.bf16.gmra.mxu0 %v6304
      %v6445 = vpop.f32.mrf.mxu0
      %v6446 = vadd.f32 0.0, %v6445
      %v6447 = vpop.f32.mrf.mxu0
      %v6448 = vadd.f32 0.0, %v6447
      %6449 = vmatmul.bf16.gmra.mxu0 %v6307
      %v6450 = vpop.f32.mrf.mxu0
      %v6451 = vadd.f32 0.0, %v6450
      %v6452 = vpop.f32.mrf.mxu0
      %v6453 = vadd.f32 0.0, %v6452
      %6454 = vmatmul.bf16.gmra.mxu0 %v6310
      %v6455 = vpop.f32.mrf.mxu0
      %v6456 = vadd.f32 0.0, %v6455
      %v6457 = vpop.f32.mrf.mxu0
      %v6458 = vadd.f32 0.0, %v6457
      %6459 = vmatmul.bf16.gmra.mxu0 %v6313
      %v6460 = vpop.f32.mrf.mxu0
      %v6461 = vadd.f32 0.0, %v6460
      %v6462 = vpop.f32.mrf.mxu0
      %v6463 = vadd.f32 0.0, %v6462
      %6464 = vmatmul.bf16.gmra.mxu0 %v6316
      %v6465 = vpop.f32.mrf.mxu0
      %v6466 = vadd.f32 0.0, %v6465
      %v6467 = vpop.f32.mrf.mxu0
      %v6468 = vadd.f32 0.0, %v6467
      %6469 = vmatmul.bf16.gmra.mxu0 %v6319
      %v6470 = vpop.f32.mrf.mxu0
      %v6471 = vadd.f32 0.0, %v6470
      %v6472 = vpop.f32.mrf.mxu0
      %v6473 = vadd.f32 0.0, %v6472
      %6474 = vmatmul.bf16.gmra.mxu0 %v6322
      %v6475 = vpop.f32.mrf.mxu0
      %v6476 = vadd.f32 0.0, %v6475
      %v6477 = vpop.f32.mrf.mxu0
      %v6478 = vadd.f32 0.0, %v6477
      %6479 = vmatmul.bf16.gmra.mxu0 %v6325
      %v6480 = vpop.f32.mrf.mxu0
      %v6481 = vadd.f32 0.0, %v6480
      %v6482 = vpop.f32.mrf.mxu0
      %v6483 = vadd.f32 0.0, %v6482
      %6484 = vmatmul.bf16.gmra.mxu0 %v6429
      %v6485 = vpop.f32.mrf.mxu0
      %v6486 = vadd.f32 0.0, %v6485
      %v6487 = vpop.f32.mrf.mxu0
      %v6488 = vadd.f32 0.0, %v6487
      %6489 = vdwg.mxu0
      %v6490 = vadd.f32 %v6386, %v6441
      %v6491 = vadd.f32 %v6387, %v6443
      %v6492 = vadd.f32 %v6388, %v6446
      %v6493 = vadd.f32 %v6389, %v6448
      %v6494 = vadd.f32 %v6390, %v6451
      %v6495 = vadd.f32 %v6391, %v6453
      %v6496 = vadd.f32 %v6392, %v6456
      %v6497 = vadd.f32 %v6393, %v6458
      %v6498 = vadd.f32 %v6394, %v6461
      %v6499 = vadd.f32 %v6395, %v6463
      %v6500 = vadd.f32 %v6396, %v6466
      %v6501 = vadd.f32 %v6397, %v6468
      %v6502 = vadd.f32 %v6398, %v6471
      %v6503 = vadd.f32 %v6399, %v6473
      %v6504 = vadd.f32 %v6400, %v6476
      %v6505 = vadd.f32 %v6401, %v6478
      %v6506 = vadd.f32 %v6402, %v6481
      %v6507 = vadd.f32 %v6403, %v6483
      %v6508 = vadd.f32 %v6404, %v6486
      %v6509 = vadd.f32 %v6405, %v6488
      %s6510 = scalar_lea.vmem %s3, 224
      %v6511 = vld [vmem:[%s6510] sm:$0xf]
      %v6512 = vld [vmem:[%s6510 + $0x4] sm:$0xf]
      %v6513 = vld [vmem:[%s6510 + $0x8] sm:$0xf]
      %v6514 = vld [vmem:[%s6510 + $0xc] sm:$0xf]
      %v6517 = vunpack.c.l.b16 %v6224
      %v6518 = vunpack.c.l.b16 %v6225
      %v6519 = vpack.c.b16 %v6518, %v6517
      %v6524 = vunpack.c.l.b16 %v6511
      %v6525 = vunpack.c.l.b16 %v6512
      %v6526 = vunpack.c.l.b16 %v6513
      %v6527 = vunpack.c.l.b16 %v6514
      %v6528 = vpack.c.b16 %v6525, %v6524
      %v6529 = vpack.c.b16 %v6527, %v6526
      %v6533 = vsel %vm3006, %v6519, 0
      %6535 = vmatpush.bf16.msra.mxu0 0
      %6536 = vmatpush.bf16.msra.mxu0 0
      %6537 = vmatpush.bf16.msra.mxu0 0
      %6538 = vmatpush.bf16.msra.mxu0 0
      %6539 = vmatpush.bf16.msra.mxu0 0
      %6540 = vmatpush.bf16.msra.mxu0 0
      %6541 = vmatpush.bf16.msra.mxu0 %v6529
      %6542 = vmatpush.bf16.msra.mxu0 %v6528
      %6543 = vmatmul.bf16.gmra.mxu0 %v6304
      %v6544 = vpop.f32.mrf.mxu0
      %v6545 = vadd.f32 0.0, %v6544
      %v6546 = vpop.f32.mrf.mxu0
      %v6547 = vadd.f32 0.0, %v6546
      %6548 = vmatmul.bf16.gmra.mxu0 %v6307
      %v6549 = vpop.f32.mrf.mxu0
      %v6550 = vadd.f32 0.0, %v6549
      %v6551 = vpop.f32.mrf.mxu0
      %v6552 = vadd.f32 0.0, %v6551
      %6553 = vmatmul.bf16.gmra.mxu0 %v6310
      %v6554 = vpop.f32.mrf.mxu0
      %v6555 = vadd.f32 0.0, %v6554
      %v6556 = vpop.f32.mrf.mxu0
      %v6557 = vadd.f32 0.0, %v6556
      %6558 = vmatmul.bf16.gmra.mxu0 %v6313
      %v6559 = vpop.f32.mrf.mxu0
      %v6560 = vadd.f32 0.0, %v6559
      %v6561 = vpop.f32.mrf.mxu0
      %v6562 = vadd.f32 0.0, %v6561
      %6563 = vmatmul.bf16.gmra.mxu0 %v6316
      %v6564 = vpop.f32.mrf.mxu0
      %v6565 = vadd.f32 0.0, %v6564
      %v6566 = vpop.f32.mrf.mxu0
      %v6567 = vadd.f32 0.0, %v6566
      %6568 = vmatmul.bf16.gmra.mxu0 %v6319
      %v6569 = vpop.f32.mrf.mxu0
      %v6570 = vadd.f32 0.0, %v6569
      %v6571 = vpop.f32.mrf.mxu0
      %v6572 = vadd.f32 0.0, %v6571
      %6573 = vmatmul.bf16.gmra.mxu0 %v6322
      %v6574 = vpop.f32.mrf.mxu0
      %v6575 = vadd.f32 0.0, %v6574
      %v6576 = vpop.f32.mrf.mxu0
      %v6577 = vadd.f32 0.0, %v6576
      %6578 = vmatmul.bf16.gmra.mxu0 %v6325
      %v6579 = vpop.f32.mrf.mxu0
      %v6580 = vadd.f32 0.0, %v6579
      %v6581 = vpop.f32.mrf.mxu0
      %v6582 = vadd.f32 0.0, %v6581
      %6583 = vmatmul.bf16.gmra.mxu0 %v6429
      %v6584 = vpop.f32.mrf.mxu0
      %v6585 = vadd.f32 0.0, %v6584
      %v6586 = vpop.f32.mrf.mxu0
      %v6587 = vadd.f32 0.0, %v6586
      %6588 = vmatmul.bf16.gmra.mxu0 %v6533
      %v6589 = vpop.f32.mrf.mxu0
      %v6590 = vadd.f32 0.0, %v6589
      %v6591 = vpop.f32.mrf.mxu0
      %v6592 = vadd.f32 0.0, %v6591
      %6593 = vdwg.mxu0
      %v6594 = vadd.f32 %v6490, %v6545
      %v6595 = vadd.f32 %v6491, %v6547
      %v6596 = vadd.f32 %v6492, %v6550
      %v6597 = vadd.f32 %v6493, %v6552
      %v6598 = vadd.f32 %v6494, %v6555
      %v6599 = vadd.f32 %v6495, %v6557
      %v6600 = vadd.f32 %v6496, %v6560
      %v6601 = vadd.f32 %v6497, %v6562
      %v6602 = vadd.f32 %v6498, %v6565
      %v6603 = vadd.f32 %v6499, %v6567
      %v6604 = vadd.f32 %v6500, %v6570
      %v6605 = vadd.f32 %v6501, %v6572
      %v6606 = vadd.f32 %v6502, %v6575
      %v6607 = vadd.f32 %v6503, %v6577
      %v6608 = vadd.f32 %v6504, %v6580
      %v6609 = vadd.f32 %v6505, %v6582
      %v6610 = vadd.f32 %v6506, %v6585
      %v6611 = vadd.f32 %v6507, %v6587
      %v6612 = vadd.f32 %v6508, %v6590
      %v6613 = vadd.f32 %v6509, %v6592
      %s6614 = scalar_lea.vmem %s3, 304
      %v6615 = vld [vmem:[%s6614] sm:$0xf]
      %v6616 = vld [vmem:[%s6614 + $0x4] sm:$0xf]
      %v6617 = vld [vmem:[%s6614 + $0x8] sm:$0xf]
      %v6618 = vld [vmem:[%s6614 + $0xc] sm:$0xf]
      %v6621 = vunpack.c.l.b16 %v6226
      %v6622 = vunpack.c.l.b16 %v6227
      %v6623 = vpack.c.b16 %v6622, %v6621
      %v6628 = vunpack.c.l.b16 %v6615
      %v6629 = vunpack.c.l.b16 %v6616
      %v6630 = vunpack.c.l.b16 %v6617
      %v6631 = vunpack.c.l.b16 %v6618
      %v6632 = vpack.c.b16 %v6629, %v6628
      %v6633 = vpack.c.b16 %v6631, %v6630
      %v6637 = vsel %vm3006, %v6623, 0
      %6639 = vmatpush.bf16.msra.mxu0 0
      %6640 = vmatpush.bf16.msra.mxu0 0
      %6641 = vmatpush.bf16.msra.mxu0 0
      %6642 = vmatpush.bf16.msra.mxu0 0
      %6643 = vmatpush.bf16.msra.mxu0 0
      %6644 = vmatpush.bf16.msra.mxu0 0
      %6645 = vmatpush.bf16.msra.mxu0 %v6633
      %6646 = vmatpush.bf16.msra.mxu0 %v6632
      %6647 = vmatmul.bf16.gmra.mxu0 %v6307
      %v6648 = vpop.f32.mrf.mxu0
      %v6649 = vadd.f32 0.0, %v6648
      %v6650 = vpop.f32.mrf.mxu0
      %v6651 = vadd.f32 0.0, %v6650
      %6652 = vmatmul.bf16.gmra.mxu0 %v6310
      %v6653 = vpop.f32.mrf.mxu0
      %v6654 = vadd.f32 0.0, %v6653
      %v6655 = vpop.f32.mrf.mxu0
      %v6656 = vadd.f32 0.0, %v6655
      %6657 = vmatmul.bf16.gmra.mxu0 %v6313
      %v6658 = vpop.f32.mrf.mxu0
      %v6659 = vadd.f32 0.0, %v6658
      %v6660 = vpop.f32.mrf.mxu0
      %v6661 = vadd.f32 0.0, %v6660
      %6662 = vmatmul.bf16.gmra.mxu0 %v6316
      %v6663 = vpop.f32.mrf.mxu0
      %v6664 = vadd.f32 0.0, %v6663
      %v6665 = vpop.f32.mrf.mxu0
      %v6666 = vadd.f32 0.0, %v6665
      %6667 = vmatmul.bf16.gmra.mxu0 %v6319
      %v6668 = vpop.f32.mrf.mxu0
      %v6669 = vadd.f32 0.0, %v6668
      %v6670 = vpop.f32.mrf.mxu0
      %v6671 = vadd.f32 0.0, %v6670
      %6672 = vmatmul.bf16.gmra.mxu0 %v6322
      %v6673 = vpop.f32.mrf.mxu0
      %v6674 = vadd.f32 0.0, %v6673
      %v6675 = vpop.f32.mrf.mxu0
      %v6676 = vadd.f32 0.0, %v6675
      %6677 = vmatmul.bf16.gmra.mxu0 %v6325
      %v6678 = vpop.f32.mrf.mxu0
      %v6679 = vadd.f32 0.0, %v6678
      %v6680 = vpop.f32.mrf.mxu0
      %v6681 = vadd.f32 0.0, %v6680
      %6682 = vmatmul.bf16.gmra.mxu0 %v6429
      %v6683 = vpop.f32.mrf.mxu0
      %v6684 = vadd.f32 0.0, %v6683
      %v6685 = vpop.f32.mrf.mxu0
      %v6686 = vadd.f32 0.0, %v6685
      %6687 = vmatmul.bf16.gmra.mxu0 %v6533
      %v6688 = vpop.f32.mrf.mxu0
      %v6689 = vadd.f32 0.0, %v6688
      %v6690 = vpop.f32.mrf.mxu0
      %v6691 = vadd.f32 0.0, %v6690
      %6692 = vmatmul.bf16.gmra.mxu0 %v6637
      %v6693 = vpop.f32.mrf.mxu0
      %v6694 = vadd.f32 0.0, %v6693
      %v6695 = vpop.f32.mrf.mxu0
      %v6696 = vadd.f32 0.0, %v6695
      %6697 = vdwg.mxu0
      %v6698 = vadd.f32 %v6594, %v6649
      %v6699 = vadd.f32 %v6595, %v6651
      %v6700 = vadd.f32 %v6596, %v6654
      %v6701 = vadd.f32 %v6597, %v6656
      %v6702 = vadd.f32 %v6598, %v6659
      %v6703 = vadd.f32 %v6599, %v6661
      %v6704 = vadd.f32 %v6600, %v6664
      %v6705 = vadd.f32 %v6601, %v6666
      %v6706 = vadd.f32 %v6602, %v6669
      %v6707 = vadd.f32 %v6603, %v6671
      %v6708 = vadd.f32 %v6604, %v6674
      %v6709 = vadd.f32 %v6605, %v6676
      %v6710 = vadd.f32 %v6606, %v6679
      %v6711 = vadd.f32 %v6607, %v6681
      %v6712 = vadd.f32 %v6608, %v6684
      %v6713 = vadd.f32 %v6609, %v6686
      %v6714 = vadd.f32 %v6610, %v6689
      %v6715 = vadd.f32 %v6611, %v6691
      %v6716 = vadd.f32 %v6612, %v6694
      %v6717 = vadd.f32 %v6613, %v6696
      %s6718 = scalar_lea.vmem %s3, 384
      %v6719 = vld [vmem:[%s6718] sm:$0xf]
      %v6720 = vld [vmem:[%s6718 + $0x4] sm:$0xf]
      %v6721 = vld [vmem:[%s6718 + $0x8] sm:$0xf]
      %v6722 = vld [vmem:[%s6718 + $0xc] sm:$0xf]
      %v6725 = vunpack.c.l.b16 %v6228
      %v6726 = vunpack.c.l.b16 %v6229
      %v6727 = vpack.c.b16 %v6726, %v6725
      %v6732 = vunpack.c.l.b16 %v6719
      %v6733 = vunpack.c.l.b16 %v6720
      %v6734 = vunpack.c.l.b16 %v6721
      %v6735 = vunpack.c.l.b16 %v6722
      %v6736 = vpack.c.b16 %v6733, %v6732
      %v6737 = vpack.c.b16 %v6735, %v6734
      %v6741 = vsel %vm3006, %v6727, 0
      %6743 = vmatpush.bf16.msra.mxu0 0
      %6744 = vmatpush.bf16.msra.mxu0 0
      %6745 = vmatpush.bf16.msra.mxu0 0
      %6746 = vmatpush.bf16.msra.mxu0 0
      %6747 = vmatpush.bf16.msra.mxu0 0
      %6748 = vmatpush.bf16.msra.mxu0 0
      %6749 = vmatpush.bf16.msra.mxu0 %v6737
      %6750 = vmatpush.bf16.msra.mxu0 %v6736
      %6751 = vmatmul.bf16.gmra.mxu0 %v6310
      %v6752 = vpop.f32.mrf.mxu0
      %v6753 = vadd.f32 0.0, %v6752
      %v6754 = vpop.f32.mrf.mxu0
      %v6755 = vadd.f32 0.0, %v6754
      %6756 = vmatmul.bf16.gmra.mxu0 %v6313
      %v6757 = vpop.f32.mrf.mxu0
      %v6758 = vadd.f32 0.0, %v6757
      %v6759 = vpop.f32.mrf.mxu0
      %v6760 = vadd.f32 0.0, %v6759
      %6761 = vmatmul.bf16.gmra.mxu0 %v6316
      %v6762 = vpop.f32.mrf.mxu0
      %v6763 = vadd.f32 0.0, %v6762
      %v6764 = vpop.f32.mrf.mxu0
      %v6765 = vadd.f32 0.0, %v6764
      %6766 = vmatmul.bf16.gmra.mxu0 %v6319
      %v6767 = vpop.f32.mrf.mxu0
      %v6768 = vadd.f32 0.0, %v6767
      %v6769 = vpop.f32.mrf.mxu0
      %v6770 = vadd.f32 0.0, %v6769
      %6771 = vmatmul.bf16.gmra.mxu0 %v6322
      %v6772 = vpop.f32.mrf.mxu0
      %v6773 = vadd.f32 0.0, %v6772
      %v6774 = vpop.f32.mrf.mxu0
      %v6775 = vadd.f32 0.0, %v6774
      %6776 = vmatmul.bf16.gmra.mxu0 %v6325
      %v6777 = vpop.f32.mrf.mxu0
      %v6778 = vadd.f32 0.0, %v6777
      %v6779 = vpop.f32.mrf.mxu0
      %v6780 = vadd.f32 0.0, %v6779
      %6781 = vmatmul.bf16.gmra.mxu0 %v6429
      %v6782 = vpop.f32.mrf.mxu0
      %v6783 = vadd.f32 0.0, %v6782
      %v6784 = vpop.f32.mrf.mxu0
      %v6785 = vadd.f32 0.0, %v6784
      %6786 = vmatmul.bf16.gmra.mxu0 %v6533
      %v6787 = vpop.f32.mrf.mxu0
      %v6788 = vadd.f32 0.0, %v6787
      %v6789 = vpop.f32.mrf.mxu0
      %v6790 = vadd.f32 0.0, %v6789
      %6791 = vmatmul.bf16.gmra.mxu0 %v6637
      %v6792 = vpop.f32.mrf.mxu0
      %v6793 = vadd.f32 0.0, %v6792
      %v6794 = vpop.f32.mrf.mxu0
      %v6795 = vadd.f32 0.0, %v6794
      %6796 = vmatmul.bf16.gmra.mxu0 %v6741
      %v6797 = vpop.f32.mrf.mxu0
      %v6798 = vadd.f32 0.0, %v6797
      %v6799 = vpop.f32.mrf.mxu0
      %v6800 = vadd.f32 0.0, %v6799
      %6801 = vdwg.mxu0
      %v6802 = vadd.f32 %v6698, %v6753
      %v6803 = vadd.f32 %v6699, %v6755
      %v6804 = vadd.f32 %v6700, %v6758
      %v6805 = vadd.f32 %v6701, %v6760
      %v6806 = vadd.f32 %v6702, %v6763
      %v6807 = vadd.f32 %v6703, %v6765
      %v6808 = vadd.f32 %v6704, %v6768
      %v6809 = vadd.f32 %v6705, %v6770
      %v6810 = vadd.f32 %v6706, %v6773
      %v6811 = vadd.f32 %v6707, %v6775
      %v6812 = vadd.f32 %v6708, %v6778
      %v6813 = vadd.f32 %v6709, %v6780
      %v6814 = vadd.f32 %v6710, %v6783
      %v6815 = vadd.f32 %v6711, %v6785
      %v6816 = vadd.f32 %v6712, %v6788
      %v6817 = vadd.f32 %v6713, %v6790
      %v6818 = vadd.f32 %v6714, %v6793
      %v6819 = vadd.f32 %v6715, %v6795
      %v6820 = vadd.f32 %v6716, %v6798
      %v6821 = vadd.f32 %v6717, %v6800
      %v6822 = vld [vmem:[%s4] sm:$0x1]
      %v6824 = vperm.slane %v6822, 0
      %v6826 = vadd.f32 %v6802, %v6824
      %v6827 = vadd.f32 %v6803, %v6824
      %v6828 = vadd.f32 %v6804, %v6824
      %v6829 = vadd.f32 %v6805, %v6824
      %v6830 = vadd.f32 %v6806, %v6824
      %v6831 = vadd.f32 %v6807, %v6824
      %v6832 = vadd.f32 %v6808, %v6824
      %v6833 = vadd.f32 %v6809, %v6824
      %v6834 = vadd.f32 %v6810, %v6824
      %v6835 = vadd.f32 %v6811, %v6824
      %v6836 = vadd.f32 %v6812, %v6824
      %v6837 = vadd.f32 %v6813, %v6824
      %v6838 = vadd.f32 %v6814, %v6824
      %v6839 = vadd.f32 %v6815, %v6824
      %v6840 = vadd.f32 %v6816, %v6824
      %v6841 = vadd.f32 %v6817, %v6824
      %v6842 = vadd.f32 %v6818, %v6824
      %v6843 = vadd.f32 %v6819, %v6824
      %v6844 = vadd.f32 %v6820, %v6824
      %v6845 = vadd.f32 %v6821, %v6824
      %v6846 = vmax.f32 %v6826, %v6828
      %v6847 = vmax.f32 %v6827, %v6829
      %v6848 = vmax.f32 %v6830, %v6832
      %v6849 = vmax.f32 %v6831, %v6833
      %v6850 = vmax.f32 %v6834, %v6836
      %v6851 = vmax.f32 %v6835, %v6837
      %v6852 = vmax.f32 %v6838, %v6840
      %v6853 = vmax.f32 %v6839, %v6841
      %v6854 = vmax.f32 %v6842, %v6844
      %v6855 = vmax.f32 %v6843, %v6845
      %vm6856 = vcmask 523264
      %6857 = vst.msk [vmem:[#allocation3] sm:$0xff] %vm6856, %v6846
      %6858 = vst.msk [vmem:[#allocation3 + $0x8] sm:$0xff] %vm6856, %v6847
      %6859 = vst.msk [vmem:[#allocation3 + $0x10] sm:$0xff] %vm6856, %v6848
      %6860 = vst.msk [vmem:[#allocation3 + $0x18] sm:$0xff] %vm6856, %v6849
      %6861 = vst.msk [vmem:[#allocation3 + $0x20] sm:$0xff] %vm6856, %v6850
      %6862 = vst.msk [vmem:[#allocation3 + $0x28] sm:$0xff] %vm6856, %v6851
      %6863 = vst.msk [vmem:[#allocation3 + $0x30] sm:$0xff] %vm6856, %v6852
      %6864 = vst.msk [vmem:[#allocation3 + $0x38] sm:$0xff] %vm6856, %v6853
      %6865 = vst.msk [vmem:[#allocation3 + $0x40] sm:$0xff] %vm6856, %v6854
      %6866 = vst.msk [vmem:[#allocation3 + $0x48] sm:$0xff] %vm6856, %v6855
      %v6867 = vld [vmem:[#allocation3] ss:$2 sm:$0xff]
      %s6868 = scalar_lea.vmem [#allocation3], 16
      %v6869 = vld [vmem:[%s6868] ss:$2 sm:$0xff]
      %s6870 = scalar_lea.vmem [#allocation3], 32
      %v6871 = vld [vmem:[%s6870] ss:$2 sm:$0xff]
      %s6872 = scalar_lea.vmem [#allocation3], 48
      %v6873 = vld [vmem:[%s6872] ss:$2 sm:$0xff]
      %s6874 = scalar_lea.vmem [#allocation3], 64
      %v6875 = vld [vmem:[%s6874] ss:$2 sm:$0xff]
      %s6876 = scalar_lea.vmem [#allocation3], 1
      %v6877 = vld [vmem:[%s6876] ss:$2 sm:$0xff]
      %s6878 = scalar_lea.vmem [#allocation3], 17
      %v6879 = vld [vmem:[%s6878] ss:$2 sm:$0xff]
      %s6880 = scalar_lea.vmem [#allocation3], 33
      %v6881 = vld [vmem:[%s6880] ss:$2 sm:$0xff]
      %s6882 = scalar_lea.vmem [#allocation3], 49
      %v6883 = vld [vmem:[%s6882] ss:$2 sm:$0xff]
      %s6884 = scalar_lea.vmem [#allocation3], 65
      %v6885 = vld [vmem:[%s6884] ss:$2 sm:$0xff]
      %v6886 = vmax.f32 %v6867, %v6877
      %v6887 = vmax.f32 %v6869, %v6879
      %v6888 = vmax.f32 %v6871, %v6881
      %v6889 = vmax.f32 %v6873, %v6883
      %v6890 = vmax.f32 %v6875, %v6885
      %v6892 = vrot.slane %v6887, 3
      %v6895 = vrot.slane %v6888, 6
      %v6898 = vrot.slane %v6889, 1
      %v6901 = vrot.slane %v6890, 4
      %vm6903 = vcmask 1044480
      %v6904 = vsel %vm6903, %v6886, %v6892
      %vm6905 = vcmask 1041408
      %v6906 = vsel %vm6905, %v6892, %v6895
      %v6907 = vsel %vm941, %v6906, %v6898
      %vm6908 = vcmask 1043456
      %v6909 = vsel %vm6908, %v6898, %v6901
      %v6910 = vpack.c.bf16 %v6904, %v6904
      %v6911 = vpack.c.bf16 %v6907, %v6907
      %v6912 = vpack.c.bf16 %v6909, %v6909
      %v6913 = vpack.c.bf16 %v6901, %v6901
      %vm6914 = vcmask 519168
      %6915 = vst.msk [vmem:[%s224] sm:$0xf] %vm6914, %v6910
      %6916 = vst.msk [vmem:[%s224 + $0x4] sm:$0xf] %vm6914, %v6911
      %6917 = vst.msk [vmem:[%s224 + $0x8] sm:$0xf] %vm6914, %v6912
      %vm6918 = vcmask 516096
      %vm6919 = vsmask.f32 256
      %vm6920 = vmand %vm6918, %vm6919
      %v6921 = vld [vmem:[%s224 + $0xc] sm:$0x1]
      %v6922 = vsel %vm6920, %v6913, %v6921
      %6923 = vst [vmem:[%s224 + $0xc] sm:$0x1] %v6922
      %p6924 = scmp.lt.s32.totalorder %s16, 1
      %s6925 = scalar_select %p6924, %s16, 1
      %s6926 = smul.addr %s6925, 4
      %s6927 = smul.addr %s6926, 4
      %s6928 = scalar_lea.vmem %s5, %s6927
      // Predicated region
      $region41: #{cnn_forward.2} parent=39 // pred_check
        %p6929 = pneg %p144
      $region42: #{cnn_forward.2} parent=39 // pred_check_branch
        %6931 = sbr.rel (%p6929) target = $region44
      $region43: #{cnn_forward.2} parent=39 // pred_region
        _
      $region44: #{cnn_forward.2} parent=39 // pred_fallthru
        _
    $region40: #{cnn_forward.2} parent=5 // pred_fallthru
      _
    %p6932 = scmp.le.s32.totalorder 2, %s11
    // Predicated region
    $region45: #{cnn_forward.2} parent=5 // pred_check
      %p6933 = pneg %p6932
    $region46: #{cnn_forward.2} parent=5 // pred_check_branch
      %6935 = sbr.rel (%p6933) target = $region48
    $region47: #{cnn_forward.2} parent=5 // pred_region
      %s6936 = ssub.s32 %s11, 2
      // Predicated region
      $region49: #{cnn_forward.2} parent=47 // pred_check
        %p6937 = pneg %p150
      $region50: #{cnn_forward.2} parent=47 // pred_check_branch
        %6939 = sbr.rel (%p6937) target = $region52
      $region51: #{cnn_forward.2} parent=47 // pred_region
        %p6940 = scmp.lt.s32.totalorder %s17, 1
        %s6941 = scalar_select %p6940, %s17, 1
        %s6942 = smul.addr %s6941, 4
        %s6943 = smul.addr %s6942, 4
        %s6944 = scalar_lea.vmem %s5, %s6943
      $region52: #{cnn_forward.2} parent=47 // pred_fallthru
        _
    $region48: #{cnn_forward.2} parent=5 // pred_fallthru
      _
  $region6: #{cnn_forward.2} parent=0 // loop_footer
    %s15 = sadd.s32 1, %s11
  $region7: #{cnn_forward.2} parent=0 // loop_footer_branch
    %10 = sbr.rel target = $region3
  $region8: #{cnn_forward.2} parent=0 // loop_exit
    _

</llo_original>
